<compile_context>
chip_gen: v7x
topology: tpu7x:2x2x1
jax: 0.10.0
libtpu: 0.0.40
codegen_flags: <defaults>
</compile_context>

<pallas_src>
import jax
import jax.numpy as jnp
from jax.experimental import pallas as pl
from jax.experimental.pallas import tpu as pltpu


# ----------------------------------------------------------------------------
# Helpers
# ----------------------------------------------------------------------------
def _round_up(x, m):
    return (x + m - 1) // m * m


def _choose_tile_m(M, Kp, Cout, *, in_bytes=2, out_bytes=2,
                   budget_bytes=20 * 1024 * 1024):
    """Pick an M tile (multiple of 8, <=512) that keeps double-buffered tiles
    plus the resident weight/affine blocks inside the VMEM budget."""
    resident = Kp * Cout * in_bytes + 2 * Cout * 4
    per_row = 2 * (Kp * in_bytes + Cout * out_bytes)   # double-buffered in + out
    avail = max(budget_bytes - resident, per_row * 8)
    tm = (avail // per_row) // 8 * 8
    tm = int(max(8, min(512, tm)))
    tm = min(tm, _round_up(M, 8))
    return max(tm, 8)


# ----------------------------------------------------------------------------
# Pallas kernels
# ----------------------------------------------------------------------------
def _conv_bn_relu_kernel(p_ref, w_ref, scale_ref, shift_ref, o_ref):
    # p_ref: (TM, Kp) bf16 im2col patches, w_ref: (Kp, Cout) bf16 (resident).
    acc = jnp.dot(p_ref[...], w_ref[...], preferred_element_type=jnp.float32)
    y = acc * scale_ref[...] + shift_ref[...]              # f32 epilogue (v5e-safe)
    o_ref[...] = jnp.maximum(y, 0.0).astype(o_ref.dtype)   # ReLU, store bf16


def _pool_linear_kernel(h_ref, w_ref, b_ref, hsum_ref, adv_ref):
    # h_ref: (B, TS, C) spatial tile; hsum_ref: (B, C) f32 resident accumulator.
    s = pl.program_id(0)

    @pl.when(s == 0)
    def _():
        hsum_ref[...] = jnp.zeros_like(hsum_ref)

    hsum_ref[...] += jnp.sum(h_ref[...].astype(jnp.float32), axis=1)

    @pl.when(s == pl.num_programs(0) - 1)
    def _():
        adv = jnp.dot(hsum_ref[...], w_ref[...],
                      preferred_element_type=jnp.float32) + b_ref[...]
        adv_ref[...] = adv.astype(adv_ref.dtype)


# ----------------------------------------------------------------------------
# Wrappers
# ----------------------------------------------------------------------------
def conv_bn_relu(x_nhwc, w_oihw, b_conv, gamma, beta, mean, var,
                 *, stride, pad, eps=1e-5, out_dtype=jnp.bfloat16):
    """Conv2d(k,stride,pad) + BatchNorm(eval) + ReLU, GEMM done in Pallas."""
    B, H, W, C = x_nhwc.shape
    Cout, Cin, kh, kw = w_oihw.shape
    assert Cin == C

    xp = jnp.pad(x_nhwc, ((0, 0), (pad, pad), (pad, pad), (0, 0)))
    Hp, Wp = H + 2 * pad, W + 2 * pad
    Ho = (Hp - kh) // stride + 1
    Wo = (Wp - kw) // stride + 1

    # im2col (glue): patches[(b,ho,wo), (i*kw+j)*C + c]
    cols = []
    for i in range(kh):
        for j in range(kw):
            cols.append(xp[:, i:i + stride * Ho:stride, j:j + stride * Wo:stride, :])
    patches = jnp.stack(cols, axis=3).reshape(B * Ho * Wo, kh * kw * C)

    # weight (Cout, Cin, kh, kw) -> (kh*kw*Cin, Cout), index order matches patches
    w_mat = jnp.transpose(w_oihw, (2, 3, 1, 0)).reshape(kh * kw * Cin, Cout)

    # Zero-pad the contraction dim to a multiple of 128 (both sides -> exact).
    K = kh * kw * C
    Kp = _round_up(K, 128)
    if Kp != K:
        patches = jnp.pad(patches, ((0, 0), (0, Kp - K)))
        w_mat = jnp.pad(w_mat, ((0, Kp - K), (0, 0)))

    # bf16 MXU operands, f32 accumulation in-kernel.
    patches = patches.astype(jnp.bfloat16)
    w_mat = w_mat.astype(jnp.bfloat16)

    # Fold conv bias + eval-mode BN into per-channel affine (f32).
    scale = (gamma / jnp.sqrt(var + eps)).astype(jnp.float32)
    shift = (beta + (b_conv - mean) * scale).astype(jnp.float32)

    M = B * Ho * Wo
    out_bytes = jnp.dtype(out_dtype).itemsize
    TM = _choose_tile_m(M, Kp, Cout, out_bytes=out_bytes)
    Mp = _round_up(M, TM)
    if Mp != M:
        patches = jnp.pad(patches, ((0, Mp - M), (0, 0)))

    out = pl.pallas_call(
        _conv_bn_relu_kernel,
        out_shape=jax.ShapeDtypeStruct((Mp, Cout), out_dtype),
        grid=(Mp // TM,),
        in_specs=[
            pl.BlockSpec((TM, Kp), lambda i: (i, 0)),
            pl.BlockSpec((Kp, Cout), lambda i: (0, 0)),   # resident weights
            pl.BlockSpec((1, Cout), lambda i: (0, 0)),    # resident scale
            pl.BlockSpec((1, Cout), lambda i: (0, 0)),    # resident shift
        ],
        out_specs=pl.BlockSpec((TM, Cout), lambda i: (i, 0)),
        compiler_params=pltpu.CompilerParams(
            dimension_semantics=("parallel",),
            vmem_limit_bytes=32 * 1024 * 1024),
        cost_estimate=pl.CostEstimate(
            flops=2 * Mp * Kp * Cout,
            transcendentals=0,
            bytes_accessed=(Mp * Kp * 2 + Kp * Cout * 2
                            + Mp * Cout * out_bytes + 2 * Cout * 4)),
    )(patches, w_mat, scale.reshape(1, Cout), shift.reshape(1, Cout))

    out = out[:M]
    return out.reshape(B, Ho, Wo, Cout)


def global_sum_pool_linear(h_nhwc, w_lin, b_lin):
    """torch.sum(h, dim=[2,3]) + linear1, fused in one Pallas kernel tiled over
    the spatial reduction axis; Nout padded to 128 lanes for dense stores."""
    B, Ho, Wo, C = h_nhwc.shape
    Nout = w_lin.shape[0]                     # PyTorch linear weight is (out, in)
    NP = _round_up(max(Nout, 1), 128)

    S = Ho * Wo
    TS = min(512, _round_up(S, 8))
    Sp = _round_up(S, TS)
    hflat = h_nhwc.reshape(B, S, C)
    if Sp != S:
        hflat = jnp.pad(hflat, ((0, 0), (0, Sp - S), (0, 0)))  # zeros don't affect sum

    w_mat = jnp.zeros((C, NP), jnp.float32).at[:, :Nout].set(
        w_lin.T.astype(jnp.float32))
    b_vec = jnp.zeros((1, NP), jnp.float32).at[:, :Nout].set(
        b_lin.astype(jnp.float32).reshape(1, Nout))

    hsum, adv = pl.pallas_call(
        _pool_linear_kernel,
        out_shape=(
            jax.ShapeDtypeStruct((B, C), jnp.float32),
            jax.ShapeDtypeStruct((B, NP), jnp.float32),
        ),
        grid=(Sp // TS,),
        in_specs=[
            pl.BlockSpec((B, TS, C), lambda s: (0, s, 0)),
            pl.BlockSpec((C, NP), lambda s: (0, 0)),      # resident
            pl.BlockSpec((1, NP), lambda s: (0, 0)),      # resident
        ],
        out_specs=(
            pl.BlockSpec((B, C), lambda s: (0, 0)),       # resident f32 accumulator
            pl.BlockSpec((B, NP), lambda s: (0, 0)),
        ),
        compiler_params=pltpu.CompilerParams(
            dimension_semantics=("arbitrary",),
            vmem_limit_bytes=32 * 1024 * 1024),
        cost_estimate=pl.CostEstimate(
            flops=2 * B * Sp * C + 2 * B * C * NP,
            transcendentals=0,
            bytes_accessed=(B * Sp * C * hflat.dtype.itemsize
                            + C * NP * 4 + B * (C + NP) * 4)),
    )(hflat, w_mat, b_vec)
    return hsum, adv[:, :Nout]


# ----------------------------------------------------------------------------
# Parameter construction (deterministic, synthetic)
# ----------------------------------------------------------------------------
def make_params(key):
    # in_dims = [3, 64, 128], out_dims = [64, 128, 256]; top conv 256->512
    conv_defs = [
        ("b0c0", 3, 64, 3), ("b0c1", 64, 64, 4),
        ("b1c0", 64, 128, 3), ("b1c1", 128, 128, 4),
        ("b2c0", 128, 256, 3), ("b2c1", 256, 256, 4),
        ("top", 256, 512, 3),
    ]
    params = {}
    keys = jax.random.split(key, len(conv_defs) + 1)
    for (name, cin, cout, k), kk in zip(conv_defs, keys[:-1]):
        k1, k2, k3, k4, k5, k6 = jax.random.split(kk, 6)
        params[name] = dict(
            w=(jax.random.normal(k1, (cout, cin, k, k), jnp.float32) * 0.05),
            b=(jax.random.normal(k2, (cout,), jnp.float32) * 0.01),
            gamma=1.0 + 0.1 * jax.random.normal(k3, (cout,), jnp.float32),
            beta=0.1 * jax.random.normal(k4, (cout,), jnp.float32),
            mean=0.1 * jax.random.normal(k5, (cout,), jnp.float32),
            var=jnp.abs(1.0 + 0.1 * jax.random.normal(k6, (cout,), jnp.float32)),
        )
    kl1, kl2 = jax.random.split(keys[-1], 2)
    params["linear1"] = dict(
        w=jax.random.normal(kl1, (1, 512), jnp.float32) * 0.05,  # 'W/O' -> 1 output
        b=jax.random.normal(kl2, (1,), jnp.float32) * 0.01,
    )
    return params


# ----------------------------------------------------------------------------
# Forward pass (mirrors Discriminator.forward for W/O conditioning)
# ----------------------------------------------------------------------------
def discriminator_forward(params, x_nchw, label):
    # NCHW (PyTorch) -> NHWC (kernel layout)
    h = jnp.transpose(x_nchw, (0, 2, 3, 1)).astype(jnp.float32)

    # (name, stride, pad) — DiscBlock = conv0(3x3,s1,p1) then conv1(4x4,s2,p1)
    plan = [
        ("b0c0", 1, 1), ("b0c1", 2, 1),
        ("b1c0", 1, 1), ("b1c1", 2, 1),
        ("b2c0", 1, 1), ("b2c1", 2, 1),
        ("top", 1, 1),
    ]
    for name, stride, pad in plan:
        p = params[name]
        h = conv_bn_relu(h, p["w"], p["b"], p["gamma"], p["beta"], p["mean"],
                         p["var"], stride=stride, pad=pad)

    hsum, adv = global_sum_pool_linear(h, params["linear1"]["w"],
                                       params["linear1"]["b"])
    adv_output = jnp.squeeze(adv)  # (B,)

    return {
        "h": hsum,                 # (B, 512) — torch.sum(h, dim=[2,3])
        "adv_output": adv_output,  # (B,)
        "embed": None,
        "proxy": None,
        "cls_output": None,
        "label": label,
        "mi_embed": None,
        "mi_proxy": None,
        "mi_cls_output": None,
    }


if __name__ == "__main__":
    key = jax.random.PRNGKey(0)
    kp, kx, kl = jax.random.split(key, 3)

    params = make_params(kp)
    x = jax.random.normal(kx, (2, 3, 16, 16), jnp.float32)      # NCHW, like PyTorch
    label = jax.random.randint(kl, (2,), 0, 10)

    fwd = jax.jit(discriminator_forward)
    out = fwd(params, x, label)
    jax.block_until_ready(out["adv_output"])
    jax.block_until_ready(out["h"])

    assert out["h"].shape == (2, 512)
    assert out["adv_output"].shape == (2,)
    print("KERNEL_OK")
</pallas_src>

<mosaic_0001>
module attributes {stable_mosaic.version = 11 : i64} {
  func.func @_conv_bn_relu_kernel(%arg0: i32, %arg1: memref<512x128xbf16, #tpu.memory_space<vmem>>, %arg2: memref<128x64xbf16, #tpu.memory_space<vmem>>, %arg3: memref<1x64xf32, #tpu.memory_space<vmem>>, %arg4: memref<1x64xf32, #tpu.memory_space<vmem>>, %arg5: memref<512x64xbf16, #tpu.memory_space<vmem>>) attributes {dimension_semantics = [#tpu.dimension_semantics<parallel>], iteration_bounds = array<i64: 1>, scalar_prefetch = 0 : i64, scratch_operands = 0 : i64, tpu.core_type = #tpu.core_type<tc>, window_params = [{transform_indices = @transform_0, window_bounds = array<i64: 512, 128>}, {pipeline_mode = #tpu.pipeline_mode<synchronous>, transform_indices = @transform_1, window_bounds = array<i64: 128, 64>}, {pipeline_mode = #tpu.pipeline_mode<synchronous>, transform_indices = @transform_2, window_bounds = array<i64: 1, 64>}, {pipeline_mode = #tpu.pipeline_mode<synchronous>, transform_indices = @transform_3, window_bounds = array<i64: 1, 64>}, {transform_indices = @transform_4, window_bounds = array<i64: 512, 64>}]} {
    %c0 = arith.constant 0 : index
    %c0_0 = arith.constant 0 : index
    %0 = vector.load %arg1[%c0, %c0_0] : memref<512x128xbf16, #tpu.memory_space<vmem>>, vector<512x128xbf16>
    %c0_1 = arith.constant 0 : index
    %c0_2 = arith.constant 0 : index
    %1 = vector.load %arg2[%c0_1, %c0_2] : memref<128x64xbf16, #tpu.memory_space<vmem>>, vector<128x64xbf16>
    %cst = arith.constant dense<0.000000e+00> : vector<512x64xf32>
    %2 = tpu.matmul %0, %1, %cst {dimension_numbers = #tpu.dot_dimension_numbers<[1], [0], [0], [1], [0, 0, 1, 1], [], []>} : vector<512x128xbf16>, vector<128x64xbf16>, vector<512x64xf32> -> vector<512x64xf32>
    %c0_3 = arith.constant 0 : index
    %c0_4 = arith.constant 0 : index
    %3 = vector.load %arg3[%c0_3, %c0_4] : memref<1x64xf32, #tpu.memory_space<vmem>>, vector<1x64xf32>
    %4 = vector.broadcast %3 : vector<1x64xf32> to vector<512x64xf32>
    %5 = arith.mulf %2, %4 : vector<512x64xf32>
    %c0_5 = arith.constant 0 : index
    %c0_6 = arith.constant 0 : index
    %6 = vector.load %arg4[%c0_5, %c0_6] : memref<1x64xf32, #tpu.memory_space<vmem>>, vector<1x64xf32>
    %7 = vector.broadcast %6 : vector<1x64xf32> to vector<512x64xf32>
    %8 = arith.addf %5, %7 : vector<512x64xf32>
    %cst_7 = arith.constant 0.000000e+00 : f32
    %9 = vector.broadcast %cst_7 : f32 to vector<512x64xf32>
    %10 = arith.maximumf %8, %9 : vector<512x64xf32>
    %11 = arith.truncf %10 : vector<512x64xf32> to vector<512x64xbf16>
    %c0_8 = arith.constant 0 : index
    %c0_9 = arith.constant 0 : index
    %12 = vector.load %arg5[%c0_8, %c0_9] : memref<512x64xbf16, #tpu.memory_space<vmem>>, vector<512x64xbf16>
    tpu.vector_store %arg5[%c0_8, %c0_9], %11 {strides = array<i32>} : memref<512x64xbf16, #tpu.memory_space<vmem>>, vector<512x64xbf16>,
    return
  }
  func.func @transform_0(%arg0: i32) -> (i32, i32) {
    %c0_i32 = arith.constant 0 : i32
    %c0_i32_0 = arith.constant 0 : i32
    return %arg0, %c0_i32 : i32, i32
  }
  func.func @transform_1(%arg0: i32) -> (i32, i32) {
    %c0_i32 = arith.constant 0 : i32
    %c0_i32_0 = arith.constant 0 : i32
    %c0_i32_1 = arith.constant 0 : i32
    return %c0_i32, %c0_i32_0 : i32, i32
  }
  func.func @transform_2(%arg0: i32) -> (i32, i32) {
    %c0_i32 = arith.constant 0 : i32
    %c0_i32_0 = arith.constant 0 : i32
    %c0_i32_1 = arith.constant 0 : i32
    return %c0_i32, %c0_i32_0 : i32, i32
  }
  func.func @transform_3(%arg0: i32) -> (i32, i32) {
    %c0_i32 = arith.constant 0 : i32
    %c0_i32_0 = arith.constant 0 : i32
    %c0_i32_1 = arith.constant 0 : i32
    return %c0_i32, %c0_i32_0 : i32, i32
  }
  func.func @transform_4(%arg0: i32) -> (i32, i32) {
    %c0_i32 = arith.constant 0 : i32
    %c0_i32_0 = arith.constant 0 : i32
    return %arg0, %c0_i32 : i32, i32
  }
}

module attributes {stable_mosaic.version = 11 : i64} {
  func.func @_conv_bn_relu_kernel(%arg0: i32, %arg1: memref<128x1024xbf16, #tpu.memory_space<vmem>>, %arg2: memref<1024x64xbf16, #tpu.memory_space<vmem>>, %arg3: memref<1x64xf32, #tpu.memory_space<vmem>>, %arg4: memref<1x64xf32, #tpu.memory_space<vmem>>, %arg5: memref<128x64xbf16, #tpu.memory_space<vmem>>) attributes {dimension_semantics = [#tpu.dimension_semantics<parallel>], iteration_bounds = array<i64: 1>, scalar_prefetch = 0 : i64, scratch_operands = 0 : i64, tpu.core_type = #tpu.core_type<tc>, window_params = [{transform_indices = @transform_0, window_bounds = array<i64: 128, 1024>}, {pipeline_mode = #tpu.pipeline_mode<synchronous>, transform_indices = @transform_1, window_bounds = array<i64: 1024, 64>}, {pipeline_mode = #tpu.pipeline_mode<synchronous>, transform_indices = @transform_2, window_bounds = array<i64: 1, 64>}, {pipeline_mode = #tpu.pipeline_mode<synchronous>, transform_indices = @transform_3, window_bounds = array<i64: 1, 64>}, {transform_indices = @transform_4, window_bounds = array<i64: 128, 64>}]} {
    %c0 = arith.constant 0 : index
    %c0_0 = arith.constant 0 : index
    %0 = vector.load %arg1[%c0, %c0_0] : memref<128x1024xbf16, #tpu.memory_space<vmem>>, vector<128x1024xbf16>
    %c0_1 = arith.constant 0 : index
    %c0_2 = arith.constant 0 : index
    %1 = vector.load %arg2[%c0_1, %c0_2] : memref<1024x64xbf16, #tpu.memory_space<vmem>>, vector<1024x64xbf16>
    %cst = arith.constant dense<0.000000e+00> : vector<128x64xf32>
    %2 = tpu.matmul %0, %1, %cst {dimension_numbers = #tpu.dot_dimension_numbers<[1], [0], [0], [1], [0, 0, 1, 1], [], []>} : vector<128x1024xbf16>, vector<1024x64xbf16>, vector<128x64xf32> -> vector<128x64xf32>
    %c0_3 = arith.constant 0 : index
    %c0_4 = arith.constant 0 : index
    %3 = vector.load %arg3[%c0_3, %c0_4] : memref<1x64xf32, #tpu.memory_space<vmem>>, vector<1x64xf32>
    %4 = vector.broadcast %3 : vector<1x64xf32> to vector<128x64xf32>
    %5 = arith.mulf %2, %4 : vector<128x64xf32>
    %c0_5 = arith.constant 0 : index
    %c0_6 = arith.constant 0 : index
    %6 = vector.load %arg4[%c0_5, %c0_6] : memref<1x64xf32, #tpu.memory_space<vmem>>, vector<1x64xf32>
    %7 = vector.broadcast %6 : vector<1x64xf32> to vector<128x64xf32>
    %8 = arith.addf %5, %7 : vector<128x64xf32>
    %cst_7 = arith.constant 0.000000e+00 : f32
    %9 = vector.broadcast %cst_7 : f32 to vector<128x64xf32>
    %10 = arith.maximumf %8, %9 : vector<128x64xf32>
    %11 = arith.truncf %10 : vector<128x64xf32> to vector<128x64xbf16>
    %c0_8 = arith.constant 0 : index
    %c0_9 = arith.constant 0 : index
    %12 = vector.load %arg5[%c0_8, %c0_9] : memref<128x64xbf16, #tpu.memory_space<vmem>>, vector<128x64xbf16>
    tpu.vector_store %arg5[%c0_8, %c0_9], %11 {strides = array<i32>} : memref<128x64xbf16, #tpu.memory_space<vmem>>, vector<128x64xbf16>,
    return
  }
  func.func @transform_0(%arg0: i32) -> (i32, i32) {
    %c0_i32 = arith.constant 0 : i32
    %c0_i32_0 = arith.constant 0 : i32
    return %arg0, %c0_i32 : i32, i32
  }
  func.func @transform_1(%arg0: i32) -> (i32, i32) {
    %c0_i32 = arith.constant 0 : i32
    %c0_i32_0 = arith.constant 0 : i32
    %c0_i32_1 = arith.constant 0 : i32
    return %c0_i32, %c0_i32_0 : i32, i32
  }
  func.func @transform_2(%arg0: i32) -> (i32, i32) {
    %c0_i32 = arith.constant 0 : i32
    %c0_i32_0 = arith.constant 0 : i32
    %c0_i32_1 = arith.constant 0 : i32
    return %c0_i32, %c0_i32_0 : i32, i32
  }
  func.func @transform_3(%arg0: i32) -> (i32, i32) {
    %c0_i32 = arith.constant 0 : i32
    %c0_i32_0 = arith.constant 0 : i32
    %c0_i32_1 = arith.constant 0 : i32
    return %c0_i32, %c0_i32_0 : i32, i32
  }
  func.func @transform_4(%arg0: i32) -> (i32, i32) {
    %c0_i32 = arith.constant 0 : i32
    %c0_i32_0 = arith.constant 0 : i32
    return %arg0, %c0_i32 : i32, i32
  }
}

module attributes {stable_mosaic.version = 11 : i64} {
  func.func @_conv_bn_relu_kernel(%arg0: i32, %arg1: memref<128x640xbf16, #tpu.memory_space<vmem>>, %arg2: memref<640x128xbf16, #tpu.memory_space<vmem>>, %arg3: memref<1x128xf32, #tpu.memory_space<vmem>>, %arg4: memref<1x128xf32, #tpu.memory_space<vmem>>, %arg5: memref<128x128xbf16, #tpu.memory_space<vmem>>) attributes {dimension_semantics = [#tpu.dimension_semantics<parallel>], iteration_bounds = array<i64: 1>, scalar_prefetch = 0 : i64, scratch_operands = 0 : i64, tpu.core_type = #tpu.core_type<tc>, window_params = [{transform_indices = @transform_0, window_bounds = array<i64: 128, 640>}, {pipeline_mode = #tpu.pipeline_mode<synchronous>, transform_indices = @transform_1, window_bounds = array<i64: 640, 128>}, {pipeline_mode = #tpu.pipeline_mode<synchronous>, transform_indices = @transform_2, window_bounds = array<i64: 1, 128>}, {pipeline_mode = #tpu.pipeline_mode<synchronous>, transform_indices = @transform_3, window_bounds = array<i64: 1, 128>}, {transform_indices = @transform_4, window_bounds = array<i64: 128, 128>}]} {
    %c0 = arith.constant 0 : index
    %c0_0 = arith.constant 0 : index
    %0 = vector.load %arg1[%c0, %c0_0] : memref<128x640xbf16, #tpu.memory_space<vmem>>, vector<128x640xbf16>
    %c0_1 = arith.constant 0 : index
    %c0_2 = arith.constant 0 : index
    %1 = vector.load %arg2[%c0_1, %c0_2] : memref<640x128xbf16, #tpu.memory_space<vmem>>, vector<640x128xbf16>
    %cst = arith.constant dense<0.000000e+00> : vector<128x128xf32>
    %2 = tpu.matmul %0, %1, %cst {dimension_numbers = #tpu.dot_dimension_numbers<[1], [0], [0], [1], [0, 0, 1, 1], [], []>} : vector<128x640xbf16>, vector<640x128xbf16>, vector<128x128xf32> -> vector<128x128xf32>
    %c0_3 = arith.constant 0 : index
    %c0_4 = arith.constant 0 : index
    %3 = vector.load %arg3[%c0_3, %c0_4] : memref<1x128xf32, #tpu.memory_space<vmem>>, vector<1x128xf32>
    %4 = vector.broadcast %3 : vector<1x128xf32> to vector<128x128xf32>
    %5 = arith.mulf %2, %4 : vector<128x128xf32>
    %c0_5 = arith.constant 0 : index
    %c0_6 = arith.constant 0 : index
    %6 = vector.load %arg4[%c0_5, %c0_6] : memref<1x128xf32, #tpu.memory_space<vmem>>, vector<1x128xf32>
    %7 = vector.broadcast %6 : vector<1x128xf32> to vector<128x128xf32>
    %8 = arith.addf %5, %7 : vector<128x128xf32>
    %cst_7 = arith.constant 0.000000e+00 : f32
    %9 = vector.broadcast %cst_7 : f32 to vector<128x128xf32>
    %10 = arith.maximumf %8, %9 : vector<128x128xf32>
    %11 = arith.truncf %10 : vector<128x128xf32> to vector<128x128xbf16>
    %c0_8 = arith.constant 0 : index
    %c0_9 = arith.constant 0 : index
    %12 = vector.load %arg5[%c0_8, %c0_9] : memref<128x128xbf16, #tpu.memory_space<vmem>>, vector<128x128xbf16>
    tpu.vector_store %arg5[%c0_8, %c0_9], %11 {strides = array<i32>} : memref<128x128xbf16, #tpu.memory_space<vmem>>, vector<128x128xbf16>,
    return
  }
  func.func @transform_0(%arg0: i32) -> (i32, i32) {
    %c0_i32 = arith.constant 0 : i32
    %c0_i32_0 = arith.constant 0 : i32
    return %arg0, %c0_i32 : i32, i32
  }
  func.func @transform_1(%arg0: i32) -> (i32, i32) {
    %c0_i32 = arith.constant 0 : i32
    %c0_i32_0 = arith.constant 0 : i32
    %c0_i32_1 = arith.constant 0 : i32
    return %c0_i32, %c0_i32_0 : i32, i32
  }
  func.func @transform_2(%arg0: i32) -> (i32, i32) {
    %c0_i32 = arith.constant 0 : i32
    %c0_i32_0 = arith.constant 0 : i32
    %c0_i32_1 = arith.constant 0 : i32
    return %c0_i32, %c0_i32_0 : i32, i32
  }
  func.func @transform_3(%arg0: i32) -> (i32, i32) {
    %c0_i32 = arith.constant 0 : i32
    %c0_i32_0 = arith.constant 0 : i32
    %c0_i32_1 = arith.constant 0 : i32
    return %c0_i32, %c0_i32_0 : i32, i32
  }
  func.func @transform_4(%arg0: i32) -> (i32, i32) {
    %c0_i32 = arith.constant 0 : i32
    %c0_i32_0 = arith.constant 0 : i32
    return %arg0, %c0_i32 : i32, i32
  }
}

module attributes {stable_mosaic.version = 11 : i64} {
  func.func @_conv_bn_relu_kernel(%arg0: i32, %arg1: memref<32x2048xbf16, #tpu.memory_space<vmem>>, %arg2: memref<2048x128xbf16, #tpu.memory_space<vmem>>, %arg3: memref<1x128xf32, #tpu.memory_space<vmem>>, %arg4: memref<1x128xf32, #tpu.memory_space<vmem>>, %arg5: memref<32x128xbf16, #tpu.memory_space<vmem>>) attributes {dimension_semantics = [#tpu.dimension_semantics<parallel>], iteration_bounds = array<i64: 1>, scalar_prefetch = 0 : i64, scratch_operands = 0 : i64, tpu.core_type = #tpu.core_type<tc>, window_params = [{transform_indices = @transform_0, window_bounds = array<i64: 32, 2048>}, {pipeline_mode = #tpu.pipeline_mode<synchronous>, transform_indices = @transform_1, window_bounds = array<i64: 2048, 128>}, {pipeline_mode = #tpu.pipeline_mode<synchronous>, transform_indices = @transform_2, window_bounds = array<i64: 1, 128>}, {pipeline_mode = #tpu.pipeline_mode<synchronous>, transform_indices = @transform_3, window_bounds = array<i64: 1, 128>}, {transform_indices = @transform_4, window_bounds = array<i64: 32, 128>}]} {
    %c0 = arith.constant 0 : index
    %c0_0 = arith.constant 0 : index
    %0 = vector.load %arg1[%c0, %c0_0] : memref<32x2048xbf16, #tpu.memory_space<vmem>>, vector<32x2048xbf16>
    %c0_1 = arith.constant 0 : index
    %c0_2 = arith.constant 0 : index
    %1 = vector.load %arg2[%c0_1, %c0_2] : memref<2048x128xbf16, #tpu.memory_space<vmem>>, vector<2048x128xbf16>
    %cst = arith.constant dense<0.000000e+00> : vector<32x128xf32>
    %2 = tpu.matmul %0, %1, %cst {dimension_numbers = #tpu.dot_dimension_numbers<[1], [0], [0], [1], [0, 0, 1, 1], [], []>} : vector<32x2048xbf16>, vector<2048x128xbf16>, vector<32x128xf32> -> vector<32x128xf32>
    %c0_3 = arith.constant 0 : index
    %c0_4 = arith.constant 0 : index
    %3 = vector.load %arg3[%c0_3, %c0_4] : memref<1x128xf32, #tpu.memory_space<vmem>>, vector<1x128xf32>
    %4 = vector.broadcast %3 : vector<1x128xf32> to vector<32x128xf32>
    %5 = arith.mulf %2, %4 : vector<32x128xf32>
    %c0_5 = arith.constant 0 : index
    %c0_6 = arith.constant 0 : index
    %6 = vector.load %arg4[%c0_5, %c0_6] : memref<1x128xf32, #tpu.memory_space<vmem>>, vector<1x128xf32>
    %7 = vector.broadcast %6 : vector<1x128xf32> to vector<32x128xf32>
    %8 = arith.addf %5, %7 : vector<32x128xf32>
    %cst_7 = arith.constant 0.000000e+00 : f32
    %9 = vector.broadcast %cst_7 : f32 to vector<32x128xf32>
    %10 = arith.maximumf %8, %9 : vector<32x128xf32>
    %11 = arith.truncf %10 : vector<32x128xf32> to vector<32x128xbf16>
    %c0_8 = arith.constant 0 : index
    %c0_9 = arith.constant 0 : index
    %12 = vector.load %arg5[%c0_8, %c0_9] : memref<32x128xbf16, #tpu.memory_space<vmem>>, vector<32x128xbf16>
    tpu.vector_store %arg5[%c0_8, %c0_9], %11 {strides = array<i32>} : memref<32x128xbf16, #tpu.memory_space<vmem>>, vector<32x128xbf16>,
    return
  }
  func.func @transform_0(%arg0: i32) -> (i32, i32) {
    %c0_i32 = arith.constant 0 : i32
    %c0_i32_0 = arith.constant 0 : i32
    return %arg0, %c0_i32 : i32, i32
  }
  func.func @transform_1(%arg0: i32) -> (i32, i32) {
    %c0_i32 = arith.constant 0 : i32
    %c0_i32_0 = arith.constant 0 : i32
    %c0_i32_1 = arith.constant 0 : i32
    return %c0_i32, %c0_i32_0 : i32, i32
  }
  func.func @transform_2(%arg0: i32) -> (i32, i32) {
    %c0_i32 = arith.constant 0 : i32
    %c0_i32_0 = arith.constant 0 : i32
    %c0_i32_1 = arith.constant 0 : i32
    return %c0_i32, %c0_i32_0 : i32, i32
  }
  func.func @transform_3(%arg0: i32) -> (i32, i32) {
    %c0_i32 = arith.constant 0 : i32
    %c0_i32_0 = arith.constant 0 : i32
    %c0_i32_1 = arith.constant 0 : i32
    return %c0_i32, %c0_i32_0 : i32, i32
  }
  func.func @transform_4(%arg0: i32) -> (i32, i32) {
    %c0_i32 = arith.constant 0 : i32
    %c0_i32_0 = arith.constant 0 : i32
    return %arg0, %c0_i32 : i32, i32
  }
}

module attributes {stable_mosaic.version = 11 : i64} {
  func.func @_conv_bn_relu_kernel(%arg0: i32, %arg1: memref<32x1152xbf16, #tpu.memory_space<vmem>>, %arg2: memref<1152x256xbf16, #tpu.memory_space<vmem>>, %arg3: memref<1x256xf32, #tpu.memory_space<vmem>>, %arg4: memref<1x256xf32, #tpu.memory_space<vmem>>, %arg5: memref<32x256xbf16, #tpu.memory_space<vmem>>) attributes {dimension_semantics = [#tpu.dimension_semantics<parallel>], iteration_bounds = array<i64: 1>, scalar_prefetch = 0 : i64, scratch_operands = 0 : i64, tpu.core_type = #tpu.core_type<tc>, window_params = [{transform_indices = @transform_0, window_bounds = array<i64: 32, 1152>}, {pipeline_mode = #tpu.pipeline_mode<synchronous>, transform_indices = @transform_1, window_bounds = array<i64: 1152, 256>}, {pipeline_mode = #tpu.pipeline_mode<synchronous>, transform_indices = @transform_2, window_bounds = array<i64: 1, 256>}, {pipeline_mode = #tpu.pipeline_mode<synchronous>, transform_indices = @transform_3, window_bounds = array<i64: 1, 256>}, {transform_indices = @transform_4, window_bounds = array<i64: 32, 256>}]} {
    %c0 = arith.constant 0 : index
    %c0_0 = arith.constant 0 : index
    %0 = vector.load %arg1[%c0, %c0_0] : memref<32x1152xbf16, #tpu.memory_space<vmem>>, vector<32x1152xbf16>
    %c0_1 = arith.constant 0 : index
    %c0_2 = arith.constant 0 : index
    %1 = vector.load %arg2[%c0_1, %c0_2] : memref<1152x256xbf16, #tpu.memory_space<vmem>>, vector<1152x256xbf16>
    %cst = arith.constant dense<0.000000e+00> : vector<32x256xf32>
    %2 = tpu.matmul %0, %1, %cst {dimension_numbers = #tpu.dot_dimension_numbers<[1], [0], [0], [1], [0, 0, 1, 1], [], []>} : vector<32x1152xbf16>, vector<1152x256xbf16>, vector<32x256xf32> -> vector<32x256xf32>
    %c0_3 = arith.constant 0 : index
    %c0_4 = arith.constant 0 : index
    %3 = vector.load %arg3[%c0_3, %c0_4] : memref<1x256xf32, #tpu.memory_space<vmem>>, vector<1x256xf32>
    %4 = vector.broadcast %3 : vector<1x256xf32> to vector<32x256xf32>
    %5 = arith.mulf %2, %4 : vector<32x256xf32>
    %c0_5 = arith.constant 0 : index
    %c0_6 = arith.constant 0 : index
    %6 = vector.load %arg4[%c0_5, %c0_6] : memref<1x256xf32, #tpu.memory_space<vmem>>, vector<1x256xf32>
    %7 = vector.broadcast %6 : vector<1x256xf32> to vector<32x256xf32>
    %8 = arith.addf %5, %7 : vector<32x256xf32>
    %cst_7 = arith.constant 0.000000e+00 : f32
    %9 = vector.broadcast %cst_7 : f32 to vector<32x256xf32>
    %10 = arith.maximumf %8, %9 : vector<32x256xf32>
    %11 = arith.truncf %10 : vector<32x256xf32> to vector<32x256xbf16>
    %c0_8 = arith.constant 0 : index
    %c0_9 = arith.constant 0 : index
    %12 = vector.load %arg5[%c0_8, %c0_9] : memref<32x256xbf16, #tpu.memory_space<vmem>>, vector<32x256xbf16>
    tpu.vector_store %arg5[%c0_8, %c0_9], %11 {strides = array<i32>} : memref<32x256xbf16, #tpu.memory_space<vmem>>, vector<32x256xbf16>,
    return
  }
  func.func @transform_0(%arg0: i32) -> (i32, i32) {
    %c0_i32 = arith.constant 0 : i32
    %c0_i32_0 = arith.constant 0 : i32
    return %arg0, %c0_i32 : i32, i32
  }
  func.func @transform_1(%arg0: i32) -> (i32, i32) {
    %c0_i32 = arith.constant 0 : i32
    %c0_i32_0 = arith.constant 0 : i32
    %c0_i32_1 = arith.constant 0 : i32
    return %c0_i32, %c0_i32_0 : i32, i32
  }
  func.func @transform_2(%arg0: i32) -> (i32, i32) {
    %c0_i32 = arith.constant 0 : i32
    %c0_i32_0 = arith.constant 0 : i32
    %c0_i32_1 = arith.constant 0 : i32
    return %c0_i32, %c0_i32_0 : i32, i32
  }
  func.func @transform_3(%arg0: i32) -> (i32, i32) {
    %c0_i32 = arith.constant 0 : i32
    %c0_i32_0 = arith.constant 0 : i32
    %c0_i32_1 = arith.constant 0 : i32
    return %c0_i32, %c0_i32_0 : i32, i32
  }
  func.func @transform_4(%arg0: i32) -> (i32, i32) {
    %c0_i32 = arith.constant 0 : i32
    %c0_i32_0 = arith.constant 0 : i32
    return %arg0, %c0_i32 : i32, i32
  }
}

module attributes {stable_mosaic.version = 11 : i64} {
  func.func @_conv_bn_relu_kernel(%arg0: i32, %arg1: memref<8x4096xbf16, #tpu.memory_space<vmem>>, %arg2: memref<4096x256xbf16, #tpu.memory_space<vmem>>, %arg3: memref<1x256xf32, #tpu.memory_space<vmem>>, %arg4: memref<1x256xf32, #tpu.memory_space<vmem>>, %arg5: memref<8x256xbf16, #tpu.memory_space<vmem>>) attributes {dimension_semantics = [#tpu.dimension_semantics<parallel>], iteration_bounds = array<i64: 1>, scalar_prefetch = 0 : i64, scratch_operands = 0 : i64, tpu.core_type = #tpu.core_type<tc>, window_params = [{transform_indices = @transform_0, window_bounds = array<i64: 8, 4096>}, {pipeline_mode = #tpu.pipeline_mode<synchronous>, transform_indices = @transform_1, window_bounds = array<i64: 4096, 256>}, {pipeline_mode = #tpu.pipeline_mode<synchronous>, transform_indices = @transform_2, window_bounds = array<i64: 1, 256>}, {pipeline_mode = #tpu.pipeline_mode<synchronous>, transform_indices = @transform_3, window_bounds = array<i64: 1, 256>}, {transform_indices = @transform_4, window_bounds = array<i64: 8, 256>}]} {
    %c0 = arith.constant 0 : index
    %c0_0 = arith.constant 0 : index
    %0 = vector.load %arg1[%c0, %c0_0] : memref<8x4096xbf16, #tpu.memory_space<vmem>>, vector<8x4096xbf16>
    %c0_1 = arith.constant 0 : index
    %c0_2 = arith.constant 0 : index
    %1 = vector.load %arg2[%c0_1, %c0_2] : memref<4096x256xbf16, #tpu.memory_space<vmem>>, vector<4096x256xbf16>
    %cst = arith.constant dense<0.000000e+00> : vector<8x256xf32>
    %2 = tpu.matmul %0, %1, %cst {dimension_numbers = #tpu.dot_dimension_numbers<[1], [0], [0], [1], [0, 0, 1, 1], [], []>} : vector<8x4096xbf16>, vector<4096x256xbf16>, vector<8x256xf32> -> vector<8x256xf32>
    %c0_3 = arith.constant 0 : index
    %c0_4 = arith.constant 0 : index
    %3 = vector.load %arg3[%c0_3, %c0_4] : memref<1x256xf32, #tpu.memory_space<vmem>>, vector<1x256xf32>
    %4 = vector.broadcast %3 : vector<1x256xf32> to vector<8x256xf32>
    %5 = arith.mulf %2, %4 : vector<8x256xf32>
    %c0_5 = arith.constant 0 : index
    %c0_6 = arith.constant 0 : index
    %6 = vector.load %arg4[%c0_5, %c0_6] : memref<1x256xf32, #tpu.memory_space<vmem>>, vector<1x256xf32>
    %7 = vector.broadcast %6 : vector<1x256xf32> to vector<8x256xf32>
    %8 = arith.addf %5, %7 : vector<8x256xf32>
    %cst_7 = arith.constant 0.000000e+00 : f32
    %9 = vector.broadcast %cst_7 : f32 to vector<8x256xf32>
    %10 = arith.maximumf %8, %9 : vector<8x256xf32>
    %11 = arith.truncf %10 : vector<8x256xf32> to vector<8x256xbf16>
    %c0_8 = arith.constant 0 : index
    %c0_9 = arith.constant 0 : index
    %12 = vector.load %arg5[%c0_8, %c0_9] : memref<8x256xbf16, #tpu.memory_space<vmem>>, vector<8x256xbf16>
    tpu.vector_store %arg5[%c0_8, %c0_9], %11 {strides = array<i32>} : memref<8x256xbf16, #tpu.memory_space<vmem>>, vector<8x256xbf16>,
    return
  }
  func.func @transform_0(%arg0: i32) -> (i32, i32) {
    %c0_i32 = arith.constant 0 : i32
    %c0_i32_0 = arith.constant 0 : i32
    return %arg0, %c0_i32 : i32, i32
  }
  func.func @transform_1(%arg0: i32) -> (i32, i32) {
    %c0_i32 = arith.constant 0 : i32
    %c0_i32_0 = arith.constant 0 : i32
    %c0_i32_1 = arith.constant 0 : i32
    return %c0_i32, %c0_i32_0 : i32, i32
  }
  func.func @transform_2(%arg0: i32) -> (i32, i32) {
    %c0_i32 = arith.constant 0 : i32
    %c0_i32_0 = arith.constant 0 : i32
    %c0_i32_1 = arith.constant 0 : i32
    return %c0_i32, %c0_i32_0 : i32, i32
  }
  func.func @transform_3(%arg0: i32) -> (i32, i32) {
    %c0_i32 = arith.constant 0 : i32
    %c0_i32_0 = arith.constant 0 : i32
    %c0_i32_1 = arith.constant 0 : i32
    return %c0_i32, %c0_i32_0 : i32, i32
  }
  func.func @transform_4(%arg0: i32) -> (i32, i32) {
    %c0_i32 = arith.constant 0 : i32
    %c0_i32_0 = arith.constant 0 : i32
    return %arg0, %c0_i32 : i32, i32
  }
}

module attributes {stable_mosaic.version = 11 : i64} {
  func.func @_conv_bn_relu_kernel(%arg0: i32, %arg1: memref<8x2304xbf16, #tpu.memory_space<vmem>>, %arg2: memref<2304x512xbf16, #tpu.memory_space<vmem>>, %arg3: memref<1x512xf32, #tpu.memory_space<vmem>>, %arg4: memref<1x512xf32, #tpu.memory_space<vmem>>, %arg5: memref<8x512xbf16, #tpu.memory_space<vmem>>) attributes {dimension_semantics = [#tpu.dimension_semantics<parallel>], iteration_bounds = array<i64: 1>, scalar_prefetch = 0 : i64, scratch_operands = 0 : i64, tpu.core_type = #tpu.core_type<tc>, window_params = [{transform_indices = @transform_0, window_bounds = array<i64: 8, 2304>}, {pipeline_mode = #tpu.pipeline_mode<synchronous>, transform_indices = @transform_1, window_bounds = array<i64: 2304, 512>}, {pipeline_mode = #tpu.pipeline_mode<synchronous>, transform_indices = @transform_2, window_bounds = array<i64: 1, 512>}, {pipeline_mode = #tpu.pipeline_mode<synchronous>, transform_indices = @transform_3, window_bounds = array<i64: 1, 512>}, {transform_indices = @transform_4, window_bounds = array<i64: 8, 512>}]} {
    %c0 = arith.constant 0 : index
    %c0_0 = arith.constant 0 : index
    %0 = vector.load %arg1[%c0, %c0_0] : memref<8x2304xbf16, #tpu.memory_space<vmem>>, vector<8x2304xbf16>
    %c0_1 = arith.constant 0 : index
    %c0_2 = arith.constant 0 : index
    %1 = vector.load %arg2[%c0_1, %c0_2] : memref<2304x512xbf16, #tpu.memory_space<vmem>>, vector<2304x512xbf16>
    %cst = arith.constant dense<0.000000e+00> : vector<8x512xf32>
    %2 = tpu.matmul %0, %1, %cst {dimension_numbers = #tpu.dot_dimension_numbers<[1], [0], [0], [1], [0, 0, 1, 1], [], []>} : vector<8x2304xbf16>, vector<2304x512xbf16>, vector<8x512xf32> -> vector<8x512xf32>
    %c0_3 = arith.constant 0 : index
    %c0_4 = arith.constant 0 : index
    %3 = vector.load %arg3[%c0_3, %c0_4] : memref<1x512xf32, #tpu.memory_space<vmem>>, vector<1x512xf32>
    %4 = vector.broadcast %3 : vector<1x512xf32> to vector<8x512xf32>
    %5 = arith.mulf %2, %4 : vector<8x512xf32>
    %c0_5 = arith.constant 0 : index
    %c0_6 = arith.constant 0 : index
    %6 = vector.load %arg4[%c0_5, %c0_6] : memref<1x512xf32, #tpu.memory_space<vmem>>, vector<1x512xf32>
    %7 = vector.broadcast %6 : vector<1x512xf32> to vector<8x512xf32>
    %8 = arith.addf %5, %7 : vector<8x512xf32>
    %cst_7 = arith.constant 0.000000e+00 : f32
    %9 = vector.broadcast %cst_7 : f32 to vector<8x512xf32>
    %10 = arith.maximumf %8, %9 : vector<8x512xf32>
    %11 = arith.truncf %10 : vector<8x512xf32> to vector<8x512xbf16>
    %c0_8 = arith.constant 0 : index
    %c0_9 = arith.constant 0 : index
    %12 = vector.load %arg5[%c0_8, %c0_9] : memref<8x512xbf16, #tpu.memory_space<vmem>>, vector<8x512xbf16>
    tpu.vector_store %arg5[%c0_8, %c0_9], %11 {strides = array<i32>} : memref<8x512xbf16, #tpu.memory_space<vmem>>, vector<8x512xbf16>,
    return
  }
  func.func @transform_0(%arg0: i32) -> (i32, i32) {
    %c0_i32 = arith.constant 0 : i32
    %c0_i32_0 = arith.constant 0 : i32
    return %arg0, %c0_i32 : i32, i32
  }
  func.func @transform_1(%arg0: i32) -> (i32, i32) {
    %c0_i32 = arith.constant 0 : i32
    %c0_i32_0 = arith.constant 0 : i32
    %c0_i32_1 = arith.constant 0 : i32
    return %c0_i32, %c0_i32_0 : i32, i32
  }
  func.func @transform_2(%arg0: i32) -> (i32, i32) {
    %c0_i32 = arith.constant 0 : i32
    %c0_i32_0 = arith.constant 0 : i32
    %c0_i32_1 = arith.constant 0 : i32
    return %c0_i32, %c0_i32_0 : i32, i32
  }
  func.func @transform_3(%arg0: i32) -> (i32, i32) {
    %c0_i32 = arith.constant 0 : i32
    %c0_i32_0 = arith.constant 0 : i32
    %c0_i32_1 = arith.constant 0 : i32
    return %c0_i32, %c0_i32_0 : i32, i32
  }
  func.func @transform_4(%arg0: i32) -> (i32, i32) {
    %c0_i32 = arith.constant 0 : i32
    %c0_i32_0 = arith.constant 0 : i32
    return %arg0, %c0_i32 : i32, i32
  }
}

module attributes {stable_mosaic.version = 11 : i64} {
  func.func @_pool_linear_kernel(%arg0: i32, %arg1: memref<2x8x512xbf16, #tpu.memory_space<vmem>>, %arg2: memref<512x128xf32, #tpu.memory_space<vmem>>, %arg3: memref<1x128xf32, #tpu.memory_space<vmem>>, %arg4: memref<2x512xf32, #tpu.memory_space<vmem>>, %arg5: memref<2x128xf32, #tpu.memory_space<vmem>>) attributes {dimension_semantics = [#tpu.dimension_semantics<arbitrary>], iteration_bounds = array<i64: 1>, scalar_prefetch = 0 : i64, scratch_operands = 0 : i64, tpu.core_type = #tpu.core_type<tc>, window_params = [{transform_indices = @transform_0, window_bounds = array<i64: 2, 8, 512>}, {pipeline_mode = #tpu.pipeline_mode<synchronous>, transform_indices = @transform_1, window_bounds = array<i64: 512, 128>}, {pipeline_mode = #tpu.pipeline_mode<synchronous>, transform_indices = @transform_2, window_bounds = array<i64: 1, 128>}, {pipeline_mode = #tpu.pipeline_mode<synchronous>, transform_indices = @transform_3, window_bounds = array<i64: 2, 512>}, {pipeline_mode = #tpu.pipeline_mode<synchronous>, transform_indices = @transform_4, window_bounds = array<i64: 2, 128>}]} {
    %c0_i32 = arith.constant 0 : i32
    %0 = arith.cmpi eq, %arg0, %c0_i32 : i32
    %1 = arith.extui %0 : i1 to i32
    %c0_i32_0 = arith.constant 0 : i32
    %2 = arith.cmpi ne, %1, %c0_i32_0 : i32
    scf.if %2 {
      %cst_9 = arith.constant 0.000000e+00 : f32
      %12 = vector.broadcast %cst_9 : f32 to vector<2x512xf32>
      %c0_10 = arith.constant 0 : index
      %c0_11 = arith.constant 0 : index
      %13 = vector.load %arg4[%c0_10, %c0_11] : memref<2x512xf32, #tpu.memory_space<vmem>>, vector<2x512xf32>
      tpu.vector_store %arg4[%c0_10, %c0_11], %12 {strides = array<i32>} : memref<2x512xf32, #tpu.memory_space<vmem>>, vector<2x512xf32>,
    } else {
    }
    %c0 = arith.constant 0 : index
    %c0_1 = arith.constant 0 : index
    %3 = vector.load %arg4[%c0, %c0_1] : memref<2x512xf32, #tpu.memory_space<vmem>>, vector<2x512xf32>
    %c0_2 = arith.constant 0 : index
    %c0_3 = arith.constant 0 : index
    %c0_4 = arith.constant 0 : index
    %4 = vector.load %arg1[%c0_2, %c0_3, %c0_4] : memref<2x8x512xbf16, #tpu.memory_space<vmem>>, vector<2x8x512xbf16>
    %5 = arith.extf %4 : vector<2x8x512xbf16> to vector<2x8x512xf32>
    %cst = arith.constant dense<0.000000e+00> : vector<2x512xf32>
    %6 = vector.multi_reduction <add>, %5, %cst [1] : vector<2x8x512xf32> to vector<2x512xf32>
    %7 = arith.addf %3, %6 : vector<2x512xf32>
    %c0_5 = arith.constant 0 : index
    %c0_6 = arith.constant 0 : index
    %8 = vector.load %arg4[%c0_5, %c0_6] : memref<2x512xf32, #tpu.memory_space<vmem>>, vector<2x512xf32>
    tpu.vector_store %arg4[%c0_5, %c0_6], %7 {strides = array<i32>} : memref<2x512xf32, #tpu.memory_space<vmem>>, vector<2x512xf32>,
    %c0_i32_7 = arith.constant 0 : i32
    %9 = arith.cmpi eq, %arg0, %c0_i32_7 : i32
    %10 = arith.extui %9 : i1 to i32
    %c0_i32_8 = arith.constant 0 : i32
    %11 = arith.cmpi ne, %10, %c0_i32_8 : i32
    scf.if %11 {
      %c0_9 = arith.constant 0 : index
      %c0_10 = arith.constant 0 : index
      %12 = vector.load %arg4[%c0_9, %c0_10] : memref<2x512xf32, #tpu.memory_space<vmem>>, vector<2x512xf32>
      %c0_11 = arith.constant 0 : index
      %c0_12 = arith.constant 0 : index
      %13 = vector.load %arg2[%c0_11, %c0_12] : memref<512x128xf32, #tpu.memory_space<vmem>>, vector<512x128xf32>
      %cst_13 = arith.constant dense<0.000000e+00> : vector<2x128xf32>
      %14 = tpu.matmul %12, %13, %cst_13 {dimension_numbers = #tpu.dot_dimension_numbers<[1], [0], [0], [1], [0, 0, 1, 1], [], []>} : vector<2x512xf32>, vector<512x128xf32>, vector<2x128xf32> -> vector<2x128xf32>
      %c0_14 = arith.constant 0 : index
      %c0_15 = arith.constant 0 : index
      %15 = vector.load %arg3[%c0_14, %c0_15] : memref<1x128xf32, #tpu.memory_space<vmem>>, vector<1x128xf32>
      %16 = vector.broadcast %15 : vector<1x128xf32> to vector<2x128xf32>
      %17 = arith.addf %14, %16 : vector<2x128xf32>
      %c0_16 = arith.constant 0 : index
      %c0_17 = arith.constant 0 : index
      %18 = vector.load %arg5[%c0_16, %c0_17] : memref<2x128xf32, #tpu.memory_space<vmem>>, vector<2x128xf32>
      tpu.vector_store %arg5[%c0_16, %c0_17], %17 {strides = array<i32>} : memref<2x128xf32, #tpu.memory_space<vmem>>, vector<2x128xf32>,
    } else {
    }
    return
  }
  func.func @transform_0(%arg0: i32) -> (i32, i32, i32) {
    %c0_i32 = arith.constant 0 : i32
    %c0_i32_0 = arith.constant 0 : i32
    %c0_i32_1 = arith.constant 0 : i32
    return %c0_i32, %arg0, %c0_i32_0 : i32, i32, i32
  }
  func.func @transform_1(%arg0: i32) -> (i32, i32) {
    %c0_i32 = arith.constant 0 : i32
    %c0_i32_0 = arith.constant 0 : i32
    %c0_i32_1 = arith.constant 0 : i32
    return %c0_i32, %c0_i32_0 : i32, i32
  }
  func.func @transform_2(%arg0: i32) -> (i32, i32) {
    %c0_i32 = arith.constant 0 : i32
    %c0_i32_0 = arith.constant 0 : i32
    %c0_i32_1 = arith.constant 0 : i32
    return %c0_i32, %c0_i32_0 : i32, i32
  }
  func.func @transform_3(%arg0: i32) -> (i32, i32) {
    %c0_i32 = arith.constant 0 : i32
    %c0_i32_0 = arith.constant 0 : i32
    %c0_i32_1 = arith.constant 0 : i32
    return %c0_i32, %c0_i32_0 : i32, i32
  }
  func.func @transform_4(%arg0: i32) -> (i32, i32) {
    %c0_i32 = arith.constant 0 : i32
    %c0_i32_0 = arith.constant 0 : i32
    %c0_i32_1 = arith.constant 0 : i32
    return %c0_i32, %c0_i32_0 : i32, i32
  }
}

</mosaic_0001>

<llo_original>
// kernel: discriminator_forward.8
$region0: #{discriminator_forward.8}
  #allocation0 [shape = 'u32[]', space=smem, size = 0x4, offset = 0x4, fixed_abs, tag = 'smem constant byte address 0x4 - core index']
  #allocation1 [shape = 'u32[144,128]{1,0:T(1,128)}', space=vmem, size = 0x12000, scoped, tag = 'internal scratch']
  %s0 = inlined_call_operand.vmem [shape: bf16[512,128], index: 0, kind: input, shape index: {}]
  %s1 = inlined_call_operand.vmem [shape: bf16[128,64], index: 1, kind: input, shape index: {}]
  %s2 = inlined_call_operand.vmem [shape: f32[1,64], index: 2, kind: input, shape index: {}]
  %s3 = inlined_call_operand.vmem [shape: f32[1,64], index: 3, kind: input, shape index: {}]
  %s4 = inlined_call_operand.vmem [shape: bf16[512,64], index: 4, kind: output, shape index: {}]
  %s5 = sld [smem:[#allocation0]]
  $region26: #{discriminator_forward.8} parent=0
    _
  %s7 = ssub.s32 1, %s5
  %s8 = scalar_select 0, %s7, %s5
  // Predicated region
  $region2: #{discriminator_forward.8} parent=0 // pred_check
    _
  $region3: #{discriminator_forward.8} parent=0 // pred_check_branch
    %10 = sbr.rel (0) target = $region5
  $region4: #{discriminator_forward.8} parent=0 // pred_region
    _
  $region5: #{discriminator_forward.8} parent=0 // pred_fallthru
    _
  // Predicated region
  $region6: #{discriminator_forward.8} parent=0 // pred_check
    _
  $region7: #{discriminator_forward.8} parent=0 // pred_check_branch
    %12 = sbr.rel (0) target = $region9
  $region8: #{discriminator_forward.8} parent=0 // pred_region
    _
  $region9: #{discriminator_forward.8} parent=0 // pred_fallthru
    _
  // Predicated region
  $region10: #{discriminator_forward.8} parent=0 // pred_check
    _
  $region11: #{discriminator_forward.8} parent=0 // pred_check_branch
    %14 = sbr.rel (0) target = $region13
  $region12: #{discriminator_forward.8} parent=0 // pred_region
    _
  $region13: #{discriminator_forward.8} parent=0 // pred_fallthru
    _
  // Predicated region
  $region14: #{discriminator_forward.8} parent=0 // pred_check
    _
  $region15: #{discriminator_forward.8} parent=0 // pred_check_branch
    %16 = sbr.rel (0) target = $region17
  $region16: #{discriminator_forward.8} parent=0 // pred_region
    _
  $region17: #{discriminator_forward.8} parent=0 // pred_fallthru
    _
  %v18 = vld [vmem:[%s0] sm:$0xf]
  %v19 = vld [vmem:[%s0 + $0x4] sm:$0xf]
  %v20 = vld [vmem:[%s0 + $0x8] sm:$0xf]
  %v21 = vld [vmem:[%s0 + $0xc] sm:$0xf]
  %v22 = vld [vmem:[%s0 + $0x10] sm:$0xf]
  %v23 = vld [vmem:[%s0 + $0x14] sm:$0xf]
  %v24 = vld [vmem:[%s0 + $0x18] sm:$0xf]
  %v25 = vld [vmem:[%s0 + $0x1c] sm:$0xf]
  %v26 = vld [vmem:[%s0 + $0x20] sm:$0xf]
  %v27 = vld [vmem:[%s0 + $0x24] sm:$0xf]
  %v28 = vld [vmem:[%s0 + $0x28] sm:$0xf]
  %v29 = vld [vmem:[%s0 + $0x2c] sm:$0xf]
  %v30 = vld [vmem:[%s0 + $0x30] sm:$0xf]
  %v31 = vld [vmem:[%s0 + $0x34] sm:$0xf]
  %v32 = vld [vmem:[%s0 + $0x38] sm:$0xf]
  %v33 = vld [vmem:[%s0 + $0x3c] sm:$0xf]
  %v34 = vld [vmem:[%s0 + $0x40] sm:$0xf]
  %v35 = vld [vmem:[%s0 + $0x44] sm:$0xf]
  %v36 = vld [vmem:[%s0 + $0x48] sm:$0xf]
  %v37 = vld [vmem:[%s0 + $0x4c] sm:$0xf]
  %v38 = vld [vmem:[%s0 + $0x50] sm:$0xf]
  %v39 = vld [vmem:[%s0 + $0x54] sm:$0xf]
  %v40 = vld [vmem:[%s0 + $0x58] sm:$0xf]
  %v41 = vld [vmem:[%s0 + $0x5c] sm:$0xf]
  %v42 = vld [vmem:[%s0 + $0x60] sm:$0xf]
  %v43 = vld [vmem:[%s0 + $0x64] sm:$0xf]
  %v44 = vld [vmem:[%s0 + $0x68] sm:$0xf]
  %v45 = vld [vmem:[%s0 + $0x6c] sm:$0xf]
  %v46 = vld [vmem:[%s0 + $0x70] sm:$0xf]
  %v47 = vld [vmem:[%s0 + $0x74] sm:$0xf]
  %v48 = vld [vmem:[%s0 + $0x78] sm:$0xf]
  %v49 = vld [vmem:[%s0 + $0x7c] sm:$0xf]
  %v50 = vld [vmem:[%s0 + $0x80] sm:$0xf]
  %v51 = vld [vmem:[%s0 + $0x84] sm:$0xf]
  %v52 = vld [vmem:[%s0 + $0x88] sm:$0xf]
  %v53 = vld [vmem:[%s0 + $0x8c] sm:$0xf]
  %v54 = vld [vmem:[%s0 + $0x90] sm:$0xf]
  %v55 = vld [vmem:[%s0 + $0x94] sm:$0xf]
  %v56 = vld [vmem:[%s0 + $0x98] sm:$0xf]
  %v57 = vld [vmem:[%s0 + $0x9c] sm:$0xf]
  %v58 = vld [vmem:[%s0 + $0xa0] sm:$0xf]
  %v59 = vld [vmem:[%s0 + $0xa4] sm:$0xf]
  %v60 = vld [vmem:[%s0 + $0xa8] sm:$0xf]
  %v61 = vld [vmem:[%s0 + $0xac] sm:$0xf]
  %v62 = vld [vmem:[%s0 + $0xb0] sm:$0xf]
  %v63 = vld [vmem:[%s0 + $0xb4] sm:$0xf]
  %v64 = vld [vmem:[%s0 + $0xb8] sm:$0xf]
  %v65 = vld [vmem:[%s0 + $0xbc] sm:$0xf]
  %v66 = vld [vmem:[%s0 + $0xc0] sm:$0xf]
  %v67 = vld [vmem:[%s0 + $0xc4] sm:$0xf]
  %v68 = vld [vmem:[%s0 + $0xc8] sm:$0xf]
  %v69 = vld [vmem:[%s0 + $0xcc] sm:$0xf]
  %v70 = vld [vmem:[%s0 + $0xd0] sm:$0xf]
  %v71 = vld [vmem:[%s0 + $0xd4] sm:$0xf]
  %v72 = vld [vmem:[%s0 + $0xd8] sm:$0xf]
  %v73 = vld [vmem:[%s0 + $0xdc] sm:$0xf]
  %v74 = vld [vmem:[%s0 + $0xe0] sm:$0xf]
  %v75 = vld [vmem:[%s0 + $0xe4] sm:$0xf]
  %v76 = vld [vmem:[%s0 + $0xe8] sm:$0xf]
  %v77 = vld [vmem:[%s0 + $0xec] sm:$0xf]
  %v78 = vld [vmem:[%s0 + $0xf0] sm:$0xf]
  %v79 = vld [vmem:[%s0 + $0xf4] sm:$0xf]
  %v80 = vld [vmem:[%s0 + $0xf8] sm:$0xf]
  %v81 = vld [vmem:[%s0 + $0xfc] sm:$0xf]
  %v82 = vld [vmem:[%s1] sm:$0xf]
  %v83 = vld [vmem:[%s1 + $0x4] sm:$0xf]
  %v84 = vld [vmem:[%s1 + $0x8] sm:$0xf]
  %v85 = vld [vmem:[%s1 + $0xc] sm:$0xf]
  %v86 = vld [vmem:[%s1 + $0x10] sm:$0xf]
  %v87 = vld [vmem:[%s1 + $0x14] sm:$0xf]
  %v88 = vld [vmem:[%s1 + $0x18] sm:$0xf]
  %v89 = vld [vmem:[%s1 + $0x1c] sm:$0xf]
  %v90 = vld [vmem:[%s1 + $0x20] sm:$0xf]
  %v91 = vld [vmem:[%s1 + $0x24] sm:$0xf]
  %v92 = vld [vmem:[%s1 + $0x28] sm:$0xf]
  %v93 = vld [vmem:[%s1 + $0x2c] sm:$0xf]
  %v94 = vld [vmem:[%s1 + $0x30] sm:$0xf]
  %v95 = vld [vmem:[%s1 + $0x34] sm:$0xf]
  %v96 = vld [vmem:[%s1 + $0x38] sm:$0xf]
  %v97 = vld [vmem:[%s1 + $0x3c] sm:$0xf]
  %v162 = vunpack.c.l.b16 %v18
  %v163 = vunpack.c.l.b16 %v19
  %v164 = vunpack.c.l.b16 %v20
  %v165 = vunpack.c.l.b16 %v21
  %v166 = vunpack.c.l.b16 %v22
  %v167 = vunpack.c.l.b16 %v23
  %v168 = vunpack.c.l.b16 %v24
  %v169 = vunpack.c.l.b16 %v25
  %v170 = vunpack.c.l.b16 %v26
  %v171 = vunpack.c.l.b16 %v27
  %v172 = vunpack.c.l.b16 %v28
  %v173 = vunpack.c.l.b16 %v29
  %v174 = vunpack.c.l.b16 %v30
  %v175 = vunpack.c.l.b16 %v31
  %v176 = vunpack.c.l.b16 %v32
  %v177 = vunpack.c.l.b16 %v33
  %v178 = vunpack.c.l.b16 %v34
  %v179 = vunpack.c.l.b16 %v35
  %v180 = vunpack.c.l.b16 %v36
  %v181 = vunpack.c.l.b16 %v37
  %v182 = vunpack.c.l.b16 %v38
  %v183 = vunpack.c.l.b16 %v39
  %v184 = vunpack.c.l.b16 %v40
  %v185 = vunpack.c.l.b16 %v41
  %v186 = vunpack.c.l.b16 %v42
  %v187 = vunpack.c.l.b16 %v43
  %v188 = vunpack.c.l.b16 %v44
  %v189 = vunpack.c.l.b16 %v45
  %v190 = vunpack.c.l.b16 %v46
  %v191 = vunpack.c.l.b16 %v47
  %v192 = vunpack.c.l.b16 %v48
  %v193 = vunpack.c.l.b16 %v49
  %v194 = vunpack.c.l.b16 %v50
  %v195 = vunpack.c.l.b16 %v51
  %v196 = vunpack.c.l.b16 %v52
  %v197 = vunpack.c.l.b16 %v53
  %v198 = vunpack.c.l.b16 %v54
  %v199 = vunpack.c.l.b16 %v55
  %v200 = vunpack.c.l.b16 %v56
  %v201 = vunpack.c.l.b16 %v57
  %v202 = vunpack.c.l.b16 %v58
  %v203 = vunpack.c.l.b16 %v59
  %v204 = vunpack.c.l.b16 %v60
  %v205 = vunpack.c.l.b16 %v61
  %v206 = vunpack.c.l.b16 %v62
  %v207 = vunpack.c.l.b16 %v63
  %v208 = vunpack.c.l.b16 %v64
  %v209 = vunpack.c.l.b16 %v65
  %v210 = vunpack.c.l.b16 %v66
  %v211 = vunpack.c.l.b16 %v67
  %v212 = vunpack.c.l.b16 %v68
  %v213 = vunpack.c.l.b16 %v69
  %v214 = vunpack.c.l.b16 %v70
  %v215 = vunpack.c.l.b16 %v71
  %v216 = vunpack.c.l.b16 %v72
  %v217 = vunpack.c.l.b16 %v73
  %v218 = vunpack.c.l.b16 %v74
  %v219 = vunpack.c.l.b16 %v75
  %v220 = vunpack.c.l.b16 %v76
  %v221 = vunpack.c.l.b16 %v77
  %v222 = vunpack.c.l.b16 %v78
  %v223 = vunpack.c.l.b16 %v79
  %v224 = vunpack.c.l.b16 %v80
  %v225 = vunpack.c.l.b16 %v81
  %v226 = vpack.c.b16 %v163, %v162
  %v227 = vpack.c.b16 %v165, %v164
  %v228 = vpack.c.b16 %v167, %v166
  %v229 = vpack.c.b16 %v169, %v168
  %v230 = vpack.c.b16 %v171, %v170
  %v231 = vpack.c.b16 %v173, %v172
  %v232 = vpack.c.b16 %v175, %v174
  %v233 = vpack.c.b16 %v177, %v176
  %v234 = vpack.c.b16 %v179, %v178
  %v235 = vpack.c.b16 %v181, %v180
  %v236 = vpack.c.b16 %v183, %v182
  %v237 = vpack.c.b16 %v185, %v184
  %v238 = vpack.c.b16 %v187, %v186
  %v239 = vpack.c.b16 %v189, %v188
  %v240 = vpack.c.b16 %v191, %v190
  %v241 = vpack.c.b16 %v193, %v192
  %v242 = vpack.c.b16 %v195, %v194
  %v243 = vpack.c.b16 %v197, %v196
  %v244 = vpack.c.b16 %v199, %v198
  %v245 = vpack.c.b16 %v201, %v200
  %v246 = vpack.c.b16 %v203, %v202
  %v247 = vpack.c.b16 %v205, %v204
  %v248 = vpack.c.b16 %v207, %v206
  %v249 = vpack.c.b16 %v209, %v208
  %v250 = vpack.c.b16 %v211, %v210
  %v251 = vpack.c.b16 %v213, %v212
  %v252 = vpack.c.b16 %v215, %v214
  %v253 = vpack.c.b16 %v217, %v216
  %v254 = vpack.c.b16 %v219, %v218
  %v255 = vpack.c.b16 %v221, %v220
  %v256 = vpack.c.b16 %v223, %v222
  %v257 = vpack.c.b16 %v225, %v224
  %v306 = vunpack.c.l.b16 %v82
  %v307 = vunpack.c.l.b16 %v83
  %v308 = vunpack.c.l.b16 %v84
  %v309 = vunpack.c.l.b16 %v85
  %v310 = vunpack.c.l.b16 %v86
  %v311 = vunpack.c.l.b16 %v87
  %v312 = vunpack.c.l.b16 %v88
  %v313 = vunpack.c.l.b16 %v89
  %v314 = vunpack.c.l.b16 %v90
  %v315 = vunpack.c.l.b16 %v91
  %v316 = vunpack.c.l.b16 %v92
  %v317 = vunpack.c.l.b16 %v93
  %v318 = vunpack.c.l.b16 %v94
  %v319 = vunpack.c.l.b16 %v95
  %v320 = vunpack.c.l.b16 %v96
  %v321 = vunpack.c.l.b16 %v97
  %v322 = vpack.c.b16 %v307, %v306
  %v323 = vpack.c.b16 %v309, %v308
  %v324 = vpack.c.b16 %v311, %v310
  %v325 = vpack.c.b16 %v313, %v312
  %v326 = vpack.c.b16 %v315, %v314
  %v327 = vpack.c.b16 %v317, %v316
  %v328 = vpack.c.b16 %v319, %v318
  %v329 = vpack.c.b16 %v321, %v320
  %338 = vmatprep.subr.bf16.mxu0 0
  %339 = vmatpush1.bf16.msra.mxu0 %v322
  %340 = vmatprep.subr.bf16.mxu0 0
  %341 = vmatpush1.bf16.msra.mxu0 %v323
  %342 = vmatprep.subr.bf16.mxu0 0
  %343 = vmatpush1.bf16.msra.mxu0 %v324
  %344 = vmatprep.subr.bf16.mxu0 0
  %345 = vmatpush1.bf16.msra.mxu0 %v325
  %346 = vmatprep.subr.bf16.mxu0 0
  %347 = vmatpush1.bf16.msra.mxu0 %v326
  %348 = vmatprep.subr.bf16.mxu0 0
  %349 = vmatpush1.bf16.msra.mxu0 %v327
  %350 = vmatprep.subr.bf16.mxu0 0
  %351 = vmatpush1.bf16.msra.mxu0 %v328
  %352 = vmatprep.subr.bf16.mxu0 0
  %353 = vmatpush1.bf16.msra.mxu0 %v329
  %354 = vmatprep.subr.bf16.mxu0 0
  %355 = vmatpush1.bf16.msra.mxu0 0
  %356 = vmatprep.subr.bf16.mxu0 0
  %357 = vmatpush1.bf16.msra.mxu0 0
  %358 = vmatprep.subr.bf16.mxu0 0
  %359 = vmatpush1.bf16.msra.mxu0 0
  %360 = vmatprep.subr.bf16.mxu0 0
  %361 = vmatpush1.bf16.msra.mxu0 0
  %362 = vmatprep.subr.bf16.mxu0 0
  %363 = vmatpush1.bf16.msra.mxu0 0
  %364 = vmatprep.subr.bf16.mxu0 0
  %365 = vmatpush1.bf16.msra.mxu0 0
  %366 = vmatprep.subr.bf16.mxu0 0
  %367 = vmatpush1.bf16.msra.mxu0 0
  %368 = vmatprep.subr.bf16.mxu0 0
  %369 = vmatpush1.bf16.msra.mxu0 0
  %370 = vmatprep.mubr.bf16.mxu0 0
  %371 = vmatmul.mubr.bf16.gmra.mrb[0].mxu0 %v226
  %v372 = vpop.f32.mrb[0].mxu0
  %v373 = vadd.f32 0.0, %v372
  %v374 = vpop.f32.mrb[0].mxu0
  %v375 = vpop.f32.mrb[0].mxu0
  %v376 = vadd.f32 0.0, %v375
  %v377 = vpop.f32.mrb[0].mxu0
  %378 = vmatprep.mubr.bf16.mxu0 0
  %379 = vmatmul.mubr.bf16.gmra.mrb[0].mxu0 %v227
  %v380 = vpop.f32.mrb[0].mxu0
  %v381 = vadd.f32 0.0, %v380
  %v382 = vpop.f32.mrb[0].mxu0
  %v383 = vpop.f32.mrb[0].mxu0
  %v384 = vadd.f32 0.0, %v383
  %v385 = vpop.f32.mrb[0].mxu0
  %386 = vmatprep.mubr.bf16.mxu0 0
  %387 = vmatmul.mubr.bf16.gmra.mrb[0].mxu0 %v228
  %v388 = vpop.f32.mrb[0].mxu0
  %v389 = vadd.f32 0.0, %v388
  %v390 = vpop.f32.mrb[0].mxu0
  %v391 = vpop.f32.mrb[0].mxu0
  %v392 = vadd.f32 0.0, %v391
  %v393 = vpop.f32.mrb[0].mxu0
  %394 = vmatprep.mubr.bf16.mxu0 0
  %395 = vmatmul.mubr.bf16.gmra.mrb[0].mxu0 %v229
  %v396 = vpop.f32.mrb[0].mxu0
  %v397 = vadd.f32 0.0, %v396
  %v398 = vpop.f32.mrb[0].mxu0
  %v399 = vpop.f32.mrb[0].mxu0
  %v400 = vadd.f32 0.0, %v399
  %v401 = vpop.f32.mrb[0].mxu0
  %402 = vmatprep.mubr.bf16.mxu0 0
  %403 = vmatmul.mubr.bf16.gmra.mrb[0].mxu0 %v230
  %v404 = vpop.f32.mrb[0].mxu0
  %v405 = vadd.f32 0.0, %v404
  %v406 = vpop.f32.mrb[0].mxu0
  %v407 = vpop.f32.mrb[0].mxu0
  %v408 = vadd.f32 0.0, %v407
  %v409 = vpop.f32.mrb[0].mxu0
  %410 = vmatprep.mubr.bf16.mxu0 0
  %411 = vmatmul.mubr.bf16.gmra.mrb[0].mxu0 %v231
  %v412 = vpop.f32.mrb[0].mxu0
  %v413 = vadd.f32 0.0, %v412
  %v414 = vpop.f32.mrb[0].mxu0
  %v415 = vpop.f32.mrb[0].mxu0
  %v416 = vadd.f32 0.0, %v415
  %v417 = vpop.f32.mrb[0].mxu0
  %418 = vmatprep.mubr.bf16.mxu0 0
  %419 = vmatmul.mubr.bf16.gmra.mrb[0].mxu0 %v232
  %v420 = vpop.f32.mrb[0].mxu0
  %v421 = vadd.f32 0.0, %v420
  %v422 = vpop.f32.mrb[0].mxu0
  %v423 = vpop.f32.mrb[0].mxu0
  %v424 = vadd.f32 0.0, %v423
  %v425 = vpop.f32.mrb[0].mxu0
  %426 = vmatprep.mubr.bf16.mxu0 0
  %427 = vmatmul.mubr.bf16.gmra.mrb[0].mxu0 %v233
  %v428 = vpop.f32.mrb[0].mxu0
  %v429 = vadd.f32 0.0, %v428
  %v430 = vpop.f32.mrb[0].mxu0
  %v431 = vpop.f32.mrb[0].mxu0
  %v432 = vadd.f32 0.0, %v431
  %v433 = vpop.f32.mrb[0].mxu0
  %434 = vmatprep.mubr.bf16.mxu0 0
  %435 = vmatmul.mubr.bf16.gmra.mrb[0].mxu0 %v234
  %v436 = vpop.f32.mrb[0].mxu0
  %v437 = vadd.f32 0.0, %v436
  %v438 = vpop.f32.mrb[0].mxu0
  %v439 = vpop.f32.mrb[0].mxu0
  %v440 = vadd.f32 0.0, %v439
  %v441 = vpop.f32.mrb[0].mxu0
  %442 = vmatprep.mubr.bf16.mxu0 0
  %443 = vmatmul.mubr.bf16.gmra.mrb[0].mxu0 %v235
  %v444 = vpop.f32.mrb[0].mxu0
  %v445 = vadd.f32 0.0, %v444
  %v446 = vpop.f32.mrb[0].mxu0
  %v447 = vpop.f32.mrb[0].mxu0
  %v448 = vadd.f32 0.0, %v447
  %v449 = vpop.f32.mrb[0].mxu0
  %450 = vmatprep.mubr.bf16.mxu0 0
  %451 = vmatmul.mubr.bf16.gmra.mrb[0].mxu0 %v236
  %v452 = vpop.f32.mrb[0].mxu0
  %v453 = vadd.f32 0.0, %v452
  %v454 = vpop.f32.mrb[0].mxu0
  %v455 = vpop.f32.mrb[0].mxu0
  %v456 = vadd.f32 0.0, %v455
  %v457 = vpop.f32.mrb[0].mxu0
  %458 = vmatprep.mubr.bf16.mxu0 0
  %459 = vmatmul.mubr.bf16.gmra.mrb[0].mxu0 %v237
  %v460 = vpop.f32.mrb[0].mxu0
  %v461 = vadd.f32 0.0, %v460
  %v462 = vpop.f32.mrb[0].mxu0
  %v463 = vpop.f32.mrb[0].mxu0
  %v464 = vadd.f32 0.0, %v463
  %v465 = vpop.f32.mrb[0].mxu0
  %466 = vmatprep.mubr.bf16.mxu0 0
  %467 = vmatmul.mubr.bf16.gmra.mrb[0].mxu0 %v238
  %v468 = vpop.f32.mrb[0].mxu0
  %v469 = vadd.f32 0.0, %v468
  %v470 = vpop.f32.mrb[0].mxu0
  %v471 = vpop.f32.mrb[0].mxu0
  %v472 = vadd.f32 0.0, %v471
  %v473 = vpop.f32.mrb[0].mxu0
  %474 = vmatprep.mubr.bf16.mxu0 0
  %475 = vmatmul.mubr.bf16.gmra.mrb[0].mxu0 %v239
  %v476 = vpop.f32.mrb[0].mxu0
  %v477 = vadd.f32 0.0, %v476
  %v478 = vpop.f32.mrb[0].mxu0
  %v479 = vpop.f32.mrb[0].mxu0
  %v480 = vadd.f32 0.0, %v479
  %v481 = vpop.f32.mrb[0].mxu0
  %482 = vmatprep.mubr.bf16.mxu0 0
  %483 = vmatmul.mubr.bf16.gmra.mrb[0].mxu0 %v240
  %v484 = vpop.f32.mrb[0].mxu0
  %v485 = vadd.f32 0.0, %v484
  %v486 = vpop.f32.mrb[0].mxu0
  %v487 = vpop.f32.mrb[0].mxu0
  %v488 = vadd.f32 0.0, %v487
  %v489 = vpop.f32.mrb[0].mxu0
  %490 = vmatprep.mubr.bf16.mxu0 0
  %491 = vmatmul.mubr.bf16.gmra.mrb[0].mxu0 %v241
  %v492 = vpop.f32.mrb[0].mxu0
  %v493 = vadd.f32 0.0, %v492
  %v494 = vpop.f32.mrb[0].mxu0
  %v495 = vpop.f32.mrb[0].mxu0
  %v496 = vadd.f32 0.0, %v495
  %v497 = vpop.f32.mrb[0].mxu0
  %498 = vmatprep.mubr.bf16.mxu0 0
  %499 = vmatmul.mubr.bf16.gmra.mrb[0].mxu0 %v242
  %v500 = vpop.f32.mrb[0].mxu0
  %v501 = vadd.f32 0.0, %v500
  %v502 = vpop.f32.mrb[0].mxu0
  %v503 = vpop.f32.mrb[0].mxu0
  %v504 = vadd.f32 0.0, %v503
  %v505 = vpop.f32.mrb[0].mxu0
  %506 = vmatprep.mubr.bf16.mxu0 0
  %507 = vmatmul.mubr.bf16.gmra.mrb[0].mxu0 %v243
  %v508 = vpop.f32.mrb[0].mxu0
  %v509 = vadd.f32 0.0, %v508
  %v510 = vpop.f32.mrb[0].mxu0
  %v511 = vpop.f32.mrb[0].mxu0
  %v512 = vadd.f32 0.0, %v511
  %v513 = vpop.f32.mrb[0].mxu0
  %514 = vmatprep.mubr.bf16.mxu0 0
  %515 = vmatmul.mubr.bf16.gmra.mrb[0].mxu0 %v244
  %v516 = vpop.f32.mrb[0].mxu0
  %v517 = vadd.f32 0.0, %v516
  %v518 = vpop.f32.mrb[0].mxu0
  %v519 = vpop.f32.mrb[0].mxu0
  %v520 = vadd.f32 0.0, %v519
  %v521 = vpop.f32.mrb[0].mxu0
  %522 = vmatprep.mubr.bf16.mxu0 0
  %523 = vmatmul.mubr.bf16.gmra.mrb[0].mxu0 %v245
  %v524 = vpop.f32.mrb[0].mxu0
  %v525 = vadd.f32 0.0, %v524
  %v526 = vpop.f32.mrb[0].mxu0
  %v527 = vpop.f32.mrb[0].mxu0
  %v528 = vadd.f32 0.0, %v527
  %v529 = vpop.f32.mrb[0].mxu0
  %530 = vmatprep.mubr.bf16.mxu0 0
  %531 = vmatmul.mubr.bf16.gmra.mrb[0].mxu0 %v246
  %v532 = vpop.f32.mrb[0].mxu0
  %v533 = vadd.f32 0.0, %v532
  %v534 = vpop.f32.mrb[0].mxu0
  %v535 = vpop.f32.mrb[0].mxu0
  %v536 = vadd.f32 0.0, %v535
  %v537 = vpop.f32.mrb[0].mxu0
  %538 = vmatprep.mubr.bf16.mxu0 0
  %539 = vmatmul.mubr.bf16.gmra.mrb[0].mxu0 %v247
  %v540 = vpop.f32.mrb[0].mxu0
  %v541 = vadd.f32 0.0, %v540
  %v542 = vpop.f32.mrb[0].mxu0
  %v543 = vpop.f32.mrb[0].mxu0
  %v544 = vadd.f32 0.0, %v543
  %v545 = vpop.f32.mrb[0].mxu0
  %546 = vmatprep.mubr.bf16.mxu0 0
  %547 = vmatmul.mubr.bf16.gmra.mrb[0].mxu0 %v248
  %v548 = vpop.f32.mrb[0].mxu0
  %v549 = vadd.f32 0.0, %v548
  %v550 = vpop.f32.mrb[0].mxu0
  %v551 = vpop.f32.mrb[0].mxu0
  %v552 = vadd.f32 0.0, %v551
  %v553 = vpop.f32.mrb[0].mxu0
  %554 = vmatprep.mubr.bf16.mxu0 0
  %555 = vmatmul.mubr.bf16.gmra.mrb[0].mxu0 %v249
  %v556 = vpop.f32.mrb[0].mxu0
  %v557 = vadd.f32 0.0, %v556
  %v558 = vpop.f32.mrb[0].mxu0
  %v559 = vpop.f32.mrb[0].mxu0
  %v560 = vadd.f32 0.0, %v559
  %v561 = vpop.f32.mrb[0].mxu0
  %562 = vmatprep.mubr.bf16.mxu0 0
  %563 = vmatmul.mubr.bf16.gmra.mrb[0].mxu0 %v250
  %v564 = vpop.f32.mrb[0].mxu0
  %v565 = vadd.f32 0.0, %v564
  %v566 = vpop.f32.mrb[0].mxu0
  %v567 = vpop.f32.mrb[0].mxu0
  %v568 = vadd.f32 0.0, %v567
  %v569 = vpop.f32.mrb[0].mxu0
  %570 = vmatprep.mubr.bf16.mxu0 0
  %571 = vmatmul.mubr.bf16.gmra.mrb[0].mxu0 %v251
  %v572 = vpop.f32.mrb[0].mxu0
  %v573 = vadd.f32 0.0, %v572
  %v574 = vpop.f32.mrb[0].mxu0
  %v575 = vpop.f32.mrb[0].mxu0
  %v576 = vadd.f32 0.0, %v575
  %v577 = vpop.f32.mrb[0].mxu0
  %578 = vmatprep.mubr.bf16.mxu0 0
  %579 = vmatmul.mubr.bf16.gmra.mrb[0].mxu0 %v252
  %v580 = vpop.f32.mrb[0].mxu0
  %v581 = vadd.f32 0.0, %v580
  %v582 = vpop.f32.mrb[0].mxu0
  %v583 = vpop.f32.mrb[0].mxu0
  %v584 = vadd.f32 0.0, %v583
  %v585 = vpop.f32.mrb[0].mxu0
  %586 = vmatprep.mubr.bf16.mxu0 0
  %587 = vmatmul.mubr.bf16.gmra.mrb[0].mxu0 %v253
  %v588 = vpop.f32.mrb[0].mxu0
  %v589 = vadd.f32 0.0, %v588
  %v590 = vpop.f32.mrb[0].mxu0
  %v591 = vpop.f32.mrb[0].mxu0
  %v592 = vadd.f32 0.0, %v591
  %v593 = vpop.f32.mrb[0].mxu0
  %594 = vmatprep.mubr.bf16.mxu0 0
  %595 = vmatmul.mubr.bf16.gmra.mrb[0].mxu0 %v254
  %v596 = vpop.f32.mrb[0].mxu0
  %v597 = vadd.f32 0.0, %v596
  %v598 = vpop.f32.mrb[0].mxu0
  %v599 = vpop.f32.mrb[0].mxu0
  %v600 = vadd.f32 0.0, %v599
  %v601 = vpop.f32.mrb[0].mxu0
  %602 = vmatprep.mubr.bf16.mxu0 0
  %603 = vmatmul.mubr.bf16.gmra.mrb[0].mxu0 %v255
  %v604 = vpop.f32.mrb[0].mxu0
  %v605 = vadd.f32 0.0, %v604
  %v606 = vpop.f32.mrb[0].mxu0
  %v607 = vpop.f32.mrb[0].mxu0
  %v608 = vadd.f32 0.0, %v607
  %v609 = vpop.f32.mrb[0].mxu0
  %610 = vmatprep.mubr.bf16.mxu0 0
  %611 = vmatmul.mubr.bf16.gmra.mrb[0].mxu0 %v256
  %v612 = vpop.f32.mrb[0].mxu0
  %v613 = vadd.f32 0.0, %v612
  %v614 = vpop.f32.mrb[0].mxu0
  %v615 = vpop.f32.mrb[0].mxu0
  %v616 = vadd.f32 0.0, %v615
  %v617 = vpop.f32.mrb[0].mxu0
  %618 = vmatprep.mubr.bf16.mxu0 0
  %619 = vmatmul.mubr.bf16.gmra.mrb[0].mxu0 %v257
  %v620 = vpop.f32.mrb[0].mxu0
  %v621 = vadd.f32 0.0, %v620
  %v622 = vpop.f32.mrb[0].mxu0
  %v623 = vpop.f32.mrb[0].mxu0
  %v624 = vadd.f32 0.0, %v623
  %v625 = vpop.f32.mrb[0].mxu0
  %626 = vdwg.mxu0
  %v627 = vld [vmem:[%s2] sm:$0x1]
  %v629 = vlaneseq
  %v630 = vshrl.u32 %v629, 7
  %v631 = vsub.s32 0, %v630
  %v632 = vrot.slane %v627, %v631
  %v634 = vmul.f32 %v373, %v632
  %v635 = vmul.f32 %v376, %v632
  %v636 = vmul.f32 %v381, %v632
  %v637 = vmul.f32 %v384, %v632
  %v638 = vmul.f32 %v389, %v632
  %v639 = vmul.f32 %v392, %v632
  %v640 = vmul.f32 %v397, %v632
  %v641 = vmul.f32 %v400, %v632
  %v642 = vmul.f32 %v405, %v632
  %v643 = vmul.f32 %v408, %v632
  %v644 = vmul.f32 %v413, %v632
  %v645 = vmul.f32 %v416, %v632
  %v646 = vmul.f32 %v421, %v632
  %v647 = vmul.f32 %v424, %v632
  %v648 = vmul.f32 %v429, %v632
  %v649 = vmul.f32 %v432, %v632
  %v650 = vmul.f32 %v437, %v632
  %v651 = vmul.f32 %v440, %v632
  %v652 = vmul.f32 %v445, %v632
  %v653 = vmul.f32 %v448, %v632
  %v654 = vmul.f32 %v453, %v632
  %v655 = vmul.f32 %v456, %v632
  %v656 = vmul.f32 %v461, %v632
  %v657 = vmul.f32 %v464, %v632
  %v658 = vmul.f32 %v469, %v632
  %v659 = vmul.f32 %v472, %v632
  %v660 = vmul.f32 %v477, %v632
  %v661 = vmul.f32 %v480, %v632
  %v662 = vmul.f32 %v485, %v632
  %v663 = vmul.f32 %v488, %v632
  %v664 = vmul.f32 %v493, %v632
  %v665 = vmul.f32 %v496, %v632
  %v666 = vmul.f32 %v501, %v632
  %v667 = vmul.f32 %v504, %v632
  %v668 = vmul.f32 %v509, %v632
  %v669 = vmul.f32 %v512, %v632
  %v670 = vmul.f32 %v517, %v632
  %v671 = vmul.f32 %v520, %v632
  %v672 = vmul.f32 %v525, %v632
  %v673 = vmul.f32 %v528, %v632
  %v674 = vmul.f32 %v533, %v632
  %v675 = vmul.f32 %v536, %v632
  %v676 = vmul.f32 %v541, %v632
  %v677 = vmul.f32 %v544, %v632
  %v678 = vmul.f32 %v549, %v632
  %v679 = vmul.f32 %v552, %v632
  %v680 = vmul.f32 %v557, %v632
  %v681 = vmul.f32 %v560, %v632
  %v682 = vmul.f32 %v565, %v632
  %v683 = vmul.f32 %v568, %v632
  %v684 = vmul.f32 %v573, %v632
  %v685 = vmul.f32 %v576, %v632
  %v686 = vmul.f32 %v581, %v632
  %v687 = vmul.f32 %v584, %v632
  %v688 = vmul.f32 %v589, %v632
  %v689 = vmul.f32 %v592, %v632
  %v690 = vmul.f32 %v597, %v632
  %v691 = vmul.f32 %v600, %v632
  %v692 = vmul.f32 %v605, %v632
  %v693 = vmul.f32 %v608, %v632
  %v694 = vmul.f32 %v613, %v632
  %v695 = vmul.f32 %v616, %v632
  %v696 = vmul.f32 %v621, %v632
  %v697 = vmul.f32 %v624, %v632
  %v698 = vld [vmem:[%s3] sm:$0x1]
  %v700 = vlaneseq
  %v701 = vshrl.u32 %v700, 7
  %v702 = vsub.s32 0, %v701
  %v703 = vrot.slane %v698, %v702
  %v705 = vadd.f32 %v634, %v703
  %v706 = vadd.f32 %v635, %v703
  %v707 = vadd.f32 %v636, %v703
  %v708 = vadd.f32 %v637, %v703
  %v709 = vadd.f32 %v638, %v703
  %v710 = vadd.f32 %v639, %v703
  %v711 = vadd.f32 %v640, %v703
  %v712 = vadd.f32 %v641, %v703
  %v713 = vadd.f32 %v642, %v703
  %v714 = vadd.f32 %v643, %v703
  %v715 = vadd.f32 %v644, %v703
  %v716 = vadd.f32 %v645, %v703
  %v717 = vadd.f32 %v646, %v703
  %v718 = vadd.f32 %v647, %v703
  %v719 = vadd.f32 %v648, %v703
  %v720 = vadd.f32 %v649, %v703
  %v721 = vadd.f32 %v650, %v703
  %v722 = vadd.f32 %v651, %v703
  %v723 = vadd.f32 %v652, %v703
  %v724 = vadd.f32 %v653, %v703
  %v725 = vadd.f32 %v654, %v703
  %v726 = vadd.f32 %v655, %v703
  %v727 = vadd.f32 %v656, %v703
  %v728 = vadd.f32 %v657, %v703
  %v729 = vadd.f32 %v658, %v703
  %v730 = vadd.f32 %v659, %v703
  %v731 = vadd.f32 %v660, %v703
  %v732 = vadd.f32 %v661, %v703
  %v733 = vadd.f32 %v662, %v703
  %v734 = vadd.f32 %v663, %v703
  %v735 = vadd.f32 %v664, %v703
  %v736 = vadd.f32 %v665, %v703
  %v737 = vadd.f32 %v666, %v703
  %v738 = vadd.f32 %v667, %v703
  %v739 = vadd.f32 %v668, %v703
  %v740 = vadd.f32 %v669, %v703
  %v741 = vadd.f32 %v670, %v703
  %v742 = vadd.f32 %v671, %v703
  %v743 = vadd.f32 %v672, %v703
  %v744 = vadd.f32 %v673, %v703
  %v745 = vadd.f32 %v674, %v703
  %v746 = vadd.f32 %v675, %v703
  %v747 = vadd.f32 %v676, %v703
  %v748 = vadd.f32 %v677, %v703
  %v749 = vadd.f32 %v678, %v703
  %v750 = vadd.f32 %v679, %v703
  %v751 = vadd.f32 %v680, %v703
  %v752 = vadd.f32 %v681, %v703
  %v753 = vadd.f32 %v682, %v703
  %v754 = vadd.f32 %v683, %v703
  %v755 = vadd.f32 %v684, %v703
  %v756 = vadd.f32 %v685, %v703
  %v757 = vadd.f32 %v686, %v703
  %v758 = vadd.f32 %v687, %v703
  %v759 = vadd.f32 %v688, %v703
  %v760 = vadd.f32 %v689, %v703
  %v761 = vadd.f32 %v690, %v703
  %v762 = vadd.f32 %v691, %v703
  %v763 = vadd.f32 %v692, %v703
  %v764 = vadd.f32 %v693, %v703
  %v765 = vadd.f32 %v694, %v703
  %v766 = vadd.f32 %v695, %v703
  %v767 = vadd.f32 %v696, %v703
  %v768 = vadd.f32 %v697, %v703
  %v769 = vmax.f32 %v705, 0.0
  %v770 = vmax.f32 %v706, 0.0
  %v771 = vmax.f32 %v707, 0.0
  %v772 = vmax.f32 %v708, 0.0
  %v773 = vmax.f32 %v709, 0.0
  %v774 = vmax.f32 %v710, 0.0
  %v775 = vmax.f32 %v711, 0.0
  %v776 = vmax.f32 %v712, 0.0
  %v777 = vmax.f32 %v713, 0.0
  %v778 = vmax.f32 %v714, 0.0
  %v779 = vmax.f32 %v715, 0.0
  %v780 = vmax.f32 %v716, 0.0
  %v781 = vmax.f32 %v717, 0.0
  %v782 = vmax.f32 %v718, 0.0
  %v783 = vmax.f32 %v719, 0.0
  %v784 = vmax.f32 %v720, 0.0
  %v785 = vmax.f32 %v721, 0.0
  %v786 = vmax.f32 %v722, 0.0
  %v787 = vmax.f32 %v723, 0.0
  %v788 = vmax.f32 %v724, 0.0
  %v789 = vmax.f32 %v725, 0.0
  %v790 = vmax.f32 %v726, 0.0
  %v791 = vmax.f32 %v727, 0.0
  %v792 = vmax.f32 %v728, 0.0
  %v793 = vmax.f32 %v729, 0.0
  %v794 = vmax.f32 %v730, 0.0
  %v795 = vmax.f32 %v731, 0.0
  %v796 = vmax.f32 %v732, 0.0
  %v797 = vmax.f32 %v733, 0.0
  %v798 = vmax.f32 %v734, 0.0
  %v799 = vmax.f32 %v735, 0.0
  %v800 = vmax.f32 %v736, 0.0
  %v801 = vmax.f32 %v737, 0.0
  %v802 = vmax.f32 %v738, 0.0
  %v803 = vmax.f32 %v739, 0.0
  %v804 = vmax.f32 %v740, 0.0
  %v805 = vmax.f32 %v741, 0.0
  %v806 = vmax.f32 %v742, 0.0
  %v807 = vmax.f32 %v743, 0.0
  %v808 = vmax.f32 %v744, 0.0
  %v809 = vmax.f32 %v745, 0.0
  %v810 = vmax.f32 %v746, 0.0
  %v811 = vmax.f32 %v747, 0.0
  %v812 = vmax.f32 %v748, 0.0
  %v813 = vmax.f32 %v749, 0.0
  %v814 = vmax.f32 %v750, 0.0
  %v815 = vmax.f32 %v751, 0.0
  %v816 = vmax.f32 %v752, 0.0
  %v817 = vmax.f32 %v753, 0.0
  %v818 = vmax.f32 %v754, 0.0
  %v819 = vmax.f32 %v755, 0.0
  %v820 = vmax.f32 %v756, 0.0
  %v821 = vmax.f32 %v757, 0.0
  %v822 = vmax.f32 %v758, 0.0
  %v823 = vmax.f32 %v759, 0.0
  %v824 = vmax.f32 %v760, 0.0
  %v825 = vmax.f32 %v761, 0.0
  %v826 = vmax.f32 %v762, 0.0
  %v827 = vmax.f32 %v763, 0.0
  %v828 = vmax.f32 %v764, 0.0
  %v829 = vmax.f32 %v765, 0.0
  %v830 = vmax.f32 %v766, 0.0
  %v831 = vmax.f32 %v767, 0.0
  %v832 = vmax.f32 %v768, 0.0
  %v833 = vpack.c.bf16 %v770, %v769
  %v834 = vpack.c.bf16 %v772, %v771
  %v835 = vpack.c.bf16 %v774, %v773
  %v836 = vpack.c.bf16 %v776, %v775
  %v837 = vpack.c.bf16 %v778, %v777
  %v838 = vpack.c.bf16 %v780, %v779
  %v839 = vpack.c.bf16 %v782, %v781
  %v840 = vpack.c.bf16 %v784, %v783
  %v841 = vpack.c.bf16 %v786, %v785
  %v842 = vpack.c.bf16 %v788, %v787
  %v843 = vpack.c.bf16 %v790, %v789
  %v844 = vpack.c.bf16 %v792, %v791
  %v845 = vpack.c.bf16 %v794, %v793
  %v846 = vpack.c.bf16 %v796, %v795
  %v847 = vpack.c.bf16 %v798, %v797
  %v848 = vpack.c.bf16 %v800, %v799
  %v849 = vpack.c.bf16 %v802, %v801
  %v850 = vpack.c.bf16 %v804, %v803
  %v851 = vpack.c.bf16 %v806, %v805
  %v852 = vpack.c.bf16 %v808, %v807
  %v853 = vpack.c.bf16 %v810, %v809
  %v854 = vpack.c.bf16 %v812, %v811
  %v855 = vpack.c.bf16 %v814, %v813
  %v856 = vpack.c.bf16 %v816, %v815
  %v857 = vpack.c.bf16 %v818, %v817
  %v858 = vpack.c.bf16 %v820, %v819
  %v859 = vpack.c.bf16 %v822, %v821
  %v860 = vpack.c.bf16 %v824, %v823
  %v861 = vpack.c.bf16 %v826, %v825
  %v862 = vpack.c.bf16 %v828, %v827
  %v863 = vpack.c.bf16 %v830, %v829
  %v864 = vpack.c.bf16 %v832, %v831
  %v897 = vunpack.c.l.b16 %v833
  %v898 = vunpack.c.h.b16 %v833
  %v899 = vunpack.c.l.b16 %v834
  %v900 = vunpack.c.h.b16 %v834
  %v901 = vunpack.c.l.b16 %v835
  %v902 = vunpack.c.h.b16 %v835
  %v903 = vunpack.c.l.b16 %v836
  %v904 = vunpack.c.h.b16 %v836
  %v905 = vunpack.c.l.b16 %v837
  %v906 = vunpack.c.h.b16 %v837
  %v907 = vunpack.c.l.b16 %v838
  %v908 = vunpack.c.h.b16 %v838
  %v909 = vunpack.c.l.b16 %v839
  %v910 = vunpack.c.h.b16 %v839
  %v911 = vunpack.c.l.b16 %v840
  %v912 = vunpack.c.h.b16 %v840
  %v913 = vunpack.c.l.b16 %v841
  %v914 = vunpack.c.h.b16 %v841
  %v915 = vunpack.c.l.b16 %v842
  %v916 = vunpack.c.h.b16 %v842
  %v917 = vunpack.c.l.b16 %v843
  %v918 = vunpack.c.h.b16 %v843
  %v919 = vunpack.c.l.b16 %v844
  %v920 = vunpack.c.h.b16 %v844
  %v921 = vunpack.c.l.b16 %v845
  %v922 = vunpack.c.h.b16 %v845
  %v923 = vunpack.c.l.b16 %v846
  %v924 = vunpack.c.h.b16 %v846
  %v925 = vunpack.c.l.b16 %v847
  %v926 = vunpack.c.h.b16 %v847
  %v927 = vunpack.c.l.b16 %v848
  %v928 = vunpack.c.h.b16 %v848
  %v929 = vunpack.c.l.b16 %v849
  %v930 = vunpack.c.h.b16 %v849
  %v931 = vunpack.c.l.b16 %v850
  %v932 = vunpack.c.h.b16 %v850
  %v933 = vunpack.c.l.b16 %v851
  %v934 = vunpack.c.h.b16 %v851
  %v935 = vunpack.c.l.b16 %v852
  %v936 = vunpack.c.h.b16 %v852
  %v937 = vunpack.c.l.b16 %v853
  %v938 = vunpack.c.h.b16 %v853
  %v939 = vunpack.c.l.b16 %v854
  %v940 = vunpack.c.h.b16 %v854
  %v941 = vunpack.c.l.b16 %v855
  %v942 = vunpack.c.h.b16 %v855
  %v943 = vunpack.c.l.b16 %v856
  %v944 = vunpack.c.h.b16 %v856
  %v945 = vunpack.c.l.b16 %v857
  %v946 = vunpack.c.h.b16 %v857
  %v947 = vunpack.c.l.b16 %v858
  %v948 = vunpack.c.h.b16 %v858
  %v949 = vunpack.c.l.b16 %v859
  %v950 = vunpack.c.h.b16 %v859
  %v951 = vunpack.c.l.b16 %v860
  %v952 = vunpack.c.h.b16 %v860
  %v953 = vunpack.c.l.b16 %v861
  %v954 = vunpack.c.h.b16 %v861
  %v955 = vunpack.c.l.b16 %v862
  %v956 = vunpack.c.h.b16 %v862
  %v957 = vunpack.c.l.b16 %v863
  %v958 = vunpack.c.h.b16 %v863
  %v959 = vunpack.c.l.b16 %v864
  %v960 = vunpack.c.h.b16 %v864
  %v961 = vpack.c.b16 %v897, %v897
  %v962 = vpack.c.b16 %v898, %v898
  %v963 = vpack.c.b16 %v899, %v899
  %v964 = vpack.c.b16 %v900, %v900
  %v965 = vpack.c.b16 %v901, %v901
  %v966 = vpack.c.b16 %v902, %v902
  %v967 = vpack.c.b16 %v903, %v903
  %v968 = vpack.c.b16 %v904, %v904
  %v969 = vpack.c.b16 %v905, %v905
  %v970 = vpack.c.b16 %v906, %v906
  %v971 = vpack.c.b16 %v907, %v907
  %v972 = vpack.c.b16 %v908, %v908
  %v973 = vpack.c.b16 %v909, %v909
  %v974 = vpack.c.b16 %v910, %v910
  %v975 = vpack.c.b16 %v911, %v911
  %v976 = vpack.c.b16 %v912, %v912
  %v977 = vpack.c.b16 %v913, %v913
  %v978 = vpack.c.b16 %v914, %v914
  %v979 = vpack.c.b16 %v915, %v915
  %v980 = vpack.c.b16 %v916, %v916
  %v981 = vpack.c.b16 %v917, %v917
  %v982 = vpack.c.b16 %v918, %v918
  %v983 = vpack.c.b16 %v919, %v919
  %v984 = vpack.c.b16 %v920, %v920
  %v985 = vpack.c.b16 %v921, %v921
  %v986 = vpack.c.b16 %v922, %v922
  %v987 = vpack.c.b16 %v923, %v923
  %v988 = vpack.c.b16 %v924, %v924
  %v989 = vpack.c.b16 %v925, %v925
  %v990 = vpack.c.b16 %v926, %v926
  %v991 = vpack.c.b16 %v927, %v927
  %v992 = vpack.c.b16 %v928, %v928
  %v993 = vpack.c.b16 %v929, %v929
  %v994 = vpack.c.b16 %v930, %v930
  %v995 = vpack.c.b16 %v931, %v931
  %v996 = vpack.c.b16 %v932, %v932
  %v997 = vpack.c.b16 %v933, %v933
  %v998 = vpack.c.b16 %v934, %v934
  %v999 = vpack.c.b16 %v935, %v935
  %v1000 = vpack.c.b16 %v936, %v936
  %v1001 = vpack.c.b16 %v937, %v937
  %v1002 = vpack.c.b16 %v938, %v938
  %v1003 = vpack.c.b16 %v939, %v939
  %v1004 = vpack.c.b16 %v940, %v940
  %v1005 = vpack.c.b16 %v941, %v941
  %v1006 = vpack.c.b16 %v942, %v942
  %v1007 = vpack.c.b16 %v943, %v943
  %v1008 = vpack.c.b16 %v944, %v944
  %v1009 = vpack.c.b16 %v945, %v945
  %v1010 = vpack.c.b16 %v946, %v946
  %v1011 = vpack.c.b16 %v947, %v947
  %v1012 = vpack.c.b16 %v948, %v948
  %v1013 = vpack.c.b16 %v949, %v949
  %v1014 = vpack.c.b16 %v950, %v950
  %v1015 = vpack.c.b16 %v951, %v951
  %v1016 = vpack.c.b16 %v952, %v952
  %v1017 = vpack.c.b16 %v953, %v953
  %v1018 = vpack.c.b16 %v954, %v954
  %v1019 = vpack.c.b16 %v955, %v955
  %v1020 = vpack.c.b16 %v956, %v956
  %v1021 = vpack.c.b16 %v957, %v957
  %v1022 = vpack.c.b16 %v958, %v958
  %v1023 = vpack.c.b16 %v959, %v959
  %v1024 = vpack.c.b16 %v960, %v960
  %vm1089 = vcmask 519168
  %1090 = vst.msk [vmem:[%s4] sm:$0xf] %vm1089, %v961
  %1091 = vst.msk [vmem:[%s4 + $0x4] sm:$0xf] %vm1089, %v962
  %1092 = vst.msk [vmem:[%s4 + $0x8] sm:$0xf] %vm1089, %v963
  %1093 = vst.msk [vmem:[%s4 + $0xc] sm:$0xf] %vm1089, %v964
  %1094 = vst.msk [vmem:[%s4 + $0x10] sm:$0xf] %vm1089, %v965
  %1095 = vst.msk [vmem:[%s4 + $0x14] sm:$0xf] %vm1089, %v966
  %1096 = vst.msk [vmem:[%s4 + $0x18] sm:$0xf] %vm1089, %v967
  %1097 = vst.msk [vmem:[%s4 + $0x1c] sm:$0xf] %vm1089, %v968
  %1098 = vst.msk [vmem:[%s4 + $0x20] sm:$0xf] %vm1089, %v969
  %1099 = vst.msk [vmem:[%s4 + $0x24] sm:$0xf] %vm1089, %v970
  %1100 = vst.msk [vmem:[%s4 + $0x28] sm:$0xf] %vm1089, %v971
  %1101 = vst.msk [vmem:[%s4 + $0x2c] sm:$0xf] %vm1089, %v972
  %1102 = vst.msk [vmem:[%s4 + $0x30] sm:$0xf] %vm1089, %v973
  %1103 = vst.msk [vmem:[%s4 + $0x34] sm:$0xf] %vm1089, %v974
  %1104 = vst.msk [vmem:[%s4 + $0x38] sm:$0xf] %vm1089, %v975
  %1105 = vst.msk [vmem:[%s4 + $0x3c] sm:$0xf] %vm1089, %v976
  %1106 = vst.msk [vmem:[%s4 + $0x40] sm:$0xf] %vm1089, %v977
  %1107 = vst.msk [vmem:[%s4 + $0x44] sm:$0xf] %vm1089, %v978
  %1108 = vst.msk [vmem:[%s4 + $0x48] sm:$0xf] %vm1089, %v979
  %1109 = vst.msk [vmem:[%s4 + $0x4c] sm:$0xf] %vm1089, %v980
  %1110 = vst.msk [vmem:[%s4 + $0x50] sm:$0xf] %vm1089, %v981
  %1111 = vst.msk [vmem:[%s4 + $0x54] sm:$0xf] %vm1089, %v982
  %1112 = vst.msk [vmem:[%s4 + $0x58] sm:$0xf] %vm1089, %v983
  %1113 = vst.msk [vmem:[%s4 + $0x5c] sm:$0xf] %vm1089, %v984
  %1114 = vst.msk [vmem:[%s4 + $0x60] sm:$0xf] %vm1089, %v985
  %1115 = vst.msk [vmem:[%s4 + $0x64] sm:$0xf] %vm1089, %v986
  %1116 = vst.msk [vmem:[%s4 + $0x68] sm:$0xf] %vm1089, %v987
  %1117 = vst.msk [vmem:[%s4 + $0x6c] sm:$0xf] %vm1089, %v988
  %1118 = vst.msk [vmem:[%s4 + $0x70] sm:$0xf] %vm1089, %v989
  %1119 = vst.msk [vmem:[%s4 + $0x74] sm:$0xf] %vm1089, %v990
  %1120 = vst.msk [vmem:[%s4 + $0x78] sm:$0xf] %vm1089, %v991
  %1121 = vst.msk [vmem:[%s4 + $0x7c] sm:$0xf] %vm1089, %v992
  %1122 = vst.msk [vmem:[%s4 + $0x80] sm:$0xf] %vm1089, %v993
  %1123 = vst.msk [vmem:[%s4 + $0x84] sm:$0xf] %vm1089, %v994
  %1124 = vst.msk [vmem:[%s4 + $0x88] sm:$0xf] %vm1089, %v995
  %1125 = vst.msk [vmem:[%s4 + $0x8c] sm:$0xf] %vm1089, %v996
  %1126 = vst.msk [vmem:[%s4 + $0x90] sm:$0xf] %vm1089, %v997
  %1127 = vst.msk [vmem:[%s4 + $0x94] sm:$0xf] %vm1089, %v998
  %1128 = vst.msk [vmem:[%s4 + $0x98] sm:$0xf] %vm1089, %v999
  %1129 = vst.msk [vmem:[%s4 + $0x9c] sm:$0xf] %vm1089, %v1000
  %1130 = vst.msk [vmem:[%s4 + $0xa0] sm:$0xf] %vm1089, %v1001
  %1131 = vst.msk [vmem:[%s4 + $0xa4] sm:$0xf] %vm1089, %v1002
  %1132 = vst.msk [vmem:[%s4 + $0xa8] sm:$0xf] %vm1089, %v1003
  %1133 = vst.msk [vmem:[%s4 + $0xac] sm:$0xf] %vm1089, %v1004
  %1134 = vst.msk [vmem:[%s4 + $0xb0] sm:$0xf] %vm1089, %v1005
  %1135 = vst.msk [vmem:[%s4 + $0xb4] sm:$0xf] %vm1089, %v1006
  %1136 = vst.msk [vmem:[%s4 + $0xb8] sm:$0xf] %vm1089, %v1007
  %1137 = vst.msk [vmem:[%s4 + $0xbc] sm:$0xf] %vm1089, %v1008
  %1138 = vst.msk [vmem:[%s4 + $0xc0] sm:$0xf] %vm1089, %v1009
  %1139 = vst.msk [vmem:[%s4 + $0xc4] sm:$0xf] %vm1089, %v1010
  %1140 = vst.msk [vmem:[%s4 + $0xc8] sm:$0xf] %vm1089, %v1011
  %1141 = vst.msk [vmem:[%s4 + $0xcc] sm:$0xf] %vm1089, %v1012
  %1142 = vst.msk [vmem:[%s4 + $0xd0] sm:$0xf] %vm1089, %v1013
  %1143 = vst.msk [vmem:[%s4 + $0xd4] sm:$0xf] %vm1089, %v1014
  %1144 = vst.msk [vmem:[%s4 + $0xd8] sm:$0xf] %vm1089, %v1015
  %1145 = vst.msk [vmem:[%s4 + $0xdc] sm:$0xf] %vm1089, %v1016
  %1146 = vst.msk [vmem:[%s4 + $0xe0] sm:$0xf] %vm1089, %v1017
  %1147 = vst.msk [vmem:[%s4 + $0xe4] sm:$0xf] %vm1089, %v1018
  %1148 = vst.msk [vmem:[%s4 + $0xe8] sm:$0xf] %vm1089, %v1019
  %1149 = vst.msk [vmem:[%s4 + $0xec] sm:$0xf] %vm1089, %v1020
  %1150 = vst.msk [vmem:[%s4 + $0xf0] sm:$0xf] %vm1089, %v1021
  %1151 = vst.msk [vmem:[%s4 + $0xf4] sm:$0xf] %vm1089, %v1022
  %1152 = vst.msk [vmem:[%s4 + $0xf8] sm:$0xf] %vm1089, %v1023
  %1153 = vst.msk [vmem:[%s4 + $0xfc] sm:$0xf] %vm1089, %v1024
  // Predicated region
  $region18: #{discriminator_forward.8} parent=0 // pred_check
    _
  $region19: #{discriminator_forward.8} parent=0 // pred_check_branch
    %1155 = sbr.rel (0) target = $region21
  $region20: #{discriminator_forward.8} parent=0 // pred_region
    _
  $region21: #{discriminator_forward.8} parent=0 // pred_fallthru
    _
  // Predicated region
  $region22: #{discriminator_forward.8} parent=0 // pred_check
    _
  $region23: #{discriminator_forward.8} parent=0 // pred_check_branch
    %1157 = sbr.rel (0) target = $region25
  $region24: #{discriminator_forward.8} parent=0 // pred_region
    _
  $region25: #{discriminator_forward.8} parent=0 // pred_fallthru
    _

// kernel: discriminator_forward.9
$region0: #{discriminator_forward.9}
  #allocation0 [shape = 'u32[]', space=smem, size = 0x4, offset = 0x4, fixed_abs, tag = 'smem constant byte address 0x4 - core index']
  #allocation1 [shape = 'u32[144,128]{1,0:T(1,128)}', space=vmem, size = 0x12000, scoped, tag = 'internal scratch']
  %s0 = inlined_call_operand.vmem [shape: bf16[128,1024], index: 0, kind: input, shape index: {}]
  %s1 = inlined_call_operand.vmem [shape: bf16[1024,64], index: 1, kind: input, shape index: {}]
  %s2 = inlined_call_operand.vmem [shape: f32[1,64], index: 2, kind: input, shape index: {}]
  %s3 = inlined_call_operand.vmem [shape: f32[1,64], index: 3, kind: input, shape index: {}]
  %s4 = inlined_call_operand.vmem [shape: bf16[128,64], index: 4, kind: output, shape index: {}]
  %s5 = sld [smem:[#allocation0]]
  $region26: #{discriminator_forward.9} parent=0
    _
  %s7 = ssub.s32 1, %s5
  %s8 = scalar_select 0, %s7, %s5
  // Predicated region
  $region2: #{discriminator_forward.9} parent=0 // pred_check
    _
  $region3: #{discriminator_forward.9} parent=0 // pred_check_branch
    %10 = sbr.rel (0) target = $region5
  $region4: #{discriminator_forward.9} parent=0 // pred_region
    _
  $region5: #{discriminator_forward.9} parent=0 // pred_fallthru
    _
  // Predicated region
  $region6: #{discriminator_forward.9} parent=0 // pred_check
    _
  $region7: #{discriminator_forward.9} parent=0 // pred_check_branch
    %12 = sbr.rel (0) target = $region9
  $region8: #{discriminator_forward.9} parent=0 // pred_region
    _
  $region9: #{discriminator_forward.9} parent=0 // pred_fallthru
    _
  // Predicated region
  $region10: #{discriminator_forward.9} parent=0 // pred_check
    _
  $region11: #{discriminator_forward.9} parent=0 // pred_check_branch
    %14 = sbr.rel (0) target = $region13
  $region12: #{discriminator_forward.9} parent=0 // pred_region
    _
  $region13: #{discriminator_forward.9} parent=0 // pred_fallthru
    _
  // Predicated region
  $region14: #{discriminator_forward.9} parent=0 // pred_check
    _
  $region15: #{discriminator_forward.9} parent=0 // pred_check_branch
    %16 = sbr.rel (0) target = $region17
  $region16: #{discriminator_forward.9} parent=0 // pred_region
    _
  $region17: #{discriminator_forward.9} parent=0 // pred_fallthru
    _
  %v18 = vld [vmem:[%s0] sm:$0xff]
  %v19 = vld [vmem:[%s0 + $0x8] sm:$0xff]
  %v20 = vld [vmem:[%s0 + $0x10] sm:$0xff]
  %v21 = vld [vmem:[%s0 + $0x18] sm:$0xff]
  %v22 = vld [vmem:[%s0 + $0x20] sm:$0xff]
  %v23 = vld [vmem:[%s0 + $0x28] sm:$0xff]
  %v24 = vld [vmem:[%s0 + $0x30] sm:$0xff]
  %v25 = vld [vmem:[%s0 + $0x38] sm:$0xff]
  %v26 = vld [vmem:[%s0 + $0x40] sm:$0xff]
  %v27 = vld [vmem:[%s0 + $0x48] sm:$0xff]
  %v28 = vld [vmem:[%s0 + $0x50] sm:$0xff]
  %v29 = vld [vmem:[%s0 + $0x58] sm:$0xff]
  %v30 = vld [vmem:[%s0 + $0x60] sm:$0xff]
  %v31 = vld [vmem:[%s0 + $0x68] sm:$0xff]
  %v32 = vld [vmem:[%s0 + $0x70] sm:$0xff]
  %v33 = vld [vmem:[%s0 + $0x78] sm:$0xff]
  %v34 = vld [vmem:[%s0 + $0x80] sm:$0xff]
  %v35 = vld [vmem:[%s0 + $0x88] sm:$0xff]
  %v36 = vld [vmem:[%s0 + $0x90] sm:$0xff]
  %v37 = vld [vmem:[%s0 + $0x98] sm:$0xff]
  %v38 = vld [vmem:[%s0 + $0xa0] sm:$0xff]
  %v39 = vld [vmem:[%s0 + $0xa8] sm:$0xff]
  %v40 = vld [vmem:[%s0 + $0xb0] sm:$0xff]
  %v41 = vld [vmem:[%s0 + $0xb8] sm:$0xff]
  %v42 = vld [vmem:[%s0 + $0xc0] sm:$0xff]
  %v43 = vld [vmem:[%s0 + $0xc8] sm:$0xff]
  %v44 = vld [vmem:[%s0 + $0xd0] sm:$0xff]
  %v45 = vld [vmem:[%s0 + $0xd8] sm:$0xff]
  %v46 = vld [vmem:[%s0 + $0xe0] sm:$0xff]
  %v47 = vld [vmem:[%s0 + $0xe8] sm:$0xff]
  %v48 = vld [vmem:[%s0 + $0xf0] sm:$0xff]
  %v49 = vld [vmem:[%s0 + $0xf8] sm:$0xff]
  %v50 = vld [vmem:[%s0 + $0x100] sm:$0xff]
  %v51 = vld [vmem:[%s0 + $0x108] sm:$0xff]
  %v52 = vld [vmem:[%s0 + $0x110] sm:$0xff]
  %v53 = vld [vmem:[%s0 + $0x118] sm:$0xff]
  %v54 = vld [vmem:[%s0 + $0x120] sm:$0xff]
  %v55 = vld [vmem:[%s0 + $0x128] sm:$0xff]
  %v56 = vld [vmem:[%s0 + $0x130] sm:$0xff]
  %v57 = vld [vmem:[%s0 + $0x138] sm:$0xff]
  %v58 = vld [vmem:[%s0 + $0x140] sm:$0xff]
  %v59 = vld [vmem:[%s0 + $0x148] sm:$0xff]
  %v60 = vld [vmem:[%s0 + $0x150] sm:$0xff]
  %v61 = vld [vmem:[%s0 + $0x158] sm:$0xff]
  %v62 = vld [vmem:[%s0 + $0x160] sm:$0xff]
  %v63 = vld [vmem:[%s0 + $0x168] sm:$0xff]
  %v64 = vld [vmem:[%s0 + $0x170] sm:$0xff]
  %v65 = vld [vmem:[%s0 + $0x178] sm:$0xff]
  %v66 = vld [vmem:[%s0 + $0x180] sm:$0xff]
  %v67 = vld [vmem:[%s0 + $0x188] sm:$0xff]
  %v68 = vld [vmem:[%s0 + $0x190] sm:$0xff]
  %v69 = vld [vmem:[%s0 + $0x198] sm:$0xff]
  %v70 = vld [vmem:[%s0 + $0x1a0] sm:$0xff]
  %v71 = vld [vmem:[%s0 + $0x1a8] sm:$0xff]
  %v72 = vld [vmem:[%s0 + $0x1b0] sm:$0xff]
  %v73 = vld [vmem:[%s0 + $0x1b8] sm:$0xff]
  %v74 = vld [vmem:[%s0 + $0x1c0] sm:$0xff]
  %v75 = vld [vmem:[%s0 + $0x1c8] sm:$0xff]
  %v76 = vld [vmem:[%s0 + $0x1d0] sm:$0xff]
  %v77 = vld [vmem:[%s0 + $0x1d8] sm:$0xff]
  %v78 = vld [vmem:[%s0 + $0x1e0] sm:$0xff]
  %v79 = vld [vmem:[%s0 + $0x1e8] sm:$0xff]
  %v80 = vld [vmem:[%s0 + $0x1f0] sm:$0xff]
  %v81 = vld [vmem:[%s0 + $0x1f8] sm:$0xff]
  %v82 = vld [vmem:[%s1] sm:$0xf]
  %v83 = vld [vmem:[%s1 + $0x4] sm:$0xf]
  %v84 = vld [vmem:[%s1 + $0x8] sm:$0xf]
  %v85 = vld [vmem:[%s1 + $0xc] sm:$0xf]
  %v86 = vld [vmem:[%s1 + $0x10] sm:$0xf]
  %v87 = vld [vmem:[%s1 + $0x14] sm:$0xf]
  %v88 = vld [vmem:[%s1 + $0x18] sm:$0xf]
  %v89 = vld [vmem:[%s1 + $0x1c] sm:$0xf]
  %v90 = vld [vmem:[%s1 + $0x20] sm:$0xf]
  %v91 = vld [vmem:[%s1 + $0x24] sm:$0xf]
  %v92 = vld [vmem:[%s1 + $0x28] sm:$0xf]
  %v93 = vld [vmem:[%s1 + $0x2c] sm:$0xf]
  %v94 = vld [vmem:[%s1 + $0x30] sm:$0xf]
  %v95 = vld [vmem:[%s1 + $0x34] sm:$0xf]
  %v96 = vld [vmem:[%s1 + $0x38] sm:$0xf]
  %v97 = vld [vmem:[%s1 + $0x3c] sm:$0xf]
  %v98 = vld [vmem:[%s1 + $0x40] sm:$0xf]
  %v99 = vld [vmem:[%s1 + $0x44] sm:$0xf]
  %v100 = vld [vmem:[%s1 + $0x48] sm:$0xf]
  %v101 = vld [vmem:[%s1 + $0x4c] sm:$0xf]
  %v102 = vld [vmem:[%s1 + $0x50] sm:$0xf]
  %v103 = vld [vmem:[%s1 + $0x54] sm:$0xf]
  %v104 = vld [vmem:[%s1 + $0x58] sm:$0xf]
  %v105 = vld [vmem:[%s1 + $0x5c] sm:$0xf]
  %v106 = vld [vmem:[%s1 + $0x60] sm:$0xf]
  %v107 = vld [vmem:[%s1 + $0x64] sm:$0xf]
  %v108 = vld [vmem:[%s1 + $0x68] sm:$0xf]
  %v109 = vld [vmem:[%s1 + $0x6c] sm:$0xf]
  %v110 = vld [vmem:[%s1 + $0x70] sm:$0xf]
  %v111 = vld [vmem:[%s1 + $0x74] sm:$0xf]
  %v112 = vld [vmem:[%s1 + $0x78] sm:$0xf]
  %v113 = vld [vmem:[%s1 + $0x7c] sm:$0xf]
  %v114 = vld [vmem:[%s1 + $0x80] sm:$0xf]
  %v115 = vld [vmem:[%s1 + $0x84] sm:$0xf]
  %v116 = vld [vmem:[%s1 + $0x88] sm:$0xf]
  %v117 = vld [vmem:[%s1 + $0x8c] sm:$0xf]
  %v118 = vld [vmem:[%s1 + $0x90] sm:$0xf]
  %v119 = vld [vmem:[%s1 + $0x94] sm:$0xf]
  %v120 = vld [vmem:[%s1 + $0x98] sm:$0xf]
  %v121 = vld [vmem:[%s1 + $0x9c] sm:$0xf]
  %v122 = vld [vmem:[%s1 + $0xa0] sm:$0xf]
  %v123 = vld [vmem:[%s1 + $0xa4] sm:$0xf]
  %v124 = vld [vmem:[%s1 + $0xa8] sm:$0xf]
  %v125 = vld [vmem:[%s1 + $0xac] sm:$0xf]
  %v126 = vld [vmem:[%s1 + $0xb0] sm:$0xf]
  %v127 = vld [vmem:[%s1 + $0xb4] sm:$0xf]
  %v128 = vld [vmem:[%s1 + $0xb8] sm:$0xf]
  %v129 = vld [vmem:[%s1 + $0xbc] sm:$0xf]
  %v130 = vld [vmem:[%s1 + $0xc0] sm:$0xf]
  %v131 = vld [vmem:[%s1 + $0xc4] sm:$0xf]
  %v132 = vld [vmem:[%s1 + $0xc8] sm:$0xf]
  %v133 = vld [vmem:[%s1 + $0xcc] sm:$0xf]
  %v134 = vld [vmem:[%s1 + $0xd0] sm:$0xf]
  %v135 = vld [vmem:[%s1 + $0xd4] sm:$0xf]
  %v136 = vld [vmem:[%s1 + $0xd8] sm:$0xf]
  %v137 = vld [vmem:[%s1 + $0xdc] sm:$0xf]
  %v138 = vld [vmem:[%s1 + $0xe0] sm:$0xf]
  %v139 = vld [vmem:[%s1 + $0xe4] sm:$0xf]
  %v140 = vld [vmem:[%s1 + $0xe8] sm:$0xf]
  %v141 = vld [vmem:[%s1 + $0xec] sm:$0xf]
  %v142 = vld [vmem:[%s1 + $0xf0] sm:$0xf]
  %v143 = vld [vmem:[%s1 + $0xf4] sm:$0xf]
  %v144 = vld [vmem:[%s1 + $0xf8] sm:$0xf]
  %v145 = vld [vmem:[%s1 + $0xfc] sm:$0xf]
  %v146 = vld [vmem:[%s1 + $0x100] sm:$0xf]
  %v147 = vld [vmem:[%s1 + $0x104] sm:$0xf]
  %v148 = vld [vmem:[%s1 + $0x108] sm:$0xf]
  %v149 = vld [vmem:[%s1 + $0x10c] sm:$0xf]
  %v150 = vld [vmem:[%s1 + $0x110] sm:$0xf]
  %v151 = vld [vmem:[%s1 + $0x114] sm:$0xf]
  %v152 = vld [vmem:[%s1 + $0x118] sm:$0xf]
  %v153 = vld [vmem:[%s1 + $0x11c] sm:$0xf]
  %v154 = vld [vmem:[%s1 + $0x120] sm:$0xf]
  %v155 = vld [vmem:[%s1 + $0x124] sm:$0xf]
  %v156 = vld [vmem:[%s1 + $0x128] sm:$0xf]
  %v157 = vld [vmem:[%s1 + $0x12c] sm:$0xf]
  %v158 = vld [vmem:[%s1 + $0x130] sm:$0xf]
  %v159 = vld [vmem:[%s1 + $0x134] sm:$0xf]
  %v160 = vld [vmem:[%s1 + $0x138] sm:$0xf]
  %v161 = vld [vmem:[%s1 + $0x13c] sm:$0xf]
  %v162 = vld [vmem:[%s1 + $0x140] sm:$0xf]
  %v163 = vld [vmem:[%s1 + $0x144] sm:$0xf]
  %v164 = vld [vmem:[%s1 + $0x148] sm:$0xf]
  %v165 = vld [vmem:[%s1 + $0x14c] sm:$0xf]
  %v166 = vld [vmem:[%s1 + $0x150] sm:$0xf]
  %v167 = vld [vmem:[%s1 + $0x154] sm:$0xf]
  %v168 = vld [vmem:[%s1 + $0x158] sm:$0xf]
  %v169 = vld [vmem:[%s1 + $0x15c] sm:$0xf]
  %v170 = vld [vmem:[%s1 + $0x160] sm:$0xf]
  %v171 = vld [vmem:[%s1 + $0x164] sm:$0xf]
  %v172 = vld [vmem:[%s1 + $0x168] sm:$0xf]
  %v173 = vld [vmem:[%s1 + $0x16c] sm:$0xf]
  %v174 = vld [vmem:[%s1 + $0x170] sm:$0xf]
  %v175 = vld [vmem:[%s1 + $0x174] sm:$0xf]
  %v176 = vld [vmem:[%s1 + $0x178] sm:$0xf]
  %v177 = vld [vmem:[%s1 + $0x17c] sm:$0xf]
  %v178 = vld [vmem:[%s1 + $0x180] sm:$0xf]
  %v179 = vld [vmem:[%s1 + $0x184] sm:$0xf]
  %v180 = vld [vmem:[%s1 + $0x188] sm:$0xf]
  %v181 = vld [vmem:[%s1 + $0x18c] sm:$0xf]
  %v182 = vld [vmem:[%s1 + $0x190] sm:$0xf]
  %v183 = vld [vmem:[%s1 + $0x194] sm:$0xf]
  %v184 = vld [vmem:[%s1 + $0x198] sm:$0xf]
  %v185 = vld [vmem:[%s1 + $0x19c] sm:$0xf]
  %v186 = vld [vmem:[%s1 + $0x1a0] sm:$0xf]
  %v187 = vld [vmem:[%s1 + $0x1a4] sm:$0xf]
  %v188 = vld [vmem:[%s1 + $0x1a8] sm:$0xf]
  %v189 = vld [vmem:[%s1 + $0x1ac] sm:$0xf]
  %v190 = vld [vmem:[%s1 + $0x1b0] sm:$0xf]
  %v191 = vld [vmem:[%s1 + $0x1b4] sm:$0xf]
  %v192 = vld [vmem:[%s1 + $0x1b8] sm:$0xf]
  %v193 = vld [vmem:[%s1 + $0x1bc] sm:$0xf]
  %v194 = vld [vmem:[%s1 + $0x1c0] sm:$0xf]
  %v195 = vld [vmem:[%s1 + $0x1c4] sm:$0xf]
  %v196 = vld [vmem:[%s1 + $0x1c8] sm:$0xf]
  %v197 = vld [vmem:[%s1 + $0x1cc] sm:$0xf]
  %v198 = vld [vmem:[%s1 + $0x1d0] sm:$0xf]
  %v199 = vld [vmem:[%s1 + $0x1d4] sm:$0xf]
  %v200 = vld [vmem:[%s1 + $0x1d8] sm:$0xf]
  %v201 = vld [vmem:[%s1 + $0x1dc] sm:$0xf]
  %v202 = vld [vmem:[%s1 + $0x1e0] sm:$0xf]
  %v203 = vld [vmem:[%s1 + $0x1e4] sm:$0xf]
  %v204 = vld [vmem:[%s1 + $0x1e8] sm:$0xf]
  %v205 = vld [vmem:[%s1 + $0x1ec] sm:$0xf]
  %v206 = vld [vmem:[%s1 + $0x1f0] sm:$0xf]
  %v207 = vld [vmem:[%s1 + $0x1f4] sm:$0xf]
  %v208 = vld [vmem:[%s1 + $0x1f8] sm:$0xf]
  %v209 = vld [vmem:[%s1 + $0x1fc] sm:$0xf]
  %v274 = vunpack.c.l.b16 %v18
  %v275 = vunpack.c.h.b16 %v18
  %v276 = vunpack.c.l.b16 %v19
  %v277 = vunpack.c.h.b16 %v19
  %v278 = vunpack.c.l.b16 %v20
  %v279 = vunpack.c.h.b16 %v20
  %v280 = vunpack.c.l.b16 %v21
  %v281 = vunpack.c.h.b16 %v21
  %v282 = vunpack.c.l.b16 %v22
  %v283 = vunpack.c.h.b16 %v22
  %v284 = vunpack.c.l.b16 %v23
  %v285 = vunpack.c.h.b16 %v23
  %v286 = vunpack.c.l.b16 %v24
  %v287 = vunpack.c.h.b16 %v24
  %v288 = vunpack.c.l.b16 %v25
  %v289 = vunpack.c.h.b16 %v25
  %v290 = vunpack.c.l.b16 %v26
  %v291 = vunpack.c.h.b16 %v26
  %v292 = vunpack.c.l.b16 %v27
  %v293 = vunpack.c.h.b16 %v27
  %v294 = vunpack.c.l.b16 %v28
  %v295 = vunpack.c.h.b16 %v28
  %v296 = vunpack.c.l.b16 %v29
  %v297 = vunpack.c.h.b16 %v29
  %v298 = vunpack.c.l.b16 %v30
  %v299 = vunpack.c.h.b16 %v30
  %v300 = vunpack.c.l.b16 %v31
  %v301 = vunpack.c.h.b16 %v31
  %v302 = vunpack.c.l.b16 %v32
  %v303 = vunpack.c.h.b16 %v32
  %v304 = vunpack.c.l.b16 %v33
  %v305 = vunpack.c.h.b16 %v33
  %v306 = vunpack.c.l.b16 %v34
  %v307 = vunpack.c.h.b16 %v34
  %v308 = vunpack.c.l.b16 %v35
  %v309 = vunpack.c.h.b16 %v35
  %v310 = vunpack.c.l.b16 %v36
  %v311 = vunpack.c.h.b16 %v36
  %v312 = vunpack.c.l.b16 %v37
  %v313 = vunpack.c.h.b16 %v37
  %v314 = vunpack.c.l.b16 %v38
  %v315 = vunpack.c.h.b16 %v38
  %v316 = vunpack.c.l.b16 %v39
  %v317 = vunpack.c.h.b16 %v39
  %v318 = vunpack.c.l.b16 %v40
  %v319 = vunpack.c.h.b16 %v40
  %v320 = vunpack.c.l.b16 %v41
  %v321 = vunpack.c.h.b16 %v41
  %v322 = vunpack.c.l.b16 %v42
  %v323 = vunpack.c.h.b16 %v42
  %v324 = vunpack.c.l.b16 %v43
  %v325 = vunpack.c.h.b16 %v43
  %v326 = vunpack.c.l.b16 %v44
  %v327 = vunpack.c.h.b16 %v44
  %v328 = vunpack.c.l.b16 %v45
  %v329 = vunpack.c.h.b16 %v45
  %v330 = vunpack.c.l.b16 %v46
  %v331 = vunpack.c.h.b16 %v46
  %v332 = vunpack.c.l.b16 %v47
  %v333 = vunpack.c.h.b16 %v47
  %v334 = vunpack.c.l.b16 %v48
  %v335 = vunpack.c.h.b16 %v48
  %v336 = vunpack.c.l.b16 %v49
  %v337 = vunpack.c.h.b16 %v49
  %v338 = vunpack.c.l.b16 %v50
  %v339 = vunpack.c.h.b16 %v50
  %v340 = vunpack.c.l.b16 %v51
  %v341 = vunpack.c.h.b16 %v51
  %v342 = vunpack.c.l.b16 %v52
  %v343 = vunpack.c.h.b16 %v52
  %v344 = vunpack.c.l.b16 %v53
  %v345 = vunpack.c.h.b16 %v53
  %v346 = vunpack.c.l.b16 %v54
  %v347 = vunpack.c.h.b16 %v54
  %v348 = vunpack.c.l.b16 %v55
  %v349 = vunpack.c.h.b16 %v55
  %v350 = vunpack.c.l.b16 %v56
  %v351 = vunpack.c.h.b16 %v56
  %v352 = vunpack.c.l.b16 %v57
  %v353 = vunpack.c.h.b16 %v57
  %v354 = vunpack.c.l.b16 %v58
  %v355 = vunpack.c.h.b16 %v58
  %v356 = vunpack.c.l.b16 %v59
  %v357 = vunpack.c.h.b16 %v59
  %v358 = vunpack.c.l.b16 %v60
  %v359 = vunpack.c.h.b16 %v60
  %v360 = vunpack.c.l.b16 %v61
  %v361 = vunpack.c.h.b16 %v61
  %v362 = vunpack.c.l.b16 %v62
  %v363 = vunpack.c.h.b16 %v62
  %v364 = vunpack.c.l.b16 %v63
  %v365 = vunpack.c.h.b16 %v63
  %v366 = vunpack.c.l.b16 %v64
  %v367 = vunpack.c.h.b16 %v64
  %v368 = vunpack.c.l.b16 %v65
  %v369 = vunpack.c.h.b16 %v65
  %v370 = vunpack.c.l.b16 %v66
  %v371 = vunpack.c.h.b16 %v66
  %v372 = vunpack.c.l.b16 %v67
  %v373 = vunpack.c.h.b16 %v67
  %v374 = vunpack.c.l.b16 %v68
  %v375 = vunpack.c.h.b16 %v68
  %v376 = vunpack.c.l.b16 %v69
  %v377 = vunpack.c.h.b16 %v69
  %v378 = vunpack.c.l.b16 %v70
  %v379 = vunpack.c.h.b16 %v70
  %v380 = vunpack.c.l.b16 %v71
  %v381 = vunpack.c.h.b16 %v71
  %v382 = vunpack.c.l.b16 %v72
  %v383 = vunpack.c.h.b16 %v72
  %v384 = vunpack.c.l.b16 %v73
  %v385 = vunpack.c.h.b16 %v73
  %v386 = vunpack.c.l.b16 %v74
  %v387 = vunpack.c.h.b16 %v74
  %v388 = vunpack.c.l.b16 %v75
  %v389 = vunpack.c.h.b16 %v75
  %v390 = vunpack.c.l.b16 %v76
  %v391 = vunpack.c.h.b16 %v76
  %v392 = vunpack.c.l.b16 %v77
  %v393 = vunpack.c.h.b16 %v77
  %v394 = vunpack.c.l.b16 %v78
  %v395 = vunpack.c.h.b16 %v78
  %v396 = vunpack.c.l.b16 %v79
  %v397 = vunpack.c.h.b16 %v79
  %v398 = vunpack.c.l.b16 %v80
  %v399 = vunpack.c.h.b16 %v80
  %v400 = vunpack.c.l.b16 %v81
  %v401 = vunpack.c.h.b16 %v81
  %v402 = vpack.c.b16 %v282, %v274
  %v403 = vpack.c.b16 %v283, %v275
  %v404 = vpack.c.b16 %v284, %v276
  %v405 = vpack.c.b16 %v285, %v277
  %v406 = vpack.c.b16 %v286, %v278
  %v407 = vpack.c.b16 %v287, %v279
  %v408 = vpack.c.b16 %v288, %v280
  %v409 = vpack.c.b16 %v289, %v281
  %v410 = vpack.c.b16 %v298, %v290
  %v411 = vpack.c.b16 %v299, %v291
  %v412 = vpack.c.b16 %v300, %v292
  %v413 = vpack.c.b16 %v301, %v293
  %v414 = vpack.c.b16 %v302, %v294
  %v415 = vpack.c.b16 %v303, %v295
  %v416 = vpack.c.b16 %v304, %v296
  %v417 = vpack.c.b16 %v305, %v297
  %v418 = vpack.c.b16 %v314, %v306
  %v419 = vpack.c.b16 %v315, %v307
  %v420 = vpack.c.b16 %v316, %v308
  %v421 = vpack.c.b16 %v317, %v309
  %v422 = vpack.c.b16 %v318, %v310
  %v423 = vpack.c.b16 %v319, %v311
  %v424 = vpack.c.b16 %v320, %v312
  %v425 = vpack.c.b16 %v321, %v313
  %v426 = vpack.c.b16 %v330, %v322
  %v427 = vpack.c.b16 %v331, %v323
  %v428 = vpack.c.b16 %v332, %v324
  %v429 = vpack.c.b16 %v333, %v325
  %v430 = vpack.c.b16 %v334, %v326
  %v431 = vpack.c.b16 %v335, %v327
  %v432 = vpack.c.b16 %v336, %v328
  %v433 = vpack.c.b16 %v337, %v329
  %v434 = vpack.c.b16 %v346, %v338
  %v435 = vpack.c.b16 %v347, %v339
  %v436 = vpack.c.b16 %v348, %v340
  %v437 = vpack.c.b16 %v349, %v341
  %v438 = vpack.c.b16 %v350, %v342
  %v439 = vpack.c.b16 %v351, %v343
  %v440 = vpack.c.b16 %v352, %v344
  %v441 = vpack.c.b16 %v353, %v345
  %v442 = vpack.c.b16 %v362, %v354
  %v443 = vpack.c.b16 %v363, %v355
  %v444 = vpack.c.b16 %v364, %v356
  %v445 = vpack.c.b16 %v365, %v357
  %v446 = vpack.c.b16 %v366, %v358
  %v447 = vpack.c.b16 %v367, %v359
  %v448 = vpack.c.b16 %v368, %v360
  %v449 = vpack.c.b16 %v369, %v361
  %v450 = vpack.c.b16 %v378, %v370
  %v451 = vpack.c.b16 %v379, %v371
  %v452 = vpack.c.b16 %v380, %v372
  %v453 = vpack.c.b16 %v381, %v373
  %v454 = vpack.c.b16 %v382, %v374
  %v455 = vpack.c.b16 %v383, %v375
  %v456 = vpack.c.b16 %v384, %v376
  %v457 = vpack.c.b16 %v385, %v377
  %v458 = vpack.c.b16 %v394, %v386
  %v459 = vpack.c.b16 %v395, %v387
  %v460 = vpack.c.b16 %v396, %v388
  %v461 = vpack.c.b16 %v397, %v389
  %v462 = vpack.c.b16 %v398, %v390
  %v463 = vpack.c.b16 %v399, %v391
  %v464 = vpack.c.b16 %v400, %v392
  %v465 = vpack.c.b16 %v401, %v393
  %v658 = vunpack.c.l.b16 %v82
  %v659 = vunpack.c.l.b16 %v83
  %v660 = vunpack.c.l.b16 %v84
  %v661 = vunpack.c.l.b16 %v85
  %v662 = vunpack.c.l.b16 %v86
  %v663 = vunpack.c.l.b16 %v87
  %v664 = vunpack.c.l.b16 %v88
  %v665 = vunpack.c.l.b16 %v89
  %v666 = vunpack.c.l.b16 %v90
  %v667 = vunpack.c.l.b16 %v91
  %v668 = vunpack.c.l.b16 %v92
  %v669 = vunpack.c.l.b16 %v93
  %v670 = vunpack.c.l.b16 %v94
  %v671 = vunpack.c.l.b16 %v95
  %v672 = vunpack.c.l.b16 %v96
  %v673 = vunpack.c.l.b16 %v97
  %v674 = vunpack.c.l.b16 %v98
  %v675 = vunpack.c.l.b16 %v99
  %v676 = vunpack.c.l.b16 %v100
  %v677 = vunpack.c.l.b16 %v101
  %v678 = vunpack.c.l.b16 %v102
  %v679 = vunpack.c.l.b16 %v103
  %v680 = vunpack.c.l.b16 %v104
  %v681 = vunpack.c.l.b16 %v105
  %v682 = vunpack.c.l.b16 %v106
  %v683 = vunpack.c.l.b16 %v107
  %v684 = vunpack.c.l.b16 %v108
  %v685 = vunpack.c.l.b16 %v109
  %v686 = vunpack.c.l.b16 %v110
  %v687 = vunpack.c.l.b16 %v111
  %v688 = vunpack.c.l.b16 %v112
  %v689 = vunpack.c.l.b16 %v113
  %v690 = vunpack.c.l.b16 %v114
  %v691 = vunpack.c.l.b16 %v115
  %v692 = vunpack.c.l.b16 %v116
  %v693 = vunpack.c.l.b16 %v117
  %v694 = vunpack.c.l.b16 %v118
  %v695 = vunpack.c.l.b16 %v119
  %v696 = vunpack.c.l.b16 %v120
  %v697 = vunpack.c.l.b16 %v121
  %v698 = vunpack.c.l.b16 %v122
  %v699 = vunpack.c.l.b16 %v123
  %v700 = vunpack.c.l.b16 %v124
  %v701 = vunpack.c.l.b16 %v125
  %v702 = vunpack.c.l.b16 %v126
  %v703 = vunpack.c.l.b16 %v127
  %v704 = vunpack.c.l.b16 %v128
  %v705 = vunpack.c.l.b16 %v129
  %v706 = vunpack.c.l.b16 %v130
  %v707 = vunpack.c.l.b16 %v131
  %v708 = vunpack.c.l.b16 %v132
  %v709 = vunpack.c.l.b16 %v133
  %v710 = vunpack.c.l.b16 %v134
  %v711 = vunpack.c.l.b16 %v135
  %v712 = vunpack.c.l.b16 %v136
  %v713 = vunpack.c.l.b16 %v137
  %v714 = vunpack.c.l.b16 %v138
  %v715 = vunpack.c.l.b16 %v139
  %v716 = vunpack.c.l.b16 %v140
  %v717 = vunpack.c.l.b16 %v141
  %v718 = vunpack.c.l.b16 %v142
  %v719 = vunpack.c.l.b16 %v143
  %v720 = vunpack.c.l.b16 %v144
  %v721 = vunpack.c.l.b16 %v145
  %v722 = vunpack.c.l.b16 %v146
  %v723 = vunpack.c.l.b16 %v147
  %v724 = vunpack.c.l.b16 %v148
  %v725 = vunpack.c.l.b16 %v149
  %v726 = vunpack.c.l.b16 %v150
  %v727 = vunpack.c.l.b16 %v151
  %v728 = vunpack.c.l.b16 %v152
  %v729 = vunpack.c.l.b16 %v153
  %v730 = vunpack.c.l.b16 %v154
  %v731 = vunpack.c.l.b16 %v155
  %v732 = vunpack.c.l.b16 %v156
  %v733 = vunpack.c.l.b16 %v157
  %v734 = vunpack.c.l.b16 %v158
  %v735 = vunpack.c.l.b16 %v159
  %v736 = vunpack.c.l.b16 %v160
  %v737 = vunpack.c.l.b16 %v161
  %v738 = vunpack.c.l.b16 %v162
  %v739 = vunpack.c.l.b16 %v163
  %v740 = vunpack.c.l.b16 %v164
  %v741 = vunpack.c.l.b16 %v165
  %v742 = vunpack.c.l.b16 %v166
  %v743 = vunpack.c.l.b16 %v167
  %v744 = vunpack.c.l.b16 %v168
  %v745 = vunpack.c.l.b16 %v169
  %v746 = vunpack.c.l.b16 %v170
  %v747 = vunpack.c.l.b16 %v171
  %v748 = vunpack.c.l.b16 %v172
  %v749 = vunpack.c.l.b16 %v173
  %v750 = vunpack.c.l.b16 %v174
  %v751 = vunpack.c.l.b16 %v175
  %v752 = vunpack.c.l.b16 %v176
  %v753 = vunpack.c.l.b16 %v177
  %v754 = vunpack.c.l.b16 %v178
  %v755 = vunpack.c.l.b16 %v179
  %v756 = vunpack.c.l.b16 %v180
  %v757 = vunpack.c.l.b16 %v181
  %v758 = vunpack.c.l.b16 %v182
  %v759 = vunpack.c.l.b16 %v183
  %v760 = vunpack.c.l.b16 %v184
  %v761 = vunpack.c.l.b16 %v185
  %v762 = vunpack.c.l.b16 %v186
  %v763 = vunpack.c.l.b16 %v187
  %v764 = vunpack.c.l.b16 %v188
  %v765 = vunpack.c.l.b16 %v189
  %v766 = vunpack.c.l.b16 %v190
  %v767 = vunpack.c.l.b16 %v191
  %v768 = vunpack.c.l.b16 %v192
  %v769 = vunpack.c.l.b16 %v193
  %v770 = vunpack.c.l.b16 %v194
  %v771 = vunpack.c.l.b16 %v195
  %v772 = vunpack.c.l.b16 %v196
  %v773 = vunpack.c.l.b16 %v197
  %v774 = vunpack.c.l.b16 %v198
  %v775 = vunpack.c.l.b16 %v199
  %v776 = vunpack.c.l.b16 %v200
  %v777 = vunpack.c.l.b16 %v201
  %v778 = vunpack.c.l.b16 %v202
  %v779 = vunpack.c.l.b16 %v203
  %v780 = vunpack.c.l.b16 %v204
  %v781 = vunpack.c.l.b16 %v205
  %v782 = vunpack.c.l.b16 %v206
  %v783 = vunpack.c.l.b16 %v207
  %v784 = vunpack.c.l.b16 %v208
  %v785 = vunpack.c.l.b16 %v209
  %v786 = vpack.c.b16 %v659, %v658
  %v787 = vpack.c.b16 %v661, %v660
  %v788 = vpack.c.b16 %v663, %v662
  %v789 = vpack.c.b16 %v665, %v664
  %v790 = vpack.c.b16 %v667, %v666
  %v791 = vpack.c.b16 %v669, %v668
  %v792 = vpack.c.b16 %v671, %v670
  %v793 = vpack.c.b16 %v673, %v672
  %v794 = vpack.c.b16 %v675, %v674
  %v795 = vpack.c.b16 %v677, %v676
  %v796 = vpack.c.b16 %v679, %v678
  %v797 = vpack.c.b16 %v681, %v680
  %v798 = vpack.c.b16 %v683, %v682
  %v799 = vpack.c.b16 %v685, %v684
  %v800 = vpack.c.b16 %v687, %v686
  %v801 = vpack.c.b16 %v689, %v688
  %v802 = vpack.c.b16 %v691, %v690
  %v803 = vpack.c.b16 %v693, %v692
  %v804 = vpack.c.b16 %v695, %v694
  %v805 = vpack.c.b16 %v697, %v696
  %v806 = vpack.c.b16 %v699, %v698
  %v807 = vpack.c.b16 %v701, %v700
  %v808 = vpack.c.b16 %v703, %v702
  %v809 = vpack.c.b16 %v705, %v704
  %v810 = vpack.c.b16 %v707, %v706
  %v811 = vpack.c.b16 %v709, %v708
  %v812 = vpack.c.b16 %v711, %v710
  %v813 = vpack.c.b16 %v713, %v712
  %v814 = vpack.c.b16 %v715, %v714
  %v815 = vpack.c.b16 %v717, %v716
  %v816 = vpack.c.b16 %v719, %v718
  %v817 = vpack.c.b16 %v721, %v720
  %v818 = vpack.c.b16 %v723, %v722
  %v819 = vpack.c.b16 %v725, %v724
  %v820 = vpack.c.b16 %v727, %v726
  %v821 = vpack.c.b16 %v729, %v728
  %v822 = vpack.c.b16 %v731, %v730
  %v823 = vpack.c.b16 %v733, %v732
  %v824 = vpack.c.b16 %v735, %v734
  %v825 = vpack.c.b16 %v737, %v736
  %v826 = vpack.c.b16 %v739, %v738
  %v827 = vpack.c.b16 %v741, %v740
  %v828 = vpack.c.b16 %v743, %v742
  %v829 = vpack.c.b16 %v745, %v744
  %v830 = vpack.c.b16 %v747, %v746
  %v831 = vpack.c.b16 %v749, %v748
  %v832 = vpack.c.b16 %v751, %v750
  %v833 = vpack.c.b16 %v753, %v752
  %v834 = vpack.c.b16 %v755, %v754
  %v835 = vpack.c.b16 %v757, %v756
  %v836 = vpack.c.b16 %v759, %v758
  %v837 = vpack.c.b16 %v761, %v760
  %v838 = vpack.c.b16 %v763, %v762
  %v839 = vpack.c.b16 %v765, %v764
  %v840 = vpack.c.b16 %v767, %v766
  %v841 = vpack.c.b16 %v769, %v768
  %v842 = vpack.c.b16 %v771, %v770
  %v843 = vpack.c.b16 %v773, %v772
  %v844 = vpack.c.b16 %v775, %v774
  %v845 = vpack.c.b16 %v777, %v776
  %v846 = vpack.c.b16 %v779, %v778
  %v847 = vpack.c.b16 %v781, %v780
  %v848 = vpack.c.b16 %v783, %v782
  %v849 = vpack.c.b16 %v785, %v784
  %914 = vmatprep.subr.bf16.mxu0 0
  %915 = vmatpush1.bf16.msra.mxu0 %v786
  %916 = vmatprep.subr.bf16.mxu0 0
  %917 = vmatpush1.bf16.msra.mxu0 %v787
  %918 = vmatprep.subr.bf16.mxu0 0
  %919 = vmatpush1.bf16.msra.mxu0 %v788
  %920 = vmatprep.subr.bf16.mxu0 0
  %921 = vmatpush1.bf16.msra.mxu0 %v789
  %922 = vmatprep.subr.bf16.mxu0 0
  %923 = vmatpush1.bf16.msra.mxu0 %v790
  %924 = vmatprep.subr.bf16.mxu0 0
  %925 = vmatpush1.bf16.msra.mxu0 %v791
  %926 = vmatprep.subr.bf16.mxu0 0
  %927 = vmatpush1.bf16.msra.mxu0 %v792
  %928 = vmatprep.subr.bf16.mxu0 0
  %929 = vmatpush1.bf16.msra.mxu0 %v793
  %930 = vmatprep.subr.bf16.mxu0 0
  %931 = vmatpush1.bf16.msra.mxu0 %v794
  %932 = vmatprep.subr.bf16.mxu0 0
  %933 = vmatpush1.bf16.msra.mxu0 %v795
  %934 = vmatprep.subr.bf16.mxu0 0
  %935 = vmatpush1.bf16.msra.mxu0 %v796
  %936 = vmatprep.subr.bf16.mxu0 0
  %937 = vmatpush1.bf16.msra.mxu0 %v797
  %938 = vmatprep.subr.bf16.mxu0 0
  %939 = vmatpush1.bf16.msra.mxu0 %v798
  %940 = vmatprep.subr.bf16.mxu0 0
  %941 = vmatpush1.bf16.msra.mxu0 %v799
  %942 = vmatprep.subr.bf16.mxu0 0
  %943 = vmatpush1.bf16.msra.mxu0 %v800
  %944 = vmatprep.subr.bf16.mxu0 0
  %945 = vmatpush1.bf16.msra.mxu0 %v801
  %946 = vmatprep.mubr.bf16.mxu0 %v403
  %947 = vmatmul.mubr.bf16.gmra.mrb[0].mxu0 %v402
  %v948 = vpop.f32.mrb[0].mxu0
  %v949 = vadd.f32 0.0, %v948
  %v950 = vpop.f32.mrb[0].mxu0
  %v951 = vpop.f32.mrb[0].mxu0
  %v952 = vadd.f32 0.0, %v951
  %v953 = vpop.f32.mrb[0].mxu0
  %954 = vmatprep.mubr.bf16.mxu0 %v411
  %955 = vmatmul.mubr.bf16.gmra.mrb[0].mxu0 %v410
  %v956 = vpop.f32.mrb[0].mxu0
  %v957 = vadd.f32 0.0, %v956
  %v958 = vpop.f32.mrb[0].mxu0
  %v959 = vpop.f32.mrb[0].mxu0
  %v960 = vadd.f32 0.0, %v959
  %v961 = vpop.f32.mrb[0].mxu0
  %962 = vmatprep.mubr.bf16.mxu0 %v419
  %963 = vmatmul.mubr.bf16.gmra.mrb[0].mxu0 %v418
  %v964 = vpop.f32.mrb[0].mxu0
  %v965 = vadd.f32 0.0, %v964
  %v966 = vpop.f32.mrb[0].mxu0
  %v967 = vpop.f32.mrb[0].mxu0
  %v968 = vadd.f32 0.0, %v967
  %v969 = vpop.f32.mrb[0].mxu0
  %970 = vmatprep.mubr.bf16.mxu0 %v427
  %971 = vmatmul.mubr.bf16.gmra.mrb[0].mxu0 %v426
  %v972 = vpop.f32.mrb[0].mxu0
  %v973 = vadd.f32 0.0, %v972
  %v974 = vpop.f32.mrb[0].mxu0
  %v975 = vpop.f32.mrb[0].mxu0
  %v976 = vadd.f32 0.0, %v975
  %v977 = vpop.f32.mrb[0].mxu0
  %978 = vmatprep.mubr.bf16.mxu0 %v435
  %979 = vmatmul.mubr.bf16.gmra.mrb[0].mxu0 %v434
  %v980 = vpop.f32.mrb[0].mxu0
  %v981 = vadd.f32 0.0, %v980
  %v982 = vpop.f32.mrb[0].mxu0
  %v983 = vpop.f32.mrb[0].mxu0
  %v984 = vadd.f32 0.0, %v983
  %v985 = vpop.f32.mrb[0].mxu0
  %986 = vmatprep.mubr.bf16.mxu0 %v443
  %987 = vmatmul.mubr.bf16.gmra.mrb[0].mxu0 %v442
  %v988 = vpop.f32.mrb[0].mxu0
  %v989 = vadd.f32 0.0, %v988
  %v990 = vpop.f32.mrb[0].mxu0
  %v991 = vpop.f32.mrb[0].mxu0
  %v992 = vadd.f32 0.0, %v991
  %v993 = vpop.f32.mrb[0].mxu0
  %994 = vmatprep.mubr.bf16.mxu0 %v451
  %995 = vmatmul.mubr.bf16.gmra.mrb[0].mxu0 %v450
  %v996 = vpop.f32.mrb[0].mxu0
  %v997 = vadd.f32 0.0, %v996
  %v998 = vpop.f32.mrb[0].mxu0
  %v999 = vpop.f32.mrb[0].mxu0
  %v1000 = vadd.f32 0.0, %v999
  %v1001 = vpop.f32.mrb[0].mxu0
  %1002 = vmatprep.mubr.bf16.mxu0 %v459
  %1003 = vmatmul.mubr.bf16.gmra.mrb[0].mxu0 %v458
  %v1004 = vpop.f32.mrb[0].mxu0
  %v1005 = vadd.f32 0.0, %v1004
  %v1006 = vpop.f32.mrb[0].mxu0
  %v1007 = vpop.f32.mrb[0].mxu0
  %v1008 = vadd.f32 0.0, %v1007
  %v1009 = vpop.f32.mrb[0].mxu0
  %1010 = vdwg.mxu0
  %1011 = vmatprep.subr.bf16.mxu0 0
  %1012 = vmatpush1.bf16.msra.mxu0 %v802
  %1013 = vmatprep.subr.bf16.mxu0 0
  %1014 = vmatpush1.bf16.msra.mxu0 %v803
  %1015 = vmatprep.subr.bf16.mxu0 0
  %1016 = vmatpush1.bf16.msra.mxu0 %v804
  %1017 = vmatprep.subr.bf16.mxu0 0
  %1018 = vmatpush1.bf16.msra.mxu0 %v805
  %1019 = vmatprep.subr.bf16.mxu0 0
  %1020 = vmatpush1.bf16.msra.mxu0 %v806
  %1021 = vmatprep.subr.bf16.mxu0 0
  %1022 = vmatpush1.bf16.msra.mxu0 %v807
  %1023 = vmatprep.subr.bf16.mxu0 0
  %1024 = vmatpush1.bf16.msra.mxu0 %v808
  %1025 = vmatprep.subr.bf16.mxu0 0
  %1026 = vmatpush1.bf16.msra.mxu0 %v809
  %1027 = vmatprep.subr.bf16.mxu0 0
  %1028 = vmatpush1.bf16.msra.mxu0 %v810
  %1029 = vmatprep.subr.bf16.mxu0 0
  %1030 = vmatpush1.bf16.msra.mxu0 %v811
  %1031 = vmatprep.subr.bf16.mxu0 0
  %1032 = vmatpush1.bf16.msra.mxu0 %v812
  %1033 = vmatprep.subr.bf16.mxu0 0
  %1034 = vmatpush1.bf16.msra.mxu0 %v813
  %1035 = vmatprep.subr.bf16.mxu0 0
  %1036 = vmatpush1.bf16.msra.mxu0 %v814
  %1037 = vmatprep.subr.bf16.mxu0 0
  %1038 = vmatpush1.bf16.msra.mxu0 %v815
  %1039 = vmatprep.subr.bf16.mxu0 0
  %1040 = vmatpush1.bf16.msra.mxu0 %v816
  %1041 = vmatprep.subr.bf16.mxu0 0
  %1042 = vmatpush1.bf16.msra.mxu0 %v817
  %1043 = vmatprep.mubr.bf16.mxu0 %v405
  %1044 = vmatmul.mubr.bf16.gmra.mrb[0].mxu0 %v404
  %v1045 = vpop.f32.mrb[0].mxu0
  %v1046 = vadd.f32 %v949, %v1045
  %v1047 = vpop.f32.mrb[0].mxu0
  %v1048 = vpop.f32.mrb[0].mxu0
  %v1049 = vadd.f32 %v952, %v1048
  %v1050 = vpop.f32.mrb[0].mxu0
  %1051 = vmatprep.mubr.bf16.mxu0 %v413
  %1052 = vmatmul.mubr.bf16.gmra.mrb[0].mxu0 %v412
  %v1053 = vpop.f32.mrb[0].mxu0
  %v1054 = vadd.f32 %v957, %v1053
  %v1055 = vpop.f32.mrb[0].mxu0
  %v1056 = vpop.f32.mrb[0].mxu0
  %v1057 = vadd.f32 %v960, %v1056
  %v1058 = vpop.f32.mrb[0].mxu0
  %1059 = vmatprep.mubr.bf16.mxu0 %v421
  %1060 = vmatmul.mubr.bf16.gmra.mrb[0].mxu0 %v420
  %v1061 = vpop.f32.mrb[0].mxu0
  %v1062 = vadd.f32 %v965, %v1061
  %v1063 = vpop.f32.mrb[0].mxu0
  %v1064 = vpop.f32.mrb[0].mxu0
  %v1065 = vadd.f32 %v968, %v1064
  %v1066 = vpop.f32.mrb[0].mxu0
  %1067 = vmatprep.mubr.bf16.mxu0 %v429
  %1068 = vmatmul.mubr.bf16.gmra.mrb[0].mxu0 %v428
  %v1069 = vpop.f32.mrb[0].mxu0
  %v1070 = vadd.f32 %v973, %v1069
  %v1071 = vpop.f32.mrb[0].mxu0
  %v1072 = vpop.f32.mrb[0].mxu0
  %v1073 = vadd.f32 %v976, %v1072
  %v1074 = vpop.f32.mrb[0].mxu0
  %1075 = vmatprep.mubr.bf16.mxu0 %v437
  %1076 = vmatmul.mubr.bf16.gmra.mrb[0].mxu0 %v436
  %v1077 = vpop.f32.mrb[0].mxu0
  %v1078 = vadd.f32 %v981, %v1077
  %v1079 = vpop.f32.mrb[0].mxu0
  %v1080 = vpop.f32.mrb[0].mxu0
  %v1081 = vadd.f32 %v984, %v1080
  %v1082 = vpop.f32.mrb[0].mxu0
  %1083 = vmatprep.mubr.bf16.mxu0 %v445
  %1084 = vmatmul.mubr.bf16.gmra.mrb[0].mxu0 %v444
  %v1085 = vpop.f32.mrb[0].mxu0
  %v1086 = vadd.f32 %v989, %v1085
  %v1087 = vpop.f32.mrb[0].mxu0
  %v1088 = vpop.f32.mrb[0].mxu0
  %v1089 = vadd.f32 %v992, %v1088
  %v1090 = vpop.f32.mrb[0].mxu0
  %1091 = vmatprep.mubr.bf16.mxu0 %v453
  %1092 = vmatmul.mubr.bf16.gmra.mrb[0].mxu0 %v452
  %v1093 = vpop.f32.mrb[0].mxu0
  %v1094 = vadd.f32 %v997, %v1093
  %v1095 = vpop.f32.mrb[0].mxu0
  %v1096 = vpop.f32.mrb[0].mxu0
  %v1097 = vadd.f32 %v1000, %v1096
  %v1098 = vpop.f32.mrb[0].mxu0
  %1099 = vmatprep.mubr.bf16.mxu0 %v461
  %1100 = vmatmul.mubr.bf16.gmra.mrb[0].mxu0 %v460
  %v1101 = vpop.f32.mrb[0].mxu0
  %v1102 = vadd.f32 %v1005, %v1101
  %v1103 = vpop.f32.mrb[0].mxu0
  %v1104 = vpop.f32.mrb[0].mxu0
  %v1105 = vadd.f32 %v1008, %v1104
  %v1106 = vpop.f32.mrb[0].mxu0
  %1107 = vdwg.mxu0
  %1108 = vmatprep.subr.bf16.mxu0 0
  %1109 = vmatpush1.bf16.msra.mxu0 %v818
  %1110 = vmatprep.subr.bf16.mxu0 0
  %1111 = vmatpush1.bf16.msra.mxu0 %v819
  %1112 = vmatprep.subr.bf16.mxu0 0
  %1113 = vmatpush1.bf16.msra.mxu0 %v820
  %1114 = vmatprep.subr.bf16.mxu0 0
  %1115 = vmatpush1.bf16.msra.mxu0 %v821
  %1116 = vmatprep.subr.bf16.mxu0 0
  %1117 = vmatpush1.bf16.msra.mxu0 %v822
  %1118 = vmatprep.subr.bf16.mxu0 0
  %1119 = vmatpush1.bf16.msra.mxu0 %v823
  %1120 = vmatprep.subr.bf16.mxu0 0
  %1121 = vmatpush1.bf16.msra.mxu0 %v824
  %1122 = vmatprep.subr.bf16.mxu0 0
  %1123 = vmatpush1.bf16.msra.mxu0 %v825
  %1124 = vmatprep.subr.bf16.mxu0 0
  %1125 = vmatpush1.bf16.msra.mxu0 %v826
  %1126 = vmatprep.subr.bf16.mxu0 0
  %1127 = vmatpush1.bf16.msra.mxu0 %v827
  %1128 = vmatprep.subr.bf16.mxu0 0
  %1129 = vmatpush1.bf16.msra.mxu0 %v828
  %1130 = vmatprep.subr.bf16.mxu0 0
  %1131 = vmatpush1.bf16.msra.mxu0 %v829
  %1132 = vmatprep.subr.bf16.mxu0 0
  %1133 = vmatpush1.bf16.msra.mxu0 %v830
  %1134 = vmatprep.subr.bf16.mxu0 0
  %1135 = vmatpush1.bf16.msra.mxu0 %v831
  %1136 = vmatprep.subr.bf16.mxu0 0
  %1137 = vmatpush1.bf16.msra.mxu0 %v832
  %1138 = vmatprep.subr.bf16.mxu0 0
  %1139 = vmatpush1.bf16.msra.mxu0 %v833
  %1140 = vmatprep.mubr.bf16.mxu0 %v407
  %1141 = vmatmul.mubr.bf16.gmra.mrb[0].mxu0 %v406
  %v1142 = vpop.f32.mrb[0].mxu0
  %v1143 = vadd.f32 %v1046, %v1142
  %v1144 = vpop.f32.mrb[0].mxu0
  %v1145 = vpop.f32.mrb[0].mxu0
  %v1146 = vadd.f32 %v1049, %v1145
  %v1147 = vpop.f32.mrb[0].mxu0
  %1148 = vmatprep.mubr.bf16.mxu0 %v415
  %1149 = vmatmul.mubr.bf16.gmra.mrb[0].mxu0 %v414
  %v1150 = vpop.f32.mrb[0].mxu0
  %v1151 = vadd.f32 %v1054, %v1150
  %v1152 = vpop.f32.mrb[0].mxu0
  %v1153 = vpop.f32.mrb[0].mxu0
  %v1154 = vadd.f32 %v1057, %v1153
  %v1155 = vpop.f32.mrb[0].mxu0
  %1156 = vmatprep.mubr.bf16.mxu0 %v423
  %1157 = vmatmul.mubr.bf16.gmra.mrb[0].mxu0 %v422
  %v1158 = vpop.f32.mrb[0].mxu0
  %v1159 = vadd.f32 %v1062, %v1158
  %v1160 = vpop.f32.mrb[0].mxu0
  %v1161 = vpop.f32.mrb[0].mxu0
  %v1162 = vadd.f32 %v1065, %v1161
  %v1163 = vpop.f32.mrb[0].mxu0
  %1164 = vmatprep.mubr.bf16.mxu0 %v431
  %1165 = vmatmul.mubr.bf16.gmra.mrb[0].mxu0 %v430
  %v1166 = vpop.f32.mrb[0].mxu0
  %v1167 = vadd.f32 %v1070, %v1166
  %v1168 = vpop.f32.mrb[0].mxu0
  %v1169 = vpop.f32.mrb[0].mxu0
  %v1170 = vadd.f32 %v1073, %v1169
  %v1171 = vpop.f32.mrb[0].mxu0
  %1172 = vmatprep.mubr.bf16.mxu0 %v439
  %1173 = vmatmul.mubr.bf16.gmra.mrb[0].mxu0 %v438
  %v1174 = vpop.f32.mrb[0].mxu0
  %v1175 = vadd.f32 %v1078, %v1174
  %v1176 = vpop.f32.mrb[0].mxu0
  %v1177 = vpop.f32.mrb[0].mxu0
  %v1178 = vadd.f32 %v1081, %v1177
  %v1179 = vpop.f32.mrb[0].mxu0
  %1180 = vmatprep.mubr.bf16.mxu0 %v447
  %1181 = vmatmul.mubr.bf16.gmra.mrb[0].mxu0 %v446
  %v1182 = vpop.f32.mrb[0].mxu0
  %v1183 = vadd.f32 %v1086, %v1182
  %v1184 = vpop.f32.mrb[0].mxu0
  %v1185 = vpop.f32.mrb[0].mxu0
  %v1186 = vadd.f32 %v1089, %v1185
  %v1187 = vpop.f32.mrb[0].mxu0
  %1188 = vmatprep.mubr.bf16.mxu0 %v455
  %1189 = vmatmul.mubr.bf16.gmra.mrb[0].mxu0 %v454
  %v1190 = vpop.f32.mrb[0].mxu0
  %v1191 = vadd.f32 %v1094, %v1190
  %v1192 = vpop.f32.mrb[0].mxu0
  %v1193 = vpop.f32.mrb[0].mxu0
  %v1194 = vadd.f32 %v1097, %v1193
  %v1195 = vpop.f32.mrb[0].mxu0
  %1196 = vmatprep.mubr.bf16.mxu0 %v463
  %1197 = vmatmul.mubr.bf16.gmra.mrb[0].mxu0 %v462
  %v1198 = vpop.f32.mrb[0].mxu0
  %v1199 = vadd.f32 %v1102, %v1198
  %v1200 = vpop.f32.mrb[0].mxu0
  %v1201 = vpop.f32.mrb[0].mxu0
  %v1202 = vadd.f32 %v1105, %v1201
  %v1203 = vpop.f32.mrb[0].mxu0
  %1204 = vdwg.mxu0
  %1205 = vmatprep.subr.bf16.mxu0 0
  %1206 = vmatpush1.bf16.msra.mxu0 %v834
  %1207 = vmatprep.subr.bf16.mxu0 0
  %1208 = vmatpush1.bf16.msra.mxu0 %v835
  %1209 = vmatprep.subr.bf16.mxu0 0
  %1210 = vmatpush1.bf16.msra.mxu0 %v836
  %1211 = vmatprep.subr.bf16.mxu0 0
  %1212 = vmatpush1.bf16.msra.mxu0 %v837
  %1213 = vmatprep.subr.bf16.mxu0 0
  %1214 = vmatpush1.bf16.msra.mxu0 %v838
  %1215 = vmatprep.subr.bf16.mxu0 0
  %1216 = vmatpush1.bf16.msra.mxu0 %v839
  %1217 = vmatprep.subr.bf16.mxu0 0
  %1218 = vmatpush1.bf16.msra.mxu0 %v840
  %1219 = vmatprep.subr.bf16.mxu0 0
  %1220 = vmatpush1.bf16.msra.mxu0 %v841
  %1221 = vmatprep.subr.bf16.mxu0 0
  %1222 = vmatpush1.bf16.msra.mxu0 %v842
  %1223 = vmatprep.subr.bf16.mxu0 0
  %1224 = vmatpush1.bf16.msra.mxu0 %v843
  %1225 = vmatprep.subr.bf16.mxu0 0
  %1226 = vmatpush1.bf16.msra.mxu0 %v844
  %1227 = vmatprep.subr.bf16.mxu0 0
  %1228 = vmatpush1.bf16.msra.mxu0 %v845
  %1229 = vmatprep.subr.bf16.mxu0 0
  %1230 = vmatpush1.bf16.msra.mxu0 %v846
  %1231 = vmatprep.subr.bf16.mxu0 0
  %1232 = vmatpush1.bf16.msra.mxu0 %v847
  %1233 = vmatprep.subr.bf16.mxu0 0
  %1234 = vmatpush1.bf16.msra.mxu0 %v848
  %1235 = vmatprep.subr.bf16.mxu0 0
  %1236 = vmatpush1.bf16.msra.mxu0 %v849
  %1237 = vmatprep.mubr.bf16.mxu0 %v409
  %1238 = vmatmul.mubr.bf16.gmra.mrb[0].mxu0 %v408
  %v1239 = vpop.f32.mrb[0].mxu0
  %v1240 = vadd.f32 %v1143, %v1239
  %v1241 = vpop.f32.mrb[0].mxu0
  %v1242 = vpop.f32.mrb[0].mxu0
  %v1243 = vadd.f32 %v1146, %v1242
  %v1244 = vpop.f32.mrb[0].mxu0
  %1245 = vmatprep.mubr.bf16.mxu0 %v417
  %1246 = vmatmul.mubr.bf16.gmra.mrb[0].mxu0 %v416
  %v1247 = vpop.f32.mrb[0].mxu0
  %v1248 = vadd.f32 %v1151, %v1247
  %v1249 = vpop.f32.mrb[0].mxu0
  %v1250 = vpop.f32.mrb[0].mxu0
  %v1251 = vadd.f32 %v1154, %v1250
  %v1252 = vpop.f32.mrb[0].mxu0
  %1253 = vmatprep.mubr.bf16.mxu0 %v425
  %1254 = vmatmul.mubr.bf16.gmra.mrb[0].mxu0 %v424
  %v1255 = vpop.f32.mrb[0].mxu0
  %v1256 = vadd.f32 %v1159, %v1255
  %v1257 = vpop.f32.mrb[0].mxu0
  %v1258 = vpop.f32.mrb[0].mxu0
  %v1259 = vadd.f32 %v1162, %v1258
  %v1260 = vpop.f32.mrb[0].mxu0
  %1261 = vmatprep.mubr.bf16.mxu0 %v433
  %1262 = vmatmul.mubr.bf16.gmra.mrb[0].mxu0 %v432
  %v1263 = vpop.f32.mrb[0].mxu0
  %v1264 = vadd.f32 %v1167, %v1263
  %v1265 = vpop.f32.mrb[0].mxu0
  %v1266 = vpop.f32.mrb[0].mxu0
  %v1267 = vadd.f32 %v1170, %v1266
  %v1268 = vpop.f32.mrb[0].mxu0
  %1269 = vmatprep.mubr.bf16.mxu0 %v441
  %1270 = vmatmul.mubr.bf16.gmra.mrb[0].mxu0 %v440
  %v1271 = vpop.f32.mrb[0].mxu0
  %v1272 = vadd.f32 %v1175, %v1271
  %v1273 = vpop.f32.mrb[0].mxu0
  %v1274 = vpop.f32.mrb[0].mxu0
  %v1275 = vadd.f32 %v1178, %v1274
  %v1276 = vpop.f32.mrb[0].mxu0
  %1277 = vmatprep.mubr.bf16.mxu0 %v449
  %1278 = vmatmul.mubr.bf16.gmra.mrb[0].mxu0 %v448
  %v1279 = vpop.f32.mrb[0].mxu0
  %v1280 = vadd.f32 %v1183, %v1279
  %v1281 = vpop.f32.mrb[0].mxu0
  %v1282 = vpop.f32.mrb[0].mxu0
  %v1283 = vadd.f32 %v1186, %v1282
  %v1284 = vpop.f32.mrb[0].mxu0
  %1285 = vmatprep.mubr.bf16.mxu0 %v457
  %1286 = vmatmul.mubr.bf16.gmra.mrb[0].mxu0 %v456
  %v1287 = vpop.f32.mrb[0].mxu0
  %v1288 = vadd.f32 %v1191, %v1287
  %v1289 = vpop.f32.mrb[0].mxu0
  %v1290 = vpop.f32.mrb[0].mxu0
  %v1291 = vadd.f32 %v1194, %v1290
  %v1292 = vpop.f32.mrb[0].mxu0
  %1293 = vmatprep.mubr.bf16.mxu0 %v465
  %1294 = vmatmul.mubr.bf16.gmra.mrb[0].mxu0 %v464
  %v1295 = vpop.f32.mrb[0].mxu0
  %v1296 = vadd.f32 %v1199, %v1295
  %v1297 = vpop.f32.mrb[0].mxu0
  %v1298 = vpop.f32.mrb[0].mxu0
  %v1299 = vadd.f32 %v1202, %v1298
  %v1300 = vpop.f32.mrb[0].mxu0
  %1301 = vdwg.mxu0
  %v1302 = vld [vmem:[%s2] sm:$0x1]
  %v1304 = vlaneseq
  %v1305 = vshrl.u32 %v1304, 7
  %v1306 = vsub.s32 0, %v1305
  %v1307 = vrot.slane %v1302, %v1306
  %v1309 = vmul.f32 %v1240, %v1307
  %v1310 = vmul.f32 %v1243, %v1307
  %v1311 = vmul.f32 %v1248, %v1307
  %v1312 = vmul.f32 %v1251, %v1307
  %v1313 = vmul.f32 %v1256, %v1307
  %v1314 = vmul.f32 %v1259, %v1307
  %v1315 = vmul.f32 %v1264, %v1307
  %v1316 = vmul.f32 %v1267, %v1307
  %v1317 = vmul.f32 %v1272, %v1307
  %v1318 = vmul.f32 %v1275, %v1307
  %v1319 = vmul.f32 %v1280, %v1307
  %v1320 = vmul.f32 %v1283, %v1307
  %v1321 = vmul.f32 %v1288, %v1307
  %v1322 = vmul.f32 %v1291, %v1307
  %v1323 = vmul.f32 %v1296, %v1307
  %v1324 = vmul.f32 %v1299, %v1307
  %v1325 = vld [vmem:[%s3] sm:$0x1]
  %v1327 = vlaneseq
  %v1328 = vshrl.u32 %v1327, 7
  %v1329 = vsub.s32 0, %v1328
  %v1330 = vrot.slane %v1325, %v1329
  %v1332 = vadd.f32 %v1309, %v1330
  %v1333 = vadd.f32 %v1310, %v1330
  %v1334 = vadd.f32 %v1311, %v1330
  %v1335 = vadd.f32 %v1312, %v1330
  %v1336 = vadd.f32 %v1313, %v1330
  %v1337 = vadd.f32 %v1314, %v1330
  %v1338 = vadd.f32 %v1315, %v1330
  %v1339 = vadd.f32 %v1316, %v1330
  %v1340 = vadd.f32 %v1317, %v1330
  %v1341 = vadd.f32 %v1318, %v1330
  %v1342 = vadd.f32 %v1319, %v1330
  %v1343 = vadd.f32 %v1320, %v1330
  %v1344 = vadd.f32 %v1321, %v1330
  %v1345 = vadd.f32 %v1322, %v1330
  %v1346 = vadd.f32 %v1323, %v1330
  %v1347 = vadd.f32 %v1324, %v1330
  %v1348 = vmax.f32 %v1332, 0.0
  %v1349 = vmax.f32 %v1333, 0.0
  %v1350 = vmax.f32 %v1334, 0.0
  %v1351 = vmax.f32 %v1335, 0.0
  %v1352 = vmax.f32 %v1336, 0.0
  %v1353 = vmax.f32 %v1337, 0.0
  %v1354 = vmax.f32 %v1338, 0.0
  %v1355 = vmax.f32 %v1339, 0.0
  %v1356 = vmax.f32 %v1340, 0.0
  %v1357 = vmax.f32 %v1341, 0.0
  %v1358 = vmax.f32 %v1342, 0.0
  %v1359 = vmax.f32 %v1343, 0.0
  %v1360 = vmax.f32 %v1344, 0.0
  %v1361 = vmax.f32 %v1345, 0.0
  %v1362 = vmax.f32 %v1346, 0.0
  %v1363 = vmax.f32 %v1347, 0.0
  %v1364 = vpack.c.bf16 %v1349, %v1348
  %v1365 = vpack.c.bf16 %v1351, %v1350
  %v1366 = vpack.c.bf16 %v1353, %v1352
  %v1367 = vpack.c.bf16 %v1355, %v1354
  %v1368 = vpack.c.bf16 %v1357, %v1356
  %v1369 = vpack.c.bf16 %v1359, %v1358
  %v1370 = vpack.c.bf16 %v1361, %v1360
  %v1371 = vpack.c.bf16 %v1363, %v1362
  %v1380 = vunpack.c.l.b16 %v1364
  %v1381 = vunpack.c.h.b16 %v1364
  %v1382 = vunpack.c.l.b16 %v1365
  %v1383 = vunpack.c.h.b16 %v1365
  %v1384 = vunpack.c.l.b16 %v1366
  %v1385 = vunpack.c.h.b16 %v1366
  %v1386 = vunpack.c.l.b16 %v1367
  %v1387 = vunpack.c.h.b16 %v1367
  %v1388 = vunpack.c.l.b16 %v1368
  %v1389 = vunpack.c.h.b16 %v1368
  %v1390 = vunpack.c.l.b16 %v1369
  %v1391 = vunpack.c.h.b16 %v1369
  %v1392 = vunpack.c.l.b16 %v1370
  %v1393 = vunpack.c.h.b16 %v1370
  %v1394 = vunpack.c.l.b16 %v1371
  %v1395 = vunpack.c.h.b16 %v1371
  %v1396 = vpack.c.b16 %v1380, %v1380
  %v1397 = vpack.c.b16 %v1381, %v1381
  %v1398 = vpack.c.b16 %v1382, %v1382
  %v1399 = vpack.c.b16 %v1383, %v1383
  %v1400 = vpack.c.b16 %v1384, %v1384
  %v1401 = vpack.c.b16 %v1385, %v1385
  %v1402 = vpack.c.b16 %v1386, %v1386
  %v1403 = vpack.c.b16 %v1387, %v1387
  %v1404 = vpack.c.b16 %v1388, %v1388
  %v1405 = vpack.c.b16 %v1389, %v1389
  %v1406 = vpack.c.b16 %v1390, %v1390
  %v1407 = vpack.c.b16 %v1391, %v1391
  %v1408 = vpack.c.b16 %v1392, %v1392
  %v1409 = vpack.c.b16 %v1393, %v1393
  %v1410 = vpack.c.b16 %v1394, %v1394
  %v1411 = vpack.c.b16 %v1395, %v1395
  %vm1428 = vcmask 519168
  %1429 = vst.msk [vmem:[%s4] sm:$0xf] %vm1428, %v1396
  %1430 = vst.msk [vmem:[%s4 + $0x4] sm:$0xf] %vm1428, %v1397
  %1431 = vst.msk [vmem:[%s4 + $0x8] sm:$0xf] %vm1428, %v1398
  %1432 = vst.msk [vmem:[%s4 + $0xc] sm:$0xf] %vm1428, %v1399
  %1433 = vst.msk [vmem:[%s4 + $0x10] sm:$0xf] %vm1428, %v1400
  %1434 = vst.msk [vmem:[%s4 + $0x14] sm:$0xf] %vm1428, %v1401
  %1435 = vst.msk [vmem:[%s4 + $0x18] sm:$0xf] %vm1428, %v1402
  %1436 = vst.msk [vmem:[%s4 + $0x1c] sm:$0xf] %vm1428, %v1403
  %1437 = vst.msk [vmem:[%s4 + $0x20] sm:$0xf] %vm1428, %v1404
  %1438 = vst.msk [vmem:[%s4 + $0x24] sm:$0xf] %vm1428, %v1405
  %1439 = vst.msk [vmem:[%s4 + $0x28] sm:$0xf] %vm1428, %v1406
  %1440 = vst.msk [vmem:[%s4 + $0x2c] sm:$0xf] %vm1428, %v1407
  %1441 = vst.msk [vmem:[%s4 + $0x30] sm:$0xf] %vm1428, %v1408
  %1442 = vst.msk [vmem:[%s4 + $0x34] sm:$0xf] %vm1428, %v1409
  %1443 = vst.msk [vmem:[%s4 + $0x38] sm:$0xf] %vm1428, %v1410
  %1444 = vst.msk [vmem:[%s4 + $0x3c] sm:$0xf] %vm1428, %v1411
  // Predicated region
  $region18: #{discriminator_forward.9} parent=0 // pred_check
    _
  $region19: #{discriminator_forward.9} parent=0 // pred_check_branch
    %1446 = sbr.rel (0) target = $region21
  $region20: #{discriminator_forward.9} parent=0 // pred_region
    _
  $region21: #{discriminator_forward.9} parent=0 // pred_fallthru
    _
  // Predicated region
  $region22: #{discriminator_forward.9} parent=0 // pred_check
    _
  $region23: #{discriminator_forward.9} parent=0 // pred_check_branch
    %1448 = sbr.rel (0) target = $region25
  $region24: #{discriminator_forward.9} parent=0 // pred_region
    _
  $region25: #{discriminator_forward.9} parent=0 // pred_fallthru
    _

// kernel: discriminator_forward.10
$region0: #{discriminator_forward.10}
  #allocation0 [shape = 'u32[]', space=smem, size = 0x4, offset = 0x4, fixed_abs, tag = 'smem constant byte address 0x4 - core index']
  #allocation1 [shape = 'u32[144,128]{1,0:T(1,128)}', space=vmem, size = 0x12000, scoped, tag = 'internal scratch']
  %s0 = inlined_call_operand.vmem [shape: bf16[128,640], index: 0, kind: input, shape index: {}]
  %s1 = inlined_call_operand.vmem [shape: bf16[640,128], index: 1, kind: input, shape index: {}]
  %s2 = inlined_call_operand.vmem [shape: f32[1,128], index: 2, kind: input, shape index: {}]
  %s3 = inlined_call_operand.vmem [shape: f32[1,128], index: 3, kind: input, shape index: {}]
  %s4 = inlined_call_operand.vmem [shape: bf16[128,128], index: 4, kind: output, shape index: {}]
  %s5 = sld [smem:[#allocation0]]
  $region26: #{discriminator_forward.10} parent=0
    _
  %s7 = ssub.s32 1, %s5
  %s8 = scalar_select 0, %s7, %s5
  // Predicated region
  $region2: #{discriminator_forward.10} parent=0 // pred_check
    _
  $region3: #{discriminator_forward.10} parent=0 // pred_check_branch
    %10 = sbr.rel (0) target = $region5
  $region4: #{discriminator_forward.10} parent=0 // pred_region
    _
  $region5: #{discriminator_forward.10} parent=0 // pred_fallthru
    _
  // Predicated region
  $region6: #{discriminator_forward.10} parent=0 // pred_check
    _
  $region7: #{discriminator_forward.10} parent=0 // pred_check_branch
    %12 = sbr.rel (0) target = $region9
  $region8: #{discriminator_forward.10} parent=0 // pred_region
    _
  $region9: #{discriminator_forward.10} parent=0 // pred_fallthru
    _
  // Predicated region
  $region10: #{discriminator_forward.10} parent=0 // pred_check
    _
  $region11: #{discriminator_forward.10} parent=0 // pred_check_branch
    %14 = sbr.rel (0) target = $region13
  $region12: #{discriminator_forward.10} parent=0 // pred_region
    _
  $region13: #{discriminator_forward.10} parent=0 // pred_fallthru
    _
  // Predicated region
  $region14: #{discriminator_forward.10} parent=0 // pred_check
    _
  $region15: #{discriminator_forward.10} parent=0 // pred_check_branch
    %16 = sbr.rel (0) target = $region17
  $region16: #{discriminator_forward.10} parent=0 // pred_region
    _
  $region17: #{discriminator_forward.10} parent=0 // pred_fallthru
    _
  %v18 = vld [vmem:[%s0] sm:$0xff]
  %v19 = vld [vmem:[%s0 + $0x8] sm:$0xff]
  %v20 = vld [vmem:[%s0 + $0x10] sm:$0xf]
  %v21 = vld [vmem:[%s0 + $0x14] sm:$0xff]
  %v22 = vld [vmem:[%s0 + $0x1c] sm:$0xff]
  %v23 = vld [vmem:[%s0 + $0x24] sm:$0xf]
  %v24 = vld [vmem:[%s0 + $0x28] sm:$0xff]
  %v25 = vld [vmem:[%s0 + $0x30] sm:$0xff]
  %v26 = vld [vmem:[%s0 + $0x38] sm:$0xf]
  %v27 = vld [vmem:[%s0 + $0x3c] sm:$0xff]
  %v28 = vld [vmem:[%s0 + $0x44] sm:$0xff]
  %v29 = vld [vmem:[%s0 + $0x4c] sm:$0xf]
  %v30 = vld [vmem:[%s0 + $0x50] sm:$0xff]
  %v31 = vld [vmem:[%s0 + $0x58] sm:$0xff]
  %v32 = vld [vmem:[%s0 + $0x60] sm:$0xf]
  %v33 = vld [vmem:[%s0 + $0x64] sm:$0xff]
  %v34 = vld [vmem:[%s0 + $0x6c] sm:$0xff]
  %v35 = vld [vmem:[%s0 + $0x74] sm:$0xf]
  %v36 = vld [vmem:[%s0 + $0x78] sm:$0xff]
  %v37 = vld [vmem:[%s0 + $0x80] sm:$0xff]
  %v38 = vld [vmem:[%s0 + $0x88] sm:$0xf]
  %v39 = vld [vmem:[%s0 + $0x8c] sm:$0xff]
  %v40 = vld [vmem:[%s0 + $0x94] sm:$0xff]
  %v41 = vld [vmem:[%s0 + $0x9c] sm:$0xf]
  %v42 = vld [vmem:[%s0 + $0xa0] sm:$0xff]
  %v43 = vld [vmem:[%s0 + $0xa8] sm:$0xff]
  %v44 = vld [vmem:[%s0 + $0xb0] sm:$0xf]
  %v45 = vld [vmem:[%s0 + $0xb4] sm:$0xff]
  %v46 = vld [vmem:[%s0 + $0xbc] sm:$0xff]
  %v47 = vld [vmem:[%s0 + $0xc4] sm:$0xf]
  %v48 = vld [vmem:[%s0 + $0xc8] sm:$0xff]
  %v49 = vld [vmem:[%s0 + $0xd0] sm:$0xff]
  %v50 = vld [vmem:[%s0 + $0xd8] sm:$0xf]
  %v51 = vld [vmem:[%s0 + $0xdc] sm:$0xff]
  %v52 = vld [vmem:[%s0 + $0xe4] sm:$0xff]
  %v53 = vld [vmem:[%s0 + $0xec] sm:$0xf]
  %v54 = vld [vmem:[%s0 + $0xf0] sm:$0xff]
  %v55 = vld [vmem:[%s0 + $0xf8] sm:$0xff]
  %v56 = vld [vmem:[%s0 + $0x100] sm:$0xf]
  %v57 = vld [vmem:[%s0 + $0x104] sm:$0xff]
  %v58 = vld [vmem:[%s0 + $0x10c] sm:$0xff]
  %v59 = vld [vmem:[%s0 + $0x114] sm:$0xf]
  %v60 = vld [vmem:[%s0 + $0x118] sm:$0xff]
  %v61 = vld [vmem:[%s0 + $0x120] sm:$0xff]
  %v62 = vld [vmem:[%s0 + $0x128] sm:$0xf]
  %v63 = vld [vmem:[%s0 + $0x12c] sm:$0xff]
  %v64 = vld [vmem:[%s0 + $0x134] sm:$0xff]
  %v65 = vld [vmem:[%s0 + $0x13c] sm:$0xf]
  %v66 = vld [vmem:[%s1] sm:$0xf]
  %v67 = vld [vmem:[%s1 + $0x4] sm:$0xf]
  %v68 = vld [vmem:[%s1 + $0x8] sm:$0xf]
  %v69 = vld [vmem:[%s1 + $0xc] sm:$0xf]
  %v70 = vld [vmem:[%s1 + $0x10] sm:$0xf]
  %v71 = vld [vmem:[%s1 + $0x14] sm:$0xf]
  %v72 = vld [vmem:[%s1 + $0x18] sm:$0xf]
  %v73 = vld [vmem:[%s1 + $0x1c] sm:$0xf]
  %v74 = vld [vmem:[%s1 + $0x20] sm:$0xf]
  %v75 = vld [vmem:[%s1 + $0x24] sm:$0xf]
  %v76 = vld [vmem:[%s1 + $0x28] sm:$0xf]
  %v77 = vld [vmem:[%s1 + $0x2c] sm:$0xf]
  %v78 = vld [vmem:[%s1 + $0x30] sm:$0xf]
  %v79 = vld [vmem:[%s1 + $0x34] sm:$0xf]
  %v80 = vld [vmem:[%s1 + $0x38] sm:$0xf]
  %v81 = vld [vmem:[%s1 + $0x3c] sm:$0xf]
  %v82 = vld [vmem:[%s1 + $0x40] sm:$0xf]
  %v83 = vld [vmem:[%s1 + $0x44] sm:$0xf]
  %v84 = vld [vmem:[%s1 + $0x48] sm:$0xf]
  %v85 = vld [vmem:[%s1 + $0x4c] sm:$0xf]
  %v86 = vld [vmem:[%s1 + $0x50] sm:$0xf]
  %v87 = vld [vmem:[%s1 + $0x54] sm:$0xf]
  %v88 = vld [vmem:[%s1 + $0x58] sm:$0xf]
  %v89 = vld [vmem:[%s1 + $0x5c] sm:$0xf]
  %v90 = vld [vmem:[%s1 + $0x60] sm:$0xf]
  %v91 = vld [vmem:[%s1 + $0x64] sm:$0xf]
  %v92 = vld [vmem:[%s1 + $0x68] sm:$0xf]
  %v93 = vld [vmem:[%s1 + $0x6c] sm:$0xf]
  %v94 = vld [vmem:[%s1 + $0x70] sm:$0xf]
  %v95 = vld [vmem:[%s1 + $0x74] sm:$0xf]
  %v96 = vld [vmem:[%s1 + $0x78] sm:$0xf]
  %v97 = vld [vmem:[%s1 + $0x7c] sm:$0xf]
  %v98 = vld [vmem:[%s1 + $0x80] sm:$0xf]
  %v99 = vld [vmem:[%s1 + $0x84] sm:$0xf]
  %v100 = vld [vmem:[%s1 + $0x88] sm:$0xf]
  %v101 = vld [vmem:[%s1 + $0x8c] sm:$0xf]
  %v102 = vld [vmem:[%s1 + $0x90] sm:$0xf]
  %v103 = vld [vmem:[%s1 + $0x94] sm:$0xf]
  %v104 = vld [vmem:[%s1 + $0x98] sm:$0xf]
  %v105 = vld [vmem:[%s1 + $0x9c] sm:$0xf]
  %v106 = vld [vmem:[%s1 + $0xa0] sm:$0xf]
  %v107 = vld [vmem:[%s1 + $0xa4] sm:$0xf]
  %v108 = vld [vmem:[%s1 + $0xa8] sm:$0xf]
  %v109 = vld [vmem:[%s1 + $0xac] sm:$0xf]
  %v110 = vld [vmem:[%s1 + $0xb0] sm:$0xf]
  %v111 = vld [vmem:[%s1 + $0xb4] sm:$0xf]
  %v112 = vld [vmem:[%s1 + $0xb8] sm:$0xf]
  %v113 = vld [vmem:[%s1 + $0xbc] sm:$0xf]
  %v114 = vld [vmem:[%s1 + $0xc0] sm:$0xf]
  %v115 = vld [vmem:[%s1 + $0xc4] sm:$0xf]
  %v116 = vld [vmem:[%s1 + $0xc8] sm:$0xf]
  %v117 = vld [vmem:[%s1 + $0xcc] sm:$0xf]
  %v118 = vld [vmem:[%s1 + $0xd0] sm:$0xf]
  %v119 = vld [vmem:[%s1 + $0xd4] sm:$0xf]
  %v120 = vld [vmem:[%s1 + $0xd8] sm:$0xf]
  %v121 = vld [vmem:[%s1 + $0xdc] sm:$0xf]
  %v122 = vld [vmem:[%s1 + $0xe0] sm:$0xf]
  %v123 = vld [vmem:[%s1 + $0xe4] sm:$0xf]
  %v124 = vld [vmem:[%s1 + $0xe8] sm:$0xf]
  %v125 = vld [vmem:[%s1 + $0xec] sm:$0xf]
  %v126 = vld [vmem:[%s1 + $0xf0] sm:$0xf]
  %v127 = vld [vmem:[%s1 + $0xf4] sm:$0xf]
  %v128 = vld [vmem:[%s1 + $0xf8] sm:$0xf]
  %v129 = vld [vmem:[%s1 + $0xfc] sm:$0xf]
  %v130 = vld [vmem:[%s1 + $0x100] sm:$0xf]
  %v131 = vld [vmem:[%s1 + $0x104] sm:$0xf]
  %v132 = vld [vmem:[%s1 + $0x108] sm:$0xf]
  %v133 = vld [vmem:[%s1 + $0x10c] sm:$0xf]
  %v134 = vld [vmem:[%s1 + $0x110] sm:$0xf]
  %v135 = vld [vmem:[%s1 + $0x114] sm:$0xf]
  %v136 = vld [vmem:[%s1 + $0x118] sm:$0xf]
  %v137 = vld [vmem:[%s1 + $0x11c] sm:$0xf]
  %v138 = vld [vmem:[%s1 + $0x120] sm:$0xf]
  %v139 = vld [vmem:[%s1 + $0x124] sm:$0xf]
  %v140 = vld [vmem:[%s1 + $0x128] sm:$0xf]
  %v141 = vld [vmem:[%s1 + $0x12c] sm:$0xf]
  %v142 = vld [vmem:[%s1 + $0x130] sm:$0xf]
  %v143 = vld [vmem:[%s1 + $0x134] sm:$0xf]
  %v144 = vld [vmem:[%s1 + $0x138] sm:$0xf]
  %v145 = vld [vmem:[%s1 + $0x13c] sm:$0xf]
  %v194 = vunpack.c.l.b16 %v18
  %v195 = vunpack.c.h.b16 %v18
  %v196 = vunpack.c.l.b16 %v19
  %v197 = vunpack.c.h.b16 %v19
  %v198 = vunpack.c.l.b16 %v20
  %v199 = vunpack.c.l.b16 %v21
  %v200 = vunpack.c.h.b16 %v21
  %v201 = vunpack.c.l.b16 %v22
  %v202 = vunpack.c.h.b16 %v22
  %v203 = vunpack.c.l.b16 %v23
  %v204 = vunpack.c.l.b16 %v24
  %v205 = vunpack.c.h.b16 %v24
  %v206 = vunpack.c.l.b16 %v25
  %v207 = vunpack.c.h.b16 %v25
  %v208 = vunpack.c.l.b16 %v26
  %v209 = vunpack.c.l.b16 %v27
  %v210 = vunpack.c.h.b16 %v27
  %v211 = vunpack.c.l.b16 %v28
  %v212 = vunpack.c.h.b16 %v28
  %v213 = vunpack.c.l.b16 %v29
  %v214 = vunpack.c.l.b16 %v30
  %v215 = vunpack.c.h.b16 %v30
  %v216 = vunpack.c.l.b16 %v31
  %v217 = vunpack.c.h.b16 %v31
  %v218 = vunpack.c.l.b16 %v32
  %v219 = vunpack.c.l.b16 %v33
  %v220 = vunpack.c.h.b16 %v33
  %v221 = vunpack.c.l.b16 %v34
  %v222 = vunpack.c.h.b16 %v34
  %v223 = vunpack.c.l.b16 %v35
  %v224 = vunpack.c.l.b16 %v36
  %v225 = vunpack.c.h.b16 %v36
  %v226 = vunpack.c.l.b16 %v37
  %v227 = vunpack.c.h.b16 %v37
  %v228 = vunpack.c.l.b16 %v38
  %v229 = vunpack.c.l.b16 %v39
  %v230 = vunpack.c.h.b16 %v39
  %v231 = vunpack.c.l.b16 %v40
  %v232 = vunpack.c.h.b16 %v40
  %v233 = vunpack.c.l.b16 %v41
  %v234 = vunpack.c.l.b16 %v42
  %v235 = vunpack.c.h.b16 %v42
  %v236 = vunpack.c.l.b16 %v43
  %v237 = vunpack.c.h.b16 %v43
  %v238 = vunpack.c.l.b16 %v44
  %v239 = vunpack.c.l.b16 %v45
  %v240 = vunpack.c.h.b16 %v45
  %v241 = vunpack.c.l.b16 %v46
  %v242 = vunpack.c.h.b16 %v46
  %v243 = vunpack.c.l.b16 %v47
  %v244 = vunpack.c.l.b16 %v48
  %v245 = vunpack.c.h.b16 %v48
  %v246 = vunpack.c.l.b16 %v49
  %v247 = vunpack.c.h.b16 %v49
  %v248 = vunpack.c.l.b16 %v50
  %v249 = vunpack.c.l.b16 %v51
  %v250 = vunpack.c.h.b16 %v51
  %v251 = vunpack.c.l.b16 %v52
  %v252 = vunpack.c.h.b16 %v52
  %v253 = vunpack.c.l.b16 %v53
  %v254 = vunpack.c.l.b16 %v54
  %v255 = vunpack.c.h.b16 %v54
  %v256 = vunpack.c.l.b16 %v55
  %v257 = vunpack.c.h.b16 %v55
  %v258 = vunpack.c.l.b16 %v56
  %v259 = vunpack.c.l.b16 %v57
  %v260 = vunpack.c.h.b16 %v57
  %v261 = vunpack.c.l.b16 %v58
  %v262 = vunpack.c.h.b16 %v58
  %v263 = vunpack.c.l.b16 %v59
  %v264 = vunpack.c.l.b16 %v60
  %v265 = vunpack.c.h.b16 %v60
  %v266 = vunpack.c.l.b16 %v61
  %v267 = vunpack.c.h.b16 %v61
  %v268 = vunpack.c.l.b16 %v62
  %v269 = vunpack.c.l.b16 %v63
  %v270 = vunpack.c.h.b16 %v63
  %v271 = vunpack.c.l.b16 %v64
  %v272 = vunpack.c.h.b16 %v64
  %v273 = vunpack.c.l.b16 %v65
  %v274 = vpack.c.b16 %v199, %v194
  %v275 = vpack.c.b16 %v200, %v195
  %v276 = vpack.c.b16 %v201, %v196
  %v277 = vpack.c.b16 %v202, %v197
  %v278 = vpack.c.b16 %v203, %v198
  %v279 = vpack.c.b16 %v209, %v204
  %v280 = vpack.c.b16 %v210, %v205
  %v281 = vpack.c.b16 %v211, %v206
  %v282 = vpack.c.b16 %v212, %v207
  %v283 = vpack.c.b16 %v213, %v208
  %v284 = vpack.c.b16 %v219, %v214
  %v285 = vpack.c.b16 %v220, %v215
  %v286 = vpack.c.b16 %v221, %v216
  %v287 = vpack.c.b16 %v222, %v217
  %v288 = vpack.c.b16 %v223, %v218
  %v289 = vpack.c.b16 %v229, %v224
  %v290 = vpack.c.b16 %v230, %v225
  %v291 = vpack.c.b16 %v231, %v226
  %v292 = vpack.c.b16 %v232, %v227
  %v293 = vpack.c.b16 %v233, %v228
  %v294 = vpack.c.b16 %v239, %v234
  %v295 = vpack.c.b16 %v240, %v235
  %v296 = vpack.c.b16 %v241, %v236
  %v297 = vpack.c.b16 %v242, %v237
  %v298 = vpack.c.b16 %v243, %v238
  %v299 = vpack.c.b16 %v249, %v244
  %v300 = vpack.c.b16 %v250, %v245
  %v301 = vpack.c.b16 %v251, %v246
  %v302 = vpack.c.b16 %v252, %v247
  %v303 = vpack.c.b16 %v253, %v248
  %v304 = vpack.c.b16 %v259, %v254
  %v305 = vpack.c.b16 %v260, %v255
  %v306 = vpack.c.b16 %v261, %v256
  %v307 = vpack.c.b16 %v262, %v257
  %v308 = vpack.c.b16 %v263, %v258
  %v309 = vpack.c.b16 %v269, %v264
  %v310 = vpack.c.b16 %v270, %v265
  %v311 = vpack.c.b16 %v271, %v266
  %v312 = vpack.c.b16 %v272, %v267
  %v313 = vpack.c.b16 %v273, %v268
  %v434 = vunpack.c.l.b16 %v66
  %v435 = vunpack.c.l.b16 %v67
  %v436 = vunpack.c.l.b16 %v68
  %v437 = vunpack.c.l.b16 %v69
  %v438 = vunpack.c.l.b16 %v70
  %v439 = vunpack.c.l.b16 %v71
  %v440 = vunpack.c.l.b16 %v72
  %v441 = vunpack.c.l.b16 %v73
  %v442 = vunpack.c.l.b16 %v74
  %v443 = vunpack.c.l.b16 %v75
  %v444 = vunpack.c.l.b16 %v76
  %v445 = vunpack.c.l.b16 %v77
  %v446 = vunpack.c.l.b16 %v78
  %v447 = vunpack.c.l.b16 %v79
  %v448 = vunpack.c.l.b16 %v80
  %v449 = vunpack.c.l.b16 %v81
  %v450 = vunpack.c.l.b16 %v82
  %v451 = vunpack.c.l.b16 %v83
  %v452 = vunpack.c.l.b16 %v84
  %v453 = vunpack.c.l.b16 %v85
  %v454 = vunpack.c.l.b16 %v86
  %v455 = vunpack.c.l.b16 %v87
  %v456 = vunpack.c.l.b16 %v88
  %v457 = vunpack.c.l.b16 %v89
  %v458 = vunpack.c.l.b16 %v90
  %v459 = vunpack.c.l.b16 %v91
  %v460 = vunpack.c.l.b16 %v92
  %v461 = vunpack.c.l.b16 %v93
  %v462 = vunpack.c.l.b16 %v94
  %v463 = vunpack.c.l.b16 %v95
  %v464 = vunpack.c.l.b16 %v96
  %v465 = vunpack.c.l.b16 %v97
  %v466 = vunpack.c.l.b16 %v98
  %v467 = vunpack.c.l.b16 %v99
  %v468 = vunpack.c.l.b16 %v100
  %v469 = vunpack.c.l.b16 %v101
  %v470 = vunpack.c.l.b16 %v102
  %v471 = vunpack.c.l.b16 %v103
  %v472 = vunpack.c.l.b16 %v104
  %v473 = vunpack.c.l.b16 %v105
  %v474 = vunpack.c.l.b16 %v106
  %v475 = vunpack.c.l.b16 %v107
  %v476 = vunpack.c.l.b16 %v108
  %v477 = vunpack.c.l.b16 %v109
  %v478 = vunpack.c.l.b16 %v110
  %v479 = vunpack.c.l.b16 %v111
  %v480 = vunpack.c.l.b16 %v112
  %v481 = vunpack.c.l.b16 %v113
  %v482 = vunpack.c.l.b16 %v114
  %v483 = vunpack.c.l.b16 %v115
  %v484 = vunpack.c.l.b16 %v116
  %v485 = vunpack.c.l.b16 %v117
  %v486 = vunpack.c.l.b16 %v118
  %v487 = vunpack.c.l.b16 %v119
  %v488 = vunpack.c.l.b16 %v120
  %v489 = vunpack.c.l.b16 %v121
  %v490 = vunpack.c.l.b16 %v122
  %v491 = vunpack.c.l.b16 %v123
  %v492 = vunpack.c.l.b16 %v124
  %v493 = vunpack.c.l.b16 %v125
  %v494 = vunpack.c.l.b16 %v126
  %v495 = vunpack.c.l.b16 %v127
  %v496 = vunpack.c.l.b16 %v128
  %v497 = vunpack.c.l.b16 %v129
  %v498 = vunpack.c.l.b16 %v130
  %v499 = vunpack.c.l.b16 %v131
  %v500 = vunpack.c.l.b16 %v132
  %v501 = vunpack.c.l.b16 %v133
  %v502 = vunpack.c.l.b16 %v134
  %v503 = vunpack.c.l.b16 %v135
  %v504 = vunpack.c.l.b16 %v136
  %v505 = vunpack.c.l.b16 %v137
  %v506 = vunpack.c.l.b16 %v138
  %v507 = vunpack.c.l.b16 %v139
  %v508 = vunpack.c.l.b16 %v140
  %v509 = vunpack.c.l.b16 %v141
  %v510 = vunpack.c.l.b16 %v142
  %v511 = vunpack.c.l.b16 %v143
  %v512 = vunpack.c.l.b16 %v144
  %v513 = vunpack.c.l.b16 %v145
  %v514 = vpack.c.b16 %v435, %v434
  %v515 = vpack.c.b16 %v437, %v436
  %v516 = vpack.c.b16 %v439, %v438
  %v517 = vpack.c.b16 %v441, %v440
  %v518 = vpack.c.b16 %v443, %v442
  %v519 = vpack.c.b16 %v445, %v444
  %v520 = vpack.c.b16 %v447, %v446
  %v521 = vpack.c.b16 %v449, %v448
  %v522 = vpack.c.b16 %v451, %v450
  %v523 = vpack.c.b16 %v453, %v452
  %v524 = vpack.c.b16 %v455, %v454
  %v525 = vpack.c.b16 %v457, %v456
  %v526 = vpack.c.b16 %v459, %v458
  %v527 = vpack.c.b16 %v461, %v460
  %v528 = vpack.c.b16 %v463, %v462
  %v529 = vpack.c.b16 %v465, %v464
  %v530 = vpack.c.b16 %v467, %v466
  %v531 = vpack.c.b16 %v469, %v468
  %v532 = vpack.c.b16 %v471, %v470
  %v533 = vpack.c.b16 %v473, %v472
  %v534 = vpack.c.b16 %v475, %v474
  %v535 = vpack.c.b16 %v477, %v476
  %v536 = vpack.c.b16 %v479, %v478
  %v537 = vpack.c.b16 %v481, %v480
  %v538 = vpack.c.b16 %v483, %v482
  %v539 = vpack.c.b16 %v485, %v484
  %v540 = vpack.c.b16 %v487, %v486
  %v541 = vpack.c.b16 %v489, %v488
  %v542 = vpack.c.b16 %v491, %v490
  %v543 = vpack.c.b16 %v493, %v492
  %v544 = vpack.c.b16 %v495, %v494
  %v545 = vpack.c.b16 %v497, %v496
  %v546 = vpack.c.b16 %v499, %v498
  %v547 = vpack.c.b16 %v501, %v500
  %v548 = vpack.c.b16 %v503, %v502
  %v549 = vpack.c.b16 %v505, %v504
  %v550 = vpack.c.b16 %v507, %v506
  %v551 = vpack.c.b16 %v509, %v508
  %v552 = vpack.c.b16 %v511, %v510
  %v553 = vpack.c.b16 %v513, %v512
  %594 = vmatprep.subr.bf16.mxu0 0
  %595 = vmatpush1.bf16.msra.mxu0 %v514
  %596 = vmatprep.subr.bf16.mxu0 0
  %597 = vmatpush1.bf16.msra.mxu0 %v515
  %598 = vmatprep.subr.bf16.mxu0 0
  %599 = vmatpush1.bf16.msra.mxu0 %v516
  %600 = vmatprep.subr.bf16.mxu0 0
  %601 = vmatpush1.bf16.msra.mxu0 %v517
  %602 = vmatprep.subr.bf16.mxu0 0
  %603 = vmatpush1.bf16.msra.mxu0 %v518
  %604 = vmatprep.subr.bf16.mxu0 0
  %605 = vmatpush1.bf16.msra.mxu0 %v519
  %606 = vmatprep.subr.bf16.mxu0 0
  %607 = vmatpush1.bf16.msra.mxu0 %v520
  %608 = vmatprep.subr.bf16.mxu0 0
  %609 = vmatpush1.bf16.msra.mxu0 %v521
  %610 = vmatprep.subr.bf16.mxu0 0
  %611 = vmatpush1.bf16.msra.mxu0 %v522
  %612 = vmatprep.subr.bf16.mxu0 0
  %613 = vmatpush1.bf16.msra.mxu0 %v523
  %614 = vmatprep.subr.bf16.mxu0 0
  %615 = vmatpush1.bf16.msra.mxu0 %v524
  %616 = vmatprep.subr.bf16.mxu0 0
  %617 = vmatpush1.bf16.msra.mxu0 %v525
  %618 = vmatprep.subr.bf16.mxu0 0
  %619 = vmatpush1.bf16.msra.mxu0 %v526
  %620 = vmatprep.subr.bf16.mxu0 0
  %621 = vmatpush1.bf16.msra.mxu0 %v527
  %622 = vmatprep.subr.bf16.mxu0 0
  %623 = vmatpush1.bf16.msra.mxu0 %v528
  %624 = vmatprep.subr.bf16.mxu0 0
  %625 = vmatpush1.bf16.msra.mxu0 %v529
  %626 = vmatprep.mubr.bf16.mxu0 %v275
  %627 = vmatmul.mubr.bf16.gmra.mrb[0].mxu0 %v274
  %v628 = vpop.f32.mrb[0].mxu0
  %v629 = vadd.f32 0.0, %v628
  %v630 = vpop.f32.mrb[0].mxu0
  %v631 = vpop.f32.mrb[0].mxu0
  %v632 = vadd.f32 0.0, %v631
  %v633 = vpop.f32.mrb[0].mxu0
  %634 = vmatprep.mubr.bf16.mxu0 %v280
  %635 = vmatmul.mubr.bf16.gmra.mrb[0].mxu0 %v279
  %v636 = vpop.f32.mrb[0].mxu0
  %v637 = vadd.f32 0.0, %v636
  %v638 = vpop.f32.mrb[0].mxu0
  %v639 = vpop.f32.mrb[0].mxu0
  %v640 = vadd.f32 0.0, %v639
  %v641 = vpop.f32.mrb[0].mxu0
  %642 = vmatprep.mubr.bf16.mxu0 %v285
  %643 = vmatmul.mubr.bf16.gmra.mrb[0].mxu0 %v284
  %v644 = vpop.f32.mrb[0].mxu0
  %v645 = vadd.f32 0.0, %v644
  %v646 = vpop.f32.mrb[0].mxu0
  %v647 = vpop.f32.mrb[0].mxu0
  %v648 = vadd.f32 0.0, %v647
  %v649 = vpop.f32.mrb[0].mxu0
  %650 = vmatprep.mubr.bf16.mxu0 %v290
  %651 = vmatmul.mubr.bf16.gmra.mrb[0].mxu0 %v289
  %v652 = vpop.f32.mrb[0].mxu0
  %v653 = vadd.f32 0.0, %v652
  %v654 = vpop.f32.mrb[0].mxu0
  %v655 = vpop.f32.mrb[0].mxu0
  %v656 = vadd.f32 0.0, %v655
  %v657 = vpop.f32.mrb[0].mxu0
  %658 = vmatprep.mubr.bf16.mxu0 %v295
  %659 = vmatmul.mubr.bf16.gmra.mrb[0].mxu0 %v294
  %v660 = vpop.f32.mrb[0].mxu0
  %v661 = vadd.f32 0.0, %v660
  %v662 = vpop.f32.mrb[0].mxu0
  %v663 = vpop.f32.mrb[0].mxu0
  %v664 = vadd.f32 0.0, %v663
  %v665 = vpop.f32.mrb[0].mxu0
  %666 = vmatprep.mubr.bf16.mxu0 %v300
  %667 = vmatmul.mubr.bf16.gmra.mrb[0].mxu0 %v299
  %v668 = vpop.f32.mrb[0].mxu0
  %v669 = vadd.f32 0.0, %v668
  %v670 = vpop.f32.mrb[0].mxu0
  %v671 = vpop.f32.mrb[0].mxu0
  %v672 = vadd.f32 0.0, %v671
  %v673 = vpop.f32.mrb[0].mxu0
  %674 = vmatprep.mubr.bf16.mxu0 %v305
  %675 = vmatmul.mubr.bf16.gmra.mrb[0].mxu0 %v304
  %v676 = vpop.f32.mrb[0].mxu0
  %v677 = vadd.f32 0.0, %v676
  %v678 = vpop.f32.mrb[0].mxu0
  %v679 = vpop.f32.mrb[0].mxu0
  %v680 = vadd.f32 0.0, %v679
  %v681 = vpop.f32.mrb[0].mxu0
  %682 = vmatprep.mubr.bf16.mxu0 %v310
  %683 = vmatmul.mubr.bf16.gmra.mrb[0].mxu0 %v309
  %v684 = vpop.f32.mrb[0].mxu0
  %v685 = vadd.f32 0.0, %v684
  %v686 = vpop.f32.mrb[0].mxu0
  %v687 = vpop.f32.mrb[0].mxu0
  %v688 = vadd.f32 0.0, %v687
  %v689 = vpop.f32.mrb[0].mxu0
  %690 = vdwg.mxu0
  %691 = vmatprep.subr.bf16.mxu0 0
  %692 = vmatpush1.bf16.msra.mxu0 %v530
  %693 = vmatprep.subr.bf16.mxu0 0
  %694 = vmatpush1.bf16.msra.mxu0 %v531
  %695 = vmatprep.subr.bf16.mxu0 0
  %696 = vmatpush1.bf16.msra.mxu0 %v532
  %697 = vmatprep.subr.bf16.mxu0 0
  %698 = vmatpush1.bf16.msra.mxu0 %v533
  %699 = vmatprep.subr.bf16.mxu0 0
  %700 = vmatpush1.bf16.msra.mxu0 %v534
  %701 = vmatprep.subr.bf16.mxu0 0
  %702 = vmatpush1.bf16.msra.mxu0 %v535
  %703 = vmatprep.subr.bf16.mxu0 0
  %704 = vmatpush1.bf16.msra.mxu0 %v536
  %705 = vmatprep.subr.bf16.mxu0 0
  %706 = vmatpush1.bf16.msra.mxu0 %v537
  %707 = vmatprep.subr.bf16.mxu0 0
  %708 = vmatpush1.bf16.msra.mxu0 %v538
  %709 = vmatprep.subr.bf16.mxu0 0
  %710 = vmatpush1.bf16.msra.mxu0 %v539
  %711 = vmatprep.subr.bf16.mxu0 0
  %712 = vmatpush1.bf16.msra.mxu0 %v540
  %713 = vmatprep.subr.bf16.mxu0 0
  %714 = vmatpush1.bf16.msra.mxu0 %v541
  %715 = vmatprep.subr.bf16.mxu0 0
  %716 = vmatpush1.bf16.msra.mxu0 %v542
  %717 = vmatprep.subr.bf16.mxu0 0
  %718 = vmatpush1.bf16.msra.mxu0 %v543
  %719 = vmatprep.subr.bf16.mxu0 0
  %720 = vmatpush1.bf16.msra.mxu0 %v544
  %721 = vmatprep.subr.bf16.mxu0 0
  %722 = vmatpush1.bf16.msra.mxu0 %v545
  %723 = vmatprep.mubr.bf16.mxu0 %v277
  %724 = vmatmul.mubr.bf16.gmra.mrb[0].mxu0 %v276
  %v725 = vpop.f32.mrb[0].mxu0
  %v726 = vadd.f32 %v629, %v725
  %v727 = vpop.f32.mrb[0].mxu0
  %v728 = vpop.f32.mrb[0].mxu0
  %v729 = vadd.f32 %v632, %v728
  %v730 = vpop.f32.mrb[0].mxu0
  %731 = vmatprep.mubr.bf16.mxu0 %v282
  %732 = vmatmul.mubr.bf16.gmra.mrb[0].mxu0 %v281
  %v733 = vpop.f32.mrb[0].mxu0
  %v734 = vadd.f32 %v637, %v733
  %v735 = vpop.f32.mrb[0].mxu0
  %v736 = vpop.f32.mrb[0].mxu0
  %v737 = vadd.f32 %v640, %v736
  %v738 = vpop.f32.mrb[0].mxu0
  %739 = vmatprep.mubr.bf16.mxu0 %v287
  %740 = vmatmul.mubr.bf16.gmra.mrb[0].mxu0 %v286
  %v741 = vpop.f32.mrb[0].mxu0
  %v742 = vadd.f32 %v645, %v741
  %v743 = vpop.f32.mrb[0].mxu0
  %v744 = vpop.f32.mrb[0].mxu0
  %v745 = vadd.f32 %v648, %v744
  %v746 = vpop.f32.mrb[0].mxu0
  %747 = vmatprep.mubr.bf16.mxu0 %v292
  %748 = vmatmul.mubr.bf16.gmra.mrb[0].mxu0 %v291
  %v749 = vpop.f32.mrb[0].mxu0
  %v750 = vadd.f32 %v653, %v749
  %v751 = vpop.f32.mrb[0].mxu0
  %v752 = vpop.f32.mrb[0].mxu0
  %v753 = vadd.f32 %v656, %v752
  %v754 = vpop.f32.mrb[0].mxu0
  %755 = vmatprep.mubr.bf16.mxu0 %v297
  %756 = vmatmul.mubr.bf16.gmra.mrb[0].mxu0 %v296
  %v757 = vpop.f32.mrb[0].mxu0
  %v758 = vadd.f32 %v661, %v757
  %v759 = vpop.f32.mrb[0].mxu0
  %v760 = vpop.f32.mrb[0].mxu0
  %v761 = vadd.f32 %v664, %v760
  %v762 = vpop.f32.mrb[0].mxu0
  %763 = vmatprep.mubr.bf16.mxu0 %v302
  %764 = vmatmul.mubr.bf16.gmra.mrb[0].mxu0 %v301
  %v765 = vpop.f32.mrb[0].mxu0
  %v766 = vadd.f32 %v669, %v765
  %v767 = vpop.f32.mrb[0].mxu0
  %v768 = vpop.f32.mrb[0].mxu0
  %v769 = vadd.f32 %v672, %v768
  %v770 = vpop.f32.mrb[0].mxu0
  %771 = vmatprep.mubr.bf16.mxu0 %v307
  %772 = vmatmul.mubr.bf16.gmra.mrb[0].mxu0 %v306
  %v773 = vpop.f32.mrb[0].mxu0
  %v774 = vadd.f32 %v677, %v773
  %v775 = vpop.f32.mrb[0].mxu0
  %v776 = vpop.f32.mrb[0].mxu0
  %v777 = vadd.f32 %v680, %v776
  %v778 = vpop.f32.mrb[0].mxu0
  %779 = vmatprep.mubr.bf16.mxu0 %v312
  %780 = vmatmul.mubr.bf16.gmra.mrb[0].mxu0 %v311
  %v781 = vpop.f32.mrb[0].mxu0
  %v782 = vadd.f32 %v685, %v781
  %v783 = vpop.f32.mrb[0].mxu0
  %v784 = vpop.f32.mrb[0].mxu0
  %v785 = vadd.f32 %v688, %v784
  %v786 = vpop.f32.mrb[0].mxu0
  %787 = vdwg.mxu0
  %788 = vmatprep.subr.bf16.mxu0 0
  %789 = vmatpush1.bf16.msra.mxu0 %v546
  %790 = vmatprep.subr.bf16.mxu0 0
  %791 = vmatpush1.bf16.msra.mxu0 %v547
  %792 = vmatprep.subr.bf16.mxu0 0
  %793 = vmatpush1.bf16.msra.mxu0 %v548
  %794 = vmatprep.subr.bf16.mxu0 0
  %795 = vmatpush1.bf16.msra.mxu0 %v549
  %796 = vmatprep.subr.bf16.mxu0 0
  %797 = vmatpush1.bf16.msra.mxu0 %v550
  %798 = vmatprep.subr.bf16.mxu0 0
  %799 = vmatpush1.bf16.msra.mxu0 %v551
  %800 = vmatprep.subr.bf16.mxu0 0
  %801 = vmatpush1.bf16.msra.mxu0 %v552
  %802 = vmatprep.subr.bf16.mxu0 0
  %803 = vmatpush1.bf16.msra.mxu0 %v553
  %804 = vmatprep.subr.bf16.mxu0 0
  %805 = vmatpush1.bf16.msra.mxu0 0
  %806 = vmatprep.subr.bf16.mxu0 0
  %807 = vmatpush1.bf16.msra.mxu0 0
  %808 = vmatprep.subr.bf16.mxu0 0
  %809 = vmatpush1.bf16.msra.mxu0 0
  %810 = vmatprep.subr.bf16.mxu0 0
  %811 = vmatpush1.bf16.msra.mxu0 0
  %812 = vmatprep.subr.bf16.mxu0 0
  %813 = vmatpush1.bf16.msra.mxu0 0
  %814 = vmatprep.subr.bf16.mxu0 0
  %815 = vmatpush1.bf16.msra.mxu0 0
  %816 = vmatprep.subr.bf16.mxu0 0
  %817 = vmatpush1.bf16.msra.mxu0 0
  %818 = vmatprep.subr.bf16.mxu0 0
  %819 = vmatpush1.bf16.msra.mxu0 0
  %820 = vmatprep.mubr.bf16.mxu0 0
  %821 = vmatmul.mubr.bf16.gmra.mrb[0].mxu0 %v278
  %v822 = vpop.f32.mrb[0].mxu0
  %v823 = vadd.f32 %v726, %v822
  %v824 = vpop.f32.mrb[0].mxu0
  %v825 = vpop.f32.mrb[0].mxu0
  %v826 = vadd.f32 %v729, %v825
  %v827 = vpop.f32.mrb[0].mxu0
  %828 = vmatprep.mubr.bf16.mxu0 0
  %829 = vmatmul.mubr.bf16.gmra.mrb[0].mxu0 %v283
  %v830 = vpop.f32.mrb[0].mxu0
  %v831 = vadd.f32 %v734, %v830
  %v832 = vpop.f32.mrb[0].mxu0
  %v833 = vpop.f32.mrb[0].mxu0
  %v834 = vadd.f32 %v737, %v833
  %v835 = vpop.f32.mrb[0].mxu0
  %836 = vmatprep.mubr.bf16.mxu0 0
  %837 = vmatmul.mubr.bf16.gmra.mrb[0].mxu0 %v288
  %v838 = vpop.f32.mrb[0].mxu0
  %v839 = vadd.f32 %v742, %v838
  %v840 = vpop.f32.mrb[0].mxu0
  %v841 = vpop.f32.mrb[0].mxu0
  %v842 = vadd.f32 %v745, %v841
  %v843 = vpop.f32.mrb[0].mxu0
  %844 = vmatprep.mubr.bf16.mxu0 0
  %845 = vmatmul.mubr.bf16.gmra.mrb[0].mxu0 %v293
  %v846 = vpop.f32.mrb[0].mxu0
  %v847 = vadd.f32 %v750, %v846
  %v848 = vpop.f32.mrb[0].mxu0
  %v849 = vpop.f32.mrb[0].mxu0
  %v850 = vadd.f32 %v753, %v849
  %v851 = vpop.f32.mrb[0].mxu0
  %852 = vmatprep.mubr.bf16.mxu0 0
  %853 = vmatmul.mubr.bf16.gmra.mrb[0].mxu0 %v298
  %v854 = vpop.f32.mrb[0].mxu0
  %v855 = vadd.f32 %v758, %v854
  %v856 = vpop.f32.mrb[0].mxu0
  %v857 = vpop.f32.mrb[0].mxu0
  %v858 = vadd.f32 %v761, %v857
  %v859 = vpop.f32.mrb[0].mxu0
  %860 = vmatprep.mubr.bf16.mxu0 0
  %861 = vmatmul.mubr.bf16.gmra.mrb[0].mxu0 %v303
  %v862 = vpop.f32.mrb[0].mxu0
  %v863 = vadd.f32 %v766, %v862
  %v864 = vpop.f32.mrb[0].mxu0
  %v865 = vpop.f32.mrb[0].mxu0
  %v866 = vadd.f32 %v769, %v865
  %v867 = vpop.f32.mrb[0].mxu0
  %868 = vmatprep.mubr.bf16.mxu0 0
  %869 = vmatmul.mubr.bf16.gmra.mrb[0].mxu0 %v308
  %v870 = vpop.f32.mrb[0].mxu0
  %v871 = vadd.f32 %v774, %v870
  %v872 = vpop.f32.mrb[0].mxu0
  %v873 = vpop.f32.mrb[0].mxu0
  %v874 = vadd.f32 %v777, %v873
  %v875 = vpop.f32.mrb[0].mxu0
  %876 = vmatprep.mubr.bf16.mxu0 0
  %877 = vmatmul.mubr.bf16.gmra.mrb[0].mxu0 %v313
  %v878 = vpop.f32.mrb[0].mxu0
  %v879 = vadd.f32 %v782, %v878
  %v880 = vpop.f32.mrb[0].mxu0
  %v881 = vpop.f32.mrb[0].mxu0
  %v882 = vadd.f32 %v785, %v881
  %v883 = vpop.f32.mrb[0].mxu0
  %884 = vdwg.mxu0
  %v885 = vld [vmem:[%s2] sm:$0x1]
  %v887 = vlaneseq
  %v888 = vshrl.u32 %v887, 7
  %v889 = vsub.s32 0, %v888
  %v890 = vrot.slane %v885, %v889
  %v892 = vmul.f32 %v823, %v890
  %v893 = vmul.f32 %v826, %v890
  %v894 = vmul.f32 %v831, %v890
  %v895 = vmul.f32 %v834, %v890
  %v896 = vmul.f32 %v839, %v890
  %v897 = vmul.f32 %v842, %v890
  %v898 = vmul.f32 %v847, %v890
  %v899 = vmul.f32 %v850, %v890
  %v900 = vmul.f32 %v855, %v890
  %v901 = vmul.f32 %v858, %v890
  %v902 = vmul.f32 %v863, %v890
  %v903 = vmul.f32 %v866, %v890
  %v904 = vmul.f32 %v871, %v890
  %v905 = vmul.f32 %v874, %v890
  %v906 = vmul.f32 %v879, %v890
  %v907 = vmul.f32 %v882, %v890
  %v908 = vld [vmem:[%s3] sm:$0x1]
  %v910 = vlaneseq
  %v911 = vshrl.u32 %v910, 7
  %v912 = vsub.s32 0, %v911
  %v913 = vrot.slane %v908, %v912
  %v915 = vadd.f32 %v892, %v913
  %v916 = vadd.f32 %v893, %v913
  %v917 = vadd.f32 %v894, %v913
  %v918 = vadd.f32 %v895, %v913
  %v919 = vadd.f32 %v896, %v913
  %v920 = vadd.f32 %v897, %v913
  %v921 = vadd.f32 %v898, %v913
  %v922 = vadd.f32 %v899, %v913
  %v923 = vadd.f32 %v900, %v913
  %v924 = vadd.f32 %v901, %v913
  %v925 = vadd.f32 %v902, %v913
  %v926 = vadd.f32 %v903, %v913
  %v927 = vadd.f32 %v904, %v913
  %v928 = vadd.f32 %v905, %v913
  %v929 = vadd.f32 %v906, %v913
  %v930 = vadd.f32 %v907, %v913
  %v931 = vmax.f32 %v915, 0.0
  %v932 = vmax.f32 %v916, 0.0
  %v933 = vmax.f32 %v917, 0.0
  %v934 = vmax.f32 %v918, 0.0
  %v935 = vmax.f32 %v919, 0.0
  %v936 = vmax.f32 %v920, 0.0
  %v937 = vmax.f32 %v921, 0.0
  %v938 = vmax.f32 %v922, 0.0
  %v939 = vmax.f32 %v923, 0.0
  %v940 = vmax.f32 %v924, 0.0
  %v941 = vmax.f32 %v925, 0.0
  %v942 = vmax.f32 %v926, 0.0
  %v943 = vmax.f32 %v927, 0.0
  %v944 = vmax.f32 %v928, 0.0
  %v945 = vmax.f32 %v929, 0.0
  %v946 = vmax.f32 %v930, 0.0
  %v947 = vpack.c.bf16 %v932, %v931
  %v948 = vpack.c.bf16 %v934, %v933
  %v949 = vpack.c.bf16 %v936, %v935
  %v950 = vpack.c.bf16 %v938, %v937
  %v951 = vpack.c.bf16 %v940, %v939
  %v952 = vpack.c.bf16 %v942, %v941
  %v953 = vpack.c.bf16 %v944, %v943
  %v954 = vpack.c.bf16 %v946, %v945
  %v963 = vunpack.c.l.b16 %v947
  %v964 = vunpack.c.h.b16 %v947
  %v965 = vunpack.c.l.b16 %v948
  %v966 = vunpack.c.h.b16 %v948
  %v967 = vunpack.c.l.b16 %v949
  %v968 = vunpack.c.h.b16 %v949
  %v969 = vunpack.c.l.b16 %v950
  %v970 = vunpack.c.h.b16 %v950
  %v971 = vunpack.c.l.b16 %v951
  %v972 = vunpack.c.h.b16 %v951
  %v973 = vunpack.c.l.b16 %v952
  %v974 = vunpack.c.h.b16 %v952
  %v975 = vunpack.c.l.b16 %v953
  %v976 = vunpack.c.h.b16 %v953
  %v977 = vunpack.c.l.b16 %v954
  %v978 = vunpack.c.h.b16 %v954
  %v979 = vpack.c.b16 %v963, %v963
  %v980 = vpack.c.b16 %v964, %v964
  %v981 = vpack.c.b16 %v965, %v965
  %v982 = vpack.c.b16 %v966, %v966
  %v983 = vpack.c.b16 %v967, %v967
  %v984 = vpack.c.b16 %v968, %v968
  %v985 = vpack.c.b16 %v969, %v969
  %v986 = vpack.c.b16 %v970, %v970
  %v987 = vpack.c.b16 %v971, %v971
  %v988 = vpack.c.b16 %v972, %v972
  %v989 = vpack.c.b16 %v973, %v973
  %v990 = vpack.c.b16 %v974, %v974
  %v991 = vpack.c.b16 %v975, %v975
  %v992 = vpack.c.b16 %v976, %v976
  %v993 = vpack.c.b16 %v977, %v977
  %v994 = vpack.c.b16 %v978, %v978
  %1011 = vst [vmem:[%s4] sm:$0xf] %v979
  %1012 = vst [vmem:[%s4 + $0x4] sm:$0xf] %v980
  %1013 = vst [vmem:[%s4 + $0x8] sm:$0xf] %v981
  %1014 = vst [vmem:[%s4 + $0xc] sm:$0xf] %v982
  %1015 = vst [vmem:[%s4 + $0x10] sm:$0xf] %v983
  %1016 = vst [vmem:[%s4 + $0x14] sm:$0xf] %v984
  %1017 = vst [vmem:[%s4 + $0x18] sm:$0xf] %v985
  %1018 = vst [vmem:[%s4 + $0x1c] sm:$0xf] %v986
  %1019 = vst [vmem:[%s4 + $0x20] sm:$0xf] %v987
  %1020 = vst [vmem:[%s4 + $0x24] sm:$0xf] %v988
  %1021 = vst [vmem:[%s4 + $0x28] sm:$0xf] %v989
  %1022 = vst [vmem:[%s4 + $0x2c] sm:$0xf] %v990
  %1023 = vst [vmem:[%s4 + $0x30] sm:$0xf] %v991
  %1024 = vst [vmem:[%s4 + $0x34] sm:$0xf] %v992
  %1025 = vst [vmem:[%s4 + $0x38] sm:$0xf] %v993
  %1026 = vst [vmem:[%s4 + $0x3c] sm:$0xf] %v994
  // Predicated region
  $region18: #{discriminator_forward.10} parent=0 // pred_check
    _
  $region19: #{discriminator_forward.10} parent=0 // pred_check_branch
    %1028 = sbr.rel (0) target = $region21
  $region20: #{discriminator_forward.10} parent=0 // pred_region
    _
  $region21: #{discriminator_forward.10} parent=0 // pred_fallthru
    _
  // Predicated region
  $region22: #{discriminator_forward.10} parent=0 // pred_check
    _
  $region23: #{discriminator_forward.10} parent=0 // pred_check_branch
    %1030 = sbr.rel (0) target = $region25
  $region24: #{discriminator_forward.10} parent=0 // pred_region
    _
  $region25: #{discriminator_forward.10} parent=0 // pred_fallthru
    _

// kernel: discriminator_forward.11
$region0: #{discriminator_forward.11}
  #allocation0 [shape = 'u32[]', space=smem, size = 0x4, offset = 0x4, fixed_abs, tag = 'smem constant byte address 0x4 - core index']
  #allocation1 [shape = 'u32[144,128]{1,0:T(1,128)}', space=vmem, size = 0x12000, scoped, tag = 'internal scratch']
  %s0 = inlined_call_operand.vmem [shape: bf16[32,2048], index: 0, kind: input, shape index: {}]
  %s1 = inlined_call_operand.vmem [shape: bf16[2048,128], index: 1, kind: input, shape index: {}]
  %s2 = inlined_call_operand.vmem [shape: f32[1,128], index: 2, kind: input, shape index: {}]
  %s3 = inlined_call_operand.vmem [shape: f32[1,128], index: 3, kind: input, shape index: {}]
  %s4 = inlined_call_operand.vmem [shape: bf16[32,128], index: 4, kind: output, shape index: {}]
  %s5 = sld [smem:[#allocation0]]
  $region26: #{discriminator_forward.11} parent=0
    _
  %s7 = ssub.s32 1, %s5
  %s8 = scalar_select 0, %s7, %s5
  // Predicated region
  $region2: #{discriminator_forward.11} parent=0 // pred_check
    _
  $region3: #{discriminator_forward.11} parent=0 // pred_check_branch
    %10 = sbr.rel (0) target = $region5
  $region4: #{discriminator_forward.11} parent=0 // pred_region
    _
  $region5: #{discriminator_forward.11} parent=0 // pred_fallthru
    _
  // Predicated region
  $region6: #{discriminator_forward.11} parent=0 // pred_check
    _
  $region7: #{discriminator_forward.11} parent=0 // pred_check_branch
    %12 = sbr.rel (0) target = $region9
  $region8: #{discriminator_forward.11} parent=0 // pred_region
    _
  $region9: #{discriminator_forward.11} parent=0 // pred_fallthru
    _
  // Predicated region
  $region10: #{discriminator_forward.11} parent=0 // pred_check
    _
  $region11: #{discriminator_forward.11} parent=0 // pred_check_branch
    %14 = sbr.rel (0) target = $region13
  $region12: #{discriminator_forward.11} parent=0 // pred_region
    _
  $region13: #{discriminator_forward.11} parent=0 // pred_fallthru
    _
  // Predicated region
  $region14: #{discriminator_forward.11} parent=0 // pred_check
    _
  $region15: #{discriminator_forward.11} parent=0 // pred_check_branch
    %16 = sbr.rel (0) target = $region17
  $region16: #{discriminator_forward.11} parent=0 // pred_region
    _
  $region17: #{discriminator_forward.11} parent=0 // pred_fallthru
    _
  %v18 = vld [vmem:[%s0] sm:$0xff]
  %v19 = vld [vmem:[%s0 + $0x8] sm:$0xff]
  %v20 = vld [vmem:[%s0 + $0x10] sm:$0xff]
  %v21 = vld [vmem:[%s0 + $0x18] sm:$0xff]
  %v22 = vld [vmem:[%s0 + $0x20] sm:$0xff]
  %v23 = vld [vmem:[%s0 + $0x28] sm:$0xff]
  %v24 = vld [vmem:[%s0 + $0x30] sm:$0xff]
  %v25 = vld [vmem:[%s0 + $0x38] sm:$0xff]
  %v26 = vld [vmem:[%s0 + $0x40] sm:$0xff]
  %v27 = vld [vmem:[%s0 + $0x48] sm:$0xff]
  %v28 = vld [vmem:[%s0 + $0x50] sm:$0xff]
  %v29 = vld [vmem:[%s0 + $0x58] sm:$0xff]
  %v30 = vld [vmem:[%s0 + $0x60] sm:$0xff]
  %v31 = vld [vmem:[%s0 + $0x68] sm:$0xff]
  %v32 = vld [vmem:[%s0 + $0x70] sm:$0xff]
  %v33 = vld [vmem:[%s0 + $0x78] sm:$0xff]
  %v34 = vld [vmem:[%s0 + $0x80] sm:$0xff]
  %v35 = vld [vmem:[%s0 + $0x88] sm:$0xff]
  %v36 = vld [vmem:[%s0 + $0x90] sm:$0xff]
  %v37 = vld [vmem:[%s0 + $0x98] sm:$0xff]
  %v38 = vld [vmem:[%s0 + $0xa0] sm:$0xff]
  %v39 = vld [vmem:[%s0 + $0xa8] sm:$0xff]
  %v40 = vld [vmem:[%s0 + $0xb0] sm:$0xff]
  %v41 = vld [vmem:[%s0 + $0xb8] sm:$0xff]
  %v42 = vld [vmem:[%s0 + $0xc0] sm:$0xff]
  %v43 = vld [vmem:[%s0 + $0xc8] sm:$0xff]
  %v44 = vld [vmem:[%s0 + $0xd0] sm:$0xff]
  %v45 = vld [vmem:[%s0 + $0xd8] sm:$0xff]
  %v46 = vld [vmem:[%s0 + $0xe0] sm:$0xff]
  %v47 = vld [vmem:[%s0 + $0xe8] sm:$0xff]
  %v48 = vld [vmem:[%s0 + $0xf0] sm:$0xff]
  %v49 = vld [vmem:[%s0 + $0xf8] sm:$0xff]
  %v50 = vld [vmem:[%s1] sm:$0xf]
  %v51 = vld [vmem:[%s1 + $0x4] sm:$0xf]
  %v52 = vld [vmem:[%s1 + $0x8] sm:$0xf]
  %v53 = vld [vmem:[%s1 + $0xc] sm:$0xf]
  %v54 = vld [vmem:[%s1 + $0x10] sm:$0xf]
  %v55 = vld [vmem:[%s1 + $0x14] sm:$0xf]
  %v56 = vld [vmem:[%s1 + $0x18] sm:$0xf]
  %v57 = vld [vmem:[%s1 + $0x1c] sm:$0xf]
  %v58 = vld [vmem:[%s1 + $0x20] sm:$0xf]
  %v59 = vld [vmem:[%s1 + $0x24] sm:$0xf]
  %v60 = vld [vmem:[%s1 + $0x28] sm:$0xf]
  %v61 = vld [vmem:[%s1 + $0x2c] sm:$0xf]
  %v62 = vld [vmem:[%s1 + $0x30] sm:$0xf]
  %v63 = vld [vmem:[%s1 + $0x34] sm:$0xf]
  %v64 = vld [vmem:[%s1 + $0x38] sm:$0xf]
  %v65 = vld [vmem:[%s1 + $0x3c] sm:$0xf]
  %v66 = vld [vmem:[%s1 + $0x40] sm:$0xf]
  %v67 = vld [vmem:[%s1 + $0x44] sm:$0xf]
  %v68 = vld [vmem:[%s1 + $0x48] sm:$0xf]
  %v69 = vld [vmem:[%s1 + $0x4c] sm:$0xf]
  %v70 = vld [vmem:[%s1 + $0x50] sm:$0xf]
  %v71 = vld [vmem:[%s1 + $0x54] sm:$0xf]
  %v72 = vld [vmem:[%s1 + $0x58] sm:$0xf]
  %v73 = vld [vmem:[%s1 + $0x5c] sm:$0xf]
  %v74 = vld [vmem:[%s1 + $0x60] sm:$0xf]
  %v75 = vld [vmem:[%s1 + $0x64] sm:$0xf]
  %v76 = vld [vmem:[%s1 + $0x68] sm:$0xf]
  %v77 = vld [vmem:[%s1 + $0x6c] sm:$0xf]
  %v78 = vld [vmem:[%s1 + $0x70] sm:$0xf]
  %v79 = vld [vmem:[%s1 + $0x74] sm:$0xf]
  %v80 = vld [vmem:[%s1 + $0x78] sm:$0xf]
  %v81 = vld [vmem:[%s1 + $0x7c] sm:$0xf]
  %v82 = vld [vmem:[%s1 + $0x80] sm:$0xf]
  %v83 = vld [vmem:[%s1 + $0x84] sm:$0xf]
  %v84 = vld [vmem:[%s1 + $0x88] sm:$0xf]
  %v85 = vld [vmem:[%s1 + $0x8c] sm:$0xf]
  %v86 = vld [vmem:[%s1 + $0x90] sm:$0xf]
  %v87 = vld [vmem:[%s1 + $0x94] sm:$0xf]
  %v88 = vld [vmem:[%s1 + $0x98] sm:$0xf]
  %v89 = vld [vmem:[%s1 + $0x9c] sm:$0xf]
  %v90 = vld [vmem:[%s1 + $0xa0] sm:$0xf]
  %v91 = vld [vmem:[%s1 + $0xa4] sm:$0xf]
  %v92 = vld [vmem:[%s1 + $0xa8] sm:$0xf]
  %v93 = vld [vmem:[%s1 + $0xac] sm:$0xf]
  %v94 = vld [vmem:[%s1 + $0xb0] sm:$0xf]
  %v95 = vld [vmem:[%s1 + $0xb4] sm:$0xf]
  %v96 = vld [vmem:[%s1 + $0xb8] sm:$0xf]
  %v97 = vld [vmem:[%s1 + $0xbc] sm:$0xf]
  %v98 = vld [vmem:[%s1 + $0xc0] sm:$0xf]
  %v99 = vld [vmem:[%s1 + $0xc4] sm:$0xf]
  %v100 = vld [vmem:[%s1 + $0xc8] sm:$0xf]
  %v101 = vld [vmem:[%s1 + $0xcc] sm:$0xf]
  %v102 = vld [vmem:[%s1 + $0xd0] sm:$0xf]
  %v103 = vld [vmem:[%s1 + $0xd4] sm:$0xf]
  %v104 = vld [vmem:[%s1 + $0xd8] sm:$0xf]
  %v105 = vld [vmem:[%s1 + $0xdc] sm:$0xf]
  %v106 = vld [vmem:[%s1 + $0xe0] sm:$0xf]
  %v107 = vld [vmem:[%s1 + $0xe4] sm:$0xf]
  %v108 = vld [vmem:[%s1 + $0xe8] sm:$0xf]
  %v109 = vld [vmem:[%s1 + $0xec] sm:$0xf]
  %v110 = vld [vmem:[%s1 + $0xf0] sm:$0xf]
  %v111 = vld [vmem:[%s1 + $0xf4] sm:$0xf]
  %v112 = vld [vmem:[%s1 + $0xf8] sm:$0xf]
  %v113 = vld [vmem:[%s1 + $0xfc] sm:$0xf]
  %v114 = vld [vmem:[%s1 + $0x100] sm:$0xf]
  %v115 = vld [vmem:[%s1 + $0x104] sm:$0xf]
  %v116 = vld [vmem:[%s1 + $0x108] sm:$0xf]
  %v117 = vld [vmem:[%s1 + $0x10c] sm:$0xf]
  %v118 = vld [vmem:[%s1 + $0x110] sm:$0xf]
  %v119 = vld [vmem:[%s1 + $0x114] sm:$0xf]
  %v120 = vld [vmem:[%s1 + $0x118] sm:$0xf]
  %v121 = vld [vmem:[%s1 + $0x11c] sm:$0xf]
  %v122 = vld [vmem:[%s1 + $0x120] sm:$0xf]
  %v123 = vld [vmem:[%s1 + $0x124] sm:$0xf]
  %v124 = vld [vmem:[%s1 + $0x128] sm:$0xf]
  %v125 = vld [vmem:[%s1 + $0x12c] sm:$0xf]
  %v126 = vld [vmem:[%s1 + $0x130] sm:$0xf]
  %v127 = vld [vmem:[%s1 + $0x134] sm:$0xf]
  %v128 = vld [vmem:[%s1 + $0x138] sm:$0xf]
  %v129 = vld [vmem:[%s1 + $0x13c] sm:$0xf]
  %v130 = vld [vmem:[%s1 + $0x140] sm:$0xf]
  %v131 = vld [vmem:[%s1 + $0x144] sm:$0xf]
  %v132 = vld [vmem:[%s1 + $0x148] sm:$0xf]
  %v133 = vld [vmem:[%s1 + $0x14c] sm:$0xf]
  %v134 = vld [vmem:[%s1 + $0x150] sm:$0xf]
  %v135 = vld [vmem:[%s1 + $0x154] sm:$0xf]
  %v136 = vld [vmem:[%s1 + $0x158] sm:$0xf]
  %v137 = vld [vmem:[%s1 + $0x15c] sm:$0xf]
  %v138 = vld [vmem:[%s1 + $0x160] sm:$0xf]
  %v139 = vld [vmem:[%s1 + $0x164] sm:$0xf]
  %v140 = vld [vmem:[%s1 + $0x168] sm:$0xf]
  %v141 = vld [vmem:[%s1 + $0x16c] sm:$0xf]
  %v142 = vld [vmem:[%s1 + $0x170] sm:$0xf]
  %v143 = vld [vmem:[%s1 + $0x174] sm:$0xf]
  %v144 = vld [vmem:[%s1 + $0x178] sm:$0xf]
  %v145 = vld [vmem:[%s1 + $0x17c] sm:$0xf]
  %v146 = vld [vmem:[%s1 + $0x180] sm:$0xf]
  %v147 = vld [vmem:[%s1 + $0x184] sm:$0xf]
  %v148 = vld [vmem:[%s1 + $0x188] sm:$0xf]
  %v149 = vld [vmem:[%s1 + $0x18c] sm:$0xf]
  %v150 = vld [vmem:[%s1 + $0x190] sm:$0xf]
  %v151 = vld [vmem:[%s1 + $0x194] sm:$0xf]
  %v152 = vld [vmem:[%s1 + $0x198] sm:$0xf]
  %v153 = vld [vmem:[%s1 + $0x19c] sm:$0xf]
  %v154 = vld [vmem:[%s1 + $0x1a0] sm:$0xf]
  %v155 = vld [vmem:[%s1 + $0x1a4] sm:$0xf]
  %v156 = vld [vmem:[%s1 + $0x1a8] sm:$0xf]
  %v157 = vld [vmem:[%s1 + $0x1ac] sm:$0xf]
  %v158 = vld [vmem:[%s1 + $0x1b0] sm:$0xf]
  %v159 = vld [vmem:[%s1 + $0x1b4] sm:$0xf]
  %v160 = vld [vmem:[%s1 + $0x1b8] sm:$0xf]
  %v161 = vld [vmem:[%s1 + $0x1bc] sm:$0xf]
  %v162 = vld [vmem:[%s1 + $0x1c0] sm:$0xf]
  %v163 = vld [vmem:[%s1 + $0x1c4] sm:$0xf]
  %v164 = vld [vmem:[%s1 + $0x1c8] sm:$0xf]
  %v165 = vld [vmem:[%s1 + $0x1cc] sm:$0xf]
  %v166 = vld [vmem:[%s1 + $0x1d0] sm:$0xf]
  %v167 = vld [vmem:[%s1 + $0x1d4] sm:$0xf]
  %v168 = vld [vmem:[%s1 + $0x1d8] sm:$0xf]
  %v169 = vld [vmem:[%s1 + $0x1dc] sm:$0xf]
  %v170 = vld [vmem:[%s1 + $0x1e0] sm:$0xf]
  %v171 = vld [vmem:[%s1 + $0x1e4] sm:$0xf]
  %v172 = vld [vmem:[%s1 + $0x1e8] sm:$0xf]
  %v173 = vld [vmem:[%s1 + $0x1ec] sm:$0xf]
  %v174 = vld [vmem:[%s1 + $0x1f0] sm:$0xf]
  %v175 = vld [vmem:[%s1 + $0x1f4] sm:$0xf]
  %v176 = vld [vmem:[%s1 + $0x1f8] sm:$0xf]
  %v177 = vld [vmem:[%s1 + $0x1fc] sm:$0xf]
  %v178 = vld [vmem:[%s1 + $0x200] sm:$0xf]
  %v179 = vld [vmem:[%s1 + $0x204] sm:$0xf]
  %v180 = vld [vmem:[%s1 + $0x208] sm:$0xf]
  %v181 = vld [vmem:[%s1 + $0x20c] sm:$0xf]
  %v182 = vld [vmem:[%s1 + $0x210] sm:$0xf]
  %v183 = vld [vmem:[%s1 + $0x214] sm:$0xf]
  %v184 = vld [vmem:[%s1 + $0x218] sm:$0xf]
  %v185 = vld [vmem:[%s1 + $0x21c] sm:$0xf]
  %v186 = vld [vmem:[%s1 + $0x220] sm:$0xf]
  %v187 = vld [vmem:[%s1 + $0x224] sm:$0xf]
  %v188 = vld [vmem:[%s1 + $0x228] sm:$0xf]
  %v189 = vld [vmem:[%s1 + $0x22c] sm:$0xf]
  %v190 = vld [vmem:[%s1 + $0x230] sm:$0xf]
  %v191 = vld [vmem:[%s1 + $0x234] sm:$0xf]
  %v192 = vld [vmem:[%s1 + $0x238] sm:$0xf]
  %v193 = vld [vmem:[%s1 + $0x23c] sm:$0xf]
  %v194 = vld [vmem:[%s1 + $0x240] sm:$0xf]
  %v195 = vld [vmem:[%s1 + $0x244] sm:$0xf]
  %v196 = vld [vmem:[%s1 + $0x248] sm:$0xf]
  %v197 = vld [vmem:[%s1 + $0x24c] sm:$0xf]
  %v198 = vld [vmem:[%s1 + $0x250] sm:$0xf]
  %v199 = vld [vmem:[%s1 + $0x254] sm:$0xf]
  %v200 = vld [vmem:[%s1 + $0x258] sm:$0xf]
  %v201 = vld [vmem:[%s1 + $0x25c] sm:$0xf]
  %v202 = vld [vmem:[%s1 + $0x260] sm:$0xf]
  %v203 = vld [vmem:[%s1 + $0x264] sm:$0xf]
  %v204 = vld [vmem:[%s1 + $0x268] sm:$0xf]
  %v205 = vld [vmem:[%s1 + $0x26c] sm:$0xf]
  %v206 = vld [vmem:[%s1 + $0x270] sm:$0xf]
  %v207 = vld [vmem:[%s1 + $0x274] sm:$0xf]
  %v208 = vld [vmem:[%s1 + $0x278] sm:$0xf]
  %v209 = vld [vmem:[%s1 + $0x27c] sm:$0xf]
  %v210 = vld [vmem:[%s1 + $0x280] sm:$0xf]
  %v211 = vld [vmem:[%s1 + $0x284] sm:$0xf]
  %v212 = vld [vmem:[%s1 + $0x288] sm:$0xf]
  %v213 = vld [vmem:[%s1 + $0x28c] sm:$0xf]
  %v214 = vld [vmem:[%s1 + $0x290] sm:$0xf]
  %v215 = vld [vmem:[%s1 + $0x294] sm:$0xf]
  %v216 = vld [vmem:[%s1 + $0x298] sm:$0xf]
  %v217 = vld [vmem:[%s1 + $0x29c] sm:$0xf]
  %v218 = vld [vmem:[%s1 + $0x2a0] sm:$0xf]
  %v219 = vld [vmem:[%s1 + $0x2a4] sm:$0xf]
  %v220 = vld [vmem:[%s1 + $0x2a8] sm:$0xf]
  %v221 = vld [vmem:[%s1 + $0x2ac] sm:$0xf]
  %v222 = vld [vmem:[%s1 + $0x2b0] sm:$0xf]
  %v223 = vld [vmem:[%s1 + $0x2b4] sm:$0xf]
  %v224 = vld [vmem:[%s1 + $0x2b8] sm:$0xf]
  %v225 = vld [vmem:[%s1 + $0x2bc] sm:$0xf]
  %v226 = vld [vmem:[%s1 + $0x2c0] sm:$0xf]
  %v227 = vld [vmem:[%s1 + $0x2c4] sm:$0xf]
  %v228 = vld [vmem:[%s1 + $0x2c8] sm:$0xf]
  %v229 = vld [vmem:[%s1 + $0x2cc] sm:$0xf]
  %v230 = vld [vmem:[%s1 + $0x2d0] sm:$0xf]
  %v231 = vld [vmem:[%s1 + $0x2d4] sm:$0xf]
  %v232 = vld [vmem:[%s1 + $0x2d8] sm:$0xf]
  %v233 = vld [vmem:[%s1 + $0x2dc] sm:$0xf]
  %v234 = vld [vmem:[%s1 + $0x2e0] sm:$0xf]
  %v235 = vld [vmem:[%s1 + $0x2e4] sm:$0xf]
  %v236 = vld [vmem:[%s1 + $0x2e8] sm:$0xf]
  %v237 = vld [vmem:[%s1 + $0x2ec] sm:$0xf]
  %v238 = vld [vmem:[%s1 + $0x2f0] sm:$0xf]
  %v239 = vld [vmem:[%s1 + $0x2f4] sm:$0xf]
  %v240 = vld [vmem:[%s1 + $0x2f8] sm:$0xf]
  %v241 = vld [vmem:[%s1 + $0x2fc] sm:$0xf]
  %v242 = vld [vmem:[%s1 + $0x300] sm:$0xf]
  %v243 = vld [vmem:[%s1 + $0x304] sm:$0xf]
  %v244 = vld [vmem:[%s1 + $0x308] sm:$0xf]
  %v245 = vld [vmem:[%s1 + $0x30c] sm:$0xf]
  %v246 = vld [vmem:[%s1 + $0x310] sm:$0xf]
  %v247 = vld [vmem:[%s1 + $0x314] sm:$0xf]
  %v248 = vld [vmem:[%s1 + $0x318] sm:$0xf]
  %v249 = vld [vmem:[%s1 + $0x31c] sm:$0xf]
  %v250 = vld [vmem:[%s1 + $0x320] sm:$0xf]
  %v251 = vld [vmem:[%s1 + $0x324] sm:$0xf]
  %v252 = vld [vmem:[%s1 + $0x328] sm:$0xf]
  %v253 = vld [vmem:[%s1 + $0x32c] sm:$0xf]
  %v254 = vld [vmem:[%s1 + $0x330] sm:$0xf]
  %v255 = vld [vmem:[%s1 + $0x334] sm:$0xf]
  %v256 = vld [vmem:[%s1 + $0x338] sm:$0xf]
  %v257 = vld [vmem:[%s1 + $0x33c] sm:$0xf]
  %v258 = vld [vmem:[%s1 + $0x340] sm:$0xf]
  %v259 = vld [vmem:[%s1 + $0x344] sm:$0xf]
  %v260 = vld [vmem:[%s1 + $0x348] sm:$0xf]
  %v261 = vld [vmem:[%s1 + $0x34c] sm:$0xf]
  %v262 = vld [vmem:[%s1 + $0x350] sm:$0xf]
  %v263 = vld [vmem:[%s1 + $0x354] sm:$0xf]
  %v264 = vld [vmem:[%s1 + $0x358] sm:$0xf]
  %v265 = vld [vmem:[%s1 + $0x35c] sm:$0xf]
  %v266 = vld [vmem:[%s1 + $0x360] sm:$0xf]
  %v267 = vld [vmem:[%s1 + $0x364] sm:$0xf]
  %v268 = vld [vmem:[%s1 + $0x368] sm:$0xf]
  %v269 = vld [vmem:[%s1 + $0x36c] sm:$0xf]
  %v270 = vld [vmem:[%s1 + $0x370] sm:$0xf]
  %v271 = vld [vmem:[%s1 + $0x374] sm:$0xf]
  %v272 = vld [vmem:[%s1 + $0x378] sm:$0xf]
  %v273 = vld [vmem:[%s1 + $0x37c] sm:$0xf]
  %v274 = vld [vmem:[%s1 + $0x380] sm:$0xf]
  %v275 = vld [vmem:[%s1 + $0x384] sm:$0xf]
  %v276 = vld [vmem:[%s1 + $0x388] sm:$0xf]
  %v277 = vld [vmem:[%s1 + $0x38c] sm:$0xf]
  %v278 = vld [vmem:[%s1 + $0x390] sm:$0xf]
  %v279 = vld [vmem:[%s1 + $0x394] sm:$0xf]
  %v280 = vld [vmem:[%s1 + $0x398] sm:$0xf]
  %v281 = vld [vmem:[%s1 + $0x39c] sm:$0xf]
  %v282 = vld [vmem:[%s1 + $0x3a0] sm:$0xf]
  %v283 = vld [vmem:[%s1 + $0x3a4] sm:$0xf]
  %v284 = vld [vmem:[%s1 + $0x3a8] sm:$0xf]
  %v285 = vld [vmem:[%s1 + $0x3ac] sm:$0xf]
  %v286 = vld [vmem:[%s1 + $0x3b0] sm:$0xf]
  %v287 = vld [vmem:[%s1 + $0x3b4] sm:$0xf]
  %v288 = vld [vmem:[%s1 + $0x3b8] sm:$0xf]
  %v289 = vld [vmem:[%s1 + $0x3bc] sm:$0xf]
  %v290 = vld [vmem:[%s1 + $0x3c0] sm:$0xf]
  %v291 = vld [vmem:[%s1 + $0x3c4] sm:$0xf]
  %v292 = vld [vmem:[%s1 + $0x3c8] sm:$0xf]
  %v293 = vld [vmem:[%s1 + $0x3cc] sm:$0xf]
  %v294 = vld [vmem:[%s1 + $0x3d0] sm:$0xf]
  %v295 = vld [vmem:[%s1 + $0x3d4] sm:$0xf]
  %v296 = vld [vmem:[%s1 + $0x3d8] sm:$0xf]
  %v297 = vld [vmem:[%s1 + $0x3dc] sm:$0xf]
  %v298 = vld [vmem:[%s1 + $0x3e0] sm:$0xf]
  %v299 = vld [vmem:[%s1 + $0x3e4] sm:$0xf]
  %v300 = vld [vmem:[%s1 + $0x3e8] sm:$0xf]
  %v301 = vld [vmem:[%s1 + $0x3ec] sm:$0xf]
  %v302 = vld [vmem:[%s1 + $0x3f0] sm:$0xf]
  %v303 = vld [vmem:[%s1 + $0x3f4] sm:$0xf]
  %v304 = vld [vmem:[%s1 + $0x3f8] sm:$0xf]
  %v305 = vld [vmem:[%s1 + $0x3fc] sm:$0xf]
  %v338 = vunpack.c.l.b16 %v18
  %v339 = vunpack.c.h.b16 %v18
  %v340 = vunpack.c.l.b16 %v19
  %v341 = vunpack.c.h.b16 %v19
  %v342 = vunpack.c.l.b16 %v20
  %v343 = vunpack.c.h.b16 %v20
  %v344 = vunpack.c.l.b16 %v21
  %v345 = vunpack.c.h.b16 %v21
  %v346 = vunpack.c.l.b16 %v22
  %v347 = vunpack.c.h.b16 %v22
  %v348 = vunpack.c.l.b16 %v23
  %v349 = vunpack.c.h.b16 %v23
  %v350 = vunpack.c.l.b16 %v24
  %v351 = vunpack.c.h.b16 %v24
  %v352 = vunpack.c.l.b16 %v25
  %v353 = vunpack.c.h.b16 %v25
  %v354 = vunpack.c.l.b16 %v26
  %v355 = vunpack.c.h.b16 %v26
  %v356 = vunpack.c.l.b16 %v27
  %v357 = vunpack.c.h.b16 %v27
  %v358 = vunpack.c.l.b16 %v28
  %v359 = vunpack.c.h.b16 %v28
  %v360 = vunpack.c.l.b16 %v29
  %v361 = vunpack.c.h.b16 %v29
  %v362 = vunpack.c.l.b16 %v30
  %v363 = vunpack.c.h.b16 %v30
  %v364 = vunpack.c.l.b16 %v31
  %v365 = vunpack.c.h.b16 %v31
  %v366 = vunpack.c.l.b16 %v32
  %v367 = vunpack.c.h.b16 %v32
  %v368 = vunpack.c.l.b16 %v33
  %v369 = vunpack.c.h.b16 %v33
  %v370 = vunpack.c.l.b16 %v34
  %v371 = vunpack.c.h.b16 %v34
  %v372 = vunpack.c.l.b16 %v35
  %v373 = vunpack.c.h.b16 %v35
  %v374 = vunpack.c.l.b16 %v36
  %v375 = vunpack.c.h.b16 %v36
  %v376 = vunpack.c.l.b16 %v37
  %v377 = vunpack.c.h.b16 %v37
  %v378 = vunpack.c.l.b16 %v38
  %v379 = vunpack.c.h.b16 %v38
  %v380 = vunpack.c.l.b16 %v39
  %v381 = vunpack.c.h.b16 %v39
  %v382 = vunpack.c.l.b16 %v40
  %v383 = vunpack.c.h.b16 %v40
  %v384 = vunpack.c.l.b16 %v41
  %v385 = vunpack.c.h.b16 %v41
  %v386 = vunpack.c.l.b16 %v42
  %v387 = vunpack.c.h.b16 %v42
  %v388 = vunpack.c.l.b16 %v43
  %v389 = vunpack.c.h.b16 %v43
  %v390 = vunpack.c.l.b16 %v44
  %v391 = vunpack.c.h.b16 %v44
  %v392 = vunpack.c.l.b16 %v45
  %v393 = vunpack.c.h.b16 %v45
  %v394 = vunpack.c.l.b16 %v46
  %v395 = vunpack.c.h.b16 %v46
  %v396 = vunpack.c.l.b16 %v47
  %v397 = vunpack.c.h.b16 %v47
  %v398 = vunpack.c.l.b16 %v48
  %v399 = vunpack.c.h.b16 %v48
  %v400 = vunpack.c.l.b16 %v49
  %v401 = vunpack.c.h.b16 %v49
  %v402 = vpack.c.b16 %v354, %v338
  %v403 = vpack.c.b16 %v355, %v339
  %v404 = vpack.c.b16 %v356, %v340
  %v405 = vpack.c.b16 %v357, %v341
  %v406 = vpack.c.b16 %v358, %v342
  %v407 = vpack.c.b16 %v359, %v343
  %v408 = vpack.c.b16 %v360, %v344
  %v409 = vpack.c.b16 %v361, %v345
  %v410 = vpack.c.b16 %v362, %v346
  %v411 = vpack.c.b16 %v363, %v347
  %v412 = vpack.c.b16 %v364, %v348
  %v413 = vpack.c.b16 %v365, %v349
  %v414 = vpack.c.b16 %v366, %v350
  %v415 = vpack.c.b16 %v367, %v351
  %v416 = vpack.c.b16 %v368, %v352
  %v417 = vpack.c.b16 %v369, %v353
  %v418 = vpack.c.b16 %v386, %v370
  %v419 = vpack.c.b16 %v387, %v371
  %v420 = vpack.c.b16 %v388, %v372
  %v421 = vpack.c.b16 %v389, %v373
  %v422 = vpack.c.b16 %v390, %v374
  %v423 = vpack.c.b16 %v391, %v375
  %v424 = vpack.c.b16 %v392, %v376
  %v425 = vpack.c.b16 %v393, %v377
  %v426 = vpack.c.b16 %v394, %v378
  %v427 = vpack.c.b16 %v395, %v379
  %v428 = vpack.c.b16 %v396, %v380
  %v429 = vpack.c.b16 %v397, %v381
  %v430 = vpack.c.b16 %v398, %v382
  %v431 = vpack.c.b16 %v399, %v383
  %v432 = vpack.c.b16 %v400, %v384
  %v433 = vpack.c.b16 %v401, %v385
  %v722 = vunpack.c.l.b16 %v50
  %v723 = vunpack.c.l.b16 %v51
  %v724 = vunpack.c.l.b16 %v52
  %v725 = vunpack.c.l.b16 %v53
  %v726 = vunpack.c.l.b16 %v54
  %v727 = vunpack.c.l.b16 %v55
  %v728 = vunpack.c.l.b16 %v56
  %v729 = vunpack.c.l.b16 %v57
  %v730 = vunpack.c.l.b16 %v58
  %v731 = vunpack.c.l.b16 %v59
  %v732 = vunpack.c.l.b16 %v60
  %v733 = vunpack.c.l.b16 %v61
  %v734 = vunpack.c.l.b16 %v62
  %v735 = vunpack.c.l.b16 %v63
  %v736 = vunpack.c.l.b16 %v64
  %v737 = vunpack.c.l.b16 %v65
  %v738 = vunpack.c.l.b16 %v66
  %v739 = vunpack.c.l.b16 %v67
  %v740 = vunpack.c.l.b16 %v68
  %v741 = vunpack.c.l.b16 %v69
  %v742 = vunpack.c.l.b16 %v70
  %v743 = vunpack.c.l.b16 %v71
  %v744 = vunpack.c.l.b16 %v72
  %v745 = vunpack.c.l.b16 %v73
  %v746 = vunpack.c.l.b16 %v74
  %v747 = vunpack.c.l.b16 %v75
  %v748 = vunpack.c.l.b16 %v76
  %v749 = vunpack.c.l.b16 %v77
  %v750 = vunpack.c.l.b16 %v78
  %v751 = vunpack.c.l.b16 %v79
  %v752 = vunpack.c.l.b16 %v80
  %v753 = vunpack.c.l.b16 %v81
  %v754 = vunpack.c.l.b16 %v82
  %v755 = vunpack.c.l.b16 %v83
  %v756 = vunpack.c.l.b16 %v84
  %v757 = vunpack.c.l.b16 %v85
  %v758 = vunpack.c.l.b16 %v86
  %v759 = vunpack.c.l.b16 %v87
  %v760 = vunpack.c.l.b16 %v88
  %v761 = vunpack.c.l.b16 %v89
  %v762 = vunpack.c.l.b16 %v90
  %v763 = vunpack.c.l.b16 %v91
  %v764 = vunpack.c.l.b16 %v92
  %v765 = vunpack.c.l.b16 %v93
  %v766 = vunpack.c.l.b16 %v94
  %v767 = vunpack.c.l.b16 %v95
  %v768 = vunpack.c.l.b16 %v96
  %v769 = vunpack.c.l.b16 %v97
  %v770 = vunpack.c.l.b16 %v98
  %v771 = vunpack.c.l.b16 %v99
  %v772 = vunpack.c.l.b16 %v100
  %v773 = vunpack.c.l.b16 %v101
  %v774 = vunpack.c.l.b16 %v102
  %v775 = vunpack.c.l.b16 %v103
  %v776 = vunpack.c.l.b16 %v104
  %v777 = vunpack.c.l.b16 %v105
  %v778 = vunpack.c.l.b16 %v106
  %v779 = vunpack.c.l.b16 %v107
  %v780 = vunpack.c.l.b16 %v108
  %v781 = vunpack.c.l.b16 %v109
  %v782 = vunpack.c.l.b16 %v110
  %v783 = vunpack.c.l.b16 %v111
  %v784 = vunpack.c.l.b16 %v112
  %v785 = vunpack.c.l.b16 %v113
  %v786 = vunpack.c.l.b16 %v114
  %v787 = vunpack.c.l.b16 %v115
  %v788 = vunpack.c.l.b16 %v116
  %v789 = vunpack.c.l.b16 %v117
  %v790 = vunpack.c.l.b16 %v118
  %v791 = vunpack.c.l.b16 %v119
  %v792 = vunpack.c.l.b16 %v120
  %v793 = vunpack.c.l.b16 %v121
  %v794 = vunpack.c.l.b16 %v122
  %v795 = vunpack.c.l.b16 %v123
  %v796 = vunpack.c.l.b16 %v124
  %v797 = vunpack.c.l.b16 %v125
  %v798 = vunpack.c.l.b16 %v126
  %v799 = vunpack.c.l.b16 %v127
  %v800 = vunpack.c.l.b16 %v128
  %v801 = vunpack.c.l.b16 %v129
  %v802 = vunpack.c.l.b16 %v130
  %v803 = vunpack.c.l.b16 %v131
  %v804 = vunpack.c.l.b16 %v132
  %v805 = vunpack.c.l.b16 %v133
  %v806 = vunpack.c.l.b16 %v134
  %v807 = vunpack.c.l.b16 %v135
  %v808 = vunpack.c.l.b16 %v136
  %v809 = vunpack.c.l.b16 %v137
  %v810 = vunpack.c.l.b16 %v138
  %v811 = vunpack.c.l.b16 %v139
  %v812 = vunpack.c.l.b16 %v140
  %v813 = vunpack.c.l.b16 %v141
  %v814 = vunpack.c.l.b16 %v142
  %v815 = vunpack.c.l.b16 %v143
  %v816 = vunpack.c.l.b16 %v144
  %v817 = vunpack.c.l.b16 %v145
  %v818 = vunpack.c.l.b16 %v146
  %v819 = vunpack.c.l.b16 %v147
  %v820 = vunpack.c.l.b16 %v148
  %v821 = vunpack.c.l.b16 %v149
  %v822 = vunpack.c.l.b16 %v150
  %v823 = vunpack.c.l.b16 %v151
  %v824 = vunpack.c.l.b16 %v152
  %v825 = vunpack.c.l.b16 %v153
  %v826 = vunpack.c.l.b16 %v154
  %v827 = vunpack.c.l.b16 %v155
  %v828 = vunpack.c.l.b16 %v156
  %v829 = vunpack.c.l.b16 %v157
  %v830 = vunpack.c.l.b16 %v158
  %v831 = vunpack.c.l.b16 %v159
  %v832 = vunpack.c.l.b16 %v160
  %v833 = vunpack.c.l.b16 %v161
  %v834 = vunpack.c.l.b16 %v162
  %v835 = vunpack.c.l.b16 %v163
  %v836 = vunpack.c.l.b16 %v164
  %v837 = vunpack.c.l.b16 %v165
  %v838 = vunpack.c.l.b16 %v166
  %v839 = vunpack.c.l.b16 %v167
  %v840 = vunpack.c.l.b16 %v168
  %v841 = vunpack.c.l.b16 %v169
  %v842 = vunpack.c.l.b16 %v170
  %v843 = vunpack.c.l.b16 %v171
  %v844 = vunpack.c.l.b16 %v172
  %v845 = vunpack.c.l.b16 %v173
  %v846 = vunpack.c.l.b16 %v174
  %v847 = vunpack.c.l.b16 %v175
  %v848 = vunpack.c.l.b16 %v176
  %v849 = vunpack.c.l.b16 %v177
  %v850 = vunpack.c.l.b16 %v178
  %v851 = vunpack.c.l.b16 %v179
  %v852 = vunpack.c.l.b16 %v180
  %v853 = vunpack.c.l.b16 %v181
  %v854 = vunpack.c.l.b16 %v182
  %v855 = vunpack.c.l.b16 %v183
  %v856 = vunpack.c.l.b16 %v184
  %v857 = vunpack.c.l.b16 %v185
  %v858 = vunpack.c.l.b16 %v186
  %v859 = vunpack.c.l.b16 %v187
  %v860 = vunpack.c.l.b16 %v188
  %v861 = vunpack.c.l.b16 %v189
  %v862 = vunpack.c.l.b16 %v190
  %v863 = vunpack.c.l.b16 %v191
  %v864 = vunpack.c.l.b16 %v192
  %v865 = vunpack.c.l.b16 %v193
  %v866 = vunpack.c.l.b16 %v194
  %v867 = vunpack.c.l.b16 %v195
  %v868 = vunpack.c.l.b16 %v196
  %v869 = vunpack.c.l.b16 %v197
  %v870 = vunpack.c.l.b16 %v198
  %v871 = vunpack.c.l.b16 %v199
  %v872 = vunpack.c.l.b16 %v200
  %v873 = vunpack.c.l.b16 %v201
  %v874 = vunpack.c.l.b16 %v202
  %v875 = vunpack.c.l.b16 %v203
  %v876 = vunpack.c.l.b16 %v204
  %v877 = vunpack.c.l.b16 %v205
  %v878 = vunpack.c.l.b16 %v206
  %v879 = vunpack.c.l.b16 %v207
  %v880 = vunpack.c.l.b16 %v208
  %v881 = vunpack.c.l.b16 %v209
  %v882 = vunpack.c.l.b16 %v210
  %v883 = vunpack.c.l.b16 %v211
  %v884 = vunpack.c.l.b16 %v212
  %v885 = vunpack.c.l.b16 %v213
  %v886 = vunpack.c.l.b16 %v214
  %v887 = vunpack.c.l.b16 %v215
  %v888 = vunpack.c.l.b16 %v216
  %v889 = vunpack.c.l.b16 %v217
  %v890 = vunpack.c.l.b16 %v218
  %v891 = vunpack.c.l.b16 %v219
  %v892 = vunpack.c.l.b16 %v220
  %v893 = vunpack.c.l.b16 %v221
  %v894 = vunpack.c.l.b16 %v222
  %v895 = vunpack.c.l.b16 %v223
  %v896 = vunpack.c.l.b16 %v224
  %v897 = vunpack.c.l.b16 %v225
  %v898 = vunpack.c.l.b16 %v226
  %v899 = vunpack.c.l.b16 %v227
  %v900 = vunpack.c.l.b16 %v228
  %v901 = vunpack.c.l.b16 %v229
  %v902 = vunpack.c.l.b16 %v230
  %v903 = vunpack.c.l.b16 %v231
  %v904 = vunpack.c.l.b16 %v232
  %v905 = vunpack.c.l.b16 %v233
  %v906 = vunpack.c.l.b16 %v234
  %v907 = vunpack.c.l.b16 %v235
  %v908 = vunpack.c.l.b16 %v236
  %v909 = vunpack.c.l.b16 %v237
  %v910 = vunpack.c.l.b16 %v238
  %v911 = vunpack.c.l.b16 %v239
  %v912 = vunpack.c.l.b16 %v240
  %v913 = vunpack.c.l.b16 %v241
  %v914 = vunpack.c.l.b16 %v242
  %v915 = vunpack.c.l.b16 %v243
  %v916 = vunpack.c.l.b16 %v244
  %v917 = vunpack.c.l.b16 %v245
  %v918 = vunpack.c.l.b16 %v246
  %v919 = vunpack.c.l.b16 %v247
  %v920 = vunpack.c.l.b16 %v248
  %v921 = vunpack.c.l.b16 %v249
  %v922 = vunpack.c.l.b16 %v250
  %v923 = vunpack.c.l.b16 %v251
  %v924 = vunpack.c.l.b16 %v252
  %v925 = vunpack.c.l.b16 %v253
  %v926 = vunpack.c.l.b16 %v254
  %v927 = vunpack.c.l.b16 %v255
  %v928 = vunpack.c.l.b16 %v256
  %v929 = vunpack.c.l.b16 %v257
  %v930 = vunpack.c.l.b16 %v258
  %v931 = vunpack.c.l.b16 %v259
  %v932 = vunpack.c.l.b16 %v260
  %v933 = vunpack.c.l.b16 %v261
  %v934 = vunpack.c.l.b16 %v262
  %v935 = vunpack.c.l.b16 %v263
  %v936 = vunpack.c.l.b16 %v264
  %v937 = vunpack.c.l.b16 %v265
  %v938 = vunpack.c.l.b16 %v266
  %v939 = vunpack.c.l.b16 %v267
  %v940 = vunpack.c.l.b16 %v268
  %v941 = vunpack.c.l.b16 %v269
  %v942 = vunpack.c.l.b16 %v270
  %v943 = vunpack.c.l.b16 %v271
  %v944 = vunpack.c.l.b16 %v272
  %v945 = vunpack.c.l.b16 %v273
  %v946 = vunpack.c.l.b16 %v274
  %v947 = vunpack.c.l.b16 %v275
  %v948 = vunpack.c.l.b16 %v276
  %v949 = vunpack.c.l.b16 %v277
  %v950 = vunpack.c.l.b16 %v278
  %v951 = vunpack.c.l.b16 %v279
  %v952 = vunpack.c.l.b16 %v280
  %v953 = vunpack.c.l.b16 %v281
  %v954 = vunpack.c.l.b16 %v282
  %v955 = vunpack.c.l.b16 %v283
  %v956 = vunpack.c.l.b16 %v284
  %v957 = vunpack.c.l.b16 %v285
  %v958 = vunpack.c.l.b16 %v286
  %v959 = vunpack.c.l.b16 %v287
  %v960 = vunpack.c.l.b16 %v288
  %v961 = vunpack.c.l.b16 %v289
  %v962 = vunpack.c.l.b16 %v290
  %v963 = vunpack.c.l.b16 %v291
  %v964 = vunpack.c.l.b16 %v292
  %v965 = vunpack.c.l.b16 %v293
  %v966 = vunpack.c.l.b16 %v294
  %v967 = vunpack.c.l.b16 %v295
  %v968 = vunpack.c.l.b16 %v296
  %v969 = vunpack.c.l.b16 %v297
  %v970 = vunpack.c.l.b16 %v298
  %v971 = vunpack.c.l.b16 %v299
  %v972 = vunpack.c.l.b16 %v300
  %v973 = vunpack.c.l.b16 %v301
  %v974 = vunpack.c.l.b16 %v302
  %v975 = vunpack.c.l.b16 %v303
  %v976 = vunpack.c.l.b16 %v304
  %v977 = vunpack.c.l.b16 %v305
  %v978 = vpack.c.b16 %v723, %v722
  %v979 = vpack.c.b16 %v725, %v724
  %v980 = vpack.c.b16 %v727, %v726
  %v981 = vpack.c.b16 %v729, %v728
  %v982 = vpack.c.b16 %v731, %v730
  %v983 = vpack.c.b16 %v733, %v732
  %v984 = vpack.c.b16 %v735, %v734
  %v985 = vpack.c.b16 %v737, %v736
  %v986 = vpack.c.b16 %v739, %v738
  %v987 = vpack.c.b16 %v741, %v740
  %v988 = vpack.c.b16 %v743, %v742
  %v989 = vpack.c.b16 %v745, %v744
  %v990 = vpack.c.b16 %v747, %v746
  %v991 = vpack.c.b16 %v749, %v748
  %v992 = vpack.c.b16 %v751, %v750
  %v993 = vpack.c.b16 %v753, %v752
  %v994 = vpack.c.b16 %v755, %v754
  %v995 = vpack.c.b16 %v757, %v756
  %v996 = vpack.c.b16 %v759, %v758
  %v997 = vpack.c.b16 %v761, %v760
  %v998 = vpack.c.b16 %v763, %v762
  %v999 = vpack.c.b16 %v765, %v764
  %v1000 = vpack.c.b16 %v767, %v766
  %v1001 = vpack.c.b16 %v769, %v768
  %v1002 = vpack.c.b16 %v771, %v770
  %v1003 = vpack.c.b16 %v773, %v772
  %v1004 = vpack.c.b16 %v775, %v774
  %v1005 = vpack.c.b16 %v777, %v776
  %v1006 = vpack.c.b16 %v779, %v778
  %v1007 = vpack.c.b16 %v781, %v780
  %v1008 = vpack.c.b16 %v783, %v782
  %v1009 = vpack.c.b16 %v785, %v784
  %v1010 = vpack.c.b16 %v787, %v786
  %v1011 = vpack.c.b16 %v789, %v788
  %v1012 = vpack.c.b16 %v791, %v790
  %v1013 = vpack.c.b16 %v793, %v792
  %v1014 = vpack.c.b16 %v795, %v794
  %v1015 = vpack.c.b16 %v797, %v796
  %v1016 = vpack.c.b16 %v799, %v798
  %v1017 = vpack.c.b16 %v801, %v800
  %v1018 = vpack.c.b16 %v803, %v802
  %v1019 = vpack.c.b16 %v805, %v804
  %v1020 = vpack.c.b16 %v807, %v806
  %v1021 = vpack.c.b16 %v809, %v808
  %v1022 = vpack.c.b16 %v811, %v810
  %v1023 = vpack.c.b16 %v813, %v812
  %v1024 = vpack.c.b16 %v815, %v814
  %v1025 = vpack.c.b16 %v817, %v816
  %v1026 = vpack.c.b16 %v819, %v818
  %v1027 = vpack.c.b16 %v821, %v820
  %v1028 = vpack.c.b16 %v823, %v822
  %v1029 = vpack.c.b16 %v825, %v824
  %v1030 = vpack.c.b16 %v827, %v826
  %v1031 = vpack.c.b16 %v829, %v828
  %v1032 = vpack.c.b16 %v831, %v830
  %v1033 = vpack.c.b16 %v833, %v832
  %v1034 = vpack.c.b16 %v835, %v834
  %v1035 = vpack.c.b16 %v837, %v836
  %v1036 = vpack.c.b16 %v839, %v838
  %v1037 = vpack.c.b16 %v841, %v840
  %v1038 = vpack.c.b16 %v843, %v842
  %v1039 = vpack.c.b16 %v845, %v844
  %v1040 = vpack.c.b16 %v847, %v846
  %v1041 = vpack.c.b16 %v849, %v848
  %v1042 = vpack.c.b16 %v851, %v850
  %v1043 = vpack.c.b16 %v853, %v852
  %v1044 = vpack.c.b16 %v855, %v854
  %v1045 = vpack.c.b16 %v857, %v856
  %v1046 = vpack.c.b16 %v859, %v858
  %v1047 = vpack.c.b16 %v861, %v860
  %v1048 = vpack.c.b16 %v863, %v862
  %v1049 = vpack.c.b16 %v865, %v864
  %v1050 = vpack.c.b16 %v867, %v866
  %v1051 = vpack.c.b16 %v869, %v868
  %v1052 = vpack.c.b16 %v871, %v870
  %v1053 = vpack.c.b16 %v873, %v872
  %v1054 = vpack.c.b16 %v875, %v874
  %v1055 = vpack.c.b16 %v877, %v876
  %v1056 = vpack.c.b16 %v879, %v878
  %v1057 = vpack.c.b16 %v881, %v880
  %v1058 = vpack.c.b16 %v883, %v882
  %v1059 = vpack.c.b16 %v885, %v884
  %v1060 = vpack.c.b16 %v887, %v886
  %v1061 = vpack.c.b16 %v889, %v888
  %v1062 = vpack.c.b16 %v891, %v890
  %v1063 = vpack.c.b16 %v893, %v892
  %v1064 = vpack.c.b16 %v895, %v894
  %v1065 = vpack.c.b16 %v897, %v896
  %v1066 = vpack.c.b16 %v899, %v898
  %v1067 = vpack.c.b16 %v901, %v900
  %v1068 = vpack.c.b16 %v903, %v902
  %v1069 = vpack.c.b16 %v905, %v904
  %v1070 = vpack.c.b16 %v907, %v906
  %v1071 = vpack.c.b16 %v909, %v908
  %v1072 = vpack.c.b16 %v911, %v910
  %v1073 = vpack.c.b16 %v913, %v912
  %v1074 = vpack.c.b16 %v915, %v914
  %v1075 = vpack.c.b16 %v917, %v916
  %v1076 = vpack.c.b16 %v919, %v918
  %v1077 = vpack.c.b16 %v921, %v920
  %v1078 = vpack.c.b16 %v923, %v922
  %v1079 = vpack.c.b16 %v925, %v924
  %v1080 = vpack.c.b16 %v927, %v926
  %v1081 = vpack.c.b16 %v929, %v928
  %v1082 = vpack.c.b16 %v931, %v930
  %v1083 = vpack.c.b16 %v933, %v932
  %v1084 = vpack.c.b16 %v935, %v934
  %v1085 = vpack.c.b16 %v937, %v936
  %v1086 = vpack.c.b16 %v939, %v938
  %v1087 = vpack.c.b16 %v941, %v940
  %v1088 = vpack.c.b16 %v943, %v942
  %v1089 = vpack.c.b16 %v945, %v944
  %v1090 = vpack.c.b16 %v947, %v946
  %v1091 = vpack.c.b16 %v949, %v948
  %v1092 = vpack.c.b16 %v951, %v950
  %v1093 = vpack.c.b16 %v953, %v952
  %v1094 = vpack.c.b16 %v955, %v954
  %v1095 = vpack.c.b16 %v957, %v956
  %v1096 = vpack.c.b16 %v959, %v958
  %v1097 = vpack.c.b16 %v961, %v960
  %v1098 = vpack.c.b16 %v963, %v962
  %v1099 = vpack.c.b16 %v965, %v964
  %v1100 = vpack.c.b16 %v967, %v966
  %v1101 = vpack.c.b16 %v969, %v968
  %v1102 = vpack.c.b16 %v971, %v970
  %v1103 = vpack.c.b16 %v973, %v972
  %v1104 = vpack.c.b16 %v975, %v974
  %v1105 = vpack.c.b16 %v977, %v976
  %1234 = vmatprep.subr.bf16.mxu0 0
  %1235 = vmatpush1.bf16.msra.mxu0 %v978
  %1236 = vmatprep.subr.bf16.mxu0 0
  %1237 = vmatpush1.bf16.msra.mxu0 %v979
  %1238 = vmatprep.subr.bf16.mxu0 0
  %1239 = vmatpush1.bf16.msra.mxu0 %v980
  %1240 = vmatprep.subr.bf16.mxu0 0
  %1241 = vmatpush1.bf16.msra.mxu0 %v981
  %1242 = vmatprep.subr.bf16.mxu0 0
  %1243 = vmatpush1.bf16.msra.mxu0 %v982
  %1244 = vmatprep.subr.bf16.mxu0 0
  %1245 = vmatpush1.bf16.msra.mxu0 %v983
  %1246 = vmatprep.subr.bf16.mxu0 0
  %1247 = vmatpush1.bf16.msra.mxu0 %v984
  %1248 = vmatprep.subr.bf16.mxu0 0
  %1249 = vmatpush1.bf16.msra.mxu0 %v985
  %1250 = vmatprep.subr.bf16.mxu0 0
  %1251 = vmatpush1.bf16.msra.mxu0 %v986
  %1252 = vmatprep.subr.bf16.mxu0 0
  %1253 = vmatpush1.bf16.msra.mxu0 %v987
  %1254 = vmatprep.subr.bf16.mxu0 0
  %1255 = vmatpush1.bf16.msra.mxu0 %v988
  %1256 = vmatprep.subr.bf16.mxu0 0
  %1257 = vmatpush1.bf16.msra.mxu0 %v989
  %1258 = vmatprep.subr.bf16.mxu0 0
  %1259 = vmatpush1.bf16.msra.mxu0 %v990
  %1260 = vmatprep.subr.bf16.mxu0 0
  %1261 = vmatpush1.bf16.msra.mxu0 %v991
  %1262 = vmatprep.subr.bf16.mxu0 0
  %1263 = vmatpush1.bf16.msra.mxu0 %v992
  %1264 = vmatprep.subr.bf16.mxu0 0
  %1265 = vmatpush1.bf16.msra.mxu0 %v993
  %1266 = vmatprep.mubr.bf16.mxu0 %v403
  %1267 = vmatmul.mubr.bf16.gmra.mrb[0].mxu0 %v402
  %v1268 = vpop.f32.mrb[0].mxu0
  %v1269 = vadd.f32 0.0, %v1268
  %v1270 = vpop.f32.mrb[0].mxu0
  %v1271 = vpop.f32.mrb[0].mxu0
  %v1272 = vadd.f32 0.0, %v1271
  %v1273 = vpop.f32.mrb[0].mxu0
  %1274 = vmatprep.mubr.bf16.mxu0 %v419
  %1275 = vmatmul.mubr.bf16.gmra.mrb[0].mxu0 %v418
  %v1276 = vpop.f32.mrb[0].mxu0
  %v1277 = vadd.f32 0.0, %v1276
  %v1278 = vpop.f32.mrb[0].mxu0
  %v1279 = vpop.f32.mrb[0].mxu0
  %v1280 = vadd.f32 0.0, %v1279
  %v1281 = vpop.f32.mrb[0].mxu0
  %1282 = vdwg.mxu0
  %1283 = vmatprep.subr.bf16.mxu0 0
  %1284 = vmatpush1.bf16.msra.mxu0 %v994
  %1285 = vmatprep.subr.bf16.mxu0 0
  %1286 = vmatpush1.bf16.msra.mxu0 %v995
  %1287 = vmatprep.subr.bf16.mxu0 0
  %1288 = vmatpush1.bf16.msra.mxu0 %v996
  %1289 = vmatprep.subr.bf16.mxu0 0
  %1290 = vmatpush1.bf16.msra.mxu0 %v997
  %1291 = vmatprep.subr.bf16.mxu0 0
  %1292 = vmatpush1.bf16.msra.mxu0 %v998
  %1293 = vmatprep.subr.bf16.mxu0 0
  %1294 = vmatpush1.bf16.msra.mxu0 %v999
  %1295 = vmatprep.subr.bf16.mxu0 0
  %1296 = vmatpush1.bf16.msra.mxu0 %v1000
  %1297 = vmatprep.subr.bf16.mxu0 0
  %1298 = vmatpush1.bf16.msra.mxu0 %v1001
  %1299 = vmatprep.subr.bf16.mxu0 0
  %1300 = vmatpush1.bf16.msra.mxu0 %v1002
  %1301 = vmatprep.subr.bf16.mxu0 0
  %1302 = vmatpush1.bf16.msra.mxu0 %v1003
  %1303 = vmatprep.subr.bf16.mxu0 0
  %1304 = vmatpush1.bf16.msra.mxu0 %v1004
  %1305 = vmatprep.subr.bf16.mxu0 0
  %1306 = vmatpush1.bf16.msra.mxu0 %v1005
  %1307 = vmatprep.subr.bf16.mxu0 0
  %1308 = vmatpush1.bf16.msra.mxu0 %v1006
  %1309 = vmatprep.subr.bf16.mxu0 0
  %1310 = vmatpush1.bf16.msra.mxu0 %v1007
  %1311 = vmatprep.subr.bf16.mxu0 0
  %1312 = vmatpush1.bf16.msra.mxu0 %v1008
  %1313 = vmatprep.subr.bf16.mxu0 0
  %1314 = vmatpush1.bf16.msra.mxu0 %v1009
  %1315 = vmatprep.mubr.bf16.mxu0 %v405
  %1316 = vmatmul.mubr.bf16.gmra.mrb[0].mxu0 %v404
  %v1317 = vpop.f32.mrb[0].mxu0
  %v1318 = vadd.f32 %v1269, %v1317
  %v1319 = vpop.f32.mrb[0].mxu0
  %v1320 = vpop.f32.mrb[0].mxu0
  %v1321 = vadd.f32 %v1272, %v1320
  %v1322 = vpop.f32.mrb[0].mxu0
  %1323 = vmatprep.mubr.bf16.mxu0 %v421
  %1324 = vmatmul.mubr.bf16.gmra.mrb[0].mxu0 %v420
  %v1325 = vpop.f32.mrb[0].mxu0
  %v1326 = vadd.f32 %v1277, %v1325
  %v1327 = vpop.f32.mrb[0].mxu0
  %v1328 = vpop.f32.mrb[0].mxu0
  %v1329 = vadd.f32 %v1280, %v1328
  %v1330 = vpop.f32.mrb[0].mxu0
  %1331 = vdwg.mxu0
  %1332 = vmatprep.subr.bf16.mxu0 0
  %1333 = vmatpush1.bf16.msra.mxu0 %v1010
  %1334 = vmatprep.subr.bf16.mxu0 0
  %1335 = vmatpush1.bf16.msra.mxu0 %v1011
  %1336 = vmatprep.subr.bf16.mxu0 0
  %1337 = vmatpush1.bf16.msra.mxu0 %v1012
  %1338 = vmatprep.subr.bf16.mxu0 0
  %1339 = vmatpush1.bf16.msra.mxu0 %v1013
  %1340 = vmatprep.subr.bf16.mxu0 0
  %1341 = vmatpush1.bf16.msra.mxu0 %v1014
  %1342 = vmatprep.subr.bf16.mxu0 0
  %1343 = vmatpush1.bf16.msra.mxu0 %v1015
  %1344 = vmatprep.subr.bf16.mxu0 0
  %1345 = vmatpush1.bf16.msra.mxu0 %v1016
  %1346 = vmatprep.subr.bf16.mxu0 0
  %1347 = vmatpush1.bf16.msra.mxu0 %v1017
  %1348 = vmatprep.subr.bf16.mxu0 0
  %1349 = vmatpush1.bf16.msra.mxu0 %v1018
  %1350 = vmatprep.subr.bf16.mxu0 0
  %1351 = vmatpush1.bf16.msra.mxu0 %v1019
  %1352 = vmatprep.subr.bf16.mxu0 0
  %1353 = vmatpush1.bf16.msra.mxu0 %v1020
  %1354 = vmatprep.subr.bf16.mxu0 0
  %1355 = vmatpush1.bf16.msra.mxu0 %v1021
  %1356 = vmatprep.subr.bf16.mxu0 0
  %1357 = vmatpush1.bf16.msra.mxu0 %v1022
  %1358 = vmatprep.subr.bf16.mxu0 0
  %1359 = vmatpush1.bf16.msra.mxu0 %v1023
  %1360 = vmatprep.subr.bf16.mxu0 0
  %1361 = vmatpush1.bf16.msra.mxu0 %v1024
  %1362 = vmatprep.subr.bf16.mxu0 0
  %1363 = vmatpush1.bf16.msra.mxu0 %v1025
  %1364 = vmatprep.mubr.bf16.mxu0 %v407
  %1365 = vmatmul.mubr.bf16.gmra.mrb[0].mxu0 %v406
  %v1366 = vpop.f32.mrb[0].mxu0
  %v1367 = vadd.f32 %v1318, %v1366
  %v1368 = vpop.f32.mrb[0].mxu0
  %v1369 = vpop.f32.mrb[0].mxu0
  %v1370 = vadd.f32 %v1321, %v1369
  %v1371 = vpop.f32.mrb[0].mxu0
  %1372 = vmatprep.mubr.bf16.mxu0 %v423
  %1373 = vmatmul.mubr.bf16.gmra.mrb[0].mxu0 %v422
  %v1374 = vpop.f32.mrb[0].mxu0
  %v1375 = vadd.f32 %v1326, %v1374
  %v1376 = vpop.f32.mrb[0].mxu0
  %v1377 = vpop.f32.mrb[0].mxu0
  %v1378 = vadd.f32 %v1329, %v1377
  %v1379 = vpop.f32.mrb[0].mxu0
  %1380 = vdwg.mxu0
  %1381 = vmatprep.subr.bf16.mxu0 0
  %1382 = vmatpush1.bf16.msra.mxu0 %v1026
  %1383 = vmatprep.subr.bf16.mxu0 0
  %1384 = vmatpush1.bf16.msra.mxu0 %v1027
  %1385 = vmatprep.subr.bf16.mxu0 0
  %1386 = vmatpush1.bf16.msra.mxu0 %v1028
  %1387 = vmatprep.subr.bf16.mxu0 0
  %1388 = vmatpush1.bf16.msra.mxu0 %v1029
  %1389 = vmatprep.subr.bf16.mxu0 0
  %1390 = vmatpush1.bf16.msra.mxu0 %v1030
  %1391 = vmatprep.subr.bf16.mxu0 0
  %1392 = vmatpush1.bf16.msra.mxu0 %v1031
  %1393 = vmatprep.subr.bf16.mxu0 0
  %1394 = vmatpush1.bf16.msra.mxu0 %v1032
  %1395 = vmatprep.subr.bf16.mxu0 0
  %1396 = vmatpush1.bf16.msra.mxu0 %v1033
  %1397 = vmatprep.subr.bf16.mxu0 0
  %1398 = vmatpush1.bf16.msra.mxu0 %v1034
  %1399 = vmatprep.subr.bf16.mxu0 0
  %1400 = vmatpush1.bf16.msra.mxu0 %v1035
  %1401 = vmatprep.subr.bf16.mxu0 0
  %1402 = vmatpush1.bf16.msra.mxu0 %v1036
  %1403 = vmatprep.subr.bf16.mxu0 0
  %1404 = vmatpush1.bf16.msra.mxu0 %v1037
  %1405 = vmatprep.subr.bf16.mxu0 0
  %1406 = vmatpush1.bf16.msra.mxu0 %v1038
  %1407 = vmatprep.subr.bf16.mxu0 0
  %1408 = vmatpush1.bf16.msra.mxu0 %v1039
  %1409 = vmatprep.subr.bf16.mxu0 0
  %1410 = vmatpush1.bf16.msra.mxu0 %v1040
  %1411 = vmatprep.subr.bf16.mxu0 0
  %1412 = vmatpush1.bf16.msra.mxu0 %v1041
  %1413 = vmatprep.mubr.bf16.mxu0 %v409
  %1414 = vmatmul.mubr.bf16.gmra.mrb[0].mxu0 %v408
  %v1415 = vpop.f32.mrb[0].mxu0
  %v1416 = vadd.f32 %v1367, %v1415
  %v1417 = vpop.f32.mrb[0].mxu0
  %v1418 = vpop.f32.mrb[0].mxu0
  %v1419 = vadd.f32 %v1370, %v1418
  %v1420 = vpop.f32.mrb[0].mxu0
  %1421 = vmatprep.mubr.bf16.mxu0 %v425
  %1422 = vmatmul.mubr.bf16.gmra.mrb[0].mxu0 %v424
  %v1423 = vpop.f32.mrb[0].mxu0
  %v1424 = vadd.f32 %v1375, %v1423
  %v1425 = vpop.f32.mrb[0].mxu0
  %v1426 = vpop.f32.mrb[0].mxu0
  %v1427 = vadd.f32 %v1378, %v1426
  %v1428 = vpop.f32.mrb[0].mxu0
  %1429 = vdwg.mxu0
  %1430 = vmatprep.subr.bf16.mxu0 0
  %1431 = vmatpush1.bf16.msra.mxu0 %v1042
  %1432 = vmatprep.subr.bf16.mxu0 0
  %1433 = vmatpush1.bf16.msra.mxu0 %v1043
  %1434 = vmatprep.subr.bf16.mxu0 0
  %1435 = vmatpush1.bf16.msra.mxu0 %v1044
  %1436 = vmatprep.subr.bf16.mxu0 0
  %1437 = vmatpush1.bf16.msra.mxu0 %v1045
  %1438 = vmatprep.subr.bf16.mxu0 0
  %1439 = vmatpush1.bf16.msra.mxu0 %v1046
  %1440 = vmatprep.subr.bf16.mxu0 0
  %1441 = vmatpush1.bf16.msra.mxu0 %v1047
  %1442 = vmatprep.subr.bf16.mxu0 0
  %1443 = vmatpush1.bf16.msra.mxu0 %v1048
  %1444 = vmatprep.subr.bf16.mxu0 0
  %1445 = vmatpush1.bf16.msra.mxu0 %v1049
  %1446 = vmatprep.subr.bf16.mxu0 0
  %1447 = vmatpush1.bf16.msra.mxu0 %v1050
  %1448 = vmatprep.subr.bf16.mxu0 0
  %1449 = vmatpush1.bf16.msra.mxu0 %v1051
  %1450 = vmatprep.subr.bf16.mxu0 0
  %1451 = vmatpush1.bf16.msra.mxu0 %v1052
  %1452 = vmatprep.subr.bf16.mxu0 0
  %1453 = vmatpush1.bf16.msra.mxu0 %v1053
  %1454 = vmatprep.subr.bf16.mxu0 0
  %1455 = vmatpush1.bf16.msra.mxu0 %v1054
  %1456 = vmatprep.subr.bf16.mxu0 0
  %1457 = vmatpush1.bf16.msra.mxu0 %v1055
  %1458 = vmatprep.subr.bf16.mxu0 0
  %1459 = vmatpush1.bf16.msra.mxu0 %v1056
  %1460 = vmatprep.subr.bf16.mxu0 0
  %1461 = vmatpush1.bf16.msra.mxu0 %v1057
  %1462 = vmatprep.mubr.bf16.mxu0 %v411
  %1463 = vmatmul.mubr.bf16.gmra.mrb[0].mxu0 %v410
  %v1464 = vpop.f32.mrb[0].mxu0
  %v1465 = vadd.f32 %v1416, %v1464
  %v1466 = vpop.f32.mrb[0].mxu0
  %v1467 = vpop.f32.mrb[0].mxu0
  %v1468 = vadd.f32 %v1419, %v1467
  %v1469 = vpop.f32.mrb[0].mxu0
  %1470 = vmatprep.mubr.bf16.mxu0 %v427
  %1471 = vmatmul.mubr.bf16.gmra.mrb[0].mxu0 %v426
  %v1472 = vpop.f32.mrb[0].mxu0
  %v1473 = vadd.f32 %v1424, %v1472
  %v1474 = vpop.f32.mrb[0].mxu0
  %v1475 = vpop.f32.mrb[0].mxu0
  %v1476 = vadd.f32 %v1427, %v1475
  %v1477 = vpop.f32.mrb[0].mxu0
  %1478 = vdwg.mxu0
  %1479 = vmatprep.subr.bf16.mxu0 0
  %1480 = vmatpush1.bf16.msra.mxu0 %v1058
  %1481 = vmatprep.subr.bf16.mxu0 0
  %1482 = vmatpush1.bf16.msra.mxu0 %v1059
  %1483 = vmatprep.subr.bf16.mxu0 0
  %1484 = vmatpush1.bf16.msra.mxu0 %v1060
  %1485 = vmatprep.subr.bf16.mxu0 0
  %1486 = vmatpush1.bf16.msra.mxu0 %v1061
  %1487 = vmatprep.subr.bf16.mxu0 0
  %1488 = vmatpush1.bf16.msra.mxu0 %v1062
  %1489 = vmatprep.subr.bf16.mxu0 0
  %1490 = vmatpush1.bf16.msra.mxu0 %v1063
  %1491 = vmatprep.subr.bf16.mxu0 0
  %1492 = vmatpush1.bf16.msra.mxu0 %v1064
  %1493 = vmatprep.subr.bf16.mxu0 0
  %1494 = vmatpush1.bf16.msra.mxu0 %v1065
  %1495 = vmatprep.subr.bf16.mxu0 0
  %1496 = vmatpush1.bf16.msra.mxu0 %v1066
  %1497 = vmatprep.subr.bf16.mxu0 0
  %1498 = vmatpush1.bf16.msra.mxu0 %v1067
  %1499 = vmatprep.subr.bf16.mxu0 0
  %1500 = vmatpush1.bf16.msra.mxu0 %v1068
  %1501 = vmatprep.subr.bf16.mxu0 0
  %1502 = vmatpush1.bf16.msra.mxu0 %v1069
  %1503 = vmatprep.subr.bf16.mxu0 0
  %1504 = vmatpush1.bf16.msra.mxu0 %v1070
  %1505 = vmatprep.subr.bf16.mxu0 0
  %1506 = vmatpush1.bf16.msra.mxu0 %v1071
  %1507 = vmatprep.subr.bf16.mxu0 0
  %1508 = vmatpush1.bf16.msra.mxu0 %v1072
  %1509 = vmatprep.subr.bf16.mxu0 0
  %1510 = vmatpush1.bf16.msra.mxu0 %v1073
  %1511 = vmatprep.mubr.bf16.mxu0 %v413
  %1512 = vmatmul.mubr.bf16.gmra.mrb[0].mxu0 %v412
  %v1513 = vpop.f32.mrb[0].mxu0
  %v1514 = vadd.f32 %v1465, %v1513
  %v1515 = vpop.f32.mrb[0].mxu0
  %v1516 = vpop.f32.mrb[0].mxu0
  %v1517 = vadd.f32 %v1468, %v1516
  %v1518 = vpop.f32.mrb[0].mxu0
  %1519 = vmatprep.mubr.bf16.mxu0 %v429
  %1520 = vmatmul.mubr.bf16.gmra.mrb[0].mxu0 %v428
  %v1521 = vpop.f32.mrb[0].mxu0
  %v1522 = vadd.f32 %v1473, %v1521
  %v1523 = vpop.f32.mrb[0].mxu0
  %v1524 = vpop.f32.mrb[0].mxu0
  %v1525 = vadd.f32 %v1476, %v1524
  %v1526 = vpop.f32.mrb[0].mxu0
  %1527 = vdwg.mxu0
  %1528 = vmatprep.subr.bf16.mxu0 0
  %1529 = vmatpush1.bf16.msra.mxu0 %v1074
  %1530 = vmatprep.subr.bf16.mxu0 0
  %1531 = vmatpush1.bf16.msra.mxu0 %v1075
  %1532 = vmatprep.subr.bf16.mxu0 0
  %1533 = vmatpush1.bf16.msra.mxu0 %v1076
  %1534 = vmatprep.subr.bf16.mxu0 0
  %1535 = vmatpush1.bf16.msra.mxu0 %v1077
  %1536 = vmatprep.subr.bf16.mxu0 0
  %1537 = vmatpush1.bf16.msra.mxu0 %v1078
  %1538 = vmatprep.subr.bf16.mxu0 0
  %1539 = vmatpush1.bf16.msra.mxu0 %v1079
  %1540 = vmatprep.subr.bf16.mxu0 0
  %1541 = vmatpush1.bf16.msra.mxu0 %v1080
  %1542 = vmatprep.subr.bf16.mxu0 0
  %1543 = vmatpush1.bf16.msra.mxu0 %v1081
  %1544 = vmatprep.subr.bf16.mxu0 0
  %1545 = vmatpush1.bf16.msra.mxu0 %v1082
  %1546 = vmatprep.subr.bf16.mxu0 0
  %1547 = vmatpush1.bf16.msra.mxu0 %v1083
  %1548 = vmatprep.subr.bf16.mxu0 0
  %1549 = vmatpush1.bf16.msra.mxu0 %v1084
  %1550 = vmatprep.subr.bf16.mxu0 0
  %1551 = vmatpush1.bf16.msra.mxu0 %v1085
  %1552 = vmatprep.subr.bf16.mxu0 0
  %1553 = vmatpush1.bf16.msra.mxu0 %v1086
  %1554 = vmatprep.subr.bf16.mxu0 0
  %1555 = vmatpush1.bf16.msra.mxu0 %v1087
  %1556 = vmatprep.subr.bf16.mxu0 0
  %1557 = vmatpush1.bf16.msra.mxu0 %v1088
  %1558 = vmatprep.subr.bf16.mxu0 0
  %1559 = vmatpush1.bf16.msra.mxu0 %v1089
  %1560 = vmatprep.mubr.bf16.mxu0 %v415
  %1561 = vmatmul.mubr.bf16.gmra.mrb[0].mxu0 %v414
  %v1562 = vpop.f32.mrb[0].mxu0
  %v1563 = vadd.f32 %v1514, %v1562
  %v1564 = vpop.f32.mrb[0].mxu0
  %v1565 = vpop.f32.mrb[0].mxu0
  %v1566 = vadd.f32 %v1517, %v1565
  %v1567 = vpop.f32.mrb[0].mxu0
  %1568 = vmatprep.mubr.bf16.mxu0 %v431
  %1569 = vmatmul.mubr.bf16.gmra.mrb[0].mxu0 %v430
  %v1570 = vpop.f32.mrb[0].mxu0
  %v1571 = vadd.f32 %v1522, %v1570
  %v1572 = vpop.f32.mrb[0].mxu0
  %v1573 = vpop.f32.mrb[0].mxu0
  %v1574 = vadd.f32 %v1525, %v1573
  %v1575 = vpop.f32.mrb[0].mxu0
  %1576 = vdwg.mxu0
  %1577 = vmatprep.subr.bf16.mxu0 0
  %1578 = vmatpush1.bf16.msra.mxu0 %v1090
  %1579 = vmatprep.subr.bf16.mxu0 0
  %1580 = vmatpush1.bf16.msra.mxu0 %v1091
  %1581 = vmatprep.subr.bf16.mxu0 0
  %1582 = vmatpush1.bf16.msra.mxu0 %v1092
  %1583 = vmatprep.subr.bf16.mxu0 0
  %1584 = vmatpush1.bf16.msra.mxu0 %v1093
  %1585 = vmatprep.subr.bf16.mxu0 0
  %1586 = vmatpush1.bf16.msra.mxu0 %v1094
  %1587 = vmatprep.subr.bf16.mxu0 0
  %1588 = vmatpush1.bf16.msra.mxu0 %v1095
  %1589 = vmatprep.subr.bf16.mxu0 0
  %1590 = vmatpush1.bf16.msra.mxu0 %v1096
  %1591 = vmatprep.subr.bf16.mxu0 0
  %1592 = vmatpush1.bf16.msra.mxu0 %v1097
  %1593 = vmatprep.subr.bf16.mxu0 0
  %1594 = vmatpush1.bf16.msra.mxu0 %v1098
  %1595 = vmatprep.subr.bf16.mxu0 0
  %1596 = vmatpush1.bf16.msra.mxu0 %v1099
  %1597 = vmatprep.subr.bf16.mxu0 0
  %1598 = vmatpush1.bf16.msra.mxu0 %v1100
  %1599 = vmatprep.subr.bf16.mxu0 0
  %1600 = vmatpush1.bf16.msra.mxu0 %v1101
  %1601 = vmatprep.subr.bf16.mxu0 0
  %1602 = vmatpush1.bf16.msra.mxu0 %v1102
  %1603 = vmatprep.subr.bf16.mxu0 0
  %1604 = vmatpush1.bf16.msra.mxu0 %v1103
  %1605 = vmatprep.subr.bf16.mxu0 0
  %1606 = vmatpush1.bf16.msra.mxu0 %v1104
  %1607 = vmatprep.subr.bf16.mxu0 0
  %1608 = vmatpush1.bf16.msra.mxu0 %v1105
  %1609 = vmatprep.mubr.bf16.mxu0 %v417
  %1610 = vmatmul.mubr.bf16.gmra.mrb[0].mxu0 %v416
  %v1611 = vpop.f32.mrb[0].mxu0
  %v1612 = vadd.f32 %v1563, %v1611
  %v1613 = vpop.f32.mrb[0].mxu0
  %v1614 = vpop.f32.mrb[0].mxu0
  %v1615 = vadd.f32 %v1566, %v1614
  %v1616 = vpop.f32.mrb[0].mxu0
  %1617 = vmatprep.mubr.bf16.mxu0 %v433
  %1618 = vmatmul.mubr.bf16.gmra.mrb[0].mxu0 %v432
  %v1619 = vpop.f32.mrb[0].mxu0
  %v1620 = vadd.f32 %v1571, %v1619
  %v1621 = vpop.f32.mrb[0].mxu0
  %v1622 = vpop.f32.mrb[0].mxu0
  %v1623 = vadd.f32 %v1574, %v1622
  %v1624 = vpop.f32.mrb[0].mxu0
  %1625 = vdwg.mxu0
  %v1626 = vld [vmem:[%s2] sm:$0x1]
  %v1628 = vlaneseq
  %v1629 = vshrl.u32 %v1628, 7
  %v1630 = vsub.s32 0, %v1629
  %v1631 = vrot.slane %v1626, %v1630
  %v1633 = vmul.f32 %v1612, %v1631
  %v1634 = vmul.f32 %v1615, %v1631
  %v1635 = vmul.f32 %v1620, %v1631
  %v1636 = vmul.f32 %v1623, %v1631
  %v1637 = vld [vmem:[%s3] sm:$0x1]
  %v1639 = vlaneseq
  %v1640 = vshrl.u32 %v1639, 7
  %v1641 = vsub.s32 0, %v1640
  %v1642 = vrot.slane %v1637, %v1641
  %v1644 = vadd.f32 %v1633, %v1642
  %v1645 = vadd.f32 %v1634, %v1642
  %v1646 = vadd.f32 %v1635, %v1642
  %v1647 = vadd.f32 %v1636, %v1642
  %v1648 = vmax.f32 %v1644, 0.0
  %v1649 = vmax.f32 %v1645, 0.0
  %v1650 = vmax.f32 %v1646, 0.0
  %v1651 = vmax.f32 %v1647, 0.0
  %v1652 = vpack.c.bf16 %v1649, %v1648
  %v1653 = vpack.c.bf16 %v1651, %v1650
  %v1656 = vunpack.c.l.b16 %v1652
  %v1657 = vunpack.c.h.b16 %v1652
  %v1658 = vunpack.c.l.b16 %v1653
  %v1659 = vunpack.c.h.b16 %v1653
  %v1660 = vpack.c.b16 %v1656, %v1656
  %v1661 = vpack.c.b16 %v1657, %v1657
  %v1662 = vpack.c.b16 %v1658, %v1658
  %v1663 = vpack.c.b16 %v1659, %v1659
  %1668 = vst [vmem:[%s4] sm:$0xf] %v1660
  %1669 = vst [vmem:[%s4 + $0x4] sm:$0xf] %v1661
  %1670 = vst [vmem:[%s4 + $0x8] sm:$0xf] %v1662
  %1671 = vst [vmem:[%s4 + $0xc] sm:$0xf] %v1663
  // Predicated region
  $region18: #{discriminator_forward.11} parent=0 // pred_check
    _
  $region19: #{discriminator_forward.11} parent=0 // pred_check_branch
    %1673 = sbr.rel (0) target = $region21
  $region20: #{discriminator_forward.11} parent=0 // pred_region
    _
  $region21: #{discriminator_forward.11} parent=0 // pred_fallthru
    _
  // Predicated region
  $region22: #{discriminator_forward.11} parent=0 // pred_check
    _
  $region23: #{discriminator_forward.11} parent=0 // pred_check_branch
    %1675 = sbr.rel (0) target = $region25
  $region24: #{discriminator_forward.11} parent=0 // pred_region
    _
  $region25: #{discriminator_forward.11} parent=0 // pred_fallthru
    _

// kernel: discriminator_forward.12
$region0: #{discriminator_forward.12}
  #allocation0 [shape = 'u32[]', space=smem, size = 0x4, offset = 0x4, fixed_abs, tag = 'smem constant byte address 0x4 - core index']
  #allocation1 [shape = 'u32[144,128]{1,0:T(1,128)}', space=vmem, size = 0x12000, scoped, tag = 'internal scratch']
  %s0 = inlined_call_operand.vmem [shape: bf16[32,1152], index: 0, kind: input, shape index: {}]
  %s1 = inlined_call_operand.vmem [shape: bf16[1152,256], index: 1, kind: input, shape index: {}]
  %s2 = inlined_call_operand.vmem [shape: f32[1,256], index: 2, kind: input, shape index: {}]
  %s3 = inlined_call_operand.vmem [shape: f32[1,256], index: 3, kind: input, shape index: {}]
  %s4 = inlined_call_operand.vmem [shape: bf16[32,256], index: 4, kind: output, shape index: {}]
  %s5 = sld [smem:[#allocation0]]
  $region26: #{discriminator_forward.12} parent=0
    _
  %s7 = ssub.s32 1, %s5
  %s8 = scalar_select 0, %s7, %s5
  // Predicated region
  $region2: #{discriminator_forward.12} parent=0 // pred_check
    _
  $region3: #{discriminator_forward.12} parent=0 // pred_check_branch
    %10 = sbr.rel (0) target = $region5
  $region4: #{discriminator_forward.12} parent=0 // pred_region
    _
  $region5: #{discriminator_forward.12} parent=0 // pred_fallthru
    _
  // Predicated region
  $region6: #{discriminator_forward.12} parent=0 // pred_check
    _
  $region7: #{discriminator_forward.12} parent=0 // pred_check_branch
    %12 = sbr.rel (0) target = $region9
  $region8: #{discriminator_forward.12} parent=0 // pred_region
    _
  $region9: #{discriminator_forward.12} parent=0 // pred_fallthru
    _
  // Predicated region
  $region10: #{discriminator_forward.12} parent=0 // pred_check
    _
  $region11: #{discriminator_forward.12} parent=0 // pred_check_branch
    %14 = sbr.rel (0) target = $region13
  $region12: #{discriminator_forward.12} parent=0 // pred_region
    _
  $region13: #{discriminator_forward.12} parent=0 // pred_fallthru
    _
  // Predicated region
  $region14: #{discriminator_forward.12} parent=0 // pred_check
    _
  $region15: #{discriminator_forward.12} parent=0 // pred_check_branch
    %16 = sbr.rel (0) target = $region17
  $region16: #{discriminator_forward.12} parent=0 // pred_region
    _
  $region17: #{discriminator_forward.12} parent=0 // pred_fallthru
    _
  %v18 = vld [vmem:[%s0] sm:$0xff]
  %v19 = vld [vmem:[%s0 + $0x8] sm:$0xff]
  %v20 = vld [vmem:[%s0 + $0x10] sm:$0xff]
  %v21 = vld [vmem:[%s0 + $0x18] sm:$0xff]
  %v22 = vld [vmem:[%s0 + $0x20] sm:$0xf]
  %v23 = vld [vmem:[%s0 + $0x24] sm:$0xff]
  %v24 = vld [vmem:[%s0 + $0x2c] sm:$0xff]
  %v25 = vld [vmem:[%s0 + $0x34] sm:$0xff]
  %v26 = vld [vmem:[%s0 + $0x3c] sm:$0xff]
  %v27 = vld [vmem:[%s0 + $0x44] sm:$0xf]
  %v28 = vld [vmem:[%s0 + $0x48] sm:$0xff]
  %v29 = vld [vmem:[%s0 + $0x50] sm:$0xff]
  %v30 = vld [vmem:[%s0 + $0x58] sm:$0xff]
  %v31 = vld [vmem:[%s0 + $0x60] sm:$0xff]
  %v32 = vld [vmem:[%s0 + $0x68] sm:$0xf]
  %v33 = vld [vmem:[%s0 + $0x6c] sm:$0xff]
  %v34 = vld [vmem:[%s0 + $0x74] sm:$0xff]
  %v35 = vld [vmem:[%s0 + $0x7c] sm:$0xff]
  %v36 = vld [vmem:[%s0 + $0x84] sm:$0xff]
  %v37 = vld [vmem:[%s0 + $0x8c] sm:$0xf]
  %v38 = vld [vmem:[%s1] sm:$0xff]
  %v39 = vld [vmem:[%s1 + $0x8] sm:$0xff]
  %v40 = vld [vmem:[%s1 + $0x10] sm:$0xff]
  %v41 = vld [vmem:[%s1 + $0x18] sm:$0xff]
  %v42 = vld [vmem:[%s1 + $0x20] sm:$0xff]
  %v43 = vld [vmem:[%s1 + $0x28] sm:$0xff]
  %v44 = vld [vmem:[%s1 + $0x30] sm:$0xff]
  %v45 = vld [vmem:[%s1 + $0x38] sm:$0xff]
  %v46 = vld [vmem:[%s1 + $0x40] sm:$0xff]
  %v47 = vld [vmem:[%s1 + $0x48] sm:$0xff]
  %v48 = vld [vmem:[%s1 + $0x50] sm:$0xff]
  %v49 = vld [vmem:[%s1 + $0x58] sm:$0xff]
  %v50 = vld [vmem:[%s1 + $0x60] sm:$0xff]
  %v51 = vld [vmem:[%s1 + $0x68] sm:$0xff]
  %v52 = vld [vmem:[%s1 + $0x70] sm:$0xff]
  %v53 = vld [vmem:[%s1 + $0x78] sm:$0xff]
  %v54 = vld [vmem:[%s1 + $0x80] sm:$0xff]
  %v55 = vld [vmem:[%s1 + $0x88] sm:$0xff]
  %v56 = vld [vmem:[%s1 + $0x90] sm:$0xff]
  %v57 = vld [vmem:[%s1 + $0x98] sm:$0xff]
  %v58 = vld [vmem:[%s1 + $0xa0] sm:$0xff]
  %v59 = vld [vmem:[%s1 + $0xa8] sm:$0xff]
  %v60 = vld [vmem:[%s1 + $0xb0] sm:$0xff]
  %v61 = vld [vmem:[%s1 + $0xb8] sm:$0xff]
  %v62 = vld [vmem:[%s1 + $0xc0] sm:$0xff]
  %v63 = vld [vmem:[%s1 + $0xc8] sm:$0xff]
  %v64 = vld [vmem:[%s1 + $0xd0] sm:$0xff]
  %v65 = vld [vmem:[%s1 + $0xd8] sm:$0xff]
  %v66 = vld [vmem:[%s1 + $0xe0] sm:$0xff]
  %v67 = vld [vmem:[%s1 + $0xe8] sm:$0xff]
  %v68 = vld [vmem:[%s1 + $0xf0] sm:$0xff]
  %v69 = vld [vmem:[%s1 + $0xf8] sm:$0xff]
  %v70 = vld [vmem:[%s1 + $0x100] sm:$0xff]
  %v71 = vld [vmem:[%s1 + $0x108] sm:$0xff]
  %v72 = vld [vmem:[%s1 + $0x110] sm:$0xff]
  %v73 = vld [vmem:[%s1 + $0x118] sm:$0xff]
  %v74 = vld [vmem:[%s1 + $0x120] sm:$0xff]
  %v75 = vld [vmem:[%s1 + $0x128] sm:$0xff]
  %v76 = vld [vmem:[%s1 + $0x130] sm:$0xff]
  %v77 = vld [vmem:[%s1 + $0x138] sm:$0xff]
  %v78 = vld [vmem:[%s1 + $0x140] sm:$0xff]
  %v79 = vld [vmem:[%s1 + $0x148] sm:$0xff]
  %v80 = vld [vmem:[%s1 + $0x150] sm:$0xff]
  %v81 = vld [vmem:[%s1 + $0x158] sm:$0xff]
  %v82 = vld [vmem:[%s1 + $0x160] sm:$0xff]
  %v83 = vld [vmem:[%s1 + $0x168] sm:$0xff]
  %v84 = vld [vmem:[%s1 + $0x170] sm:$0xff]
  %v85 = vld [vmem:[%s1 + $0x178] sm:$0xff]
  %v86 = vld [vmem:[%s1 + $0x180] sm:$0xff]
  %v87 = vld [vmem:[%s1 + $0x188] sm:$0xff]
  %v88 = vld [vmem:[%s1 + $0x190] sm:$0xff]
  %v89 = vld [vmem:[%s1 + $0x198] sm:$0xff]
  %v90 = vld [vmem:[%s1 + $0x1a0] sm:$0xff]
  %v91 = vld [vmem:[%s1 + $0x1a8] sm:$0xff]
  %v92 = vld [vmem:[%s1 + $0x1b0] sm:$0xff]
  %v93 = vld [vmem:[%s1 + $0x1b8] sm:$0xff]
  %v94 = vld [vmem:[%s1 + $0x1c0] sm:$0xff]
  %v95 = vld [vmem:[%s1 + $0x1c8] sm:$0xff]
  %v96 = vld [vmem:[%s1 + $0x1d0] sm:$0xff]
  %v97 = vld [vmem:[%s1 + $0x1d8] sm:$0xff]
  %v98 = vld [vmem:[%s1 + $0x1e0] sm:$0xff]
  %v99 = vld [vmem:[%s1 + $0x1e8] sm:$0xff]
  %v100 = vld [vmem:[%s1 + $0x1f0] sm:$0xff]
  %v101 = vld [vmem:[%s1 + $0x1f8] sm:$0xff]
  %v102 = vld [vmem:[%s1 + $0x200] sm:$0xff]
  %v103 = vld [vmem:[%s1 + $0x208] sm:$0xff]
  %v104 = vld [vmem:[%s1 + $0x210] sm:$0xff]
  %v105 = vld [vmem:[%s1 + $0x218] sm:$0xff]
  %v106 = vld [vmem:[%s1 + $0x220] sm:$0xff]
  %v107 = vld [vmem:[%s1 + $0x228] sm:$0xff]
  %v108 = vld [vmem:[%s1 + $0x230] sm:$0xff]
  %v109 = vld [vmem:[%s1 + $0x238] sm:$0xff]
  %v110 = vld [vmem:[%s1 + $0x240] sm:$0xff]
  %v111 = vld [vmem:[%s1 + $0x248] sm:$0xff]
  %v112 = vld [vmem:[%s1 + $0x250] sm:$0xff]
  %v113 = vld [vmem:[%s1 + $0x258] sm:$0xff]
  %v114 = vld [vmem:[%s1 + $0x260] sm:$0xff]
  %v115 = vld [vmem:[%s1 + $0x268] sm:$0xff]
  %v116 = vld [vmem:[%s1 + $0x270] sm:$0xff]
  %v117 = vld [vmem:[%s1 + $0x278] sm:$0xff]
  %v118 = vld [vmem:[%s1 + $0x280] sm:$0xff]
  %v119 = vld [vmem:[%s1 + $0x288] sm:$0xff]
  %v120 = vld [vmem:[%s1 + $0x290] sm:$0xff]
  %v121 = vld [vmem:[%s1 + $0x298] sm:$0xff]
  %v122 = vld [vmem:[%s1 + $0x2a0] sm:$0xff]
  %v123 = vld [vmem:[%s1 + $0x2a8] sm:$0xff]
  %v124 = vld [vmem:[%s1 + $0x2b0] sm:$0xff]
  %v125 = vld [vmem:[%s1 + $0x2b8] sm:$0xff]
  %v126 = vld [vmem:[%s1 + $0x2c0] sm:$0xff]
  %v127 = vld [vmem:[%s1 + $0x2c8] sm:$0xff]
  %v128 = vld [vmem:[%s1 + $0x2d0] sm:$0xff]
  %v129 = vld [vmem:[%s1 + $0x2d8] sm:$0xff]
  %v130 = vld [vmem:[%s1 + $0x2e0] sm:$0xff]
  %v131 = vld [vmem:[%s1 + $0x2e8] sm:$0xff]
  %v132 = vld [vmem:[%s1 + $0x2f0] sm:$0xff]
  %v133 = vld [vmem:[%s1 + $0x2f8] sm:$0xff]
  %v134 = vld [vmem:[%s1 + $0x300] sm:$0xff]
  %v135 = vld [vmem:[%s1 + $0x308] sm:$0xff]
  %v136 = vld [vmem:[%s1 + $0x310] sm:$0xff]
  %v137 = vld [vmem:[%s1 + $0x318] sm:$0xff]
  %v138 = vld [vmem:[%s1 + $0x320] sm:$0xff]
  %v139 = vld [vmem:[%s1 + $0x328] sm:$0xff]
  %v140 = vld [vmem:[%s1 + $0x330] sm:$0xff]
  %v141 = vld [vmem:[%s1 + $0x338] sm:$0xff]
  %v142 = vld [vmem:[%s1 + $0x340] sm:$0xff]
  %v143 = vld [vmem:[%s1 + $0x348] sm:$0xff]
  %v144 = vld [vmem:[%s1 + $0x350] sm:$0xff]
  %v145 = vld [vmem:[%s1 + $0x358] sm:$0xff]
  %v146 = vld [vmem:[%s1 + $0x360] sm:$0xff]
  %v147 = vld [vmem:[%s1 + $0x368] sm:$0xff]
  %v148 = vld [vmem:[%s1 + $0x370] sm:$0xff]
  %v149 = vld [vmem:[%s1 + $0x378] sm:$0xff]
  %v150 = vld [vmem:[%s1 + $0x380] sm:$0xff]
  %v151 = vld [vmem:[%s1 + $0x388] sm:$0xff]
  %v152 = vld [vmem:[%s1 + $0x390] sm:$0xff]
  %v153 = vld [vmem:[%s1 + $0x398] sm:$0xff]
  %v154 = vld [vmem:[%s1 + $0x3a0] sm:$0xff]
  %v155 = vld [vmem:[%s1 + $0x3a8] sm:$0xff]
  %v156 = vld [vmem:[%s1 + $0x3b0] sm:$0xff]
  %v157 = vld [vmem:[%s1 + $0x3b8] sm:$0xff]
  %v158 = vld [vmem:[%s1 + $0x3c0] sm:$0xff]
  %v159 = vld [vmem:[%s1 + $0x3c8] sm:$0xff]
  %v160 = vld [vmem:[%s1 + $0x3d0] sm:$0xff]
  %v161 = vld [vmem:[%s1 + $0x3d8] sm:$0xff]
  %v162 = vld [vmem:[%s1 + $0x3e0] sm:$0xff]
  %v163 = vld [vmem:[%s1 + $0x3e8] sm:$0xff]
  %v164 = vld [vmem:[%s1 + $0x3f0] sm:$0xff]
  %v165 = vld [vmem:[%s1 + $0x3f8] sm:$0xff]
  %v166 = vld [vmem:[%s1 + $0x400] sm:$0xff]
  %v167 = vld [vmem:[%s1 + $0x408] sm:$0xff]
  %v168 = vld [vmem:[%s1 + $0x410] sm:$0xff]
  %v169 = vld [vmem:[%s1 + $0x418] sm:$0xff]
  %v170 = vld [vmem:[%s1 + $0x420] sm:$0xff]
  %v171 = vld [vmem:[%s1 + $0x428] sm:$0xff]
  %v172 = vld [vmem:[%s1 + $0x430] sm:$0xff]
  %v173 = vld [vmem:[%s1 + $0x438] sm:$0xff]
  %v174 = vld [vmem:[%s1 + $0x440] sm:$0xff]
  %v175 = vld [vmem:[%s1 + $0x448] sm:$0xff]
  %v176 = vld [vmem:[%s1 + $0x450] sm:$0xff]
  %v177 = vld [vmem:[%s1 + $0x458] sm:$0xff]
  %v178 = vld [vmem:[%s1 + $0x460] sm:$0xff]
  %v179 = vld [vmem:[%s1 + $0x468] sm:$0xff]
  %v180 = vld [vmem:[%s1 + $0x470] sm:$0xff]
  %v181 = vld [vmem:[%s1 + $0x478] sm:$0xff]
  %v202 = vunpack.c.l.b16 %v18
  %v203 = vunpack.c.h.b16 %v18
  %v204 = vunpack.c.l.b16 %v19
  %v205 = vunpack.c.h.b16 %v19
  %v206 = vunpack.c.l.b16 %v20
  %v207 = vunpack.c.h.b16 %v20
  %v208 = vunpack.c.l.b16 %v21
  %v209 = vunpack.c.h.b16 %v21
  %v210 = vunpack.c.l.b16 %v22
  %v211 = vunpack.c.l.b16 %v23
  %v212 = vunpack.c.h.b16 %v23
  %v213 = vunpack.c.l.b16 %v24
  %v214 = vunpack.c.h.b16 %v24
  %v215 = vunpack.c.l.b16 %v25
  %v216 = vunpack.c.h.b16 %v25
  %v217 = vunpack.c.l.b16 %v26
  %v218 = vunpack.c.h.b16 %v26
  %v219 = vunpack.c.l.b16 %v27
  %v220 = vunpack.c.l.b16 %v28
  %v221 = vunpack.c.h.b16 %v28
  %v222 = vunpack.c.l.b16 %v29
  %v223 = vunpack.c.h.b16 %v29
  %v224 = vunpack.c.l.b16 %v30
  %v225 = vunpack.c.h.b16 %v30
  %v226 = vunpack.c.l.b16 %v31
  %v227 = vunpack.c.h.b16 %v31
  %v228 = vunpack.c.l.b16 %v32
  %v229 = vunpack.c.l.b16 %v33
  %v230 = vunpack.c.h.b16 %v33
  %v231 = vunpack.c.l.b16 %v34
  %v232 = vunpack.c.h.b16 %v34
  %v233 = vunpack.c.l.b16 %v35
  %v234 = vunpack.c.h.b16 %v35
  %v235 = vunpack.c.l.b16 %v36
  %v236 = vunpack.c.h.b16 %v36
  %v237 = vunpack.c.l.b16 %v37
  %v238 = vpack.c.b16 %v211, %v202
  %v239 = vpack.c.b16 %v212, %v203
  %v240 = vpack.c.b16 %v213, %v204
  %v241 = vpack.c.b16 %v214, %v205
  %v242 = vpack.c.b16 %v215, %v206
  %v243 = vpack.c.b16 %v216, %v207
  %v244 = vpack.c.b16 %v217, %v208
  %v245 = vpack.c.b16 %v218, %v209
  %v246 = vpack.c.b16 %v219, %v210
  %v247 = vpack.c.b16 %v229, %v220
  %v248 = vpack.c.b16 %v230, %v221
  %v249 = vpack.c.b16 %v231, %v222
  %v250 = vpack.c.b16 %v232, %v223
  %v251 = vpack.c.b16 %v233, %v224
  %v252 = vpack.c.b16 %v234, %v225
  %v253 = vpack.c.b16 %v235, %v226
  %v254 = vpack.c.b16 %v236, %v227
  %v255 = vpack.c.b16 %v237, %v228
  %v418 = vunpack.c.l.b16 %v38
  %v419 = vunpack.c.h.b16 %v38
  %v420 = vunpack.c.l.b16 %v39
  %v421 = vunpack.c.h.b16 %v39
  %v422 = vunpack.c.l.b16 %v40
  %v423 = vunpack.c.h.b16 %v40
  %v424 = vunpack.c.l.b16 %v41
  %v425 = vunpack.c.h.b16 %v41
  %v426 = vunpack.c.l.b16 %v42
  %v427 = vunpack.c.h.b16 %v42
  %v428 = vunpack.c.l.b16 %v43
  %v429 = vunpack.c.h.b16 %v43
  %v430 = vunpack.c.l.b16 %v44
  %v431 = vunpack.c.h.b16 %v44
  %v432 = vunpack.c.l.b16 %v45
  %v433 = vunpack.c.h.b16 %v45
  %v434 = vunpack.c.l.b16 %v46
  %v435 = vunpack.c.h.b16 %v46
  %v436 = vunpack.c.l.b16 %v47
  %v437 = vunpack.c.h.b16 %v47
  %v438 = vunpack.c.l.b16 %v48
  %v439 = vunpack.c.h.b16 %v48
  %v440 = vunpack.c.l.b16 %v49
  %v441 = vunpack.c.h.b16 %v49
  %v442 = vunpack.c.l.b16 %v50
  %v443 = vunpack.c.h.b16 %v50
  %v444 = vunpack.c.l.b16 %v51
  %v445 = vunpack.c.h.b16 %v51
  %v446 = vunpack.c.l.b16 %v52
  %v447 = vunpack.c.h.b16 %v52
  %v448 = vunpack.c.l.b16 %v53
  %v449 = vunpack.c.h.b16 %v53
  %v450 = vunpack.c.l.b16 %v54
  %v451 = vunpack.c.h.b16 %v54
  %v452 = vunpack.c.l.b16 %v55
  %v453 = vunpack.c.h.b16 %v55
  %v454 = vunpack.c.l.b16 %v56
  %v455 = vunpack.c.h.b16 %v56
  %v456 = vunpack.c.l.b16 %v57
  %v457 = vunpack.c.h.b16 %v57
  %v458 = vunpack.c.l.b16 %v58
  %v459 = vunpack.c.h.b16 %v58
  %v460 = vunpack.c.l.b16 %v59
  %v461 = vunpack.c.h.b16 %v59
  %v462 = vunpack.c.l.b16 %v60
  %v463 = vunpack.c.h.b16 %v60
  %v464 = vunpack.c.l.b16 %v61
  %v465 = vunpack.c.h.b16 %v61
  %v466 = vunpack.c.l.b16 %v62
  %v467 = vunpack.c.h.b16 %v62
  %v468 = vunpack.c.l.b16 %v63
  %v469 = vunpack.c.h.b16 %v63
  %v470 = vunpack.c.l.b16 %v64
  %v471 = vunpack.c.h.b16 %v64
  %v472 = vunpack.c.l.b16 %v65
  %v473 = vunpack.c.h.b16 %v65
  %v474 = vunpack.c.l.b16 %v66
  %v475 = vunpack.c.h.b16 %v66
  %v476 = vunpack.c.l.b16 %v67
  %v477 = vunpack.c.h.b16 %v67
  %v478 = vunpack.c.l.b16 %v68
  %v479 = vunpack.c.h.b16 %v68
  %v480 = vunpack.c.l.b16 %v69
  %v481 = vunpack.c.h.b16 %v69
  %v482 = vunpack.c.l.b16 %v70
  %v483 = vunpack.c.h.b16 %v70
  %v484 = vunpack.c.l.b16 %v71
  %v485 = vunpack.c.h.b16 %v71
  %v486 = vunpack.c.l.b16 %v72
  %v487 = vunpack.c.h.b16 %v72
  %v488 = vunpack.c.l.b16 %v73
  %v489 = vunpack.c.h.b16 %v73
  %v490 = vunpack.c.l.b16 %v74
  %v491 = vunpack.c.h.b16 %v74
  %v492 = vunpack.c.l.b16 %v75
  %v493 = vunpack.c.h.b16 %v75
  %v494 = vunpack.c.l.b16 %v76
  %v495 = vunpack.c.h.b16 %v76
  %v496 = vunpack.c.l.b16 %v77
  %v497 = vunpack.c.h.b16 %v77
  %v498 = vunpack.c.l.b16 %v78
  %v499 = vunpack.c.h.b16 %v78
  %v500 = vunpack.c.l.b16 %v79
  %v501 = vunpack.c.h.b16 %v79
  %v502 = vunpack.c.l.b16 %v80
  %v503 = vunpack.c.h.b16 %v80
  %v504 = vunpack.c.l.b16 %v81
  %v505 = vunpack.c.h.b16 %v81
  %v506 = vunpack.c.l.b16 %v82
  %v507 = vunpack.c.h.b16 %v82
  %v508 = vunpack.c.l.b16 %v83
  %v509 = vunpack.c.h.b16 %v83
  %v510 = vunpack.c.l.b16 %v84
  %v511 = vunpack.c.h.b16 %v84
  %v512 = vunpack.c.l.b16 %v85
  %v513 = vunpack.c.h.b16 %v85
  %v514 = vunpack.c.l.b16 %v86
  %v515 = vunpack.c.h.b16 %v86
  %v516 = vunpack.c.l.b16 %v87
  %v517 = vunpack.c.h.b16 %v87
  %v518 = vunpack.c.l.b16 %v88
  %v519 = vunpack.c.h.b16 %v88
  %v520 = vunpack.c.l.b16 %v89
  %v521 = vunpack.c.h.b16 %v89
  %v522 = vunpack.c.l.b16 %v90
  %v523 = vunpack.c.h.b16 %v90
  %v524 = vunpack.c.l.b16 %v91
  %v525 = vunpack.c.h.b16 %v91
  %v526 = vunpack.c.l.b16 %v92
  %v527 = vunpack.c.h.b16 %v92
  %v528 = vunpack.c.l.b16 %v93
  %v529 = vunpack.c.h.b16 %v93
  %v530 = vunpack.c.l.b16 %v94
  %v531 = vunpack.c.h.b16 %v94
  %v532 = vunpack.c.l.b16 %v95
  %v533 = vunpack.c.h.b16 %v95
  %v534 = vunpack.c.l.b16 %v96
  %v535 = vunpack.c.h.b16 %v96
  %v536 = vunpack.c.l.b16 %v97
  %v537 = vunpack.c.h.b16 %v97
  %v538 = vunpack.c.l.b16 %v98
  %v539 = vunpack.c.h.b16 %v98
  %v540 = vunpack.c.l.b16 %v99
  %v541 = vunpack.c.h.b16 %v99
  %v542 = vunpack.c.l.b16 %v100
  %v543 = vunpack.c.h.b16 %v100
  %v544 = vunpack.c.l.b16 %v101
  %v545 = vunpack.c.h.b16 %v101
  %v546 = vunpack.c.l.b16 %v102
  %v547 = vunpack.c.h.b16 %v102
  %v548 = vunpack.c.l.b16 %v103
  %v549 = vunpack.c.h.b16 %v103
  %v550 = vunpack.c.l.b16 %v104
  %v551 = vunpack.c.h.b16 %v104
  %v552 = vunpack.c.l.b16 %v105
  %v553 = vunpack.c.h.b16 %v105
  %v554 = vunpack.c.l.b16 %v106
  %v555 = vunpack.c.h.b16 %v106
  %v556 = vunpack.c.l.b16 %v107
  %v557 = vunpack.c.h.b16 %v107
  %v558 = vunpack.c.l.b16 %v108
  %v559 = vunpack.c.h.b16 %v108
  %v560 = vunpack.c.l.b16 %v109
  %v561 = vunpack.c.h.b16 %v109
  %v562 = vunpack.c.l.b16 %v110
  %v563 = vunpack.c.h.b16 %v110
  %v564 = vunpack.c.l.b16 %v111
  %v565 = vunpack.c.h.b16 %v111
  %v566 = vunpack.c.l.b16 %v112
  %v567 = vunpack.c.h.b16 %v112
  %v568 = vunpack.c.l.b16 %v113
  %v569 = vunpack.c.h.b16 %v113
  %v570 = vunpack.c.l.b16 %v114
  %v571 = vunpack.c.h.b16 %v114
  %v572 = vunpack.c.l.b16 %v115
  %v573 = vunpack.c.h.b16 %v115
  %v574 = vunpack.c.l.b16 %v116
  %v575 = vunpack.c.h.b16 %v116
  %v576 = vunpack.c.l.b16 %v117
  %v577 = vunpack.c.h.b16 %v117
  %v578 = vunpack.c.l.b16 %v118
  %v579 = vunpack.c.h.b16 %v118
  %v580 = vunpack.c.l.b16 %v119
  %v581 = vunpack.c.h.b16 %v119
  %v582 = vunpack.c.l.b16 %v120
  %v583 = vunpack.c.h.b16 %v120
  %v584 = vunpack.c.l.b16 %v121
  %v585 = vunpack.c.h.b16 %v121
  %v586 = vunpack.c.l.b16 %v122
  %v587 = vunpack.c.h.b16 %v122
  %v588 = vunpack.c.l.b16 %v123
  %v589 = vunpack.c.h.b16 %v123
  %v590 = vunpack.c.l.b16 %v124
  %v591 = vunpack.c.h.b16 %v124
  %v592 = vunpack.c.l.b16 %v125
  %v593 = vunpack.c.h.b16 %v125
  %v594 = vunpack.c.l.b16 %v126
  %v595 = vunpack.c.h.b16 %v126
  %v596 = vunpack.c.l.b16 %v127
  %v597 = vunpack.c.h.b16 %v127
  %v598 = vunpack.c.l.b16 %v128
  %v599 = vunpack.c.h.b16 %v128
  %v600 = vunpack.c.l.b16 %v129
  %v601 = vunpack.c.h.b16 %v129
  %v602 = vunpack.c.l.b16 %v130
  %v603 = vunpack.c.h.b16 %v130
  %v604 = vunpack.c.l.b16 %v131
  %v605 = vunpack.c.h.b16 %v131
  %v606 = vunpack.c.l.b16 %v132
  %v607 = vunpack.c.h.b16 %v132
  %v608 = vunpack.c.l.b16 %v133
  %v609 = vunpack.c.h.b16 %v133
  %v610 = vunpack.c.l.b16 %v134
  %v611 = vunpack.c.h.b16 %v134
  %v612 = vunpack.c.l.b16 %v135
  %v613 = vunpack.c.h.b16 %v135
  %v614 = vunpack.c.l.b16 %v136
  %v615 = vunpack.c.h.b16 %v136
  %v616 = vunpack.c.l.b16 %v137
  %v617 = vunpack.c.h.b16 %v137
  %v618 = vunpack.c.l.b16 %v138
  %v619 = vunpack.c.h.b16 %v138
  %v620 = vunpack.c.l.b16 %v139
  %v621 = vunpack.c.h.b16 %v139
  %v622 = vunpack.c.l.b16 %v140
  %v623 = vunpack.c.h.b16 %v140
  %v624 = vunpack.c.l.b16 %v141
  %v625 = vunpack.c.h.b16 %v141
  %v626 = vunpack.c.l.b16 %v142
  %v627 = vunpack.c.h.b16 %v142
  %v628 = vunpack.c.l.b16 %v143
  %v629 = vunpack.c.h.b16 %v143
  %v630 = vunpack.c.l.b16 %v144
  %v631 = vunpack.c.h.b16 %v144
  %v632 = vunpack.c.l.b16 %v145
  %v633 = vunpack.c.h.b16 %v145
  %v634 = vunpack.c.l.b16 %v146
  %v635 = vunpack.c.h.b16 %v146
  %v636 = vunpack.c.l.b16 %v147
  %v637 = vunpack.c.h.b16 %v147
  %v638 = vunpack.c.l.b16 %v148
  %v639 = vunpack.c.h.b16 %v148
  %v640 = vunpack.c.l.b16 %v149
  %v641 = vunpack.c.h.b16 %v149
  %v642 = vunpack.c.l.b16 %v150
  %v643 = vunpack.c.h.b16 %v150
  %v644 = vunpack.c.l.b16 %v151
  %v645 = vunpack.c.h.b16 %v151
  %v646 = vunpack.c.l.b16 %v152
  %v647 = vunpack.c.h.b16 %v152
  %v648 = vunpack.c.l.b16 %v153
  %v649 = vunpack.c.h.b16 %v153
  %v650 = vunpack.c.l.b16 %v154
  %v651 = vunpack.c.h.b16 %v154
  %v652 = vunpack.c.l.b16 %v155
  %v653 = vunpack.c.h.b16 %v155
  %v654 = vunpack.c.l.b16 %v156
  %v655 = vunpack.c.h.b16 %v156
  %v656 = vunpack.c.l.b16 %v157
  %v657 = vunpack.c.h.b16 %v157
  %v658 = vunpack.c.l.b16 %v158
  %v659 = vunpack.c.h.b16 %v158
  %v660 = vunpack.c.l.b16 %v159
  %v661 = vunpack.c.h.b16 %v159
  %v662 = vunpack.c.l.b16 %v160
  %v663 = vunpack.c.h.b16 %v160
  %v664 = vunpack.c.l.b16 %v161
  %v665 = vunpack.c.h.b16 %v161
  %v666 = vunpack.c.l.b16 %v162
  %v667 = vunpack.c.h.b16 %v162
  %v668 = vunpack.c.l.b16 %v163
  %v669 = vunpack.c.h.b16 %v163
  %v670 = vunpack.c.l.b16 %v164
  %v671 = vunpack.c.h.b16 %v164
  %v672 = vunpack.c.l.b16 %v165
  %v673 = vunpack.c.h.b16 %v165
  %v674 = vunpack.c.l.b16 %v166
  %v675 = vunpack.c.h.b16 %v166
  %v676 = vunpack.c.l.b16 %v167
  %v677 = vunpack.c.h.b16 %v167
  %v678 = vunpack.c.l.b16 %v168
  %v679 = vunpack.c.h.b16 %v168
  %v680 = vunpack.c.l.b16 %v169
  %v681 = vunpack.c.h.b16 %v169
  %v682 = vunpack.c.l.b16 %v170
  %v683 = vunpack.c.h.b16 %v170
  %v684 = vunpack.c.l.b16 %v171
  %v685 = vunpack.c.h.b16 %v171
  %v686 = vunpack.c.l.b16 %v172
  %v687 = vunpack.c.h.b16 %v172
  %v688 = vunpack.c.l.b16 %v173
  %v689 = vunpack.c.h.b16 %v173
  %v690 = vunpack.c.l.b16 %v174
  %v691 = vunpack.c.h.b16 %v174
  %v692 = vunpack.c.l.b16 %v175
  %v693 = vunpack.c.h.b16 %v175
  %v694 = vunpack.c.l.b16 %v176
  %v695 = vunpack.c.h.b16 %v176
  %v696 = vunpack.c.l.b16 %v177
  %v697 = vunpack.c.h.b16 %v177
  %v698 = vunpack.c.l.b16 %v178
  %v699 = vunpack.c.h.b16 %v178
  %v700 = vunpack.c.l.b16 %v179
  %v701 = vunpack.c.h.b16 %v179
  %v702 = vunpack.c.l.b16 %v180
  %v703 = vunpack.c.h.b16 %v180
  %v704 = vunpack.c.l.b16 %v181
  %v705 = vunpack.c.h.b16 %v181
  %v706 = vpack.c.b16 %v420, %v418
  %v707 = vpack.c.b16 %v421, %v419
  %v708 = vpack.c.b16 %v424, %v422
  %v709 = vpack.c.b16 %v425, %v423
  %v710 = vpack.c.b16 %v428, %v426
  %v711 = vpack.c.b16 %v429, %v427
  %v712 = vpack.c.b16 %v432, %v430
  %v713 = vpack.c.b16 %v433, %v431
  %v714 = vpack.c.b16 %v436, %v434
  %v715 = vpack.c.b16 %v437, %v435
  %v716 = vpack.c.b16 %v440, %v438
  %v717 = vpack.c.b16 %v441, %v439
  %v718 = vpack.c.b16 %v444, %v442
  %v719 = vpack.c.b16 %v445, %v443
  %v720 = vpack.c.b16 %v448, %v446
  %v721 = vpack.c.b16 %v449, %v447
  %v722 = vpack.c.b16 %v452, %v450
  %v723 = vpack.c.b16 %v453, %v451
  %v724 = vpack.c.b16 %v456, %v454
  %v725 = vpack.c.b16 %v457, %v455
  %v726 = vpack.c.b16 %v460, %v458
  %v727 = vpack.c.b16 %v461, %v459
  %v728 = vpack.c.b16 %v464, %v462
  %v729 = vpack.c.b16 %v465, %v463
  %v730 = vpack.c.b16 %v468, %v466
  %v731 = vpack.c.b16 %v469, %v467
  %v732 = vpack.c.b16 %v472, %v470
  %v733 = vpack.c.b16 %v473, %v471
  %v734 = vpack.c.b16 %v476, %v474
  %v735 = vpack.c.b16 %v477, %v475
  %v736 = vpack.c.b16 %v480, %v478
  %v737 = vpack.c.b16 %v481, %v479
  %v738 = vpack.c.b16 %v484, %v482
  %v739 = vpack.c.b16 %v485, %v483
  %v740 = vpack.c.b16 %v488, %v486
  %v741 = vpack.c.b16 %v489, %v487
  %v742 = vpack.c.b16 %v492, %v490
  %v743 = vpack.c.b16 %v493, %v491
  %v744 = vpack.c.b16 %v496, %v494
  %v745 = vpack.c.b16 %v497, %v495
  %v746 = vpack.c.b16 %v500, %v498
  %v747 = vpack.c.b16 %v501, %v499
  %v748 = vpack.c.b16 %v504, %v502
  %v749 = vpack.c.b16 %v505, %v503
  %v750 = vpack.c.b16 %v508, %v506
  %v751 = vpack.c.b16 %v509, %v507
  %v752 = vpack.c.b16 %v512, %v510
  %v753 = vpack.c.b16 %v513, %v511
  %v754 = vpack.c.b16 %v516, %v514
  %v755 = vpack.c.b16 %v517, %v515
  %v756 = vpack.c.b16 %v520, %v518
  %v757 = vpack.c.b16 %v521, %v519
  %v758 = vpack.c.b16 %v524, %v522
  %v759 = vpack.c.b16 %v525, %v523
  %v760 = vpack.c.b16 %v528, %v526
  %v761 = vpack.c.b16 %v529, %v527
  %v762 = vpack.c.b16 %v532, %v530
  %v763 = vpack.c.b16 %v533, %v531
  %v764 = vpack.c.b16 %v536, %v534
  %v765 = vpack.c.b16 %v537, %v535
  %v766 = vpack.c.b16 %v540, %v538
  %v767 = vpack.c.b16 %v541, %v539
  %v768 = vpack.c.b16 %v544, %v542
  %v769 = vpack.c.b16 %v545, %v543
  %v770 = vpack.c.b16 %v548, %v546
  %v771 = vpack.c.b16 %v549, %v547
  %v772 = vpack.c.b16 %v552, %v550
  %v773 = vpack.c.b16 %v553, %v551
  %v774 = vpack.c.b16 %v556, %v554
  %v775 = vpack.c.b16 %v557, %v555
  %v776 = vpack.c.b16 %v560, %v558
  %v777 = vpack.c.b16 %v561, %v559
  %v778 = vpack.c.b16 %v564, %v562
  %v779 = vpack.c.b16 %v565, %v563
  %v780 = vpack.c.b16 %v568, %v566
  %v781 = vpack.c.b16 %v569, %v567
  %v782 = vpack.c.b16 %v572, %v570
  %v783 = vpack.c.b16 %v573, %v571
  %v784 = vpack.c.b16 %v576, %v574
  %v785 = vpack.c.b16 %v577, %v575
  %v786 = vpack.c.b16 %v580, %v578
  %v787 = vpack.c.b16 %v581, %v579
  %v788 = vpack.c.b16 %v584, %v582
  %v789 = vpack.c.b16 %v585, %v583
  %v790 = vpack.c.b16 %v588, %v586
  %v791 = vpack.c.b16 %v589, %v587
  %v792 = vpack.c.b16 %v592, %v590
  %v793 = vpack.c.b16 %v593, %v591
  %v794 = vpack.c.b16 %v596, %v594
  %v795 = vpack.c.b16 %v597, %v595
  %v796 = vpack.c.b16 %v600, %v598
  %v797 = vpack.c.b16 %v601, %v599
  %v798 = vpack.c.b16 %v604, %v602
  %v799 = vpack.c.b16 %v605, %v603
  %v800 = vpack.c.b16 %v608, %v606
  %v801 = vpack.c.b16 %v609, %v607
  %v802 = vpack.c.b16 %v612, %v610
  %v803 = vpack.c.b16 %v613, %v611
  %v804 = vpack.c.b16 %v616, %v614
  %v805 = vpack.c.b16 %v617, %v615
  %v806 = vpack.c.b16 %v620, %v618
  %v807 = vpack.c.b16 %v621, %v619
  %v808 = vpack.c.b16 %v624, %v622
  %v809 = vpack.c.b16 %v625, %v623
  %v810 = vpack.c.b16 %v628, %v626
  %v811 = vpack.c.b16 %v629, %v627
  %v812 = vpack.c.b16 %v632, %v630
  %v813 = vpack.c.b16 %v633, %v631
  %v814 = vpack.c.b16 %v636, %v634
  %v815 = vpack.c.b16 %v637, %v635
  %v816 = vpack.c.b16 %v640, %v638
  %v817 = vpack.c.b16 %v641, %v639
  %v818 = vpack.c.b16 %v644, %v642
  %v819 = vpack.c.b16 %v645, %v643
  %v820 = vpack.c.b16 %v648, %v646
  %v821 = vpack.c.b16 %v649, %v647
  %v822 = vpack.c.b16 %v652, %v650
  %v823 = vpack.c.b16 %v653, %v651
  %v824 = vpack.c.b16 %v656, %v654
  %v825 = vpack.c.b16 %v657, %v655
  %v826 = vpack.c.b16 %v660, %v658
  %v827 = vpack.c.b16 %v661, %v659
  %v828 = vpack.c.b16 %v664, %v662
  %v829 = vpack.c.b16 %v665, %v663
  %v830 = vpack.c.b16 %v668, %v666
  %v831 = vpack.c.b16 %v669, %v667
  %v832 = vpack.c.b16 %v672, %v670
  %v833 = vpack.c.b16 %v673, %v671
  %v834 = vpack.c.b16 %v676, %v674
  %v835 = vpack.c.b16 %v677, %v675
  %v836 = vpack.c.b16 %v680, %v678
  %v837 = vpack.c.b16 %v681, %v679
  %v838 = vpack.c.b16 %v684, %v682
  %v839 = vpack.c.b16 %v685, %v683
  %v840 = vpack.c.b16 %v688, %v686
  %v841 = vpack.c.b16 %v689, %v687
  %v842 = vpack.c.b16 %v692, %v690
  %v843 = vpack.c.b16 %v693, %v691
  %v844 = vpack.c.b16 %v696, %v694
  %v845 = vpack.c.b16 %v697, %v695
  %v846 = vpack.c.b16 %v700, %v698
  %v847 = vpack.c.b16 %v701, %v699
  %v848 = vpack.c.b16 %v704, %v702
  %v849 = vpack.c.b16 %v705, %v703
  %994 = vmatprep.subr.bf16.mxu0 %v707
  %995 = vmatpush1.bf16.msra.mxu0 %v706
  %996 = vmatprep.subr.bf16.mxu0 %v709
  %997 = vmatpush1.bf16.msra.mxu0 %v708
  %998 = vmatprep.subr.bf16.mxu0 %v711
  %999 = vmatpush1.bf16.msra.mxu0 %v710
  %1000 = vmatprep.subr.bf16.mxu0 %v713
  %1001 = vmatpush1.bf16.msra.mxu0 %v712
  %1002 = vmatprep.subr.bf16.mxu0 %v715
  %1003 = vmatpush1.bf16.msra.mxu0 %v714
  %1004 = vmatprep.subr.bf16.mxu0 %v717
  %1005 = vmatpush1.bf16.msra.mxu0 %v716
  %1006 = vmatprep.subr.bf16.mxu0 %v719
  %1007 = vmatpush1.bf16.msra.mxu0 %v718
  %1008 = vmatprep.subr.bf16.mxu0 %v721
  %1009 = vmatpush1.bf16.msra.mxu0 %v720
  %1010 = vmatprep.subr.bf16.mxu0 %v723
  %1011 = vmatpush1.bf16.msra.mxu0 %v722
  %1012 = vmatprep.subr.bf16.mxu0 %v725
  %1013 = vmatpush1.bf16.msra.mxu0 %v724
  %1014 = vmatprep.subr.bf16.mxu0 %v727
  %1015 = vmatpush1.bf16.msra.mxu0 %v726
  %1016 = vmatprep.subr.bf16.mxu0 %v729
  %1017 = vmatpush1.bf16.msra.mxu0 %v728
  %1018 = vmatprep.subr.bf16.mxu0 %v731
  %1019 = vmatpush1.bf16.msra.mxu0 %v730
  %1020 = vmatprep.subr.bf16.mxu0 %v733
  %1021 = vmatpush1.bf16.msra.mxu0 %v732
  %1022 = vmatprep.subr.bf16.mxu0 %v735
  %1023 = vmatpush1.bf16.msra.mxu0 %v734
  %1024 = vmatprep.subr.bf16.mxu0 %v737
  %1025 = vmatpush1.bf16.msra.mxu0 %v736
  %1026 = vmatprep.mubr.bf16.mxu0 %v239
  %1027 = vmatmul.mubr.bf16.gmra.mrb[0].mxu0 %v238
  %v1028 = vpop.f32.mrb[0].mxu0
  %v1029 = vadd.f32 0.0, %v1028
  %v1030 = vpop.f32.mrb[0].mxu0
  %v1031 = vadd.f32 0.0, %v1030
  %v1032 = vpop.f32.mrb[0].mxu0
  %v1033 = vadd.f32 0.0, %v1032
  %v1034 = vpop.f32.mrb[0].mxu0
  %v1035 = vadd.f32 0.0, %v1034
  %1036 = vmatprep.mubr.bf16.mxu0 %v248
  %1037 = vmatmul.mubr.bf16.gmra.mrb[0].mxu0 %v247
  %v1038 = vpop.f32.mrb[0].mxu0
  %v1039 = vadd.f32 0.0, %v1038
  %v1040 = vpop.f32.mrb[0].mxu0
  %v1041 = vadd.f32 0.0, %v1040
  %v1042 = vpop.f32.mrb[0].mxu0
  %v1043 = vadd.f32 0.0, %v1042
  %v1044 = vpop.f32.mrb[0].mxu0
  %v1045 = vadd.f32 0.0, %v1044
  %1046 = vdwg.mxu0
  %1047 = vmatprep.subr.bf16.mxu0 %v739
  %1048 = vmatpush1.bf16.msra.mxu0 %v738
  %1049 = vmatprep.subr.bf16.mxu0 %v741
  %1050 = vmatpush1.bf16.msra.mxu0 %v740
  %1051 = vmatprep.subr.bf16.mxu0 %v743
  %1052 = vmatpush1.bf16.msra.mxu0 %v742
  %1053 = vmatprep.subr.bf16.mxu0 %v745
  %1054 = vmatpush1.bf16.msra.mxu0 %v744
  %1055 = vmatprep.subr.bf16.mxu0 %v747
  %1056 = vmatpush1.bf16.msra.mxu0 %v746
  %1057 = vmatprep.subr.bf16.mxu0 %v749
  %1058 = vmatpush1.bf16.msra.mxu0 %v748
  %1059 = vmatprep.subr.bf16.mxu0 %v751
  %1060 = vmatpush1.bf16.msra.mxu0 %v750
  %1061 = vmatprep.subr.bf16.mxu0 %v753
  %1062 = vmatpush1.bf16.msra.mxu0 %v752
  %1063 = vmatprep.subr.bf16.mxu0 %v755
  %1064 = vmatpush1.bf16.msra.mxu0 %v754
  %1065 = vmatprep.subr.bf16.mxu0 %v757
  %1066 = vmatpush1.bf16.msra.mxu0 %v756
  %1067 = vmatprep.subr.bf16.mxu0 %v759
  %1068 = vmatpush1.bf16.msra.mxu0 %v758
  %1069 = vmatprep.subr.bf16.mxu0 %v761
  %1070 = vmatpush1.bf16.msra.mxu0 %v760
  %1071 = vmatprep.subr.bf16.mxu0 %v763
  %1072 = vmatpush1.bf16.msra.mxu0 %v762
  %1073 = vmatprep.subr.bf16.mxu0 %v765
  %1074 = vmatpush1.bf16.msra.mxu0 %v764
  %1075 = vmatprep.subr.bf16.mxu0 %v767
  %1076 = vmatpush1.bf16.msra.mxu0 %v766
  %1077 = vmatprep.subr.bf16.mxu0 %v769
  %1078 = vmatpush1.bf16.msra.mxu0 %v768
  %1079 = vmatprep.mubr.bf16.mxu0 %v241
  %1080 = vmatmul.mubr.bf16.gmra.mrb[0].mxu0 %v240
  %v1081 = vpop.f32.mrb[0].mxu0
  %v1082 = vadd.f32 %v1029, %v1081
  %v1083 = vpop.f32.mrb[0].mxu0
  %v1084 = vadd.f32 %v1031, %v1083
  %v1085 = vpop.f32.mrb[0].mxu0
  %v1086 = vadd.f32 %v1033, %v1085
  %v1087 = vpop.f32.mrb[0].mxu0
  %v1088 = vadd.f32 %v1035, %v1087
  %1089 = vmatprep.mubr.bf16.mxu0 %v250
  %1090 = vmatmul.mubr.bf16.gmra.mrb[0].mxu0 %v249
  %v1091 = vpop.f32.mrb[0].mxu0
  %v1092 = vadd.f32 %v1039, %v1091
  %v1093 = vpop.f32.mrb[0].mxu0
  %v1094 = vadd.f32 %v1041, %v1093
  %v1095 = vpop.f32.mrb[0].mxu0
  %v1096 = vadd.f32 %v1043, %v1095
  %v1097 = vpop.f32.mrb[0].mxu0
  %v1098 = vadd.f32 %v1045, %v1097
  %1099 = vdwg.mxu0
  %1100 = vmatprep.subr.bf16.mxu0 %v771
  %1101 = vmatpush1.bf16.msra.mxu0 %v770
  %1102 = vmatprep.subr.bf16.mxu0 %v773
  %1103 = vmatpush1.bf16.msra.mxu0 %v772
  %1104 = vmatprep.subr.bf16.mxu0 %v775
  %1105 = vmatpush1.bf16.msra.mxu0 %v774
  %1106 = vmatprep.subr.bf16.mxu0 %v777
  %1107 = vmatpush1.bf16.msra.mxu0 %v776
  %1108 = vmatprep.subr.bf16.mxu0 %v779
  %1109 = vmatpush1.bf16.msra.mxu0 %v778
  %1110 = vmatprep.subr.bf16.mxu0 %v781
  %1111 = vmatpush1.bf16.msra.mxu0 %v780
  %1112 = vmatprep.subr.bf16.mxu0 %v783
  %1113 = vmatpush1.bf16.msra.mxu0 %v782
  %1114 = vmatprep.subr.bf16.mxu0 %v785
  %1115 = vmatpush1.bf16.msra.mxu0 %v784
  %1116 = vmatprep.subr.bf16.mxu0 %v787
  %1117 = vmatpush1.bf16.msra.mxu0 %v786
  %1118 = vmatprep.subr.bf16.mxu0 %v789
  %1119 = vmatpush1.bf16.msra.mxu0 %v788
  %1120 = vmatprep.subr.bf16.mxu0 %v791
  %1121 = vmatpush1.bf16.msra.mxu0 %v790
  %1122 = vmatprep.subr.bf16.mxu0 %v793
  %1123 = vmatpush1.bf16.msra.mxu0 %v792
  %1124 = vmatprep.subr.bf16.mxu0 %v795
  %1125 = vmatpush1.bf16.msra.mxu0 %v794
  %1126 = vmatprep.subr.bf16.mxu0 %v797
  %1127 = vmatpush1.bf16.msra.mxu0 %v796
  %1128 = vmatprep.subr.bf16.mxu0 %v799
  %1129 = vmatpush1.bf16.msra.mxu0 %v798
  %1130 = vmatprep.subr.bf16.mxu0 %v801
  %1131 = vmatpush1.bf16.msra.mxu0 %v800
  %1132 = vmatprep.mubr.bf16.mxu0 %v243
  %1133 = vmatmul.mubr.bf16.gmra.mrb[0].mxu0 %v242
  %v1134 = vpop.f32.mrb[0].mxu0
  %v1135 = vadd.f32 %v1082, %v1134
  %v1136 = vpop.f32.mrb[0].mxu0
  %v1137 = vadd.f32 %v1084, %v1136
  %v1138 = vpop.f32.mrb[0].mxu0
  %v1139 = vadd.f32 %v1086, %v1138
  %v1140 = vpop.f32.mrb[0].mxu0
  %v1141 = vadd.f32 %v1088, %v1140
  %1142 = vmatprep.mubr.bf16.mxu0 %v252
  %1143 = vmatmul.mubr.bf16.gmra.mrb[0].mxu0 %v251
  %v1144 = vpop.f32.mrb[0].mxu0
  %v1145 = vadd.f32 %v1092, %v1144
  %v1146 = vpop.f32.mrb[0].mxu0
  %v1147 = vadd.f32 %v1094, %v1146
  %v1148 = vpop.f32.mrb[0].mxu0
  %v1149 = vadd.f32 %v1096, %v1148
  %v1150 = vpop.f32.mrb[0].mxu0
  %v1151 = vadd.f32 %v1098, %v1150
  %1152 = vdwg.mxu0
  %1153 = vmatprep.subr.bf16.mxu0 %v803
  %1154 = vmatpush1.bf16.msra.mxu0 %v802
  %1155 = vmatprep.subr.bf16.mxu0 %v805
  %1156 = vmatpush1.bf16.msra.mxu0 %v804
  %1157 = vmatprep.subr.bf16.mxu0 %v807
  %1158 = vmatpush1.bf16.msra.mxu0 %v806
  %1159 = vmatprep.subr.bf16.mxu0 %v809
  %1160 = vmatpush1.bf16.msra.mxu0 %v808
  %1161 = vmatprep.subr.bf16.mxu0 %v811
  %1162 = vmatpush1.bf16.msra.mxu0 %v810
  %1163 = vmatprep.subr.bf16.mxu0 %v813
  %1164 = vmatpush1.bf16.msra.mxu0 %v812
  %1165 = vmatprep.subr.bf16.mxu0 %v815
  %1166 = vmatpush1.bf16.msra.mxu0 %v814
  %1167 = vmatprep.subr.bf16.mxu0 %v817
  %1168 = vmatpush1.bf16.msra.mxu0 %v816
  %1169 = vmatprep.subr.bf16.mxu0 %v819
  %1170 = vmatpush1.bf16.msra.mxu0 %v818
  %1171 = vmatprep.subr.bf16.mxu0 %v821
  %1172 = vmatpush1.bf16.msra.mxu0 %v820
  %1173 = vmatprep.subr.bf16.mxu0 %v823
  %1174 = vmatpush1.bf16.msra.mxu0 %v822
  %1175 = vmatprep.subr.bf16.mxu0 %v825
  %1176 = vmatpush1.bf16.msra.mxu0 %v824
  %1177 = vmatprep.subr.bf16.mxu0 %v827
  %1178 = vmatpush1.bf16.msra.mxu0 %v826
  %1179 = vmatprep.subr.bf16.mxu0 %v829
  %1180 = vmatpush1.bf16.msra.mxu0 %v828
  %1181 = vmatprep.subr.bf16.mxu0 %v831
  %1182 = vmatpush1.bf16.msra.mxu0 %v830
  %1183 = vmatprep.subr.bf16.mxu0 %v833
  %1184 = vmatpush1.bf16.msra.mxu0 %v832
  %1185 = vmatprep.mubr.bf16.mxu0 %v245
  %1186 = vmatmul.mubr.bf16.gmra.mrb[0].mxu0 %v244
  %v1187 = vpop.f32.mrb[0].mxu0
  %v1188 = vadd.f32 %v1135, %v1187
  %v1189 = vpop.f32.mrb[0].mxu0
  %v1190 = vadd.f32 %v1137, %v1189
  %v1191 = vpop.f32.mrb[0].mxu0
  %v1192 = vadd.f32 %v1139, %v1191
  %v1193 = vpop.f32.mrb[0].mxu0
  %v1194 = vadd.f32 %v1141, %v1193
  %1195 = vmatprep.mubr.bf16.mxu0 %v254
  %1196 = vmatmul.mubr.bf16.gmra.mrb[0].mxu0 %v253
  %v1197 = vpop.f32.mrb[0].mxu0
  %v1198 = vadd.f32 %v1145, %v1197
  %v1199 = vpop.f32.mrb[0].mxu0
  %v1200 = vadd.f32 %v1147, %v1199
  %v1201 = vpop.f32.mrb[0].mxu0
  %v1202 = vadd.f32 %v1149, %v1201
  %v1203 = vpop.f32.mrb[0].mxu0
  %v1204 = vadd.f32 %v1151, %v1203
  %1205 = vdwg.mxu0
  %1206 = vmatprep.subr.bf16.mxu0 %v835
  %1207 = vmatpush1.bf16.msra.mxu0 %v834
  %1208 = vmatprep.subr.bf16.mxu0 %v837
  %1209 = vmatpush1.bf16.msra.mxu0 %v836
  %1210 = vmatprep.subr.bf16.mxu0 %v839
  %1211 = vmatpush1.bf16.msra.mxu0 %v838
  %1212 = vmatprep.subr.bf16.mxu0 %v841
  %1213 = vmatpush1.bf16.msra.mxu0 %v840
  %1214 = vmatprep.subr.bf16.mxu0 %v843
  %1215 = vmatpush1.bf16.msra.mxu0 %v842
  %1216 = vmatprep.subr.bf16.mxu0 %v845
  %1217 = vmatpush1.bf16.msra.mxu0 %v844
  %1218 = vmatprep.subr.bf16.mxu0 %v847
  %1219 = vmatpush1.bf16.msra.mxu0 %v846
  %1220 = vmatprep.subr.bf16.mxu0 %v849
  %1221 = vmatpush1.bf16.msra.mxu0 %v848
  %1222 = vmatprep.subr.bf16.mxu0 0
  %1223 = vmatpush1.bf16.msra.mxu0 0
  %1224 = vmatprep.subr.bf16.mxu0 0
  %1225 = vmatpush1.bf16.msra.mxu0 0
  %1226 = vmatprep.subr.bf16.mxu0 0
  %1227 = vmatpush1.bf16.msra.mxu0 0
  %1228 = vmatprep.subr.bf16.mxu0 0
  %1229 = vmatpush1.bf16.msra.mxu0 0
  %1230 = vmatprep.subr.bf16.mxu0 0
  %1231 = vmatpush1.bf16.msra.mxu0 0
  %1232 = vmatprep.subr.bf16.mxu0 0
  %1233 = vmatpush1.bf16.msra.mxu0 0
  %1234 = vmatprep.subr.bf16.mxu0 0
  %1235 = vmatpush1.bf16.msra.mxu0 0
  %1236 = vmatprep.subr.bf16.mxu0 0
  %1237 = vmatpush1.bf16.msra.mxu0 0
  %1238 = vmatprep.mubr.bf16.mxu0 0
  %1239 = vmatmul.mubr.bf16.gmra.mrb[0].mxu0 %v246
  %v1240 = vpop.f32.mrb[0].mxu0
  %v1241 = vadd.f32 %v1188, %v1240
  %v1242 = vpop.f32.mrb[0].mxu0
  %v1243 = vadd.f32 %v1190, %v1242
  %v1244 = vpop.f32.mrb[0].mxu0
  %v1245 = vadd.f32 %v1192, %v1244
  %v1246 = vpop.f32.mrb[0].mxu0
  %v1247 = vadd.f32 %v1194, %v1246
  %1248 = vmatprep.mubr.bf16.mxu0 0
  %1249 = vmatmul.mubr.bf16.gmra.mrb[0].mxu0 %v255
  %v1250 = vpop.f32.mrb[0].mxu0
  %v1251 = vadd.f32 %v1198, %v1250
  %v1252 = vpop.f32.mrb[0].mxu0
  %v1253 = vadd.f32 %v1200, %v1252
  %v1254 = vpop.f32.mrb[0].mxu0
  %v1255 = vadd.f32 %v1202, %v1254
  %v1256 = vpop.f32.mrb[0].mxu0
  %v1257 = vadd.f32 %v1204, %v1256
  %1258 = vdwg.mxu0
  %v1259 = vld [vmem:[%s2] sm:$0x3]
  %v1261 = vlaneseq
  %v1262 = vshrl.u32 %v1261, 7
  %v1263 = vsub.s32 0, %v1262
  %v1264 = vrot.slane %v1259, %v1263
  %v1265 = vlaneseq
  %v1266 = vshrl.u32 %v1265, 7
  %v1267 = vsub.s32 1, %v1266
  %v1268 = vrot.slane %v1259, %v1267
  %v1271 = vmul.f32 %v1241, %v1264
  %v1272 = vmul.f32 %v1243, %v1268
  %v1273 = vmul.f32 %v1245, %v1264
  %v1274 = vmul.f32 %v1247, %v1268
  %v1275 = vmul.f32 %v1251, %v1264
  %v1276 = vmul.f32 %v1253, %v1268
  %v1277 = vmul.f32 %v1255, %v1264
  %v1278 = vmul.f32 %v1257, %v1268
  %v1279 = vld [vmem:[%s3] sm:$0x3]
  %v1281 = vlaneseq
  %v1282 = vshrl.u32 %v1281, 7
  %v1283 = vsub.s32 0, %v1282
  %v1284 = vrot.slane %v1279, %v1283
  %v1285 = vlaneseq
  %v1286 = vshrl.u32 %v1285, 7
  %v1287 = vsub.s32 1, %v1286
  %v1288 = vrot.slane %v1279, %v1287
  %v1291 = vadd.f32 %v1271, %v1284
  %v1292 = vadd.f32 %v1272, %v1288
  %v1293 = vadd.f32 %v1273, %v1284
  %v1294 = vadd.f32 %v1274, %v1288
  %v1295 = vadd.f32 %v1275, %v1284
  %v1296 = vadd.f32 %v1276, %v1288
  %v1297 = vadd.f32 %v1277, %v1284
  %v1298 = vadd.f32 %v1278, %v1288
  %v1299 = vmax.f32 %v1291, 0.0
  %v1300 = vmax.f32 %v1292, 0.0
  %v1301 = vmax.f32 %v1293, 0.0
  %v1302 = vmax.f32 %v1294, 0.0
  %v1303 = vmax.f32 %v1295, 0.0
  %v1304 = vmax.f32 %v1296, 0.0
  %v1305 = vmax.f32 %v1297, 0.0
  %v1306 = vmax.f32 %v1298, 0.0
  %v1307 = vpack.c.bf16 %v1301, %v1299
  %v1308 = vpack.c.bf16 %v1302, %v1300
  %v1309 = vpack.c.bf16 %v1305, %v1303
  %v1310 = vpack.c.bf16 %v1306, %v1304
  %v1315 = vunpack.c.l.b16 %v1307
  %v1316 = vunpack.c.l.b16 %v1308
  %v1317 = vunpack.c.h.b16 %v1307
  %v1318 = vunpack.c.h.b16 %v1308
  %v1319 = vunpack.c.l.b16 %v1309
  %v1320 = vunpack.c.l.b16 %v1310
  %v1321 = vunpack.c.h.b16 %v1309
  %v1322 = vunpack.c.h.b16 %v1310
  %v1323 = vpack.c.b16 %v1316, %v1315
  %v1324 = vpack.c.b16 %v1318, %v1317
  %v1325 = vpack.c.b16 %v1320, %v1319
  %v1326 = vpack.c.b16 %v1322, %v1321
  %1331 = vst [vmem:[%s4] sm:$0xff] %v1323
  %1332 = vst [vmem:[%s4 + $0x8] sm:$0xff] %v1324
  %1333 = vst [vmem:[%s4 + $0x10] sm:$0xff] %v1325
  %1334 = vst [vmem:[%s4 + $0x18] sm:$0xff] %v1326
  // Predicated region
  $region18: #{discriminator_forward.12} parent=0 // pred_check
    _
  $region19: #{discriminator_forward.12} parent=0 // pred_check_branch
    %1336 = sbr.rel (0) target = $region21
  $region20: #{discriminator_forward.12} parent=0 // pred_region
    _
  $region21: #{discriminator_forward.12} parent=0 // pred_fallthru
    _
  // Predicated region
  $region22: #{discriminator_forward.12} parent=0 // pred_check
    _
  $region23: #{discriminator_forward.12} parent=0 // pred_check_branch
    %1338 = sbr.rel (0) target = $region25
  $region24: #{discriminator_forward.12} parent=0 // pred_region
    _
  $region25: #{discriminator_forward.12} parent=0 // pred_fallthru
    _

// kernel: discriminator_forward.13
$region0: #{discriminator_forward.13}
  #allocation0 [shape = 'u32[]', space=smem, size = 0x4, offset = 0x4, fixed_abs, tag = 'smem constant byte address 0x4 - core index']
  #allocation1 [shape = 'u32[144,128]{1,0:T(1,128)}', space=vmem, size = 0x12000, scoped, tag = 'internal scratch']
  %s0 = inlined_call_operand.vmem [shape: bf16[8,4096], index: 0, kind: input, shape index: {}]
  %s1 = inlined_call_operand.vmem [shape: bf16[4096,256], index: 1, kind: input, shape index: {}]
  %s2 = inlined_call_operand.vmem [shape: f32[1,256], index: 2, kind: input, shape index: {}]
  %s3 = inlined_call_operand.vmem [shape: f32[1,256], index: 3, kind: input, shape index: {}]
  %s4 = inlined_call_operand.vmem [shape: bf16[8,256], index: 4, kind: output, shape index: {}]
  %s5 = sld [smem:[#allocation0]]
  $region26: #{discriminator_forward.13} parent=0
    _
  %s7 = ssub.s32 1, %s5
  %s8 = scalar_select 0, %s7, %s5
  // Predicated region
  $region2: #{discriminator_forward.13} parent=0 // pred_check
    _
  $region3: #{discriminator_forward.13} parent=0 // pred_check_branch
    %10 = sbr.rel (0) target = $region5
  $region4: #{discriminator_forward.13} parent=0 // pred_region
    _
  $region5: #{discriminator_forward.13} parent=0 // pred_fallthru
    _
  // Predicated region
  $region6: #{discriminator_forward.13} parent=0 // pred_check
    _
  $region7: #{discriminator_forward.13} parent=0 // pred_check_branch
    %12 = sbr.rel (0) target = $region9
  $region8: #{discriminator_forward.13} parent=0 // pred_region
    _
  $region9: #{discriminator_forward.13} parent=0 // pred_fallthru
    _
  // Predicated region
  $region10: #{discriminator_forward.13} parent=0 // pred_check
    _
  $region11: #{discriminator_forward.13} parent=0 // pred_check_branch
    %14 = sbr.rel (0) target = $region13
  $region12: #{discriminator_forward.13} parent=0 // pred_region
    _
  $region13: #{discriminator_forward.13} parent=0 // pred_fallthru
    _
  // Predicated region
  $region14: #{discriminator_forward.13} parent=0 // pred_check
    _
  $region15: #{discriminator_forward.13} parent=0 // pred_check_branch
    %16 = sbr.rel (0) target = $region17
  $region16: #{discriminator_forward.13} parent=0 // pred_region
    _
  $region17: #{discriminator_forward.13} parent=0 // pred_fallthru
    _
  %v17 = vld [vmem:[%s0] sm:$0xff]
  %v18 = vld [vmem:[%s0 + $0x8] sm:$0xff]
  %v19 = vld [vmem:[%s0 + $0x10] sm:$0xff]
  %v20 = vld [vmem:[%s0 + $0x18] sm:$0xff]
  %v21 = vld [vmem:[%s0 + $0x20] sm:$0xff]
  %v22 = vld [vmem:[%s0 + $0x28] sm:$0xff]
  %v23 = vld [vmem:[%s0 + $0x30] sm:$0xff]
  %v24 = vld [vmem:[%s0 + $0x38] sm:$0xff]
  %v25 = vld [vmem:[%s0 + $0x40] sm:$0xff]
  %v26 = vld [vmem:[%s0 + $0x48] sm:$0xff]
  %v27 = vld [vmem:[%s0 + $0x50] sm:$0xff]
  %v28 = vld [vmem:[%s0 + $0x58] sm:$0xff]
  %v29 = vld [vmem:[%s0 + $0x60] sm:$0xff]
  %v30 = vld [vmem:[%s0 + $0x68] sm:$0xff]
  %v31 = vld [vmem:[%s0 + $0x70] sm:$0xff]
  %v32 = vld [vmem:[%s0 + $0x78] sm:$0xff]
  %v33 = vld [vmem:[%s1] sm:$0xff]
  %v34 = vld [vmem:[%s1 + $0x8] sm:$0xff]
  %v35 = vld [vmem:[%s1 + $0x10] sm:$0xff]
  %v36 = vld [vmem:[%s1 + $0x18] sm:$0xff]
  %v37 = vld [vmem:[%s1 + $0x20] sm:$0xff]
  %v38 = vld [vmem:[%s1 + $0x28] sm:$0xff]
  %v39 = vld [vmem:[%s1 + $0x30] sm:$0xff]
  %v40 = vld [vmem:[%s1 + $0x38] sm:$0xff]
  %v41 = vld [vmem:[%s1 + $0x40] sm:$0xff]
  %v42 = vld [vmem:[%s1 + $0x48] sm:$0xff]
  %v43 = vld [vmem:[%s1 + $0x50] sm:$0xff]
  %v44 = vld [vmem:[%s1 + $0x58] sm:$0xff]
  %v45 = vld [vmem:[%s1 + $0x60] sm:$0xff]
  %v46 = vld [vmem:[%s1 + $0x68] sm:$0xff]
  %v47 = vld [vmem:[%s1 + $0x70] sm:$0xff]
  %v48 = vld [vmem:[%s1 + $0x78] sm:$0xff]
  %v49 = vld [vmem:[%s1 + $0x80] sm:$0xff]
  %v50 = vld [vmem:[%s1 + $0x88] sm:$0xff]
  %v51 = vld [vmem:[%s1 + $0x90] sm:$0xff]
  %v52 = vld [vmem:[%s1 + $0x98] sm:$0xff]
  %v53 = vld [vmem:[%s1 + $0xa0] sm:$0xff]
  %v54 = vld [vmem:[%s1 + $0xa8] sm:$0xff]
  %v55 = vld [vmem:[%s1 + $0xb0] sm:$0xff]
  %v56 = vld [vmem:[%s1 + $0xb8] sm:$0xff]
  %v57 = vld [vmem:[%s1 + $0xc0] sm:$0xff]
  %v58 = vld [vmem:[%s1 + $0xc8] sm:$0xff]
  %v59 = vld [vmem:[%s1 + $0xd0] sm:$0xff]
  %v60 = vld [vmem:[%s1 + $0xd8] sm:$0xff]
  %v61 = vld [vmem:[%s1 + $0xe0] sm:$0xff]
  %v62 = vld [vmem:[%s1 + $0xe8] sm:$0xff]
  %v63 = vld [vmem:[%s1 + $0xf0] sm:$0xff]
  %v64 = vld [vmem:[%s1 + $0xf8] sm:$0xff]
  %v65 = vld [vmem:[%s1 + $0x100] sm:$0xff]
  %v66 = vld [vmem:[%s1 + $0x108] sm:$0xff]
  %v67 = vld [vmem:[%s1 + $0x110] sm:$0xff]
  %v68 = vld [vmem:[%s1 + $0x118] sm:$0xff]
  %v69 = vld [vmem:[%s1 + $0x120] sm:$0xff]
  %v70 = vld [vmem:[%s1 + $0x128] sm:$0xff]
  %v71 = vld [vmem:[%s1 + $0x130] sm:$0xff]
  %v72 = vld [vmem:[%s1 + $0x138] sm:$0xff]
  %v73 = vld [vmem:[%s1 + $0x140] sm:$0xff]
  %v74 = vld [vmem:[%s1 + $0x148] sm:$0xff]
  %v75 = vld [vmem:[%s1 + $0x150] sm:$0xff]
  %v76 = vld [vmem:[%s1 + $0x158] sm:$0xff]
  %v77 = vld [vmem:[%s1 + $0x160] sm:$0xff]
  %v78 = vld [vmem:[%s1 + $0x168] sm:$0xff]
  %v79 = vld [vmem:[%s1 + $0x170] sm:$0xff]
  %v80 = vld [vmem:[%s1 + $0x178] sm:$0xff]
  %v81 = vld [vmem:[%s1 + $0x180] sm:$0xff]
  %v82 = vld [vmem:[%s1 + $0x188] sm:$0xff]
  %v83 = vld [vmem:[%s1 + $0x190] sm:$0xff]
  %v84 = vld [vmem:[%s1 + $0x198] sm:$0xff]
  %v85 = vld [vmem:[%s1 + $0x1a0] sm:$0xff]
  %v86 = vld [vmem:[%s1 + $0x1a8] sm:$0xff]
  %v87 = vld [vmem:[%s1 + $0x1b0] sm:$0xff]
  %v88 = vld [vmem:[%s1 + $0x1b8] sm:$0xff]
  %v89 = vld [vmem:[%s1 + $0x1c0] sm:$0xff]
  %v90 = vld [vmem:[%s1 + $0x1c8] sm:$0xff]
  %v91 = vld [vmem:[%s1 + $0x1d0] sm:$0xff]
  %v92 = vld [vmem:[%s1 + $0x1d8] sm:$0xff]
  %v93 = vld [vmem:[%s1 + $0x1e0] sm:$0xff]
  %v94 = vld [vmem:[%s1 + $0x1e8] sm:$0xff]
  %v95 = vld [vmem:[%s1 + $0x1f0] sm:$0xff]
  %v96 = vld [vmem:[%s1 + $0x1f8] sm:$0xff]
  %v97 = vld [vmem:[%s1 + $0x200] sm:$0xff]
  %v98 = vld [vmem:[%s1 + $0x208] sm:$0xff]
  %v99 = vld [vmem:[%s1 + $0x210] sm:$0xff]
  %v100 = vld [vmem:[%s1 + $0x218] sm:$0xff]
  %v101 = vld [vmem:[%s1 + $0x220] sm:$0xff]
  %v102 = vld [vmem:[%s1 + $0x228] sm:$0xff]
  %v103 = vld [vmem:[%s1 + $0x230] sm:$0xff]
  %v104 = vld [vmem:[%s1 + $0x238] sm:$0xff]
  %v105 = vld [vmem:[%s1 + $0x240] sm:$0xff]
  %v106 = vld [vmem:[%s1 + $0x248] sm:$0xff]
  %v107 = vld [vmem:[%s1 + $0x250] sm:$0xff]
  %v108 = vld [vmem:[%s1 + $0x258] sm:$0xff]
  %v109 = vld [vmem:[%s1 + $0x260] sm:$0xff]
  %v110 = vld [vmem:[%s1 + $0x268] sm:$0xff]
  %v111 = vld [vmem:[%s1 + $0x270] sm:$0xff]
  %v112 = vld [vmem:[%s1 + $0x278] sm:$0xff]
  %v113 = vld [vmem:[%s1 + $0x280] sm:$0xff]
  %v114 = vld [vmem:[%s1 + $0x288] sm:$0xff]
  %v115 = vld [vmem:[%s1 + $0x290] sm:$0xff]
  %v116 = vld [vmem:[%s1 + $0x298] sm:$0xff]
  %v117 = vld [vmem:[%s1 + $0x2a0] sm:$0xff]
  %v118 = vld [vmem:[%s1 + $0x2a8] sm:$0xff]
  %v119 = vld [vmem:[%s1 + $0x2b0] sm:$0xff]
  %v120 = vld [vmem:[%s1 + $0x2b8] sm:$0xff]
  %v121 = vld [vmem:[%s1 + $0x2c0] sm:$0xff]
  %v122 = vld [vmem:[%s1 + $0x2c8] sm:$0xff]
  %v123 = vld [vmem:[%s1 + $0x2d0] sm:$0xff]
  %v124 = vld [vmem:[%s1 + $0x2d8] sm:$0xff]
  %v125 = vld [vmem:[%s1 + $0x2e0] sm:$0xff]
  %v126 = vld [vmem:[%s1 + $0x2e8] sm:$0xff]
  %v127 = vld [vmem:[%s1 + $0x2f0] sm:$0xff]
  %v128 = vld [vmem:[%s1 + $0x2f8] sm:$0xff]
  %v129 = vld [vmem:[%s1 + $0x300] sm:$0xff]
  %v130 = vld [vmem:[%s1 + $0x308] sm:$0xff]
  %v131 = vld [vmem:[%s1 + $0x310] sm:$0xff]
  %v132 = vld [vmem:[%s1 + $0x318] sm:$0xff]
  %v133 = vld [vmem:[%s1 + $0x320] sm:$0xff]
  %v134 = vld [vmem:[%s1 + $0x328] sm:$0xff]
  %v135 = vld [vmem:[%s1 + $0x330] sm:$0xff]
  %v136 = vld [vmem:[%s1 + $0x338] sm:$0xff]
  %v137 = vld [vmem:[%s1 + $0x340] sm:$0xff]
  %v138 = vld [vmem:[%s1 + $0x348] sm:$0xff]
  %v139 = vld [vmem:[%s1 + $0x350] sm:$0xff]
  %v140 = vld [vmem:[%s1 + $0x358] sm:$0xff]
  %v141 = vld [vmem:[%s1 + $0x360] sm:$0xff]
  %v142 = vld [vmem:[%s1 + $0x368] sm:$0xff]
  %v143 = vld [vmem:[%s1 + $0x370] sm:$0xff]
  %v144 = vld [vmem:[%s1 + $0x378] sm:$0xff]
  %v145 = vld [vmem:[%s1 + $0x380] sm:$0xff]
  %v146 = vld [vmem:[%s1 + $0x388] sm:$0xff]
  %v147 = vld [vmem:[%s1 + $0x390] sm:$0xff]
  %v148 = vld [vmem:[%s1 + $0x398] sm:$0xff]
  %v149 = vld [vmem:[%s1 + $0x3a0] sm:$0xff]
  %v150 = vld [vmem:[%s1 + $0x3a8] sm:$0xff]
  %v151 = vld [vmem:[%s1 + $0x3b0] sm:$0xff]
  %v152 = vld [vmem:[%s1 + $0x3b8] sm:$0xff]
  %v153 = vld [vmem:[%s1 + $0x3c0] sm:$0xff]
  %v154 = vld [vmem:[%s1 + $0x3c8] sm:$0xff]
  %v155 = vld [vmem:[%s1 + $0x3d0] sm:$0xff]
  %v156 = vld [vmem:[%s1 + $0x3d8] sm:$0xff]
  %v157 = vld [vmem:[%s1 + $0x3e0] sm:$0xff]
  %v158 = vld [vmem:[%s1 + $0x3e8] sm:$0xff]
  %v159 = vld [vmem:[%s1 + $0x3f0] sm:$0xff]
  %v160 = vld [vmem:[%s1 + $0x3f8] sm:$0xff]
  %v161 = vld [vmem:[%s1 + $0x400] sm:$0xff]
  %v162 = vld [vmem:[%s1 + $0x408] sm:$0xff]
  %v163 = vld [vmem:[%s1 + $0x410] sm:$0xff]
  %v164 = vld [vmem:[%s1 + $0x418] sm:$0xff]
  %v165 = vld [vmem:[%s1 + $0x420] sm:$0xff]
  %v166 = vld [vmem:[%s1 + $0x428] sm:$0xff]
  %v167 = vld [vmem:[%s1 + $0x430] sm:$0xff]
  %v168 = vld [vmem:[%s1 + $0x438] sm:$0xff]
  %v169 = vld [vmem:[%s1 + $0x440] sm:$0xff]
  %v170 = vld [vmem:[%s1 + $0x448] sm:$0xff]
  %v171 = vld [vmem:[%s1 + $0x450] sm:$0xff]
  %v172 = vld [vmem:[%s1 + $0x458] sm:$0xff]
  %v173 = vld [vmem:[%s1 + $0x460] sm:$0xff]
  %v174 = vld [vmem:[%s1 + $0x468] sm:$0xff]
  %v175 = vld [vmem:[%s1 + $0x470] sm:$0xff]
  %v176 = vld [vmem:[%s1 + $0x478] sm:$0xff]
  %v177 = vld [vmem:[%s1 + $0x480] sm:$0xff]
  %v178 = vld [vmem:[%s1 + $0x488] sm:$0xff]
  %v179 = vld [vmem:[%s1 + $0x490] sm:$0xff]
  %v180 = vld [vmem:[%s1 + $0x498] sm:$0xff]
  %v181 = vld [vmem:[%s1 + $0x4a0] sm:$0xff]
  %v182 = vld [vmem:[%s1 + $0x4a8] sm:$0xff]
  %v183 = vld [vmem:[%s1 + $0x4b0] sm:$0xff]
  %v184 = vld [vmem:[%s1 + $0x4b8] sm:$0xff]
  %v185 = vld [vmem:[%s1 + $0x4c0] sm:$0xff]
  %v186 = vld [vmem:[%s1 + $0x4c8] sm:$0xff]
  %v187 = vld [vmem:[%s1 + $0x4d0] sm:$0xff]
  %v188 = vld [vmem:[%s1 + $0x4d8] sm:$0xff]
  %v189 = vld [vmem:[%s1 + $0x4e0] sm:$0xff]
  %v190 = vld [vmem:[%s1 + $0x4e8] sm:$0xff]
  %v191 = vld [vmem:[%s1 + $0x4f0] sm:$0xff]
  %v192 = vld [vmem:[%s1 + $0x4f8] sm:$0xff]
  %v193 = vld [vmem:[%s1 + $0x500] sm:$0xff]
  %v194 = vld [vmem:[%s1 + $0x508] sm:$0xff]
  %v195 = vld [vmem:[%s1 + $0x510] sm:$0xff]
  %v196 = vld [vmem:[%s1 + $0x518] sm:$0xff]
  %v197 = vld [vmem:[%s1 + $0x520] sm:$0xff]
  %v198 = vld [vmem:[%s1 + $0x528] sm:$0xff]
  %v199 = vld [vmem:[%s1 + $0x530] sm:$0xff]
  %v200 = vld [vmem:[%s1 + $0x538] sm:$0xff]
  %v201 = vld [vmem:[%s1 + $0x540] sm:$0xff]
  %v202 = vld [vmem:[%s1 + $0x548] sm:$0xff]
  %v203 = vld [vmem:[%s1 + $0x550] sm:$0xff]
  %v204 = vld [vmem:[%s1 + $0x558] sm:$0xff]
  %v205 = vld [vmem:[%s1 + $0x560] sm:$0xff]
  %v206 = vld [vmem:[%s1 + $0x568] sm:$0xff]
  %v207 = vld [vmem:[%s1 + $0x570] sm:$0xff]
  %v208 = vld [vmem:[%s1 + $0x578] sm:$0xff]
  %v209 = vld [vmem:[%s1 + $0x580] sm:$0xff]
  %v210 = vld [vmem:[%s1 + $0x588] sm:$0xff]
  %v211 = vld [vmem:[%s1 + $0x590] sm:$0xff]
  %v212 = vld [vmem:[%s1 + $0x598] sm:$0xff]
  %v213 = vld [vmem:[%s1 + $0x5a0] sm:$0xff]
  %v214 = vld [vmem:[%s1 + $0x5a8] sm:$0xff]
  %v215 = vld [vmem:[%s1 + $0x5b0] sm:$0xff]
  %v216 = vld [vmem:[%s1 + $0x5b8] sm:$0xff]
  %v217 = vld [vmem:[%s1 + $0x5c0] sm:$0xff]
  %v218 = vld [vmem:[%s1 + $0x5c8] sm:$0xff]
  %v219 = vld [vmem:[%s1 + $0x5d0] sm:$0xff]
  %v220 = vld [vmem:[%s1 + $0x5d8] sm:$0xff]
  %v221 = vld [vmem:[%s1 + $0x5e0] sm:$0xff]
  %v222 = vld [vmem:[%s1 + $0x5e8] sm:$0xff]
  %v223 = vld [vmem:[%s1 + $0x5f0] sm:$0xff]
  %v224 = vld [vmem:[%s1 + $0x5f8] sm:$0xff]
  %v225 = vld [vmem:[%s1 + $0x600] sm:$0xff]
  %v226 = vld [vmem:[%s1 + $0x608] sm:$0xff]
  %v227 = vld [vmem:[%s1 + $0x610] sm:$0xff]
  %v228 = vld [vmem:[%s1 + $0x618] sm:$0xff]
  %v229 = vld [vmem:[%s1 + $0x620] sm:$0xff]
  %v230 = vld [vmem:[%s1 + $0x628] sm:$0xff]
  %v231 = vld [vmem:[%s1 + $0x630] sm:$0xff]
  %v232 = vld [vmem:[%s1 + $0x638] sm:$0xff]
  %v233 = vld [vmem:[%s1 + $0x640] sm:$0xff]
  %v234 = vld [vmem:[%s1 + $0x648] sm:$0xff]
  %v235 = vld [vmem:[%s1 + $0x650] sm:$0xff]
  %v236 = vld [vmem:[%s1 + $0x658] sm:$0xff]
  %v237 = vld [vmem:[%s1 + $0x660] sm:$0xff]
  %v238 = vld [vmem:[%s1 + $0x668] sm:$0xff]
  %v239 = vld [vmem:[%s1 + $0x670] sm:$0xff]
  %v240 = vld [vmem:[%s1 + $0x678] sm:$0xff]
  %v241 = vld [vmem:[%s1 + $0x680] sm:$0xff]
  %v242 = vld [vmem:[%s1 + $0x688] sm:$0xff]
  %v243 = vld [vmem:[%s1 + $0x690] sm:$0xff]
  %v244 = vld [vmem:[%s1 + $0x698] sm:$0xff]
  %v245 = vld [vmem:[%s1 + $0x6a0] sm:$0xff]
  %v246 = vld [vmem:[%s1 + $0x6a8] sm:$0xff]
  %v247 = vld [vmem:[%s1 + $0x6b0] sm:$0xff]
  %v248 = vld [vmem:[%s1 + $0x6b8] sm:$0xff]
  %v249 = vld [vmem:[%s1 + $0x6c0] sm:$0xff]
  %v250 = vld [vmem:[%s1 + $0x6c8] sm:$0xff]
  %v251 = vld [vmem:[%s1 + $0x6d0] sm:$0xff]
  %v252 = vld [vmem:[%s1 + $0x6d8] sm:$0xff]
  %v253 = vld [vmem:[%s1 + $0x6e0] sm:$0xff]
  %v254 = vld [vmem:[%s1 + $0x6e8] sm:$0xff]
  %v255 = vld [vmem:[%s1 + $0x6f0] sm:$0xff]
  %v256 = vld [vmem:[%s1 + $0x6f8] sm:$0xff]
  %v257 = vld [vmem:[%s1 + $0x700] sm:$0xff]
  %v258 = vld [vmem:[%s1 + $0x708] sm:$0xff]
  %v259 = vld [vmem:[%s1 + $0x710] sm:$0xff]
  %v260 = vld [vmem:[%s1 + $0x718] sm:$0xff]
  %v261 = vld [vmem:[%s1 + $0x720] sm:$0xff]
  %v262 = vld [vmem:[%s1 + $0x728] sm:$0xff]
  %v263 = vld [vmem:[%s1 + $0x730] sm:$0xff]
  %v264 = vld [vmem:[%s1 + $0x738] sm:$0xff]
  %v265 = vld [vmem:[%s1 + $0x740] sm:$0xff]
  %v266 = vld [vmem:[%s1 + $0x748] sm:$0xff]
  %v267 = vld [vmem:[%s1 + $0x750] sm:$0xff]
  %v268 = vld [vmem:[%s1 + $0x758] sm:$0xff]
  %v269 = vld [vmem:[%s1 + $0x760] sm:$0xff]
  %v270 = vld [vmem:[%s1 + $0x768] sm:$0xff]
  %v271 = vld [vmem:[%s1 + $0x770] sm:$0xff]
  %v272 = vld [vmem:[%s1 + $0x778] sm:$0xff]
  %v273 = vld [vmem:[%s1 + $0x780] sm:$0xff]
  %v274 = vld [vmem:[%s1 + $0x788] sm:$0xff]
  %v275 = vld [vmem:[%s1 + $0x790] sm:$0xff]
  %v276 = vld [vmem:[%s1 + $0x798] sm:$0xff]
  %v277 = vld [vmem:[%s1 + $0x7a0] sm:$0xff]
  %v278 = vld [vmem:[%s1 + $0x7a8] sm:$0xff]
  %v279 = vld [vmem:[%s1 + $0x7b0] sm:$0xff]
  %v280 = vld [vmem:[%s1 + $0x7b8] sm:$0xff]
  %v281 = vld [vmem:[%s1 + $0x7c0] sm:$0xff]
  %v282 = vld [vmem:[%s1 + $0x7c8] sm:$0xff]
  %v283 = vld [vmem:[%s1 + $0x7d0] sm:$0xff]
  %v284 = vld [vmem:[%s1 + $0x7d8] sm:$0xff]
  %v285 = vld [vmem:[%s1 + $0x7e0] sm:$0xff]
  %v286 = vld [vmem:[%s1 + $0x7e8] sm:$0xff]
  %v287 = vld [vmem:[%s1 + $0x7f0] sm:$0xff]
  %v288 = vld [vmem:[%s1 + $0x7f8] sm:$0xff]
  %v289 = vld [vmem:[%s1 + $0x800] sm:$0xff]
  %v290 = vld [vmem:[%s1 + $0x808] sm:$0xff]
  %v291 = vld [vmem:[%s1 + $0x810] sm:$0xff]
  %v292 = vld [vmem:[%s1 + $0x818] sm:$0xff]
  %v293 = vld [vmem:[%s1 + $0x820] sm:$0xff]
  %v294 = vld [vmem:[%s1 + $0x828] sm:$0xff]
  %v295 = vld [vmem:[%s1 + $0x830] sm:$0xff]
  %v296 = vld [vmem:[%s1 + $0x838] sm:$0xff]
  %v297 = vld [vmem:[%s1 + $0x840] sm:$0xff]
  %v298 = vld [vmem:[%s1 + $0x848] sm:$0xff]
  %v299 = vld [vmem:[%s1 + $0x850] sm:$0xff]
  %v300 = vld [vmem:[%s1 + $0x858] sm:$0xff]
  %v301 = vld [vmem:[%s1 + $0x860] sm:$0xff]
  %v302 = vld [vmem:[%s1 + $0x868] sm:$0xff]
  %v303 = vld [vmem:[%s1 + $0x870] sm:$0xff]
  %v304 = vld [vmem:[%s1 + $0x878] sm:$0xff]
  %v305 = vld [vmem:[%s1 + $0x880] sm:$0xff]
  %v306 = vld [vmem:[%s1 + $0x888] sm:$0xff]
  %v307 = vld [vmem:[%s1 + $0x890] sm:$0xff]
  %v308 = vld [vmem:[%s1 + $0x898] sm:$0xff]
  %v309 = vld [vmem:[%s1 + $0x8a0] sm:$0xff]
  %v310 = vld [vmem:[%s1 + $0x8a8] sm:$0xff]
  %v311 = vld [vmem:[%s1 + $0x8b0] sm:$0xff]
  %v312 = vld [vmem:[%s1 + $0x8b8] sm:$0xff]
  %v313 = vld [vmem:[%s1 + $0x8c0] sm:$0xff]
  %v314 = vld [vmem:[%s1 + $0x8c8] sm:$0xff]
  %v315 = vld [vmem:[%s1 + $0x8d0] sm:$0xff]
  %v316 = vld [vmem:[%s1 + $0x8d8] sm:$0xff]
  %v317 = vld [vmem:[%s1 + $0x8e0] sm:$0xff]
  %v318 = vld [vmem:[%s1 + $0x8e8] sm:$0xff]
  %v319 = vld [vmem:[%s1 + $0x8f0] sm:$0xff]
  %v320 = vld [vmem:[%s1 + $0x8f8] sm:$0xff]
  %v321 = vld [vmem:[%s1 + $0x900] sm:$0xff]
  %v322 = vld [vmem:[%s1 + $0x908] sm:$0xff]
  %v323 = vld [vmem:[%s1 + $0x910] sm:$0xff]
  %v324 = vld [vmem:[%s1 + $0x918] sm:$0xff]
  %v325 = vld [vmem:[%s1 + $0x920] sm:$0xff]
  %v326 = vld [vmem:[%s1 + $0x928] sm:$0xff]
  %v327 = vld [vmem:[%s1 + $0x930] sm:$0xff]
  %v328 = vld [vmem:[%s1 + $0x938] sm:$0xff]
  %v329 = vld [vmem:[%s1 + $0x940] sm:$0xff]
  %v330 = vld [vmem:[%s1 + $0x948] sm:$0xff]
  %v331 = vld [vmem:[%s1 + $0x950] sm:$0xff]
  %v332 = vld [vmem:[%s1 + $0x958] sm:$0xff]
  %v333 = vld [vmem:[%s1 + $0x960] sm:$0xff]
  %v334 = vld [vmem:[%s1 + $0x968] sm:$0xff]
  %v335 = vld [vmem:[%s1 + $0x970] sm:$0xff]
  %v336 = vld [vmem:[%s1 + $0x978] sm:$0xff]
  %v337 = vld [vmem:[%s1 + $0x980] sm:$0xff]
  %v338 = vld [vmem:[%s1 + $0x988] sm:$0xff]
  %v339 = vld [vmem:[%s1 + $0x990] sm:$0xff]
  %v340 = vld [vmem:[%s1 + $0x998] sm:$0xff]
  %v341 = vld [vmem:[%s1 + $0x9a0] sm:$0xff]
  %v342 = vld [vmem:[%s1 + $0x9a8] sm:$0xff]
  %v343 = vld [vmem:[%s1 + $0x9b0] sm:$0xff]
  %v344 = vld [vmem:[%s1 + $0x9b8] sm:$0xff]
  %v345 = vld [vmem:[%s1 + $0x9c0] sm:$0xff]
  %v346 = vld [vmem:[%s1 + $0x9c8] sm:$0xff]
  %v347 = vld [vmem:[%s1 + $0x9d0] sm:$0xff]
  %v348 = vld [vmem:[%s1 + $0x9d8] sm:$0xff]
  %v349 = vld [vmem:[%s1 + $0x9e0] sm:$0xff]
  %v350 = vld [vmem:[%s1 + $0x9e8] sm:$0xff]
  %v351 = vld [vmem:[%s1 + $0x9f0] sm:$0xff]
  %v352 = vld [vmem:[%s1 + $0x9f8] sm:$0xff]
  %v353 = vld [vmem:[%s1 + $0xa00] sm:$0xff]
  %v354 = vld [vmem:[%s1 + $0xa08] sm:$0xff]
  %v355 = vld [vmem:[%s1 + $0xa10] sm:$0xff]
  %v356 = vld [vmem:[%s1 + $0xa18] sm:$0xff]
  %v357 = vld [vmem:[%s1 + $0xa20] sm:$0xff]
  %v358 = vld [vmem:[%s1 + $0xa28] sm:$0xff]
  %v359 = vld [vmem:[%s1 + $0xa30] sm:$0xff]
  %v360 = vld [vmem:[%s1 + $0xa38] sm:$0xff]
  %v361 = vld [vmem:[%s1 + $0xa40] sm:$0xff]
  %v362 = vld [vmem:[%s1 + $0xa48] sm:$0xff]
  %v363 = vld [vmem:[%s1 + $0xa50] sm:$0xff]
  %v364 = vld [vmem:[%s1 + $0xa58] sm:$0xff]
  %v365 = vld [vmem:[%s1 + $0xa60] sm:$0xff]
  %v366 = vld [vmem:[%s1 + $0xa68] sm:$0xff]
  %v367 = vld [vmem:[%s1 + $0xa70] sm:$0xff]
  %v368 = vld [vmem:[%s1 + $0xa78] sm:$0xff]
  %v369 = vld [vmem:[%s1 + $0xa80] sm:$0xff]
  %v370 = vld [vmem:[%s1 + $0xa88] sm:$0xff]
  %v371 = vld [vmem:[%s1 + $0xa90] sm:$0xff]
  %v372 = vld [vmem:[%s1 + $0xa98] sm:$0xff]
  %v373 = vld [vmem:[%s1 + $0xaa0] sm:$0xff]
  %v374 = vld [vmem:[%s1 + $0xaa8] sm:$0xff]
  %v375 = vld [vmem:[%s1 + $0xab0] sm:$0xff]
  %v376 = vld [vmem:[%s1 + $0xab8] sm:$0xff]
  %v377 = vld [vmem:[%s1 + $0xac0] sm:$0xff]
  %v378 = vld [vmem:[%s1 + $0xac8] sm:$0xff]
  %v379 = vld [vmem:[%s1 + $0xad0] sm:$0xff]
  %v380 = vld [vmem:[%s1 + $0xad8] sm:$0xff]
  %v381 = vld [vmem:[%s1 + $0xae0] sm:$0xff]
  %v382 = vld [vmem:[%s1 + $0xae8] sm:$0xff]
  %v383 = vld [vmem:[%s1 + $0xaf0] sm:$0xff]
  %v384 = vld [vmem:[%s1 + $0xaf8] sm:$0xff]
  %v385 = vld [vmem:[%s1 + $0xb00] sm:$0xff]
  %v386 = vld [vmem:[%s1 + $0xb08] sm:$0xff]
  %v387 = vld [vmem:[%s1 + $0xb10] sm:$0xff]
  %v388 = vld [vmem:[%s1 + $0xb18] sm:$0xff]
  %v389 = vld [vmem:[%s1 + $0xb20] sm:$0xff]
  %v390 = vld [vmem:[%s1 + $0xb28] sm:$0xff]
  %v391 = vld [vmem:[%s1 + $0xb30] sm:$0xff]
  %v392 = vld [vmem:[%s1 + $0xb38] sm:$0xff]
  %v393 = vld [vmem:[%s1 + $0xb40] sm:$0xff]
  %v394 = vld [vmem:[%s1 + $0xb48] sm:$0xff]
  %v395 = vld [vmem:[%s1 + $0xb50] sm:$0xff]
  %v396 = vld [vmem:[%s1 + $0xb58] sm:$0xff]
  %v397 = vld [vmem:[%s1 + $0xb60] sm:$0xff]
  %v398 = vld [vmem:[%s1 + $0xb68] sm:$0xff]
  %v399 = vld [vmem:[%s1 + $0xb70] sm:$0xff]
  %v400 = vld [vmem:[%s1 + $0xb78] sm:$0xff]
  %v401 = vld [vmem:[%s1 + $0xb80] sm:$0xff]
  %v402 = vld [vmem:[%s1 + $0xb88] sm:$0xff]
  %v403 = vld [vmem:[%s1 + $0xb90] sm:$0xff]
  %v404 = vld [vmem:[%s1 + $0xb98] sm:$0xff]
  %v405 = vld [vmem:[%s1 + $0xba0] sm:$0xff]
  %v406 = vld [vmem:[%s1 + $0xba8] sm:$0xff]
  %v407 = vld [vmem:[%s1 + $0xbb0] sm:$0xff]
  %v408 = vld [vmem:[%s1 + $0xbb8] sm:$0xff]
  %v409 = vld [vmem:[%s1 + $0xbc0] sm:$0xff]
  %v410 = vld [vmem:[%s1 + $0xbc8] sm:$0xff]
  %v411 = vld [vmem:[%s1 + $0xbd0] sm:$0xff]
  %v412 = vld [vmem:[%s1 + $0xbd8] sm:$0xff]
  %v413 = vld [vmem:[%s1 + $0xbe0] sm:$0xff]
  %v414 = vld [vmem:[%s1 + $0xbe8] sm:$0xff]
  %v415 = vld [vmem:[%s1 + $0xbf0] sm:$0xff]
  %v416 = vld [vmem:[%s1 + $0xbf8] sm:$0xff]
  %v417 = vld [vmem:[%s1 + $0xc00] sm:$0xff]
  %v418 = vld [vmem:[%s1 + $0xc08] sm:$0xff]
  %v419 = vld [vmem:[%s1 + $0xc10] sm:$0xff]
  %v420 = vld [vmem:[%s1 + $0xc18] sm:$0xff]
  %v421 = vld [vmem:[%s1 + $0xc20] sm:$0xff]
  %v422 = vld [vmem:[%s1 + $0xc28] sm:$0xff]
  %v423 = vld [vmem:[%s1 + $0xc30] sm:$0xff]
  %v424 = vld [vmem:[%s1 + $0xc38] sm:$0xff]
  %v425 = vld [vmem:[%s1 + $0xc40] sm:$0xff]
  %v426 = vld [vmem:[%s1 + $0xc48] sm:$0xff]
  %v427 = vld [vmem:[%s1 + $0xc50] sm:$0xff]
  %v428 = vld [vmem:[%s1 + $0xc58] sm:$0xff]
  %v429 = vld [vmem:[%s1 + $0xc60] sm:$0xff]
  %v430 = vld [vmem:[%s1 + $0xc68] sm:$0xff]
  %v431 = vld [vmem:[%s1 + $0xc70] sm:$0xff]
  %v432 = vld [vmem:[%s1 + $0xc78] sm:$0xff]
  %v433 = vld [vmem:[%s1 + $0xc80] sm:$0xff]
  %v434 = vld [vmem:[%s1 + $0xc88] sm:$0xff]
  %v435 = vld [vmem:[%s1 + $0xc90] sm:$0xff]
  %v436 = vld [vmem:[%s1 + $0xc98] sm:$0xff]
  %v437 = vld [vmem:[%s1 + $0xca0] sm:$0xff]
  %v438 = vld [vmem:[%s1 + $0xca8] sm:$0xff]
  %v439 = vld [vmem:[%s1 + $0xcb0] sm:$0xff]
  %v440 = vld [vmem:[%s1 + $0xcb8] sm:$0xff]
  %v441 = vld [vmem:[%s1 + $0xcc0] sm:$0xff]
  %v442 = vld [vmem:[%s1 + $0xcc8] sm:$0xff]
  %v443 = vld [vmem:[%s1 + $0xcd0] sm:$0xff]
  %v444 = vld [vmem:[%s1 + $0xcd8] sm:$0xff]
  %v445 = vld [vmem:[%s1 + $0xce0] sm:$0xff]
  %v446 = vld [vmem:[%s1 + $0xce8] sm:$0xff]
  %v447 = vld [vmem:[%s1 + $0xcf0] sm:$0xff]
  %v448 = vld [vmem:[%s1 + $0xcf8] sm:$0xff]
  %v449 = vld [vmem:[%s1 + $0xd00] sm:$0xff]
  %v450 = vld [vmem:[%s1 + $0xd08] sm:$0xff]
  %v451 = vld [vmem:[%s1 + $0xd10] sm:$0xff]
  %v452 = vld [vmem:[%s1 + $0xd18] sm:$0xff]
  %v453 = vld [vmem:[%s1 + $0xd20] sm:$0xff]
  %v454 = vld [vmem:[%s1 + $0xd28] sm:$0xff]
  %v455 = vld [vmem:[%s1 + $0xd30] sm:$0xff]
  %v456 = vld [vmem:[%s1 + $0xd38] sm:$0xff]
  %v457 = vld [vmem:[%s1 + $0xd40] sm:$0xff]
  %v458 = vld [vmem:[%s1 + $0xd48] sm:$0xff]
  %v459 = vld [vmem:[%s1 + $0xd50] sm:$0xff]
  %v460 = vld [vmem:[%s1 + $0xd58] sm:$0xff]
  %v461 = vld [vmem:[%s1 + $0xd60] sm:$0xff]
  %v462 = vld [vmem:[%s1 + $0xd68] sm:$0xff]
  %v463 = vld [vmem:[%s1 + $0xd70] sm:$0xff]
  %v464 = vld [vmem:[%s1 + $0xd78] sm:$0xff]
  %v465 = vld [vmem:[%s1 + $0xd80] sm:$0xff]
  %v466 = vld [vmem:[%s1 + $0xd88] sm:$0xff]
  %v467 = vld [vmem:[%s1 + $0xd90] sm:$0xff]
  %v468 = vld [vmem:[%s1 + $0xd98] sm:$0xff]
  %v469 = vld [vmem:[%s1 + $0xda0] sm:$0xff]
  %v470 = vld [vmem:[%s1 + $0xda8] sm:$0xff]
  %v471 = vld [vmem:[%s1 + $0xdb0] sm:$0xff]
  %v472 = vld [vmem:[%s1 + $0xdb8] sm:$0xff]
  %v473 = vld [vmem:[%s1 + $0xdc0] sm:$0xff]
  %v474 = vld [vmem:[%s1 + $0xdc8] sm:$0xff]
  %v475 = vld [vmem:[%s1 + $0xdd0] sm:$0xff]
  %v476 = vld [vmem:[%s1 + $0xdd8] sm:$0xff]
  %v477 = vld [vmem:[%s1 + $0xde0] sm:$0xff]
  %v478 = vld [vmem:[%s1 + $0xde8] sm:$0xff]
  %v479 = vld [vmem:[%s1 + $0xdf0] sm:$0xff]
  %v480 = vld [vmem:[%s1 + $0xdf8] sm:$0xff]
  %v481 = vld [vmem:[%s1 + $0xe00] sm:$0xff]
  %v482 = vld [vmem:[%s1 + $0xe08] sm:$0xff]
  %v483 = vld [vmem:[%s1 + $0xe10] sm:$0xff]
  %v484 = vld [vmem:[%s1 + $0xe18] sm:$0xff]
  %v485 = vld [vmem:[%s1 + $0xe20] sm:$0xff]
  %v486 = vld [vmem:[%s1 + $0xe28] sm:$0xff]
  %v487 = vld [vmem:[%s1 + $0xe30] sm:$0xff]
  %v488 = vld [vmem:[%s1 + $0xe38] sm:$0xff]
  %v489 = vld [vmem:[%s1 + $0xe40] sm:$0xff]
  %v490 = vld [vmem:[%s1 + $0xe48] sm:$0xff]
  %v491 = vld [vmem:[%s1 + $0xe50] sm:$0xff]
  %v492 = vld [vmem:[%s1 + $0xe58] sm:$0xff]
  %v493 = vld [vmem:[%s1 + $0xe60] sm:$0xff]
  %v494 = vld [vmem:[%s1 + $0xe68] sm:$0xff]
  %v495 = vld [vmem:[%s1 + $0xe70] sm:$0xff]
  %v496 = vld [vmem:[%s1 + $0xe78] sm:$0xff]
  %v497 = vld [vmem:[%s1 + $0xe80] sm:$0xff]
  %v498 = vld [vmem:[%s1 + $0xe88] sm:$0xff]
  %v499 = vld [vmem:[%s1 + $0xe90] sm:$0xff]
  %v500 = vld [vmem:[%s1 + $0xe98] sm:$0xff]
  %v501 = vld [vmem:[%s1 + $0xea0] sm:$0xff]
  %v502 = vld [vmem:[%s1 + $0xea8] sm:$0xff]
  %v503 = vld [vmem:[%s1 + $0xeb0] sm:$0xff]
  %v504 = vld [vmem:[%s1 + $0xeb8] sm:$0xff]
  %v505 = vld [vmem:[%s1 + $0xec0] sm:$0xff]
  %v506 = vld [vmem:[%s1 + $0xec8] sm:$0xff]
  %v507 = vld [vmem:[%s1 + $0xed0] sm:$0xff]
  %v508 = vld [vmem:[%s1 + $0xed8] sm:$0xff]
  %v509 = vld [vmem:[%s1 + $0xee0] sm:$0xff]
  %v510 = vld [vmem:[%s1 + $0xee8] sm:$0xff]
  %v511 = vld [vmem:[%s1 + $0xef0] sm:$0xff]
  %v512 = vld [vmem:[%s1 + $0xef8] sm:$0xff]
  %v513 = vld [vmem:[%s1 + $0xf00] sm:$0xff]
  %v514 = vld [vmem:[%s1 + $0xf08] sm:$0xff]
  %v515 = vld [vmem:[%s1 + $0xf10] sm:$0xff]
  %v516 = vld [vmem:[%s1 + $0xf18] sm:$0xff]
  %v517 = vld [vmem:[%s1 + $0xf20] sm:$0xff]
  %v518 = vld [vmem:[%s1 + $0xf28] sm:$0xff]
  %v519 = vld [vmem:[%s1 + $0xf30] sm:$0xff]
  %v520 = vld [vmem:[%s1 + $0xf38] sm:$0xff]
  %v521 = vld [vmem:[%s1 + $0xf40] sm:$0xff]
  %v522 = vld [vmem:[%s1 + $0xf48] sm:$0xff]
  %v523 = vld [vmem:[%s1 + $0xf50] sm:$0xff]
  %v524 = vld [vmem:[%s1 + $0xf58] sm:$0xff]
  %v525 = vld [vmem:[%s1 + $0xf60] sm:$0xff]
  %v526 = vld [vmem:[%s1 + $0xf68] sm:$0xff]
  %v527 = vld [vmem:[%s1 + $0xf70] sm:$0xff]
  %v528 = vld [vmem:[%s1 + $0xf78] sm:$0xff]
  %v529 = vld [vmem:[%s1 + $0xf80] sm:$0xff]
  %v530 = vld [vmem:[%s1 + $0xf88] sm:$0xff]
  %v531 = vld [vmem:[%s1 + $0xf90] sm:$0xff]
  %v532 = vld [vmem:[%s1 + $0xf98] sm:$0xff]
  %v533 = vld [vmem:[%s1 + $0xfa0] sm:$0xff]
  %v534 = vld [vmem:[%s1 + $0xfa8] sm:$0xff]
  %v535 = vld [vmem:[%s1 + $0xfb0] sm:$0xff]
  %v536 = vld [vmem:[%s1 + $0xfb8] sm:$0xff]
  %v537 = vld [vmem:[%s1 + $0xfc0] sm:$0xff]
  %v538 = vld [vmem:[%s1 + $0xfc8] sm:$0xff]
  %v539 = vld [vmem:[%s1 + $0xfd0] sm:$0xff]
  %v540 = vld [vmem:[%s1 + $0xfd8] sm:$0xff]
  %v541 = vld [vmem:[%s1 + $0xfe0] sm:$0xff]
  %v542 = vld [vmem:[%s1 + $0xfe8] sm:$0xff]
  %v543 = vld [vmem:[%s1 + $0xff0] sm:$0xff]
  %v544 = vld [vmem:[%s1 + $0xff8] sm:$0xff]
  %v561 = vunpack.c.l.b16 %v17
  %v562 = vunpack.c.h.b16 %v17
  %v563 = vunpack.c.l.b16 %v18
  %v564 = vunpack.c.h.b16 %v18
  %v565 = vunpack.c.l.b16 %v19
  %v566 = vunpack.c.h.b16 %v19
  %v567 = vunpack.c.l.b16 %v20
  %v568 = vunpack.c.h.b16 %v20
  %v569 = vunpack.c.l.b16 %v21
  %v570 = vunpack.c.h.b16 %v21
  %v571 = vunpack.c.l.b16 %v22
  %v572 = vunpack.c.h.b16 %v22
  %v573 = vunpack.c.l.b16 %v23
  %v574 = vunpack.c.h.b16 %v23
  %v575 = vunpack.c.l.b16 %v24
  %v576 = vunpack.c.h.b16 %v24
  %v577 = vunpack.c.l.b16 %v25
  %v578 = vunpack.c.h.b16 %v25
  %v579 = vunpack.c.l.b16 %v26
  %v580 = vunpack.c.h.b16 %v26
  %v581 = vunpack.c.l.b16 %v27
  %v582 = vunpack.c.h.b16 %v27
  %v583 = vunpack.c.l.b16 %v28
  %v584 = vunpack.c.h.b16 %v28
  %v585 = vunpack.c.l.b16 %v29
  %v586 = vunpack.c.h.b16 %v29
  %v587 = vunpack.c.l.b16 %v30
  %v588 = vunpack.c.h.b16 %v30
  %v589 = vunpack.c.l.b16 %v31
  %v590 = vunpack.c.h.b16 %v31
  %v591 = vunpack.c.l.b16 %v32
  %v592 = vunpack.c.h.b16 %v32
  %v593 = vpack.c.b16 %v561, %v561
  %v594 = vpack.c.b16 %v562, %v562
  %v595 = vpack.c.b16 %v563, %v563
  %v596 = vpack.c.b16 %v564, %v564
  %v597 = vpack.c.b16 %v565, %v565
  %v598 = vpack.c.b16 %v566, %v566
  %v599 = vpack.c.b16 %v567, %v567
  %v600 = vpack.c.b16 %v568, %v568
  %v601 = vpack.c.b16 %v569, %v569
  %v602 = vpack.c.b16 %v570, %v570
  %v603 = vpack.c.b16 %v571, %v571
  %v604 = vpack.c.b16 %v572, %v572
  %v605 = vpack.c.b16 %v573, %v573
  %v606 = vpack.c.b16 %v574, %v574
  %v607 = vpack.c.b16 %v575, %v575
  %v608 = vpack.c.b16 %v576, %v576
  %v609 = vpack.c.b16 %v577, %v577
  %v610 = vpack.c.b16 %v578, %v578
  %v611 = vpack.c.b16 %v579, %v579
  %v612 = vpack.c.b16 %v580, %v580
  %v613 = vpack.c.b16 %v581, %v581
  %v614 = vpack.c.b16 %v582, %v582
  %v615 = vpack.c.b16 %v583, %v583
  %v616 = vpack.c.b16 %v584, %v584
  %v617 = vpack.c.b16 %v585, %v585
  %v618 = vpack.c.b16 %v586, %v586
  %v619 = vpack.c.b16 %v587, %v587
  %v620 = vpack.c.b16 %v588, %v588
  %v621 = vpack.c.b16 %v589, %v589
  %v622 = vpack.c.b16 %v590, %v590
  %v623 = vpack.c.b16 %v591, %v591
  %v624 = vpack.c.b16 %v592, %v592
  %v1169 = vunpack.c.l.b16 %v33
  %v1170 = vunpack.c.h.b16 %v33
  %v1171 = vunpack.c.l.b16 %v34
  %v1172 = vunpack.c.h.b16 %v34
  %v1173 = vunpack.c.l.b16 %v35
  %v1174 = vunpack.c.h.b16 %v35
  %v1175 = vunpack.c.l.b16 %v36
  %v1176 = vunpack.c.h.b16 %v36
  %v1177 = vunpack.c.l.b16 %v37
  %v1178 = vunpack.c.h.b16 %v37
  %v1179 = vunpack.c.l.b16 %v38
  %v1180 = vunpack.c.h.b16 %v38
  %v1181 = vunpack.c.l.b16 %v39
  %v1182 = vunpack.c.h.b16 %v39
  %v1183 = vunpack.c.l.b16 %v40
  %v1184 = vunpack.c.h.b16 %v40
  %v1185 = vunpack.c.l.b16 %v41
  %v1186 = vunpack.c.h.b16 %v41
  %v1187 = vunpack.c.l.b16 %v42
  %v1188 = vunpack.c.h.b16 %v42
  %v1189 = vunpack.c.l.b16 %v43
  %v1190 = vunpack.c.h.b16 %v43
  %v1191 = vunpack.c.l.b16 %v44
  %v1192 = vunpack.c.h.b16 %v44
  %v1193 = vunpack.c.l.b16 %v45
  %v1194 = vunpack.c.h.b16 %v45
  %v1195 = vunpack.c.l.b16 %v46
  %v1196 = vunpack.c.h.b16 %v46
  %v1197 = vunpack.c.l.b16 %v47
  %v1198 = vunpack.c.h.b16 %v47
  %v1199 = vunpack.c.l.b16 %v48
  %v1200 = vunpack.c.h.b16 %v48
  %v1201 = vunpack.c.l.b16 %v49
  %v1202 = vunpack.c.h.b16 %v49
  %v1203 = vunpack.c.l.b16 %v50
  %v1204 = vunpack.c.h.b16 %v50
  %v1205 = vunpack.c.l.b16 %v51
  %v1206 = vunpack.c.h.b16 %v51
  %v1207 = vunpack.c.l.b16 %v52
  %v1208 = vunpack.c.h.b16 %v52
  %v1209 = vunpack.c.l.b16 %v53
  %v1210 = vunpack.c.h.b16 %v53
  %v1211 = vunpack.c.l.b16 %v54
  %v1212 = vunpack.c.h.b16 %v54
  %v1213 = vunpack.c.l.b16 %v55
  %v1214 = vunpack.c.h.b16 %v55
  %v1215 = vunpack.c.l.b16 %v56
  %v1216 = vunpack.c.h.b16 %v56
  %v1217 = vunpack.c.l.b16 %v57
  %v1218 = vunpack.c.h.b16 %v57
  %v1219 = vunpack.c.l.b16 %v58
  %v1220 = vunpack.c.h.b16 %v58
  %v1221 = vunpack.c.l.b16 %v59
  %v1222 = vunpack.c.h.b16 %v59
  %v1223 = vunpack.c.l.b16 %v60
  %v1224 = vunpack.c.h.b16 %v60
  %v1225 = vunpack.c.l.b16 %v61
  %v1226 = vunpack.c.h.b16 %v61
  %v1227 = vunpack.c.l.b16 %v62
  %v1228 = vunpack.c.h.b16 %v62
  %v1229 = vunpack.c.l.b16 %v63
  %v1230 = vunpack.c.h.b16 %v63
  %v1231 = vunpack.c.l.b16 %v64
  %v1232 = vunpack.c.h.b16 %v64
  %v1233 = vunpack.c.l.b16 %v65
  %v1234 = vunpack.c.h.b16 %v65
  %v1235 = vunpack.c.l.b16 %v66
  %v1236 = vunpack.c.h.b16 %v66
  %v1237 = vunpack.c.l.b16 %v67
  %v1238 = vunpack.c.h.b16 %v67
  %v1239 = vunpack.c.l.b16 %v68
  %v1240 = vunpack.c.h.b16 %v68
  %v1241 = vunpack.c.l.b16 %v69
  %v1242 = vunpack.c.h.b16 %v69
  %v1243 = vunpack.c.l.b16 %v70
  %v1244 = vunpack.c.h.b16 %v70
  %v1245 = vunpack.c.l.b16 %v71
  %v1246 = vunpack.c.h.b16 %v71
  %v1247 = vunpack.c.l.b16 %v72
  %v1248 = vunpack.c.h.b16 %v72
  %v1249 = vunpack.c.l.b16 %v73
  %v1250 = vunpack.c.h.b16 %v73
  %v1251 = vunpack.c.l.b16 %v74
  %v1252 = vunpack.c.h.b16 %v74
  %v1253 = vunpack.c.l.b16 %v75
  %v1254 = vunpack.c.h.b16 %v75
  %v1255 = vunpack.c.l.b16 %v76
  %v1256 = vunpack.c.h.b16 %v76
  %v1257 = vunpack.c.l.b16 %v77
  %v1258 = vunpack.c.h.b16 %v77
  %v1259 = vunpack.c.l.b16 %v78
  %v1260 = vunpack.c.h.b16 %v78
  %v1261 = vunpack.c.l.b16 %v79
  %v1262 = vunpack.c.h.b16 %v79
  %v1263 = vunpack.c.l.b16 %v80
  %v1264 = vunpack.c.h.b16 %v80
  %v1265 = vunpack.c.l.b16 %v81
  %v1266 = vunpack.c.h.b16 %v81
  %v1267 = vunpack.c.l.b16 %v82
  %v1268 = vunpack.c.h.b16 %v82
  %v1269 = vunpack.c.l.b16 %v83
  %v1270 = vunpack.c.h.b16 %v83
  %v1271 = vunpack.c.l.b16 %v84
  %v1272 = vunpack.c.h.b16 %v84
  %v1273 = vunpack.c.l.b16 %v85
  %v1274 = vunpack.c.h.b16 %v85
  %v1275 = vunpack.c.l.b16 %v86
  %v1276 = vunpack.c.h.b16 %v86
  %v1277 = vunpack.c.l.b16 %v87
  %v1278 = vunpack.c.h.b16 %v87
  %v1279 = vunpack.c.l.b16 %v88
  %v1280 = vunpack.c.h.b16 %v88
  %v1281 = vunpack.c.l.b16 %v89
  %v1282 = vunpack.c.h.b16 %v89
  %v1283 = vunpack.c.l.b16 %v90
  %v1284 = vunpack.c.h.b16 %v90
  %v1285 = vunpack.c.l.b16 %v91
  %v1286 = vunpack.c.h.b16 %v91
  %v1287 = vunpack.c.l.b16 %v92
  %v1288 = vunpack.c.h.b16 %v92
  %v1289 = vunpack.c.l.b16 %v93
  %v1290 = vunpack.c.h.b16 %v93
  %v1291 = vunpack.c.l.b16 %v94
  %v1292 = vunpack.c.h.b16 %v94
  %v1293 = vunpack.c.l.b16 %v95
  %v1294 = vunpack.c.h.b16 %v95
  %v1295 = vunpack.c.l.b16 %v96
  %v1296 = vunpack.c.h.b16 %v96
  %v1297 = vunpack.c.l.b16 %v97
  %v1298 = vunpack.c.h.b16 %v97
  %v1299 = vunpack.c.l.b16 %v98
  %v1300 = vunpack.c.h.b16 %v98
  %v1301 = vunpack.c.l.b16 %v99
  %v1302 = vunpack.c.h.b16 %v99
  %v1303 = vunpack.c.l.b16 %v100
  %v1304 = vunpack.c.h.b16 %v100
  %v1305 = vunpack.c.l.b16 %v101
  %v1306 = vunpack.c.h.b16 %v101
  %v1307 = vunpack.c.l.b16 %v102
  %v1308 = vunpack.c.h.b16 %v102
  %v1309 = vunpack.c.l.b16 %v103
  %v1310 = vunpack.c.h.b16 %v103
  %v1311 = vunpack.c.l.b16 %v104
  %v1312 = vunpack.c.h.b16 %v104
  %v1313 = vunpack.c.l.b16 %v105
  %v1314 = vunpack.c.h.b16 %v105
  %v1315 = vunpack.c.l.b16 %v106
  %v1316 = vunpack.c.h.b16 %v106
  %v1317 = vunpack.c.l.b16 %v107
  %v1318 = vunpack.c.h.b16 %v107
  %v1319 = vunpack.c.l.b16 %v108
  %v1320 = vunpack.c.h.b16 %v108
  %v1321 = vunpack.c.l.b16 %v109
  %v1322 = vunpack.c.h.b16 %v109
  %v1323 = vunpack.c.l.b16 %v110
  %v1324 = vunpack.c.h.b16 %v110
  %v1325 = vunpack.c.l.b16 %v111
  %v1326 = vunpack.c.h.b16 %v111
  %v1327 = vunpack.c.l.b16 %v112
  %v1328 = vunpack.c.h.b16 %v112
  %v1329 = vunpack.c.l.b16 %v113
  %v1330 = vunpack.c.h.b16 %v113
  %v1331 = vunpack.c.l.b16 %v114
  %v1332 = vunpack.c.h.b16 %v114
  %v1333 = vunpack.c.l.b16 %v115
  %v1334 = vunpack.c.h.b16 %v115
  %v1335 = vunpack.c.l.b16 %v116
  %v1336 = vunpack.c.h.b16 %v116
  %v1337 = vunpack.c.l.b16 %v117
  %v1338 = vunpack.c.h.b16 %v117
  %v1339 = vunpack.c.l.b16 %v118
  %v1340 = vunpack.c.h.b16 %v118
  %v1341 = vunpack.c.l.b16 %v119
  %v1342 = vunpack.c.h.b16 %v119
  %v1343 = vunpack.c.l.b16 %v120
  %v1344 = vunpack.c.h.b16 %v120
  %v1345 = vunpack.c.l.b16 %v121
  %v1346 = vunpack.c.h.b16 %v121
  %v1347 = vunpack.c.l.b16 %v122
  %v1348 = vunpack.c.h.b16 %v122
  %v1349 = vunpack.c.l.b16 %v123
  %v1350 = vunpack.c.h.b16 %v123
  %v1351 = vunpack.c.l.b16 %v124
  %v1352 = vunpack.c.h.b16 %v124
  %v1353 = vunpack.c.l.b16 %v125
  %v1354 = vunpack.c.h.b16 %v125
  %v1355 = vunpack.c.l.b16 %v126
  %v1356 = vunpack.c.h.b16 %v126
  %v1357 = vunpack.c.l.b16 %v127
  %v1358 = vunpack.c.h.b16 %v127
  %v1359 = vunpack.c.l.b16 %v128
  %v1360 = vunpack.c.h.b16 %v128
  %v1361 = vunpack.c.l.b16 %v129
  %v1362 = vunpack.c.h.b16 %v129
  %v1363 = vunpack.c.l.b16 %v130
  %v1364 = vunpack.c.h.b16 %v130
  %v1365 = vunpack.c.l.b16 %v131
  %v1366 = vunpack.c.h.b16 %v131
  %v1367 = vunpack.c.l.b16 %v132
  %v1368 = vunpack.c.h.b16 %v132
  %v1369 = vunpack.c.l.b16 %v133
  %v1370 = vunpack.c.h.b16 %v133
  %v1371 = vunpack.c.l.b16 %v134
  %v1372 = vunpack.c.h.b16 %v134
  %v1373 = vunpack.c.l.b16 %v135
  %v1374 = vunpack.c.h.b16 %v135
  %v1375 = vunpack.c.l.b16 %v136
  %v1376 = vunpack.c.h.b16 %v136
  %v1377 = vunpack.c.l.b16 %v137
  %v1378 = vunpack.c.h.b16 %v137
  %v1379 = vunpack.c.l.b16 %v138
  %v1380 = vunpack.c.h.b16 %v138
  %v1381 = vunpack.c.l.b16 %v139
  %v1382 = vunpack.c.h.b16 %v139
  %v1383 = vunpack.c.l.b16 %v140
  %v1384 = vunpack.c.h.b16 %v140
  %v1385 = vunpack.c.l.b16 %v141
  %v1386 = vunpack.c.h.b16 %v141
  %v1387 = vunpack.c.l.b16 %v142
  %v1388 = vunpack.c.h.b16 %v142
  %v1389 = vunpack.c.l.b16 %v143
  %v1390 = vunpack.c.h.b16 %v143
  %v1391 = vunpack.c.l.b16 %v144
  %v1392 = vunpack.c.h.b16 %v144
  %v1393 = vunpack.c.l.b16 %v145
  %v1394 = vunpack.c.h.b16 %v145
  %v1395 = vunpack.c.l.b16 %v146
  %v1396 = vunpack.c.h.b16 %v146
  %v1397 = vunpack.c.l.b16 %v147
  %v1398 = vunpack.c.h.b16 %v147
  %v1399 = vunpack.c.l.b16 %v148
  %v1400 = vunpack.c.h.b16 %v148
  %v1401 = vunpack.c.l.b16 %v149
  %v1402 = vunpack.c.h.b16 %v149
  %v1403 = vunpack.c.l.b16 %v150
  %v1404 = vunpack.c.h.b16 %v150
  %v1405 = vunpack.c.l.b16 %v151
  %v1406 = vunpack.c.h.b16 %v151
  %v1407 = vunpack.c.l.b16 %v152
  %v1408 = vunpack.c.h.b16 %v152
  %v1409 = vunpack.c.l.b16 %v153
  %v1410 = vunpack.c.h.b16 %v153
  %v1411 = vunpack.c.l.b16 %v154
  %v1412 = vunpack.c.h.b16 %v154
  %v1413 = vunpack.c.l.b16 %v155
  %v1414 = vunpack.c.h.b16 %v155
  %v1415 = vunpack.c.l.b16 %v156
  %v1416 = vunpack.c.h.b16 %v156
  %v1417 = vunpack.c.l.b16 %v157
  %v1418 = vunpack.c.h.b16 %v157
  %v1419 = vunpack.c.l.b16 %v158
  %v1420 = vunpack.c.h.b16 %v158
  %v1421 = vunpack.c.l.b16 %v159
  %v1422 = vunpack.c.h.b16 %v159
  %v1423 = vunpack.c.l.b16 %v160
  %v1424 = vunpack.c.h.b16 %v160
  %v1425 = vunpack.c.l.b16 %v161
  %v1426 = vunpack.c.h.b16 %v161
  %v1427 = vunpack.c.l.b16 %v162
  %v1428 = vunpack.c.h.b16 %v162
  %v1429 = vunpack.c.l.b16 %v163
  %v1430 = vunpack.c.h.b16 %v163
  %v1431 = vunpack.c.l.b16 %v164
  %v1432 = vunpack.c.h.b16 %v164
  %v1433 = vunpack.c.l.b16 %v165
  %v1434 = vunpack.c.h.b16 %v165
  %v1435 = vunpack.c.l.b16 %v166
  %v1436 = vunpack.c.h.b16 %v166
  %v1437 = vunpack.c.l.b16 %v167
  %v1438 = vunpack.c.h.b16 %v167
  %v1439 = vunpack.c.l.b16 %v168
  %v1440 = vunpack.c.h.b16 %v168
  %v1441 = vunpack.c.l.b16 %v169
  %v1442 = vunpack.c.h.b16 %v169
  %v1443 = vunpack.c.l.b16 %v170
  %v1444 = vunpack.c.h.b16 %v170
  %v1445 = vunpack.c.l.b16 %v171
  %v1446 = vunpack.c.h.b16 %v171
  %v1447 = vunpack.c.l.b16 %v172
  %v1448 = vunpack.c.h.b16 %v172
  %v1449 = vunpack.c.l.b16 %v173
  %v1450 = vunpack.c.h.b16 %v173
  %v1451 = vunpack.c.l.b16 %v174
  %v1452 = vunpack.c.h.b16 %v174
  %v1453 = vunpack.c.l.b16 %v175
  %v1454 = vunpack.c.h.b16 %v175
  %v1455 = vunpack.c.l.b16 %v176
  %v1456 = vunpack.c.h.b16 %v176
  %v1457 = vunpack.c.l.b16 %v177
  %v1458 = vunpack.c.h.b16 %v177
  %v1459 = vunpack.c.l.b16 %v178
  %v1460 = vunpack.c.h.b16 %v178
  %v1461 = vunpack.c.l.b16 %v179
  %v1462 = vunpack.c.h.b16 %v179
  %v1463 = vunpack.c.l.b16 %v180
  %v1464 = vunpack.c.h.b16 %v180
  %v1465 = vunpack.c.l.b16 %v181
  %v1466 = vunpack.c.h.b16 %v181
  %v1467 = vunpack.c.l.b16 %v182
  %v1468 = vunpack.c.h.b16 %v182
  %v1469 = vunpack.c.l.b16 %v183
  %v1470 = vunpack.c.h.b16 %v183
  %v1471 = vunpack.c.l.b16 %v184
  %v1472 = vunpack.c.h.b16 %v184
  %v1473 = vunpack.c.l.b16 %v185
  %v1474 = vunpack.c.h.b16 %v185
  %v1475 = vunpack.c.l.b16 %v186
  %v1476 = vunpack.c.h.b16 %v186
  %v1477 = vunpack.c.l.b16 %v187
  %v1478 = vunpack.c.h.b16 %v187
  %v1479 = vunpack.c.l.b16 %v188
  %v1480 = vunpack.c.h.b16 %v188
  %v1481 = vunpack.c.l.b16 %v189
  %v1482 = vunpack.c.h.b16 %v189
  %v1483 = vunpack.c.l.b16 %v190
  %v1484 = vunpack.c.h.b16 %v190
  %v1485 = vunpack.c.l.b16 %v191
  %v1486 = vunpack.c.h.b16 %v191
  %v1487 = vunpack.c.l.b16 %v192
  %v1488 = vunpack.c.h.b16 %v192
  %v1489 = vunpack.c.l.b16 %v193
  %v1490 = vunpack.c.h.b16 %v193
  %v1491 = vunpack.c.l.b16 %v194
  %v1492 = vunpack.c.h.b16 %v194
  %v1493 = vunpack.c.l.b16 %v195
  %v1494 = vunpack.c.h.b16 %v195
  %v1495 = vunpack.c.l.b16 %v196
  %v1496 = vunpack.c.h.b16 %v196
  %v1497 = vunpack.c.l.b16 %v197
  %v1498 = vunpack.c.h.b16 %v197
  %v1499 = vunpack.c.l.b16 %v198
  %v1500 = vunpack.c.h.b16 %v198
  %v1501 = vunpack.c.l.b16 %v199
  %v1502 = vunpack.c.h.b16 %v199
  %v1503 = vunpack.c.l.b16 %v200
  %v1504 = vunpack.c.h.b16 %v200
  %v1505 = vunpack.c.l.b16 %v201
  %v1506 = vunpack.c.h.b16 %v201
  %v1507 = vunpack.c.l.b16 %v202
  %v1508 = vunpack.c.h.b16 %v202
  %v1509 = vunpack.c.l.b16 %v203
  %v1510 = vunpack.c.h.b16 %v203
  %v1511 = vunpack.c.l.b16 %v204
  %v1512 = vunpack.c.h.b16 %v204
  %v1513 = vunpack.c.l.b16 %v205
  %v1514 = vunpack.c.h.b16 %v205
  %v1515 = vunpack.c.l.b16 %v206
  %v1516 = vunpack.c.h.b16 %v206
  %v1517 = vunpack.c.l.b16 %v207
  %v1518 = vunpack.c.h.b16 %v207
  %v1519 = vunpack.c.l.b16 %v208
  %v1520 = vunpack.c.h.b16 %v208
  %v1521 = vunpack.c.l.b16 %v209
  %v1522 = vunpack.c.h.b16 %v209
  %v1523 = vunpack.c.l.b16 %v210
  %v1524 = vunpack.c.h.b16 %v210
  %v1525 = vunpack.c.l.b16 %v211
  %v1526 = vunpack.c.h.b16 %v211
  %v1527 = vunpack.c.l.b16 %v212
  %v1528 = vunpack.c.h.b16 %v212
  %v1529 = vunpack.c.l.b16 %v213
  %v1530 = vunpack.c.h.b16 %v213
  %v1531 = vunpack.c.l.b16 %v214
  %v1532 = vunpack.c.h.b16 %v214
  %v1533 = vunpack.c.l.b16 %v215
  %v1534 = vunpack.c.h.b16 %v215
  %v1535 = vunpack.c.l.b16 %v216
  %v1536 = vunpack.c.h.b16 %v216
  %v1537 = vunpack.c.l.b16 %v217
  %v1538 = vunpack.c.h.b16 %v217
  %v1539 = vunpack.c.l.b16 %v218
  %v1540 = vunpack.c.h.b16 %v218
  %v1541 = vunpack.c.l.b16 %v219
  %v1542 = vunpack.c.h.b16 %v219
  %v1543 = vunpack.c.l.b16 %v220
  %v1544 = vunpack.c.h.b16 %v220
  %v1545 = vunpack.c.l.b16 %v221
  %v1546 = vunpack.c.h.b16 %v221
  %v1547 = vunpack.c.l.b16 %v222
  %v1548 = vunpack.c.h.b16 %v222
  %v1549 = vunpack.c.l.b16 %v223
  %v1550 = vunpack.c.h.b16 %v223
  %v1551 = vunpack.c.l.b16 %v224
  %v1552 = vunpack.c.h.b16 %v224
  %v1553 = vunpack.c.l.b16 %v225
  %v1554 = vunpack.c.h.b16 %v225
  %v1555 = vunpack.c.l.b16 %v226
  %v1556 = vunpack.c.h.b16 %v226
  %v1557 = vunpack.c.l.b16 %v227
  %v1558 = vunpack.c.h.b16 %v227
  %v1559 = vunpack.c.l.b16 %v228
  %v1560 = vunpack.c.h.b16 %v228
  %v1561 = vunpack.c.l.b16 %v229
  %v1562 = vunpack.c.h.b16 %v229
  %v1563 = vunpack.c.l.b16 %v230
  %v1564 = vunpack.c.h.b16 %v230
  %v1565 = vunpack.c.l.b16 %v231
  %v1566 = vunpack.c.h.b16 %v231
  %v1567 = vunpack.c.l.b16 %v232
  %v1568 = vunpack.c.h.b16 %v232
  %v1569 = vunpack.c.l.b16 %v233
  %v1570 = vunpack.c.h.b16 %v233
  %v1571 = vunpack.c.l.b16 %v234
  %v1572 = vunpack.c.h.b16 %v234
  %v1573 = vunpack.c.l.b16 %v235
  %v1574 = vunpack.c.h.b16 %v235
  %v1575 = vunpack.c.l.b16 %v236
  %v1576 = vunpack.c.h.b16 %v236
  %v1577 = vunpack.c.l.b16 %v237
  %v1578 = vunpack.c.h.b16 %v237
  %v1579 = vunpack.c.l.b16 %v238
  %v1580 = vunpack.c.h.b16 %v238
  %v1581 = vunpack.c.l.b16 %v239
  %v1582 = vunpack.c.h.b16 %v239
  %v1583 = vunpack.c.l.b16 %v240
  %v1584 = vunpack.c.h.b16 %v240
  %v1585 = vunpack.c.l.b16 %v241
  %v1586 = vunpack.c.h.b16 %v241
  %v1587 = vunpack.c.l.b16 %v242
  %v1588 = vunpack.c.h.b16 %v242
  %v1589 = vunpack.c.l.b16 %v243
  %v1590 = vunpack.c.h.b16 %v243
  %v1591 = vunpack.c.l.b16 %v244
  %v1592 = vunpack.c.h.b16 %v244
  %v1593 = vunpack.c.l.b16 %v245
  %v1594 = vunpack.c.h.b16 %v245
  %v1595 = vunpack.c.l.b16 %v246
  %v1596 = vunpack.c.h.b16 %v246
  %v1597 = vunpack.c.l.b16 %v247
  %v1598 = vunpack.c.h.b16 %v247
  %v1599 = vunpack.c.l.b16 %v248
  %v1600 = vunpack.c.h.b16 %v248
  %v1601 = vunpack.c.l.b16 %v249
  %v1602 = vunpack.c.h.b16 %v249
  %v1603 = vunpack.c.l.b16 %v250
  %v1604 = vunpack.c.h.b16 %v250
  %v1605 = vunpack.c.l.b16 %v251
  %v1606 = vunpack.c.h.b16 %v251
  %v1607 = vunpack.c.l.b16 %v252
  %v1608 = vunpack.c.h.b16 %v252
  %v1609 = vunpack.c.l.b16 %v253
  %v1610 = vunpack.c.h.b16 %v253
  %v1611 = vunpack.c.l.b16 %v254
  %v1612 = vunpack.c.h.b16 %v254
  %v1613 = vunpack.c.l.b16 %v255
  %v1614 = vunpack.c.h.b16 %v255
  %v1615 = vunpack.c.l.b16 %v256
  %v1616 = vunpack.c.h.b16 %v256
  %v1617 = vunpack.c.l.b16 %v257
  %v1618 = vunpack.c.h.b16 %v257
  %v1619 = vunpack.c.l.b16 %v258
  %v1620 = vunpack.c.h.b16 %v258
  %v1621 = vunpack.c.l.b16 %v259
  %v1622 = vunpack.c.h.b16 %v259
  %v1623 = vunpack.c.l.b16 %v260
  %v1624 = vunpack.c.h.b16 %v260
  %v1625 = vunpack.c.l.b16 %v261
  %v1626 = vunpack.c.h.b16 %v261
  %v1627 = vunpack.c.l.b16 %v262
  %v1628 = vunpack.c.h.b16 %v262
  %v1629 = vunpack.c.l.b16 %v263
  %v1630 = vunpack.c.h.b16 %v263
  %v1631 = vunpack.c.l.b16 %v264
  %v1632 = vunpack.c.h.b16 %v264
  %v1633 = vunpack.c.l.b16 %v265
  %v1634 = vunpack.c.h.b16 %v265
  %v1635 = vunpack.c.l.b16 %v266
  %v1636 = vunpack.c.h.b16 %v266
  %v1637 = vunpack.c.l.b16 %v267
  %v1638 = vunpack.c.h.b16 %v267
  %v1639 = vunpack.c.l.b16 %v268
  %v1640 = vunpack.c.h.b16 %v268
  %v1641 = vunpack.c.l.b16 %v269
  %v1642 = vunpack.c.h.b16 %v269
  %v1643 = vunpack.c.l.b16 %v270
  %v1644 = vunpack.c.h.b16 %v270
  %v1645 = vunpack.c.l.b16 %v271
  %v1646 = vunpack.c.h.b16 %v271
  %v1647 = vunpack.c.l.b16 %v272
  %v1648 = vunpack.c.h.b16 %v272
  %v1649 = vunpack.c.l.b16 %v273
  %v1650 = vunpack.c.h.b16 %v273
  %v1651 = vunpack.c.l.b16 %v274
  %v1652 = vunpack.c.h.b16 %v274
  %v1653 = vunpack.c.l.b16 %v275
  %v1654 = vunpack.c.h.b16 %v275
  %v1655 = vunpack.c.l.b16 %v276
  %v1656 = vunpack.c.h.b16 %v276
  %v1657 = vunpack.c.l.b16 %v277
  %v1658 = vunpack.c.h.b16 %v277
  %v1659 = vunpack.c.l.b16 %v278
  %v1660 = vunpack.c.h.b16 %v278
  %v1661 = vunpack.c.l.b16 %v279
  %v1662 = vunpack.c.h.b16 %v279
  %v1663 = vunpack.c.l.b16 %v280
  %v1664 = vunpack.c.h.b16 %v280
  %v1665 = vunpack.c.l.b16 %v281
  %v1666 = vunpack.c.h.b16 %v281
  %v1667 = vunpack.c.l.b16 %v282
  %v1668 = vunpack.c.h.b16 %v282
  %v1669 = vunpack.c.l.b16 %v283
  %v1670 = vunpack.c.h.b16 %v283
  %v1671 = vunpack.c.l.b16 %v284
  %v1672 = vunpack.c.h.b16 %v284
  %v1673 = vunpack.c.l.b16 %v285
  %v1674 = vunpack.c.h.b16 %v285
  %v1675 = vunpack.c.l.b16 %v286
  %v1676 = vunpack.c.h.b16 %v286
  %v1677 = vunpack.c.l.b16 %v287
  %v1678 = vunpack.c.h.b16 %v287
  %v1679 = vunpack.c.l.b16 %v288
  %v1680 = vunpack.c.h.b16 %v288
  %v1681 = vunpack.c.l.b16 %v289
  %v1682 = vunpack.c.h.b16 %v289
  %v1683 = vunpack.c.l.b16 %v290
  %v1684 = vunpack.c.h.b16 %v290
  %v1685 = vunpack.c.l.b16 %v291
  %v1686 = vunpack.c.h.b16 %v291
  %v1687 = vunpack.c.l.b16 %v292
  %v1688 = vunpack.c.h.b16 %v292
  %v1689 = vunpack.c.l.b16 %v293
  %v1690 = vunpack.c.h.b16 %v293
  %v1691 = vunpack.c.l.b16 %v294
  %v1692 = vunpack.c.h.b16 %v294
  %v1693 = vunpack.c.l.b16 %v295
  %v1694 = vunpack.c.h.b16 %v295
  %v1695 = vunpack.c.l.b16 %v296
  %v1696 = vunpack.c.h.b16 %v296
  %v1697 = vunpack.c.l.b16 %v297
  %v1698 = vunpack.c.h.b16 %v297
  %v1699 = vunpack.c.l.b16 %v298
  %v1700 = vunpack.c.h.b16 %v298
  %v1701 = vunpack.c.l.b16 %v299
  %v1702 = vunpack.c.h.b16 %v299
  %v1703 = vunpack.c.l.b16 %v300
  %v1704 = vunpack.c.h.b16 %v300
  %v1705 = vunpack.c.l.b16 %v301
  %v1706 = vunpack.c.h.b16 %v301
  %v1707 = vunpack.c.l.b16 %v302
  %v1708 = vunpack.c.h.b16 %v302
  %v1709 = vunpack.c.l.b16 %v303
  %v1710 = vunpack.c.h.b16 %v303
  %v1711 = vunpack.c.l.b16 %v304
  %v1712 = vunpack.c.h.b16 %v304
  %v1713 = vunpack.c.l.b16 %v305
  %v1714 = vunpack.c.h.b16 %v305
  %v1715 = vunpack.c.l.b16 %v306
  %v1716 = vunpack.c.h.b16 %v306
  %v1717 = vunpack.c.l.b16 %v307
  %v1718 = vunpack.c.h.b16 %v307
  %v1719 = vunpack.c.l.b16 %v308
  %v1720 = vunpack.c.h.b16 %v308
  %v1721 = vunpack.c.l.b16 %v309
  %v1722 = vunpack.c.h.b16 %v309
  %v1723 = vunpack.c.l.b16 %v310
  %v1724 = vunpack.c.h.b16 %v310
  %v1725 = vunpack.c.l.b16 %v311
  %v1726 = vunpack.c.h.b16 %v311
  %v1727 = vunpack.c.l.b16 %v312
  %v1728 = vunpack.c.h.b16 %v312
  %v1729 = vunpack.c.l.b16 %v313
  %v1730 = vunpack.c.h.b16 %v313
  %v1731 = vunpack.c.l.b16 %v314
  %v1732 = vunpack.c.h.b16 %v314
  %v1733 = vunpack.c.l.b16 %v315
  %v1734 = vunpack.c.h.b16 %v315
  %v1735 = vunpack.c.l.b16 %v316
  %v1736 = vunpack.c.h.b16 %v316
  %v1737 = vunpack.c.l.b16 %v317
  %v1738 = vunpack.c.h.b16 %v317
  %v1739 = vunpack.c.l.b16 %v318
  %v1740 = vunpack.c.h.b16 %v318
  %v1741 = vunpack.c.l.b16 %v319
  %v1742 = vunpack.c.h.b16 %v319
  %v1743 = vunpack.c.l.b16 %v320
  %v1744 = vunpack.c.h.b16 %v320
  %v1745 = vunpack.c.l.b16 %v321
  %v1746 = vunpack.c.h.b16 %v321
  %v1747 = vunpack.c.l.b16 %v322
  %v1748 = vunpack.c.h.b16 %v322
  %v1749 = vunpack.c.l.b16 %v323
  %v1750 = vunpack.c.h.b16 %v323
  %v1751 = vunpack.c.l.b16 %v324
  %v1752 = vunpack.c.h.b16 %v324
  %v1753 = vunpack.c.l.b16 %v325
  %v1754 = vunpack.c.h.b16 %v325
  %v1755 = vunpack.c.l.b16 %v326
  %v1756 = vunpack.c.h.b16 %v326
  %v1757 = vunpack.c.l.b16 %v327
  %v1758 = vunpack.c.h.b16 %v327
  %v1759 = vunpack.c.l.b16 %v328
  %v1760 = vunpack.c.h.b16 %v328
  %v1761 = vunpack.c.l.b16 %v329
  %v1762 = vunpack.c.h.b16 %v329
  %v1763 = vunpack.c.l.b16 %v330
  %v1764 = vunpack.c.h.b16 %v330
  %v1765 = vunpack.c.l.b16 %v331
  %v1766 = vunpack.c.h.b16 %v331
  %v1767 = vunpack.c.l.b16 %v332
  %v1768 = vunpack.c.h.b16 %v332
  %v1769 = vunpack.c.l.b16 %v333
  %v1770 = vunpack.c.h.b16 %v333
  %v1771 = vunpack.c.l.b16 %v334
  %v1772 = vunpack.c.h.b16 %v334
  %v1773 = vunpack.c.l.b16 %v335
  %v1774 = vunpack.c.h.b16 %v335
  %v1775 = vunpack.c.l.b16 %v336
  %v1776 = vunpack.c.h.b16 %v336
  %v1777 = vunpack.c.l.b16 %v337
  %v1778 = vunpack.c.h.b16 %v337
  %v1779 = vunpack.c.l.b16 %v338
  %v1780 = vunpack.c.h.b16 %v338
  %v1781 = vunpack.c.l.b16 %v339
  %v1782 = vunpack.c.h.b16 %v339
  %v1783 = vunpack.c.l.b16 %v340
  %v1784 = vunpack.c.h.b16 %v340
  %v1785 = vunpack.c.l.b16 %v341
  %v1786 = vunpack.c.h.b16 %v341
  %v1787 = vunpack.c.l.b16 %v342
  %v1788 = vunpack.c.h.b16 %v342
  %v1789 = vunpack.c.l.b16 %v343
  %v1790 = vunpack.c.h.b16 %v343
  %v1791 = vunpack.c.l.b16 %v344
  %v1792 = vunpack.c.h.b16 %v344
  %v1793 = vunpack.c.l.b16 %v345
  %v1794 = vunpack.c.h.b16 %v345
  %v1795 = vunpack.c.l.b16 %v346
  %v1796 = vunpack.c.h.b16 %v346
  %v1797 = vunpack.c.l.b16 %v347
  %v1798 = vunpack.c.h.b16 %v347
  %v1799 = vunpack.c.l.b16 %v348
  %v1800 = vunpack.c.h.b16 %v348
  %v1801 = vunpack.c.l.b16 %v349
  %v1802 = vunpack.c.h.b16 %v349
  %v1803 = vunpack.c.l.b16 %v350
  %v1804 = vunpack.c.h.b16 %v350
  %v1805 = vunpack.c.l.b16 %v351
  %v1806 = vunpack.c.h.b16 %v351
  %v1807 = vunpack.c.l.b16 %v352
  %v1808 = vunpack.c.h.b16 %v352
  %v1809 = vunpack.c.l.b16 %v353
  %v1810 = vunpack.c.h.b16 %v353
  %v1811 = vunpack.c.l.b16 %v354
  %v1812 = vunpack.c.h.b16 %v354
  %v1813 = vunpack.c.l.b16 %v355
  %v1814 = vunpack.c.h.b16 %v355
  %v1815 = vunpack.c.l.b16 %v356
  %v1816 = vunpack.c.h.b16 %v356
  %v1817 = vunpack.c.l.b16 %v357
  %v1818 = vunpack.c.h.b16 %v357
  %v1819 = vunpack.c.l.b16 %v358
  %v1820 = vunpack.c.h.b16 %v358
  %v1821 = vunpack.c.l.b16 %v359
  %v1822 = vunpack.c.h.b16 %v359
  %v1823 = vunpack.c.l.b16 %v360
  %v1824 = vunpack.c.h.b16 %v360
  %v1825 = vunpack.c.l.b16 %v361
  %v1826 = vunpack.c.h.b16 %v361
  %v1827 = vunpack.c.l.b16 %v362
  %v1828 = vunpack.c.h.b16 %v362
  %v1829 = vunpack.c.l.b16 %v363
  %v1830 = vunpack.c.h.b16 %v363
  %v1831 = vunpack.c.l.b16 %v364
  %v1832 = vunpack.c.h.b16 %v364
  %v1833 = vunpack.c.l.b16 %v365
  %v1834 = vunpack.c.h.b16 %v365
  %v1835 = vunpack.c.l.b16 %v366
  %v1836 = vunpack.c.h.b16 %v366
  %v1837 = vunpack.c.l.b16 %v367
  %v1838 = vunpack.c.h.b16 %v367
  %v1839 = vunpack.c.l.b16 %v368
  %v1840 = vunpack.c.h.b16 %v368
  %v1841 = vunpack.c.l.b16 %v369
  %v1842 = vunpack.c.h.b16 %v369
  %v1843 = vunpack.c.l.b16 %v370
  %v1844 = vunpack.c.h.b16 %v370
  %v1845 = vunpack.c.l.b16 %v371
  %v1846 = vunpack.c.h.b16 %v371
  %v1847 = vunpack.c.l.b16 %v372
  %v1848 = vunpack.c.h.b16 %v372
  %v1849 = vunpack.c.l.b16 %v373
  %v1850 = vunpack.c.h.b16 %v373
  %v1851 = vunpack.c.l.b16 %v374
  %v1852 = vunpack.c.h.b16 %v374
  %v1853 = vunpack.c.l.b16 %v375
  %v1854 = vunpack.c.h.b16 %v375
  %v1855 = vunpack.c.l.b16 %v376
  %v1856 = vunpack.c.h.b16 %v376
  %v1857 = vunpack.c.l.b16 %v377
  %v1858 = vunpack.c.h.b16 %v377
  %v1859 = vunpack.c.l.b16 %v378
  %v1860 = vunpack.c.h.b16 %v378
  %v1861 = vunpack.c.l.b16 %v379
  %v1862 = vunpack.c.h.b16 %v379
  %v1863 = vunpack.c.l.b16 %v380
  %v1864 = vunpack.c.h.b16 %v380
  %v1865 = vunpack.c.l.b16 %v381
  %v1866 = vunpack.c.h.b16 %v381
  %v1867 = vunpack.c.l.b16 %v382
  %v1868 = vunpack.c.h.b16 %v382
  %v1869 = vunpack.c.l.b16 %v383
  %v1870 = vunpack.c.h.b16 %v383
  %v1871 = vunpack.c.l.b16 %v384
  %v1872 = vunpack.c.h.b16 %v384
  %v1873 = vunpack.c.l.b16 %v385
  %v1874 = vunpack.c.h.b16 %v385
  %v1875 = vunpack.c.l.b16 %v386
  %v1876 = vunpack.c.h.b16 %v386
  %v1877 = vunpack.c.l.b16 %v387
  %v1878 = vunpack.c.h.b16 %v387
  %v1879 = vunpack.c.l.b16 %v388
  %v1880 = vunpack.c.h.b16 %v388
  %v1881 = vunpack.c.l.b16 %v389
  %v1882 = vunpack.c.h.b16 %v389
  %v1883 = vunpack.c.l.b16 %v390
  %v1884 = vunpack.c.h.b16 %v390
  %v1885 = vunpack.c.l.b16 %v391
  %v1886 = vunpack.c.h.b16 %v391
  %v1887 = vunpack.c.l.b16 %v392
  %v1888 = vunpack.c.h.b16 %v392
  %v1889 = vunpack.c.l.b16 %v393
  %v1890 = vunpack.c.h.b16 %v393
  %v1891 = vunpack.c.l.b16 %v394
  %v1892 = vunpack.c.h.b16 %v394
  %v1893 = vunpack.c.l.b16 %v395
  %v1894 = vunpack.c.h.b16 %v395
  %v1895 = vunpack.c.l.b16 %v396
  %v1896 = vunpack.c.h.b16 %v396
  %v1897 = vunpack.c.l.b16 %v397
  %v1898 = vunpack.c.h.b16 %v397
  %v1899 = vunpack.c.l.b16 %v398
  %v1900 = vunpack.c.h.b16 %v398
  %v1901 = vunpack.c.l.b16 %v399
  %v1902 = vunpack.c.h.b16 %v399
  %v1903 = vunpack.c.l.b16 %v400
  %v1904 = vunpack.c.h.b16 %v400
  %v1905 = vunpack.c.l.b16 %v401
  %v1906 = vunpack.c.h.b16 %v401
  %v1907 = vunpack.c.l.b16 %v402
  %v1908 = vunpack.c.h.b16 %v402
  %v1909 = vunpack.c.l.b16 %v403
  %v1910 = vunpack.c.h.b16 %v403
  %v1911 = vunpack.c.l.b16 %v404
  %v1912 = vunpack.c.h.b16 %v404
  %v1913 = vunpack.c.l.b16 %v405
  %v1914 = vunpack.c.h.b16 %v405
  %v1915 = vunpack.c.l.b16 %v406
  %v1916 = vunpack.c.h.b16 %v406
  %v1917 = vunpack.c.l.b16 %v407
  %v1918 = vunpack.c.h.b16 %v407
  %v1919 = vunpack.c.l.b16 %v408
  %v1920 = vunpack.c.h.b16 %v408
  %v1921 = vunpack.c.l.b16 %v409
  %v1922 = vunpack.c.h.b16 %v409
  %v1923 = vunpack.c.l.b16 %v410
  %v1924 = vunpack.c.h.b16 %v410
  %v1925 = vunpack.c.l.b16 %v411
  %v1926 = vunpack.c.h.b16 %v411
  %v1927 = vunpack.c.l.b16 %v412
  %v1928 = vunpack.c.h.b16 %v412
  %v1929 = vunpack.c.l.b16 %v413
  %v1930 = vunpack.c.h.b16 %v413
  %v1931 = vunpack.c.l.b16 %v414
  %v1932 = vunpack.c.h.b16 %v414
  %v1933 = vunpack.c.l.b16 %v415
  %v1934 = vunpack.c.h.b16 %v415
  %v1935 = vunpack.c.l.b16 %v416
  %v1936 = vunpack.c.h.b16 %v416
  %v1937 = vunpack.c.l.b16 %v417
  %v1938 = vunpack.c.h.b16 %v417
  %v1939 = vunpack.c.l.b16 %v418
  %v1940 = vunpack.c.h.b16 %v418
  %v1941 = vunpack.c.l.b16 %v419
  %v1942 = vunpack.c.h.b16 %v419
  %v1943 = vunpack.c.l.b16 %v420
  %v1944 = vunpack.c.h.b16 %v420
  %v1945 = vunpack.c.l.b16 %v421
  %v1946 = vunpack.c.h.b16 %v421
  %v1947 = vunpack.c.l.b16 %v422
  %v1948 = vunpack.c.h.b16 %v422
  %v1949 = vunpack.c.l.b16 %v423
  %v1950 = vunpack.c.h.b16 %v423
  %v1951 = vunpack.c.l.b16 %v424
  %v1952 = vunpack.c.h.b16 %v424
  %v1953 = vunpack.c.l.b16 %v425
  %v1954 = vunpack.c.h.b16 %v425
  %v1955 = vunpack.c.l.b16 %v426
  %v1956 = vunpack.c.h.b16 %v426
  %v1957 = vunpack.c.l.b16 %v427
  %v1958 = vunpack.c.h.b16 %v427
  %v1959 = vunpack.c.l.b16 %v428
  %v1960 = vunpack.c.h.b16 %v428
  %v1961 = vunpack.c.l.b16 %v429
  %v1962 = vunpack.c.h.b16 %v429
  %v1963 = vunpack.c.l.b16 %v430
  %v1964 = vunpack.c.h.b16 %v430
  %v1965 = vunpack.c.l.b16 %v431
  %v1966 = vunpack.c.h.b16 %v431
  %v1967 = vunpack.c.l.b16 %v432
  %v1968 = vunpack.c.h.b16 %v432
  %v1969 = vunpack.c.l.b16 %v433
  %v1970 = vunpack.c.h.b16 %v433
  %v1971 = vunpack.c.l.b16 %v434
  %v1972 = vunpack.c.h.b16 %v434
  %v1973 = vunpack.c.l.b16 %v435
  %v1974 = vunpack.c.h.b16 %v435
  %v1975 = vunpack.c.l.b16 %v436
  %v1976 = vunpack.c.h.b16 %v436
  %v1977 = vunpack.c.l.b16 %v437
  %v1978 = vunpack.c.h.b16 %v437
  %v1979 = vunpack.c.l.b16 %v438
  %v1980 = vunpack.c.h.b16 %v438
  %v1981 = vunpack.c.l.b16 %v439
  %v1982 = vunpack.c.h.b16 %v439
  %v1983 = vunpack.c.l.b16 %v440
  %v1984 = vunpack.c.h.b16 %v440
  %v1985 = vunpack.c.l.b16 %v441
  %v1986 = vunpack.c.h.b16 %v441
  %v1987 = vunpack.c.l.b16 %v442
  %v1988 = vunpack.c.h.b16 %v442
  %v1989 = vunpack.c.l.b16 %v443
  %v1990 = vunpack.c.h.b16 %v443
  %v1991 = vunpack.c.l.b16 %v444
  %v1992 = vunpack.c.h.b16 %v444
  %v1993 = vunpack.c.l.b16 %v445
  %v1994 = vunpack.c.h.b16 %v445
  %v1995 = vunpack.c.l.b16 %v446
  %v1996 = vunpack.c.h.b16 %v446
  %v1997 = vunpack.c.l.b16 %v447
  %v1998 = vunpack.c.h.b16 %v447
  %v1999 = vunpack.c.l.b16 %v448
  %v2000 = vunpack.c.h.b16 %v448
  %v2001 = vunpack.c.l.b16 %v449
  %v2002 = vunpack.c.h.b16 %v449
  %v2003 = vunpack.c.l.b16 %v450
  %v2004 = vunpack.c.h.b16 %v450
  %v2005 = vunpack.c.l.b16 %v451
  %v2006 = vunpack.c.h.b16 %v451
  %v2007 = vunpack.c.l.b16 %v452
  %v2008 = vunpack.c.h.b16 %v452
  %v2009 = vunpack.c.l.b16 %v453
  %v2010 = vunpack.c.h.b16 %v453
  %v2011 = vunpack.c.l.b16 %v454
  %v2012 = vunpack.c.h.b16 %v454
  %v2013 = vunpack.c.l.b16 %v455
  %v2014 = vunpack.c.h.b16 %v455
  %v2015 = vunpack.c.l.b16 %v456
  %v2016 = vunpack.c.h.b16 %v456
  %v2017 = vunpack.c.l.b16 %v457
  %v2018 = vunpack.c.h.b16 %v457
  %v2019 = vunpack.c.l.b16 %v458
  %v2020 = vunpack.c.h.b16 %v458
  %v2021 = vunpack.c.l.b16 %v459
  %v2022 = vunpack.c.h.b16 %v459
  %v2023 = vunpack.c.l.b16 %v460
  %v2024 = vunpack.c.h.b16 %v460
  %v2025 = vunpack.c.l.b16 %v461
  %v2026 = vunpack.c.h.b16 %v461
  %v2027 = vunpack.c.l.b16 %v462
  %v2028 = vunpack.c.h.b16 %v462
  %v2029 = vunpack.c.l.b16 %v463
  %v2030 = vunpack.c.h.b16 %v463
  %v2031 = vunpack.c.l.b16 %v464
  %v2032 = vunpack.c.h.b16 %v464
  %v2033 = vunpack.c.l.b16 %v465
  %v2034 = vunpack.c.h.b16 %v465
  %v2035 = vunpack.c.l.b16 %v466
  %v2036 = vunpack.c.h.b16 %v466
  %v2037 = vunpack.c.l.b16 %v467
  %v2038 = vunpack.c.h.b16 %v467
  %v2039 = vunpack.c.l.b16 %v468
  %v2040 = vunpack.c.h.b16 %v468
  %v2041 = vunpack.c.l.b16 %v469
  %v2042 = vunpack.c.h.b16 %v469
  %v2043 = vunpack.c.l.b16 %v470
  %v2044 = vunpack.c.h.b16 %v470
  %v2045 = vunpack.c.l.b16 %v471
  %v2046 = vunpack.c.h.b16 %v471
  %v2047 = vunpack.c.l.b16 %v472
  %v2048 = vunpack.c.h.b16 %v472
  %v2049 = vunpack.c.l.b16 %v473
  %v2050 = vunpack.c.h.b16 %v473
  %v2051 = vunpack.c.l.b16 %v474
  %v2052 = vunpack.c.h.b16 %v474
  %v2053 = vunpack.c.l.b16 %v475
  %v2054 = vunpack.c.h.b16 %v475
  %v2055 = vunpack.c.l.b16 %v476
  %v2056 = vunpack.c.h.b16 %v476
  %v2057 = vunpack.c.l.b16 %v477
  %v2058 = vunpack.c.h.b16 %v477
  %v2059 = vunpack.c.l.b16 %v478
  %v2060 = vunpack.c.h.b16 %v478
  %v2061 = vunpack.c.l.b16 %v479
  %v2062 = vunpack.c.h.b16 %v479
  %v2063 = vunpack.c.l.b16 %v480
  %v2064 = vunpack.c.h.b16 %v480
  %v2065 = vunpack.c.l.b16 %v481
  %v2066 = vunpack.c.h.b16 %v481
  %v2067 = vunpack.c.l.b16 %v482
  %v2068 = vunpack.c.h.b16 %v482
  %v2069 = vunpack.c.l.b16 %v483
  %v2070 = vunpack.c.h.b16 %v483
  %v2071 = vunpack.c.l.b16 %v484
  %v2072 = vunpack.c.h.b16 %v484
  %v2073 = vunpack.c.l.b16 %v485
  %v2074 = vunpack.c.h.b16 %v485
  %v2075 = vunpack.c.l.b16 %v486
  %v2076 = vunpack.c.h.b16 %v486
  %v2077 = vunpack.c.l.b16 %v487
  %v2078 = vunpack.c.h.b16 %v487
  %v2079 = vunpack.c.l.b16 %v488
  %v2080 = vunpack.c.h.b16 %v488
  %v2081 = vunpack.c.l.b16 %v489
  %v2082 = vunpack.c.h.b16 %v489
  %v2083 = vunpack.c.l.b16 %v490
  %v2084 = vunpack.c.h.b16 %v490
  %v2085 = vunpack.c.l.b16 %v491
  %v2086 = vunpack.c.h.b16 %v491
  %v2087 = vunpack.c.l.b16 %v492
  %v2088 = vunpack.c.h.b16 %v492
  %v2089 = vunpack.c.l.b16 %v493
  %v2090 = vunpack.c.h.b16 %v493
  %v2091 = vunpack.c.l.b16 %v494
  %v2092 = vunpack.c.h.b16 %v494
  %v2093 = vunpack.c.l.b16 %v495
  %v2094 = vunpack.c.h.b16 %v495
  %v2095 = vunpack.c.l.b16 %v496
  %v2096 = vunpack.c.h.b16 %v496
  %v2097 = vunpack.c.l.b16 %v497
  %v2098 = vunpack.c.h.b16 %v497
  %v2099 = vunpack.c.l.b16 %v498
  %v2100 = vunpack.c.h.b16 %v498
  %v2101 = vunpack.c.l.b16 %v499
  %v2102 = vunpack.c.h.b16 %v499
  %v2103 = vunpack.c.l.b16 %v500
  %v2104 = vunpack.c.h.b16 %v500
  %v2105 = vunpack.c.l.b16 %v501
  %v2106 = vunpack.c.h.b16 %v501
  %v2107 = vunpack.c.l.b16 %v502
  %v2108 = vunpack.c.h.b16 %v502
  %v2109 = vunpack.c.l.b16 %v503
  %v2110 = vunpack.c.h.b16 %v503
  %v2111 = vunpack.c.l.b16 %v504
  %v2112 = vunpack.c.h.b16 %v504
  %v2113 = vunpack.c.l.b16 %v505
  %v2114 = vunpack.c.h.b16 %v505
  %v2115 = vunpack.c.l.b16 %v506
  %v2116 = vunpack.c.h.b16 %v506
  %v2117 = vunpack.c.l.b16 %v507
  %v2118 = vunpack.c.h.b16 %v507
  %v2119 = vunpack.c.l.b16 %v508
  %v2120 = vunpack.c.h.b16 %v508
  %v2121 = vunpack.c.l.b16 %v509
  %v2122 = vunpack.c.h.b16 %v509
  %v2123 = vunpack.c.l.b16 %v510
  %v2124 = vunpack.c.h.b16 %v510
  %v2125 = vunpack.c.l.b16 %v511
  %v2126 = vunpack.c.h.b16 %v511
  %v2127 = vunpack.c.l.b16 %v512
  %v2128 = vunpack.c.h.b16 %v512
  %v2129 = vunpack.c.l.b16 %v513
  %v2130 = vunpack.c.h.b16 %v513
  %v2131 = vunpack.c.l.b16 %v514
  %v2132 = vunpack.c.h.b16 %v514
  %v2133 = vunpack.c.l.b16 %v515
  %v2134 = vunpack.c.h.b16 %v515
  %v2135 = vunpack.c.l.b16 %v516
  %v2136 = vunpack.c.h.b16 %v516
  %v2137 = vunpack.c.l.b16 %v517
  %v2138 = vunpack.c.h.b16 %v517
  %v2139 = vunpack.c.l.b16 %v518
  %v2140 = vunpack.c.h.b16 %v518
  %v2141 = vunpack.c.l.b16 %v519
  %v2142 = vunpack.c.h.b16 %v519
  %v2143 = vunpack.c.l.b16 %v520
  %v2144 = vunpack.c.h.b16 %v520
  %v2145 = vunpack.c.l.b16 %v521
  %v2146 = vunpack.c.h.b16 %v521
  %v2147 = vunpack.c.l.b16 %v522
  %v2148 = vunpack.c.h.b16 %v522
  %v2149 = vunpack.c.l.b16 %v523
  %v2150 = vunpack.c.h.b16 %v523
  %v2151 = vunpack.c.l.b16 %v524
  %v2152 = vunpack.c.h.b16 %v524
  %v2153 = vunpack.c.l.b16 %v525
  %v2154 = vunpack.c.h.b16 %v525
  %v2155 = vunpack.c.l.b16 %v526
  %v2156 = vunpack.c.h.b16 %v526
  %v2157 = vunpack.c.l.b16 %v527
  %v2158 = vunpack.c.h.b16 %v527
  %v2159 = vunpack.c.l.b16 %v528
  %v2160 = vunpack.c.h.b16 %v528
  %v2161 = vunpack.c.l.b16 %v529
  %v2162 = vunpack.c.h.b16 %v529
  %v2163 = vunpack.c.l.b16 %v530
  %v2164 = vunpack.c.h.b16 %v530
  %v2165 = vunpack.c.l.b16 %v531
  %v2166 = vunpack.c.h.b16 %v531
  %v2167 = vunpack.c.l.b16 %v532
  %v2168 = vunpack.c.h.b16 %v532
  %v2169 = vunpack.c.l.b16 %v533
  %v2170 = vunpack.c.h.b16 %v533
  %v2171 = vunpack.c.l.b16 %v534
  %v2172 = vunpack.c.h.b16 %v534
  %v2173 = vunpack.c.l.b16 %v535
  %v2174 = vunpack.c.h.b16 %v535
  %v2175 = vunpack.c.l.b16 %v536
  %v2176 = vunpack.c.h.b16 %v536
  %v2177 = vunpack.c.l.b16 %v537
  %v2178 = vunpack.c.h.b16 %v537
  %v2179 = vunpack.c.l.b16 %v538
  %v2180 = vunpack.c.h.b16 %v538
  %v2181 = vunpack.c.l.b16 %v539
  %v2182 = vunpack.c.h.b16 %v539
  %v2183 = vunpack.c.l.b16 %v540
  %v2184 = vunpack.c.h.b16 %v540
  %v2185 = vunpack.c.l.b16 %v541
  %v2186 = vunpack.c.h.b16 %v541
  %v2187 = vunpack.c.l.b16 %v542
  %v2188 = vunpack.c.h.b16 %v542
  %v2189 = vunpack.c.l.b16 %v543
  %v2190 = vunpack.c.h.b16 %v543
  %v2191 = vunpack.c.l.b16 %v544
  %v2192 = vunpack.c.h.b16 %v544
  %v2193 = vpack.c.b16 %v1171, %v1169
  %v2194 = vpack.c.b16 %v1172, %v1170
  %v2195 = vpack.c.b16 %v1175, %v1173
  %v2196 = vpack.c.b16 %v1176, %v1174
  %v2197 = vpack.c.b16 %v1179, %v1177
  %v2198 = vpack.c.b16 %v1180, %v1178
  %v2199 = vpack.c.b16 %v1183, %v1181
  %v2200 = vpack.c.b16 %v1184, %v1182
  %v2201 = vpack.c.b16 %v1187, %v1185
  %v2202 = vpack.c.b16 %v1188, %v1186
  %v2203 = vpack.c.b16 %v1191, %v1189
  %v2204 = vpack.c.b16 %v1192, %v1190
  %v2205 = vpack.c.b16 %v1195, %v1193
  %v2206 = vpack.c.b16 %v1196, %v1194
  %v2207 = vpack.c.b16 %v1199, %v1197
  %v2208 = vpack.c.b16 %v1200, %v1198
  %v2209 = vpack.c.b16 %v1203, %v1201
  %v2210 = vpack.c.b16 %v1204, %v1202
  %v2211 = vpack.c.b16 %v1207, %v1205
  %v2212 = vpack.c.b16 %v1208, %v1206
  %v2213 = vpack.c.b16 %v1211, %v1209
  %v2214 = vpack.c.b16 %v1212, %v1210
  %v2215 = vpack.c.b16 %v1215, %v1213
  %v2216 = vpack.c.b16 %v1216, %v1214
  %v2217 = vpack.c.b16 %v1219, %v1217
  %v2218 = vpack.c.b16 %v1220, %v1218
  %v2219 = vpack.c.b16 %v1223, %v1221
  %v2220 = vpack.c.b16 %v1224, %v1222
  %v2221 = vpack.c.b16 %v1227, %v1225
  %v2222 = vpack.c.b16 %v1228, %v1226
  %v2223 = vpack.c.b16 %v1231, %v1229
  %v2224 = vpack.c.b16 %v1232, %v1230
  %v2225 = vpack.c.b16 %v1235, %v1233
  %v2226 = vpack.c.b16 %v1236, %v1234
  %v2227 = vpack.c.b16 %v1239, %v1237
  %v2228 = vpack.c.b16 %v1240, %v1238
  %v2229 = vpack.c.b16 %v1243, %v1241
  %v2230 = vpack.c.b16 %v1244, %v1242
  %v2231 = vpack.c.b16 %v1247, %v1245
  %v2232 = vpack.c.b16 %v1248, %v1246
  %v2233 = vpack.c.b16 %v1251, %v1249
  %v2234 = vpack.c.b16 %v1252, %v1250
  %v2235 = vpack.c.b16 %v1255, %v1253
  %v2236 = vpack.c.b16 %v1256, %v1254
  %v2237 = vpack.c.b16 %v1259, %v1257
  %v2238 = vpack.c.b16 %v1260, %v1258
  %v2239 = vpack.c.b16 %v1263, %v1261
  %v2240 = vpack.c.b16 %v1264, %v1262
  %v2241 = vpack.c.b16 %v1267, %v1265
  %v2242 = vpack.c.b16 %v1268, %v1266
  %v2243 = vpack.c.b16 %v1271, %v1269
  %v2244 = vpack.c.b16 %v1272, %v1270
  %v2245 = vpack.c.b16 %v1275, %v1273
  %v2246 = vpack.c.b16 %v1276, %v1274
  %v2247 = vpack.c.b16 %v1279, %v1277
  %v2248 = vpack.c.b16 %v1280, %v1278
  %v2249 = vpack.c.b16 %v1283, %v1281
  %v2250 = vpack.c.b16 %v1284, %v1282
  %v2251 = vpack.c.b16 %v1287, %v1285
  %v2252 = vpack.c.b16 %v1288, %v1286
  %v2253 = vpack.c.b16 %v1291, %v1289
  %v2254 = vpack.c.b16 %v1292, %v1290
  %v2255 = vpack.c.b16 %v1295, %v1293
  %v2256 = vpack.c.b16 %v1296, %v1294
  %v2257 = vpack.c.b16 %v1299, %v1297
  %v2258 = vpack.c.b16 %v1300, %v1298
  %v2259 = vpack.c.b16 %v1303, %v1301
  %v2260 = vpack.c.b16 %v1304, %v1302
  %v2261 = vpack.c.b16 %v1307, %v1305
  %v2262 = vpack.c.b16 %v1308, %v1306
  %v2263 = vpack.c.b16 %v1311, %v1309
  %v2264 = vpack.c.b16 %v1312, %v1310
  %v2265 = vpack.c.b16 %v1315, %v1313
  %v2266 = vpack.c.b16 %v1316, %v1314
  %v2267 = vpack.c.b16 %v1319, %v1317
  %v2268 = vpack.c.b16 %v1320, %v1318
  %v2269 = vpack.c.b16 %v1323, %v1321
  %v2270 = vpack.c.b16 %v1324, %v1322
  %v2271 = vpack.c.b16 %v1327, %v1325
  %v2272 = vpack.c.b16 %v1328, %v1326
  %v2273 = vpack.c.b16 %v1331, %v1329
  %v2274 = vpack.c.b16 %v1332, %v1330
  %v2275 = vpack.c.b16 %v1335, %v1333
  %v2276 = vpack.c.b16 %v1336, %v1334
  %v2277 = vpack.c.b16 %v1339, %v1337
  %v2278 = vpack.c.b16 %v1340, %v1338
  %v2279 = vpack.c.b16 %v1343, %v1341
  %v2280 = vpack.c.b16 %v1344, %v1342
  %v2281 = vpack.c.b16 %v1347, %v1345
  %v2282 = vpack.c.b16 %v1348, %v1346
  %v2283 = vpack.c.b16 %v1351, %v1349
  %v2284 = vpack.c.b16 %v1352, %v1350
  %v2285 = vpack.c.b16 %v1355, %v1353
  %v2286 = vpack.c.b16 %v1356, %v1354
  %v2287 = vpack.c.b16 %v1359, %v1357
  %v2288 = vpack.c.b16 %v1360, %v1358
  %v2289 = vpack.c.b16 %v1363, %v1361
  %v2290 = vpack.c.b16 %v1364, %v1362
  %v2291 = vpack.c.b16 %v1367, %v1365
  %v2292 = vpack.c.b16 %v1368, %v1366
  %v2293 = vpack.c.b16 %v1371, %v1369
  %v2294 = vpack.c.b16 %v1372, %v1370
  %v2295 = vpack.c.b16 %v1375, %v1373
  %v2296 = vpack.c.b16 %v1376, %v1374
  %v2297 = vpack.c.b16 %v1379, %v1377
  %v2298 = vpack.c.b16 %v1380, %v1378
  %v2299 = vpack.c.b16 %v1383, %v1381
  %v2300 = vpack.c.b16 %v1384, %v1382
  %v2301 = vpack.c.b16 %v1387, %v1385
  %v2302 = vpack.c.b16 %v1388, %v1386
  %v2303 = vpack.c.b16 %v1391, %v1389
  %v2304 = vpack.c.b16 %v1392, %v1390
  %v2305 = vpack.c.b16 %v1395, %v1393
  %v2306 = vpack.c.b16 %v1396, %v1394
  %v2307 = vpack.c.b16 %v1399, %v1397
  %v2308 = vpack.c.b16 %v1400, %v1398
  %v2309 = vpack.c.b16 %v1403, %v1401
  %v2310 = vpack.c.b16 %v1404, %v1402
  %v2311 = vpack.c.b16 %v1407, %v1405
  %v2312 = vpack.c.b16 %v1408, %v1406
  %v2313 = vpack.c.b16 %v1411, %v1409
  %v2314 = vpack.c.b16 %v1412, %v1410
  %v2315 = vpack.c.b16 %v1415, %v1413
  %v2316 = vpack.c.b16 %v1416, %v1414
  %v2317 = vpack.c.b16 %v1419, %v1417
  %v2318 = vpack.c.b16 %v1420, %v1418
  %v2319 = vpack.c.b16 %v1423, %v1421
  %v2320 = vpack.c.b16 %v1424, %v1422
  %v2321 = vpack.c.b16 %v1427, %v1425
  %v2322 = vpack.c.b16 %v1428, %v1426
  %v2323 = vpack.c.b16 %v1431, %v1429
  %v2324 = vpack.c.b16 %v1432, %v1430
  %v2325 = vpack.c.b16 %v1435, %v1433
  %v2326 = vpack.c.b16 %v1436, %v1434
  %v2327 = vpack.c.b16 %v1439, %v1437
  %v2328 = vpack.c.b16 %v1440, %v1438
  %v2329 = vpack.c.b16 %v1443, %v1441
  %v2330 = vpack.c.b16 %v1444, %v1442
  %v2331 = vpack.c.b16 %v1447, %v1445
  %v2332 = vpack.c.b16 %v1448, %v1446
  %v2333 = vpack.c.b16 %v1451, %v1449
  %v2334 = vpack.c.b16 %v1452, %v1450
  %v2335 = vpack.c.b16 %v1455, %v1453
  %v2336 = vpack.c.b16 %v1456, %v1454
  %v2337 = vpack.c.b16 %v1459, %v1457
  %v2338 = vpack.c.b16 %v1460, %v1458
  %v2339 = vpack.c.b16 %v1463, %v1461
  %v2340 = vpack.c.b16 %v1464, %v1462
  %v2341 = vpack.c.b16 %v1467, %v1465
  %v2342 = vpack.c.b16 %v1468, %v1466
  %v2343 = vpack.c.b16 %v1471, %v1469
  %v2344 = vpack.c.b16 %v1472, %v1470
  %v2345 = vpack.c.b16 %v1475, %v1473
  %v2346 = vpack.c.b16 %v1476, %v1474
  %v2347 = vpack.c.b16 %v1479, %v1477
  %v2348 = vpack.c.b16 %v1480, %v1478
  %v2349 = vpack.c.b16 %v1483, %v1481
  %v2350 = vpack.c.b16 %v1484, %v1482
  %v2351 = vpack.c.b16 %v1487, %v1485
  %v2352 = vpack.c.b16 %v1488, %v1486
  %v2353 = vpack.c.b16 %v1491, %v1489
  %v2354 = vpack.c.b16 %v1492, %v1490
  %v2355 = vpack.c.b16 %v1495, %v1493
  %v2356 = vpack.c.b16 %v1496, %v1494
  %v2357 = vpack.c.b16 %v1499, %v1497
  %v2358 = vpack.c.b16 %v1500, %v1498
  %v2359 = vpack.c.b16 %v1503, %v1501
  %v2360 = vpack.c.b16 %v1504, %v1502
  %v2361 = vpack.c.b16 %v1507, %v1505
  %v2362 = vpack.c.b16 %v1508, %v1506
  %v2363 = vpack.c.b16 %v1511, %v1509
  %v2364 = vpack.c.b16 %v1512, %v1510
  %v2365 = vpack.c.b16 %v1515, %v1513
  %v2366 = vpack.c.b16 %v1516, %v1514
  %v2367 = vpack.c.b16 %v1519, %v1517
  %v2368 = vpack.c.b16 %v1520, %v1518
  %v2369 = vpack.c.b16 %v1523, %v1521
  %v2370 = vpack.c.b16 %v1524, %v1522
  %v2371 = vpack.c.b16 %v1527, %v1525
  %v2372 = vpack.c.b16 %v1528, %v1526
  %v2373 = vpack.c.b16 %v1531, %v1529
  %v2374 = vpack.c.b16 %v1532, %v1530
  %v2375 = vpack.c.b16 %v1535, %v1533
  %v2376 = vpack.c.b16 %v1536, %v1534
  %v2377 = vpack.c.b16 %v1539, %v1537
  %v2378 = vpack.c.b16 %v1540, %v1538
  %v2379 = vpack.c.b16 %v1543, %v1541
  %v2380 = vpack.c.b16 %v1544, %v1542
  %v2381 = vpack.c.b16 %v1547, %v1545
  %v2382 = vpack.c.b16 %v1548, %v1546
  %v2383 = vpack.c.b16 %v1551, %v1549
  %v2384 = vpack.c.b16 %v1552, %v1550
  %v2385 = vpack.c.b16 %v1555, %v1553
  %v2386 = vpack.c.b16 %v1556, %v1554
  %v2387 = vpack.c.b16 %v1559, %v1557
  %v2388 = vpack.c.b16 %v1560, %v1558
  %v2389 = vpack.c.b16 %v1563, %v1561
  %v2390 = vpack.c.b16 %v1564, %v1562
  %v2391 = vpack.c.b16 %v1567, %v1565
  %v2392 = vpack.c.b16 %v1568, %v1566
  %v2393 = vpack.c.b16 %v1571, %v1569
  %v2394 = vpack.c.b16 %v1572, %v1570
  %v2395 = vpack.c.b16 %v1575, %v1573
  %v2396 = vpack.c.b16 %v1576, %v1574
  %v2397 = vpack.c.b16 %v1579, %v1577
  %v2398 = vpack.c.b16 %v1580, %v1578
  %v2399 = vpack.c.b16 %v1583, %v1581
  %v2400 = vpack.c.b16 %v1584, %v1582
  %v2401 = vpack.c.b16 %v1587, %v1585
  %v2402 = vpack.c.b16 %v1588, %v1586
  %v2403 = vpack.c.b16 %v1591, %v1589
  %v2404 = vpack.c.b16 %v1592, %v1590
  %v2405 = vpack.c.b16 %v1595, %v1593
  %v2406 = vpack.c.b16 %v1596, %v1594
  %v2407 = vpack.c.b16 %v1599, %v1597
  %v2408 = vpack.c.b16 %v1600, %v1598
  %v2409 = vpack.c.b16 %v1603, %v1601
  %v2410 = vpack.c.b16 %v1604, %v1602
  %v2411 = vpack.c.b16 %v1607, %v1605
  %v2412 = vpack.c.b16 %v1608, %v1606
  %v2413 = vpack.c.b16 %v1611, %v1609
  %v2414 = vpack.c.b16 %v1612, %v1610
  %v2415 = vpack.c.b16 %v1615, %v1613
  %v2416 = vpack.c.b16 %v1616, %v1614
  %v2417 = vpack.c.b16 %v1619, %v1617
  %v2418 = vpack.c.b16 %v1620, %v1618
  %v2419 = vpack.c.b16 %v1623, %v1621
  %v2420 = vpack.c.b16 %v1624, %v1622
  %v2421 = vpack.c.b16 %v1627, %v1625
  %v2422 = vpack.c.b16 %v1628, %v1626
  %v2423 = vpack.c.b16 %v1631, %v1629
  %v2424 = vpack.c.b16 %v1632, %v1630
  %v2425 = vpack.c.b16 %v1635, %v1633
  %v2426 = vpack.c.b16 %v1636, %v1634
  %v2427 = vpack.c.b16 %v1639, %v1637
  %v2428 = vpack.c.b16 %v1640, %v1638
  %v2429 = vpack.c.b16 %v1643, %v1641
  %v2430 = vpack.c.b16 %v1644, %v1642
  %v2431 = vpack.c.b16 %v1647, %v1645
  %v2432 = vpack.c.b16 %v1648, %v1646
  %v2433 = vpack.c.b16 %v1651, %v1649
  %v2434 = vpack.c.b16 %v1652, %v1650
  %v2435 = vpack.c.b16 %v1655, %v1653
  %v2436 = vpack.c.b16 %v1656, %v1654
  %v2437 = vpack.c.b16 %v1659, %v1657
  %v2438 = vpack.c.b16 %v1660, %v1658
  %v2439 = vpack.c.b16 %v1663, %v1661
  %v2440 = vpack.c.b16 %v1664, %v1662
  %v2441 = vpack.c.b16 %v1667, %v1665
  %v2442 = vpack.c.b16 %v1668, %v1666
  %v2443 = vpack.c.b16 %v1671, %v1669
  %v2444 = vpack.c.b16 %v1672, %v1670
  %v2445 = vpack.c.b16 %v1675, %v1673
  %v2446 = vpack.c.b16 %v1676, %v1674
  %v2447 = vpack.c.b16 %v1679, %v1677
  %v2448 = vpack.c.b16 %v1680, %v1678
  %v2449 = vpack.c.b16 %v1683, %v1681
  %v2450 = vpack.c.b16 %v1684, %v1682
  %v2451 = vpack.c.b16 %v1687, %v1685
  %v2452 = vpack.c.b16 %v1688, %v1686
  %v2453 = vpack.c.b16 %v1691, %v1689
  %v2454 = vpack.c.b16 %v1692, %v1690
  %v2455 = vpack.c.b16 %v1695, %v1693
  %v2456 = vpack.c.b16 %v1696, %v1694
  %v2457 = vpack.c.b16 %v1699, %v1697
  %v2458 = vpack.c.b16 %v1700, %v1698
  %v2459 = vpack.c.b16 %v1703, %v1701
  %v2460 = vpack.c.b16 %v1704, %v1702
  %v2461 = vpack.c.b16 %v1707, %v1705
  %v2462 = vpack.c.b16 %v1708, %v1706
  %v2463 = vpack.c.b16 %v1711, %v1709
  %v2464 = vpack.c.b16 %v1712, %v1710
  %v2465 = vpack.c.b16 %v1715, %v1713
  %v2466 = vpack.c.b16 %v1716, %v1714
  %v2467 = vpack.c.b16 %v1719, %v1717
  %v2468 = vpack.c.b16 %v1720, %v1718
  %v2469 = vpack.c.b16 %v1723, %v1721
  %v2470 = vpack.c.b16 %v1724, %v1722
  %v2471 = vpack.c.b16 %v1727, %v1725
  %v2472 = vpack.c.b16 %v1728, %v1726
  %v2473 = vpack.c.b16 %v1731, %v1729
  %v2474 = vpack.c.b16 %v1732, %v1730
  %v2475 = vpack.c.b16 %v1735, %v1733
  %v2476 = vpack.c.b16 %v1736, %v1734
  %v2477 = vpack.c.b16 %v1739, %v1737
  %v2478 = vpack.c.b16 %v1740, %v1738
  %v2479 = vpack.c.b16 %v1743, %v1741
  %v2480 = vpack.c.b16 %v1744, %v1742
  %v2481 = vpack.c.b16 %v1747, %v1745
  %v2482 = vpack.c.b16 %v1748, %v1746
  %v2483 = vpack.c.b16 %v1751, %v1749
  %v2484 = vpack.c.b16 %v1752, %v1750
  %v2485 = vpack.c.b16 %v1755, %v1753
  %v2486 = vpack.c.b16 %v1756, %v1754
  %v2487 = vpack.c.b16 %v1759, %v1757
  %v2488 = vpack.c.b16 %v1760, %v1758
  %v2489 = vpack.c.b16 %v1763, %v1761
  %v2490 = vpack.c.b16 %v1764, %v1762
  %v2491 = vpack.c.b16 %v1767, %v1765
  %v2492 = vpack.c.b16 %v1768, %v1766
  %v2493 = vpack.c.b16 %v1771, %v1769
  %v2494 = vpack.c.b16 %v1772, %v1770
  %v2495 = vpack.c.b16 %v1775, %v1773
  %v2496 = vpack.c.b16 %v1776, %v1774
  %v2497 = vpack.c.b16 %v1779, %v1777
  %v2498 = vpack.c.b16 %v1780, %v1778
  %v2499 = vpack.c.b16 %v1783, %v1781
  %v2500 = vpack.c.b16 %v1784, %v1782
  %v2501 = vpack.c.b16 %v1787, %v1785
  %v2502 = vpack.c.b16 %v1788, %v1786
  %v2503 = vpack.c.b16 %v1791, %v1789
  %v2504 = vpack.c.b16 %v1792, %v1790
  %v2505 = vpack.c.b16 %v1795, %v1793
  %v2506 = vpack.c.b16 %v1796, %v1794
  %v2507 = vpack.c.b16 %v1799, %v1797
  %v2508 = vpack.c.b16 %v1800, %v1798
  %v2509 = vpack.c.b16 %v1803, %v1801
  %v2510 = vpack.c.b16 %v1804, %v1802
  %v2511 = vpack.c.b16 %v1807, %v1805
  %v2512 = vpack.c.b16 %v1808, %v1806
  %v2513 = vpack.c.b16 %v1811, %v1809
  %v2514 = vpack.c.b16 %v1812, %v1810
  %v2515 = vpack.c.b16 %v1815, %v1813
  %v2516 = vpack.c.b16 %v1816, %v1814
  %v2517 = vpack.c.b16 %v1819, %v1817
  %v2518 = vpack.c.b16 %v1820, %v1818
  %v2519 = vpack.c.b16 %v1823, %v1821
  %v2520 = vpack.c.b16 %v1824, %v1822
  %v2521 = vpack.c.b16 %v1827, %v1825
  %v2522 = vpack.c.b16 %v1828, %v1826
  %v2523 = vpack.c.b16 %v1831, %v1829
  %v2524 = vpack.c.b16 %v1832, %v1830
  %v2525 = vpack.c.b16 %v1835, %v1833
  %v2526 = vpack.c.b16 %v1836, %v1834
  %v2527 = vpack.c.b16 %v1839, %v1837
  %v2528 = vpack.c.b16 %v1840, %v1838
  %v2529 = vpack.c.b16 %v1843, %v1841
  %v2530 = vpack.c.b16 %v1844, %v1842
  %v2531 = vpack.c.b16 %v1847, %v1845
  %v2532 = vpack.c.b16 %v1848, %v1846
  %v2533 = vpack.c.b16 %v1851, %v1849
  %v2534 = vpack.c.b16 %v1852, %v1850
  %v2535 = vpack.c.b16 %v1855, %v1853
  %v2536 = vpack.c.b16 %v1856, %v1854
  %v2537 = vpack.c.b16 %v1859, %v1857
  %v2538 = vpack.c.b16 %v1860, %v1858
  %v2539 = vpack.c.b16 %v1863, %v1861
  %v2540 = vpack.c.b16 %v1864, %v1862
  %v2541 = vpack.c.b16 %v1867, %v1865
  %v2542 = vpack.c.b16 %v1868, %v1866
  %v2543 = vpack.c.b16 %v1871, %v1869
  %v2544 = vpack.c.b16 %v1872, %v1870
  %v2545 = vpack.c.b16 %v1875, %v1873
  %v2546 = vpack.c.b16 %v1876, %v1874
  %v2547 = vpack.c.b16 %v1879, %v1877
  %v2548 = vpack.c.b16 %v1880, %v1878
  %v2549 = vpack.c.b16 %v1883, %v1881
  %v2550 = vpack.c.b16 %v1884, %v1882
  %v2551 = vpack.c.b16 %v1887, %v1885
  %v2552 = vpack.c.b16 %v1888, %v1886
  %v2553 = vpack.c.b16 %v1891, %v1889
  %v2554 = vpack.c.b16 %v1892, %v1890
  %v2555 = vpack.c.b16 %v1895, %v1893
  %v2556 = vpack.c.b16 %v1896, %v1894
  %v2557 = vpack.c.b16 %v1899, %v1897
  %v2558 = vpack.c.b16 %v1900, %v1898
  %v2559 = vpack.c.b16 %v1903, %v1901
  %v2560 = vpack.c.b16 %v1904, %v1902
  %v2561 = vpack.c.b16 %v1907, %v1905
  %v2562 = vpack.c.b16 %v1908, %v1906
  %v2563 = vpack.c.b16 %v1911, %v1909
  %v2564 = vpack.c.b16 %v1912, %v1910
  %v2565 = vpack.c.b16 %v1915, %v1913
  %v2566 = vpack.c.b16 %v1916, %v1914
  %v2567 = vpack.c.b16 %v1919, %v1917
  %v2568 = vpack.c.b16 %v1920, %v1918
  %v2569 = vpack.c.b16 %v1923, %v1921
  %v2570 = vpack.c.b16 %v1924, %v1922
  %v2571 = vpack.c.b16 %v1927, %v1925
  %v2572 = vpack.c.b16 %v1928, %v1926
  %v2573 = vpack.c.b16 %v1931, %v1929
  %v2574 = vpack.c.b16 %v1932, %v1930
  %v2575 = vpack.c.b16 %v1935, %v1933
  %v2576 = vpack.c.b16 %v1936, %v1934
  %v2577 = vpack.c.b16 %v1939, %v1937
  %v2578 = vpack.c.b16 %v1940, %v1938
  %v2579 = vpack.c.b16 %v1943, %v1941
  %v2580 = vpack.c.b16 %v1944, %v1942
  %v2581 = vpack.c.b16 %v1947, %v1945
  %v2582 = vpack.c.b16 %v1948, %v1946
  %v2583 = vpack.c.b16 %v1951, %v1949
  %v2584 = vpack.c.b16 %v1952, %v1950
  %v2585 = vpack.c.b16 %v1955, %v1953
  %v2586 = vpack.c.b16 %v1956, %v1954
  %v2587 = vpack.c.b16 %v1959, %v1957
  %v2588 = vpack.c.b16 %v1960, %v1958
  %v2589 = vpack.c.b16 %v1963, %v1961
  %v2590 = vpack.c.b16 %v1964, %v1962
  %v2591 = vpack.c.b16 %v1967, %v1965
  %v2592 = vpack.c.b16 %v1968, %v1966
  %v2593 = vpack.c.b16 %v1971, %v1969
  %v2594 = vpack.c.b16 %v1972, %v1970
  %v2595 = vpack.c.b16 %v1975, %v1973
  %v2596 = vpack.c.b16 %v1976, %v1974
  %v2597 = vpack.c.b16 %v1979, %v1977
  %v2598 = vpack.c.b16 %v1980, %v1978
  %v2599 = vpack.c.b16 %v1983, %v1981
  %v2600 = vpack.c.b16 %v1984, %v1982
  %v2601 = vpack.c.b16 %v1987, %v1985
  %v2602 = vpack.c.b16 %v1988, %v1986
  %v2603 = vpack.c.b16 %v1991, %v1989
  %v2604 = vpack.c.b16 %v1992, %v1990
  %v2605 = vpack.c.b16 %v1995, %v1993
  %v2606 = vpack.c.b16 %v1996, %v1994
  %v2607 = vpack.c.b16 %v1999, %v1997
  %v2608 = vpack.c.b16 %v2000, %v1998
  %v2609 = vpack.c.b16 %v2003, %v2001
  %v2610 = vpack.c.b16 %v2004, %v2002
  %v2611 = vpack.c.b16 %v2007, %v2005
  %v2612 = vpack.c.b16 %v2008, %v2006
  %v2613 = vpack.c.b16 %v2011, %v2009
  %v2614 = vpack.c.b16 %v2012, %v2010
  %v2615 = vpack.c.b16 %v2015, %v2013
  %v2616 = vpack.c.b16 %v2016, %v2014
  %v2617 = vpack.c.b16 %v2019, %v2017
  %v2618 = vpack.c.b16 %v2020, %v2018
  %v2619 = vpack.c.b16 %v2023, %v2021
  %v2620 = vpack.c.b16 %v2024, %v2022
  %v2621 = vpack.c.b16 %v2027, %v2025
  %v2622 = vpack.c.b16 %v2028, %v2026
  %v2623 = vpack.c.b16 %v2031, %v2029
  %v2624 = vpack.c.b16 %v2032, %v2030
  %v2625 = vpack.c.b16 %v2035, %v2033
  %v2626 = vpack.c.b16 %v2036, %v2034
  %v2627 = vpack.c.b16 %v2039, %v2037
  %v2628 = vpack.c.b16 %v2040, %v2038
  %v2629 = vpack.c.b16 %v2043, %v2041
  %v2630 = vpack.c.b16 %v2044, %v2042
  %v2631 = vpack.c.b16 %v2047, %v2045
  %v2632 = vpack.c.b16 %v2048, %v2046
  %v2633 = vpack.c.b16 %v2051, %v2049
  %v2634 = vpack.c.b16 %v2052, %v2050
  %v2635 = vpack.c.b16 %v2055, %v2053
  %v2636 = vpack.c.b16 %v2056, %v2054
  %v2637 = vpack.c.b16 %v2059, %v2057
  %v2638 = vpack.c.b16 %v2060, %v2058
  %v2639 = vpack.c.b16 %v2063, %v2061
  %v2640 = vpack.c.b16 %v2064, %v2062
  %v2641 = vpack.c.b16 %v2067, %v2065
  %v2642 = vpack.c.b16 %v2068, %v2066
  %v2643 = vpack.c.b16 %v2071, %v2069
  %v2644 = vpack.c.b16 %v2072, %v2070
  %v2645 = vpack.c.b16 %v2075, %v2073
  %v2646 = vpack.c.b16 %v2076, %v2074
  %v2647 = vpack.c.b16 %v2079, %v2077
  %v2648 = vpack.c.b16 %v2080, %v2078
  %v2649 = vpack.c.b16 %v2083, %v2081
  %v2650 = vpack.c.b16 %v2084, %v2082
  %v2651 = vpack.c.b16 %v2087, %v2085
  %v2652 = vpack.c.b16 %v2088, %v2086
  %v2653 = vpack.c.b16 %v2091, %v2089
  %v2654 = vpack.c.b16 %v2092, %v2090
  %v2655 = vpack.c.b16 %v2095, %v2093
  %v2656 = vpack.c.b16 %v2096, %v2094
  %v2657 = vpack.c.b16 %v2099, %v2097
  %v2658 = vpack.c.b16 %v2100, %v2098
  %v2659 = vpack.c.b16 %v2103, %v2101
  %v2660 = vpack.c.b16 %v2104, %v2102
  %v2661 = vpack.c.b16 %v2107, %v2105
  %v2662 = vpack.c.b16 %v2108, %v2106
  %v2663 = vpack.c.b16 %v2111, %v2109
  %v2664 = vpack.c.b16 %v2112, %v2110
  %v2665 = vpack.c.b16 %v2115, %v2113
  %v2666 = vpack.c.b16 %v2116, %v2114
  %v2667 = vpack.c.b16 %v2119, %v2117
  %v2668 = vpack.c.b16 %v2120, %v2118
  %v2669 = vpack.c.b16 %v2123, %v2121
  %v2670 = vpack.c.b16 %v2124, %v2122
  %v2671 = vpack.c.b16 %v2127, %v2125
  %v2672 = vpack.c.b16 %v2128, %v2126
  %v2673 = vpack.c.b16 %v2131, %v2129
  %v2674 = vpack.c.b16 %v2132, %v2130
  %v2675 = vpack.c.b16 %v2135, %v2133
  %v2676 = vpack.c.b16 %v2136, %v2134
  %v2677 = vpack.c.b16 %v2139, %v2137
  %v2678 = vpack.c.b16 %v2140, %v2138
  %v2679 = vpack.c.b16 %v2143, %v2141
  %v2680 = vpack.c.b16 %v2144, %v2142
  %v2681 = vpack.c.b16 %v2147, %v2145
  %v2682 = vpack.c.b16 %v2148, %v2146
  %v2683 = vpack.c.b16 %v2151, %v2149
  %v2684 = vpack.c.b16 %v2152, %v2150
  %v2685 = vpack.c.b16 %v2155, %v2153
  %v2686 = vpack.c.b16 %v2156, %v2154
  %v2687 = vpack.c.b16 %v2159, %v2157
  %v2688 = vpack.c.b16 %v2160, %v2158
  %v2689 = vpack.c.b16 %v2163, %v2161
  %v2690 = vpack.c.b16 %v2164, %v2162
  %v2691 = vpack.c.b16 %v2167, %v2165
  %v2692 = vpack.c.b16 %v2168, %v2166
  %v2693 = vpack.c.b16 %v2171, %v2169
  %v2694 = vpack.c.b16 %v2172, %v2170
  %v2695 = vpack.c.b16 %v2175, %v2173
  %v2696 = vpack.c.b16 %v2176, %v2174
  %v2697 = vpack.c.b16 %v2179, %v2177
  %v2698 = vpack.c.b16 %v2180, %v2178
  %v2699 = vpack.c.b16 %v2183, %v2181
  %v2700 = vpack.c.b16 %v2184, %v2182
  %v2701 = vpack.c.b16 %v2187, %v2185
  %v2702 = vpack.c.b16 %v2188, %v2186
  %v2703 = vpack.c.b16 %v2191, %v2189
  %v2704 = vpack.c.b16 %v2192, %v2190
  %3217 = vmatprep.subr.bf16.mxu0 %v2194
  %3218 = vmatpush1.bf16.msra.mxu0 %v2193
  %3219 = vmatprep.subr.bf16.mxu0 %v2196
  %3220 = vmatpush1.bf16.msra.mxu0 %v2195
  %3221 = vmatprep.subr.bf16.mxu0 %v2198
  %3222 = vmatpush1.bf16.msra.mxu0 %v2197
  %3223 = vmatprep.subr.bf16.mxu0 %v2200
  %3224 = vmatpush1.bf16.msra.mxu0 %v2199
  %3225 = vmatprep.subr.bf16.mxu0 %v2202
  %3226 = vmatpush1.bf16.msra.mxu0 %v2201
  %3227 = vmatprep.subr.bf16.mxu0 %v2204
  %3228 = vmatpush1.bf16.msra.mxu0 %v2203
  %3229 = vmatprep.subr.bf16.mxu0 %v2206
  %3230 = vmatpush1.bf16.msra.mxu0 %v2205
  %3231 = vmatprep.subr.bf16.mxu0 %v2208
  %3232 = vmatpush1.bf16.msra.mxu0 %v2207
  %3233 = vmatprep.subr.bf16.mxu0 %v2210
  %3234 = vmatpush1.bf16.msra.mxu0 %v2209
  %3235 = vmatprep.subr.bf16.mxu0 %v2212
  %3236 = vmatpush1.bf16.msra.mxu0 %v2211
  %3237 = vmatprep.subr.bf16.mxu0 %v2214
  %3238 = vmatpush1.bf16.msra.mxu0 %v2213
  %3239 = vmatprep.subr.bf16.mxu0 %v2216
  %3240 = vmatpush1.bf16.msra.mxu0 %v2215
  %3241 = vmatprep.subr.bf16.mxu0 %v2218
  %3242 = vmatpush1.bf16.msra.mxu0 %v2217
  %3243 = vmatprep.subr.bf16.mxu0 %v2220
  %3244 = vmatpush1.bf16.msra.mxu0 %v2219
  %3245 = vmatprep.subr.bf16.mxu0 %v2222
  %3246 = vmatpush1.bf16.msra.mxu0 %v2221
  %3247 = vmatprep.subr.bf16.mxu0 %v2224
  %3248 = vmatpush1.bf16.msra.mxu0 %v2223
  %3249 = vmatprep.mubr.bf16.mxu0 %v594
  %3250 = vmatmul.mubr.bf16.gmra.mrb[0].mxu0 %v593
  %v3251 = vpop.f32.mrb[0].mxu0
  %v3252 = vadd.f32 0.0, %v3251
  %v3253 = vpop.f32.mrb[0].mxu0
  %v3254 = vadd.f32 0.0, %v3253
  %v3255 = vpop.f32.mrb[0].mxu0
  %v3256 = vpop.f32.mrb[0].mxu0
  %3257 = vdwg.mxu0
  %3258 = vmatprep.subr.bf16.mxu0 %v2226
  %3259 = vmatpush1.bf16.msra.mxu0 %v2225
  %3260 = vmatprep.subr.bf16.mxu0 %v2228
  %3261 = vmatpush1.bf16.msra.mxu0 %v2227
  %3262 = vmatprep.subr.bf16.mxu0 %v2230
  %3263 = vmatpush1.bf16.msra.mxu0 %v2229
  %3264 = vmatprep.subr.bf16.mxu0 %v2232
  %3265 = vmatpush1.bf16.msra.mxu0 %v2231
  %3266 = vmatprep.subr.bf16.mxu0 %v2234
  %3267 = vmatpush1.bf16.msra.mxu0 %v2233
  %3268 = vmatprep.subr.bf16.mxu0 %v2236
  %3269 = vmatpush1.bf16.msra.mxu0 %v2235
  %3270 = vmatprep.subr.bf16.mxu0 %v2238
  %3271 = vmatpush1.bf16.msra.mxu0 %v2237
  %3272 = vmatprep.subr.bf16.mxu0 %v2240
  %3273 = vmatpush1.bf16.msra.mxu0 %v2239
  %3274 = vmatprep.subr.bf16.mxu0 %v2242
  %3275 = vmatpush1.bf16.msra.mxu0 %v2241
  %3276 = vmatprep.subr.bf16.mxu0 %v2244
  %3277 = vmatpush1.bf16.msra.mxu0 %v2243
  %3278 = vmatprep.subr.bf16.mxu0 %v2246
  %3279 = vmatpush1.bf16.msra.mxu0 %v2245
  %3280 = vmatprep.subr.bf16.mxu0 %v2248
  %3281 = vmatpush1.bf16.msra.mxu0 %v2247
  %3282 = vmatprep.subr.bf16.mxu0 %v2250
  %3283 = vmatpush1.bf16.msra.mxu0 %v2249
  %3284 = vmatprep.subr.bf16.mxu0 %v2252
  %3285 = vmatpush1.bf16.msra.mxu0 %v2251
  %3286 = vmatprep.subr.bf16.mxu0 %v2254
  %3287 = vmatpush1.bf16.msra.mxu0 %v2253
  %3288 = vmatprep.subr.bf16.mxu0 %v2256
  %3289 = vmatpush1.bf16.msra.mxu0 %v2255
  %3290 = vmatprep.mubr.bf16.mxu0 %v596
  %3291 = vmatmul.mubr.bf16.gmra.mrb[0].mxu0 %v595
  %v3292 = vpop.f32.mrb[0].mxu0
  %v3293 = vadd.f32 %v3252, %v3292
  %v3294 = vpop.f32.mrb[0].mxu0
  %v3295 = vadd.f32 %v3254, %v3294
  %v3296 = vpop.f32.mrb[0].mxu0
  %v3297 = vpop.f32.mrb[0].mxu0
  %3298 = vdwg.mxu0
  %3299 = vmatprep.subr.bf16.mxu0 %v2258
  %3300 = vmatpush1.bf16.msra.mxu0 %v2257
  %3301 = vmatprep.subr.bf16.mxu0 %v2260
  %3302 = vmatpush1.bf16.msra.mxu0 %v2259
  %3303 = vmatprep.subr.bf16.mxu0 %v2262
  %3304 = vmatpush1.bf16.msra.mxu0 %v2261
  %3305 = vmatprep.subr.bf16.mxu0 %v2264
  %3306 = vmatpush1.bf16.msra.mxu0 %v2263
  %3307 = vmatprep.subr.bf16.mxu0 %v2266
  %3308 = vmatpush1.bf16.msra.mxu0 %v2265
  %3309 = vmatprep.subr.bf16.mxu0 %v2268
  %3310 = vmatpush1.bf16.msra.mxu0 %v2267
  %3311 = vmatprep.subr.bf16.mxu0 %v2270
  %3312 = vmatpush1.bf16.msra.mxu0 %v2269
  %3313 = vmatprep.subr.bf16.mxu0 %v2272
  %3314 = vmatpush1.bf16.msra.mxu0 %v2271
  %3315 = vmatprep.subr.bf16.mxu0 %v2274
  %3316 = vmatpush1.bf16.msra.mxu0 %v2273
  %3317 = vmatprep.subr.bf16.mxu0 %v2276
  %3318 = vmatpush1.bf16.msra.mxu0 %v2275
  %3319 = vmatprep.subr.bf16.mxu0 %v2278
  %3320 = vmatpush1.bf16.msra.mxu0 %v2277
  %3321 = vmatprep.subr.bf16.mxu0 %v2280
  %3322 = vmatpush1.bf16.msra.mxu0 %v2279
  %3323 = vmatprep.subr.bf16.mxu0 %v2282
  %3324 = vmatpush1.bf16.msra.mxu0 %v2281
  %3325 = vmatprep.subr.bf16.mxu0 %v2284
  %3326 = vmatpush1.bf16.msra.mxu0 %v2283
  %3327 = vmatprep.subr.bf16.mxu0 %v2286
  %3328 = vmatpush1.bf16.msra.mxu0 %v2285
  %3329 = vmatprep.subr.bf16.mxu0 %v2288
  %3330 = vmatpush1.bf16.msra.mxu0 %v2287
  %3331 = vmatprep.mubr.bf16.mxu0 %v598
  %3332 = vmatmul.mubr.bf16.gmra.mrb[0].mxu0 %v597
  %v3333 = vpop.f32.mrb[0].mxu0
  %v3334 = vadd.f32 %v3293, %v3333
  %v3335 = vpop.f32.mrb[0].mxu0
  %v3336 = vadd.f32 %v3295, %v3335
  %v3337 = vpop.f32.mrb[0].mxu0
  %v3338 = vpop.f32.mrb[0].mxu0
  %3339 = vdwg.mxu0
  %3340 = vmatprep.subr.bf16.mxu0 %v2290
  %3341 = vmatpush1.bf16.msra.mxu0 %v2289
  %3342 = vmatprep.subr.bf16.mxu0 %v2292
  %3343 = vmatpush1.bf16.msra.mxu0 %v2291
  %3344 = vmatprep.subr.bf16.mxu0 %v2294
  %3345 = vmatpush1.bf16.msra.mxu0 %v2293
  %3346 = vmatprep.subr.bf16.mxu0 %v2296
  %3347 = vmatpush1.bf16.msra.mxu0 %v2295
  %3348 = vmatprep.subr.bf16.mxu0 %v2298
  %3349 = vmatpush1.bf16.msra.mxu0 %v2297
  %3350 = vmatprep.subr.bf16.mxu0 %v2300
  %3351 = vmatpush1.bf16.msra.mxu0 %v2299
  %3352 = vmatprep.subr.bf16.mxu0 %v2302
  %3353 = vmatpush1.bf16.msra.mxu0 %v2301
  %3354 = vmatprep.subr.bf16.mxu0 %v2304
  %3355 = vmatpush1.bf16.msra.mxu0 %v2303
  %3356 = vmatprep.subr.bf16.mxu0 %v2306
  %3357 = vmatpush1.bf16.msra.mxu0 %v2305
  %3358 = vmatprep.subr.bf16.mxu0 %v2308
  %3359 = vmatpush1.bf16.msra.mxu0 %v2307
  %3360 = vmatprep.subr.bf16.mxu0 %v2310
  %3361 = vmatpush1.bf16.msra.mxu0 %v2309
  %3362 = vmatprep.subr.bf16.mxu0 %v2312
  %3363 = vmatpush1.bf16.msra.mxu0 %v2311
  %3364 = vmatprep.subr.bf16.mxu0 %v2314
  %3365 = vmatpush1.bf16.msra.mxu0 %v2313
  %3366 = vmatprep.subr.bf16.mxu0 %v2316
  %3367 = vmatpush1.bf16.msra.mxu0 %v2315
  %3368 = vmatprep.subr.bf16.mxu0 %v2318
  %3369 = vmatpush1.bf16.msra.mxu0 %v2317
  %3370 = vmatprep.subr.bf16.mxu0 %v2320
  %3371 = vmatpush1.bf16.msra.mxu0 %v2319
  %3372 = vmatprep.mubr.bf16.mxu0 %v600
  %3373 = vmatmul.mubr.bf16.gmra.mrb[0].mxu0 %v599
  %v3374 = vpop.f32.mrb[0].mxu0
  %v3375 = vadd.f32 %v3334, %v3374
  %v3376 = vpop.f32.mrb[0].mxu0
  %v3377 = vadd.f32 %v3336, %v3376
  %v3378 = vpop.f32.mrb[0].mxu0
  %v3379 = vpop.f32.mrb[0].mxu0
  %3380 = vdwg.mxu0
  %3381 = vmatprep.subr.bf16.mxu0 %v2322
  %3382 = vmatpush1.bf16.msra.mxu0 %v2321
  %3383 = vmatprep.subr.bf16.mxu0 %v2324
  %3384 = vmatpush1.bf16.msra.mxu0 %v2323
  %3385 = vmatprep.subr.bf16.mxu0 %v2326
  %3386 = vmatpush1.bf16.msra.mxu0 %v2325
  %3387 = vmatprep.subr.bf16.mxu0 %v2328
  %3388 = vmatpush1.bf16.msra.mxu0 %v2327
  %3389 = vmatprep.subr.bf16.mxu0 %v2330
  %3390 = vmatpush1.bf16.msra.mxu0 %v2329
  %3391 = vmatprep.subr.bf16.mxu0 %v2332
  %3392 = vmatpush1.bf16.msra.mxu0 %v2331
  %3393 = vmatprep.subr.bf16.mxu0 %v2334
  %3394 = vmatpush1.bf16.msra.mxu0 %v2333
  %3395 = vmatprep.subr.bf16.mxu0 %v2336
  %3396 = vmatpush1.bf16.msra.mxu0 %v2335
  %3397 = vmatprep.subr.bf16.mxu0 %v2338
  %3398 = vmatpush1.bf16.msra.mxu0 %v2337
  %3399 = vmatprep.subr.bf16.mxu0 %v2340
  %3400 = vmatpush1.bf16.msra.mxu0 %v2339
  %3401 = vmatprep.subr.bf16.mxu0 %v2342
  %3402 = vmatpush1.bf16.msra.mxu0 %v2341
  %3403 = vmatprep.subr.bf16.mxu0 %v2344
  %3404 = vmatpush1.bf16.msra.mxu0 %v2343
  %3405 = vmatprep.subr.bf16.mxu0 %v2346
  %3406 = vmatpush1.bf16.msra.mxu0 %v2345
  %3407 = vmatprep.subr.bf16.mxu0 %v2348
  %3408 = vmatpush1.bf16.msra.mxu0 %v2347
  %3409 = vmatprep.subr.bf16.mxu0 %v2350
  %3410 = vmatpush1.bf16.msra.mxu0 %v2349
  %3411 = vmatprep.subr.bf16.mxu0 %v2352
  %3412 = vmatpush1.bf16.msra.mxu0 %v2351
  %3413 = vmatprep.mubr.bf16.mxu0 %v602
  %3414 = vmatmul.mubr.bf16.gmra.mrb[0].mxu0 %v601
  %v3415 = vpop.f32.mrb[0].mxu0
  %v3416 = vadd.f32 %v3375, %v3415
  %v3417 = vpop.f32.mrb[0].mxu0
  %v3418 = vadd.f32 %v3377, %v3417
  %v3419 = vpop.f32.mrb[0].mxu0
  %v3420 = vpop.f32.mrb[0].mxu0
  %3421 = vdwg.mxu0
  %3422 = vmatprep.subr.bf16.mxu0 %v2354
  %3423 = vmatpush1.bf16.msra.mxu0 %v2353
  %3424 = vmatprep.subr.bf16.mxu0 %v2356
  %3425 = vmatpush1.bf16.msra.mxu0 %v2355
  %3426 = vmatprep.subr.bf16.mxu0 %v2358
  %3427 = vmatpush1.bf16.msra.mxu0 %v2357
  %3428 = vmatprep.subr.bf16.mxu0 %v2360
  %3429 = vmatpush1.bf16.msra.mxu0 %v2359
  %3430 = vmatprep.subr.bf16.mxu0 %v2362
  %3431 = vmatpush1.bf16.msra.mxu0 %v2361
  %3432 = vmatprep.subr.bf16.mxu0 %v2364
  %3433 = vmatpush1.bf16.msra.mxu0 %v2363
  %3434 = vmatprep.subr.bf16.mxu0 %v2366
  %3435 = vmatpush1.bf16.msra.mxu0 %v2365
  %3436 = vmatprep.subr.bf16.mxu0 %v2368
  %3437 = vmatpush1.bf16.msra.mxu0 %v2367
  %3438 = vmatprep.subr.bf16.mxu0 %v2370
  %3439 = vmatpush1.bf16.msra.mxu0 %v2369
  %3440 = vmatprep.subr.bf16.mxu0 %v2372
  %3441 = vmatpush1.bf16.msra.mxu0 %v2371
  %3442 = vmatprep.subr.bf16.mxu0 %v2374
  %3443 = vmatpush1.bf16.msra.mxu0 %v2373
  %3444 = vmatprep.subr.bf16.mxu0 %v2376
  %3445 = vmatpush1.bf16.msra.mxu0 %v2375
  %3446 = vmatprep.subr.bf16.mxu0 %v2378
  %3447 = vmatpush1.bf16.msra.mxu0 %v2377
  %3448 = vmatprep.subr.bf16.mxu0 %v2380
  %3449 = vmatpush1.bf16.msra.mxu0 %v2379
  %3450 = vmatprep.subr.bf16.mxu0 %v2382
  %3451 = vmatpush1.bf16.msra.mxu0 %v2381
  %3452 = vmatprep.subr.bf16.mxu0 %v2384
  %3453 = vmatpush1.bf16.msra.mxu0 %v2383
  %3454 = vmatprep.mubr.bf16.mxu0 %v604
  %3455 = vmatmul.mubr.bf16.gmra.mrb[0].mxu0 %v603
  %v3456 = vpop.f32.mrb[0].mxu0
  %v3457 = vadd.f32 %v3416, %v3456
  %v3458 = vpop.f32.mrb[0].mxu0
  %v3459 = vadd.f32 %v3418, %v3458
  %v3460 = vpop.f32.mrb[0].mxu0
  %v3461 = vpop.f32.mrb[0].mxu0
  %3462 = vdwg.mxu0
  %3463 = vmatprep.subr.bf16.mxu0 %v2386
  %3464 = vmatpush1.bf16.msra.mxu0 %v2385
  %3465 = vmatprep.subr.bf16.mxu0 %v2388
  %3466 = vmatpush1.bf16.msra.mxu0 %v2387
  %3467 = vmatprep.subr.bf16.mxu0 %v2390
  %3468 = vmatpush1.bf16.msra.mxu0 %v2389
  %3469 = vmatprep.subr.bf16.mxu0 %v2392
  %3470 = vmatpush1.bf16.msra.mxu0 %v2391
  %3471 = vmatprep.subr.bf16.mxu0 %v2394
  %3472 = vmatpush1.bf16.msra.mxu0 %v2393
  %3473 = vmatprep.subr.bf16.mxu0 %v2396
  %3474 = vmatpush1.bf16.msra.mxu0 %v2395
  %3475 = vmatprep.subr.bf16.mxu0 %v2398
  %3476 = vmatpush1.bf16.msra.mxu0 %v2397
  %3477 = vmatprep.subr.bf16.mxu0 %v2400
  %3478 = vmatpush1.bf16.msra.mxu0 %v2399
  %3479 = vmatprep.subr.bf16.mxu0 %v2402
  %3480 = vmatpush1.bf16.msra.mxu0 %v2401
  %3481 = vmatprep.subr.bf16.mxu0 %v2404
  %3482 = vmatpush1.bf16.msra.mxu0 %v2403
  %3483 = vmatprep.subr.bf16.mxu0 %v2406
  %3484 = vmatpush1.bf16.msra.mxu0 %v2405
  %3485 = vmatprep.subr.bf16.mxu0 %v2408
  %3486 = vmatpush1.bf16.msra.mxu0 %v2407
  %3487 = vmatprep.subr.bf16.mxu0 %v2410
  %3488 = vmatpush1.bf16.msra.mxu0 %v2409
  %3489 = vmatprep.subr.bf16.mxu0 %v2412
  %3490 = vmatpush1.bf16.msra.mxu0 %v2411
  %3491 = vmatprep.subr.bf16.mxu0 %v2414
  %3492 = vmatpush1.bf16.msra.mxu0 %v2413
  %3493 = vmatprep.subr.bf16.mxu0 %v2416
  %3494 = vmatpush1.bf16.msra.mxu0 %v2415
  %3495 = vmatprep.mubr.bf16.mxu0 %v606
  %3496 = vmatmul.mubr.bf16.gmra.mrb[0].mxu0 %v605
  %v3497 = vpop.f32.mrb[0].mxu0
  %v3498 = vadd.f32 %v3457, %v3497
  %v3499 = vpop.f32.mrb[0].mxu0
  %v3500 = vadd.f32 %v3459, %v3499
  %v3501 = vpop.f32.mrb[0].mxu0
  %v3502 = vpop.f32.mrb[0].mxu0
  %3503 = vdwg.mxu0
  %3504 = vmatprep.subr.bf16.mxu0 %v2418
  %3505 = vmatpush1.bf16.msra.mxu0 %v2417
  %3506 = vmatprep.subr.bf16.mxu0 %v2420
  %3507 = vmatpush1.bf16.msra.mxu0 %v2419
  %3508 = vmatprep.subr.bf16.mxu0 %v2422
  %3509 = vmatpush1.bf16.msra.mxu0 %v2421
  %3510 = vmatprep.subr.bf16.mxu0 %v2424
  %3511 = vmatpush1.bf16.msra.mxu0 %v2423
  %3512 = vmatprep.subr.bf16.mxu0 %v2426
  %3513 = vmatpush1.bf16.msra.mxu0 %v2425
  %3514 = vmatprep.subr.bf16.mxu0 %v2428
  %3515 = vmatpush1.bf16.msra.mxu0 %v2427
  %3516 = vmatprep.subr.bf16.mxu0 %v2430
  %3517 = vmatpush1.bf16.msra.mxu0 %v2429
  %3518 = vmatprep.subr.bf16.mxu0 %v2432
  %3519 = vmatpush1.bf16.msra.mxu0 %v2431
  %3520 = vmatprep.subr.bf16.mxu0 %v2434
  %3521 = vmatpush1.bf16.msra.mxu0 %v2433
  %3522 = vmatprep.subr.bf16.mxu0 %v2436
  %3523 = vmatpush1.bf16.msra.mxu0 %v2435
  %3524 = vmatprep.subr.bf16.mxu0 %v2438
  %3525 = vmatpush1.bf16.msra.mxu0 %v2437
  %3526 = vmatprep.subr.bf16.mxu0 %v2440
  %3527 = vmatpush1.bf16.msra.mxu0 %v2439
  %3528 = vmatprep.subr.bf16.mxu0 %v2442
  %3529 = vmatpush1.bf16.msra.mxu0 %v2441
  %3530 = vmatprep.subr.bf16.mxu0 %v2444
  %3531 = vmatpush1.bf16.msra.mxu0 %v2443
  %3532 = vmatprep.subr.bf16.mxu0 %v2446
  %3533 = vmatpush1.bf16.msra.mxu0 %v2445
  %3534 = vmatprep.subr.bf16.mxu0 %v2448
  %3535 = vmatpush1.bf16.msra.mxu0 %v2447
  %3536 = vmatprep.mubr.bf16.mxu0 %v608
  %3537 = vmatmul.mubr.bf16.gmra.mrb[0].mxu0 %v607
  %v3538 = vpop.f32.mrb[0].mxu0
  %v3539 = vadd.f32 %v3498, %v3538
  %v3540 = vpop.f32.mrb[0].mxu0
  %v3541 = vadd.f32 %v3500, %v3540
  %v3542 = vpop.f32.mrb[0].mxu0
  %v3543 = vpop.f32.mrb[0].mxu0
  %3544 = vdwg.mxu0
  %3545 = vmatprep.subr.bf16.mxu0 %v2450
  %3546 = vmatpush1.bf16.msra.mxu0 %v2449
  %3547 = vmatprep.subr.bf16.mxu0 %v2452
  %3548 = vmatpush1.bf16.msra.mxu0 %v2451
  %3549 = vmatprep.subr.bf16.mxu0 %v2454
  %3550 = vmatpush1.bf16.msra.mxu0 %v2453
  %3551 = vmatprep.subr.bf16.mxu0 %v2456
  %3552 = vmatpush1.bf16.msra.mxu0 %v2455
  %3553 = vmatprep.subr.bf16.mxu0 %v2458
  %3554 = vmatpush1.bf16.msra.mxu0 %v2457
  %3555 = vmatprep.subr.bf16.mxu0 %v2460
  %3556 = vmatpush1.bf16.msra.mxu0 %v2459
  %3557 = vmatprep.subr.bf16.mxu0 %v2462
  %3558 = vmatpush1.bf16.msra.mxu0 %v2461
  %3559 = vmatprep.subr.bf16.mxu0 %v2464
  %3560 = vmatpush1.bf16.msra.mxu0 %v2463
  %3561 = vmatprep.subr.bf16.mxu0 %v2466
  %3562 = vmatpush1.bf16.msra.mxu0 %v2465
  %3563 = vmatprep.subr.bf16.mxu0 %v2468
  %3564 = vmatpush1.bf16.msra.mxu0 %v2467
  %3565 = vmatprep.subr.bf16.mxu0 %v2470
  %3566 = vmatpush1.bf16.msra.mxu0 %v2469
  %3567 = vmatprep.subr.bf16.mxu0 %v2472
  %3568 = vmatpush1.bf16.msra.mxu0 %v2471
  %3569 = vmatprep.subr.bf16.mxu0 %v2474
  %3570 = vmatpush1.bf16.msra.mxu0 %v2473
  %3571 = vmatprep.subr.bf16.mxu0 %v2476
  %3572 = vmatpush1.bf16.msra.mxu0 %v2475
  %3573 = vmatprep.subr.bf16.mxu0 %v2478
  %3574 = vmatpush1.bf16.msra.mxu0 %v2477
  %3575 = vmatprep.subr.bf16.mxu0 %v2480
  %3576 = vmatpush1.bf16.msra.mxu0 %v2479
  %3577 = vmatprep.mubr.bf16.mxu0 %v610
  %3578 = vmatmul.mubr.bf16.gmra.mrb[0].mxu0 %v609
  %v3579 = vpop.f32.mrb[0].mxu0
  %v3580 = vadd.f32 %v3539, %v3579
  %v3581 = vpop.f32.mrb[0].mxu0
  %v3582 = vadd.f32 %v3541, %v3581
  %v3583 = vpop.f32.mrb[0].mxu0
  %v3584 = vpop.f32.mrb[0].mxu0
  %3585 = vdwg.mxu0
  %3586 = vmatprep.subr.bf16.mxu0 %v2482
  %3587 = vmatpush1.bf16.msra.mxu0 %v2481
  %3588 = vmatprep.subr.bf16.mxu0 %v2484
  %3589 = vmatpush1.bf16.msra.mxu0 %v2483
  %3590 = vmatprep.subr.bf16.mxu0 %v2486
  %3591 = vmatpush1.bf16.msra.mxu0 %v2485
  %3592 = vmatprep.subr.bf16.mxu0 %v2488
  %3593 = vmatpush1.bf16.msra.mxu0 %v2487
  %3594 = vmatprep.subr.bf16.mxu0 %v2490
  %3595 = vmatpush1.bf16.msra.mxu0 %v2489
  %3596 = vmatprep.subr.bf16.mxu0 %v2492
  %3597 = vmatpush1.bf16.msra.mxu0 %v2491
  %3598 = vmatprep.subr.bf16.mxu0 %v2494
  %3599 = vmatpush1.bf16.msra.mxu0 %v2493
  %3600 = vmatprep.subr.bf16.mxu0 %v2496
  %3601 = vmatpush1.bf16.msra.mxu0 %v2495
  %3602 = vmatprep.subr.bf16.mxu0 %v2498
  %3603 = vmatpush1.bf16.msra.mxu0 %v2497
  %3604 = vmatprep.subr.bf16.mxu0 %v2500
  %3605 = vmatpush1.bf16.msra.mxu0 %v2499
  %3606 = vmatprep.subr.bf16.mxu0 %v2502
  %3607 = vmatpush1.bf16.msra.mxu0 %v2501
  %3608 = vmatprep.subr.bf16.mxu0 %v2504
  %3609 = vmatpush1.bf16.msra.mxu0 %v2503
  %3610 = vmatprep.subr.bf16.mxu0 %v2506
  %3611 = vmatpush1.bf16.msra.mxu0 %v2505
  %3612 = vmatprep.subr.bf16.mxu0 %v2508
  %3613 = vmatpush1.bf16.msra.mxu0 %v2507
  %3614 = vmatprep.subr.bf16.mxu0 %v2510
  %3615 = vmatpush1.bf16.msra.mxu0 %v2509
  %3616 = vmatprep.subr.bf16.mxu0 %v2512
  %3617 = vmatpush1.bf16.msra.mxu0 %v2511
  %3618 = vmatprep.mubr.bf16.mxu0 %v612
  %3619 = vmatmul.mubr.bf16.gmra.mrb[0].mxu0 %v611
  %v3620 = vpop.f32.mrb[0].mxu0
  %v3621 = vadd.f32 %v3580, %v3620
  %v3622 = vpop.f32.mrb[0].mxu0
  %v3623 = vadd.f32 %v3582, %v3622
  %v3624 = vpop.f32.mrb[0].mxu0
  %v3625 = vpop.f32.mrb[0].mxu0
  %3626 = vdwg.mxu0
  %3627 = vmatprep.subr.bf16.mxu0 %v2514
  %3628 = vmatpush1.bf16.msra.mxu0 %v2513
  %3629 = vmatprep.subr.bf16.mxu0 %v2516
  %3630 = vmatpush1.bf16.msra.mxu0 %v2515
  %3631 = vmatprep.subr.bf16.mxu0 %v2518
  %3632 = vmatpush1.bf16.msra.mxu0 %v2517
  %3633 = vmatprep.subr.bf16.mxu0 %v2520
  %3634 = vmatpush1.bf16.msra.mxu0 %v2519
  %3635 = vmatprep.subr.bf16.mxu0 %v2522
  %3636 = vmatpush1.bf16.msra.mxu0 %v2521
  %3637 = vmatprep.subr.bf16.mxu0 %v2524
  %3638 = vmatpush1.bf16.msra.mxu0 %v2523
  %3639 = vmatprep.subr.bf16.mxu0 %v2526
  %3640 = vmatpush1.bf16.msra.mxu0 %v2525
  %3641 = vmatprep.subr.bf16.mxu0 %v2528
  %3642 = vmatpush1.bf16.msra.mxu0 %v2527
  %3643 = vmatprep.subr.bf16.mxu0 %v2530
  %3644 = vmatpush1.bf16.msra.mxu0 %v2529
  %3645 = vmatprep.subr.bf16.mxu0 %v2532
  %3646 = vmatpush1.bf16.msra.mxu0 %v2531
  %3647 = vmatprep.subr.bf16.mxu0 %v2534
  %3648 = vmatpush1.bf16.msra.mxu0 %v2533
  %3649 = vmatprep.subr.bf16.mxu0 %v2536
  %3650 = vmatpush1.bf16.msra.mxu0 %v2535
  %3651 = vmatprep.subr.bf16.mxu0 %v2538
  %3652 = vmatpush1.bf16.msra.mxu0 %v2537
  %3653 = vmatprep.subr.bf16.mxu0 %v2540
  %3654 = vmatpush1.bf16.msra.mxu0 %v2539
  %3655 = vmatprep.subr.bf16.mxu0 %v2542
  %3656 = vmatpush1.bf16.msra.mxu0 %v2541
  %3657 = vmatprep.subr.bf16.mxu0 %v2544
  %3658 = vmatpush1.bf16.msra.mxu0 %v2543
  %3659 = vmatprep.mubr.bf16.mxu0 %v614
  %3660 = vmatmul.mubr.bf16.gmra.mrb[0].mxu0 %v613
  %v3661 = vpop.f32.mrb[0].mxu0
  %v3662 = vadd.f32 %v3621, %v3661
  %v3663 = vpop.f32.mrb[0].mxu0
  %v3664 = vadd.f32 %v3623, %v3663
  %v3665 = vpop.f32.mrb[0].mxu0
  %v3666 = vpop.f32.mrb[0].mxu0
  %3667 = vdwg.mxu0
  %3668 = vmatprep.subr.bf16.mxu0 %v2546
  %3669 = vmatpush1.bf16.msra.mxu0 %v2545
  %3670 = vmatprep.subr.bf16.mxu0 %v2548
  %3671 = vmatpush1.bf16.msra.mxu0 %v2547
  %3672 = vmatprep.subr.bf16.mxu0 %v2550
  %3673 = vmatpush1.bf16.msra.mxu0 %v2549
  %3674 = vmatprep.subr.bf16.mxu0 %v2552
  %3675 = vmatpush1.bf16.msra.mxu0 %v2551
  %3676 = vmatprep.subr.bf16.mxu0 %v2554
  %3677 = vmatpush1.bf16.msra.mxu0 %v2553
  %3678 = vmatprep.subr.bf16.mxu0 %v2556
  %3679 = vmatpush1.bf16.msra.mxu0 %v2555
  %3680 = vmatprep.subr.bf16.mxu0 %v2558
  %3681 = vmatpush1.bf16.msra.mxu0 %v2557
  %3682 = vmatprep.subr.bf16.mxu0 %v2560
  %3683 = vmatpush1.bf16.msra.mxu0 %v2559
  %3684 = vmatprep.subr.bf16.mxu0 %v2562
  %3685 = vmatpush1.bf16.msra.mxu0 %v2561
  %3686 = vmatprep.subr.bf16.mxu0 %v2564
  %3687 = vmatpush1.bf16.msra.mxu0 %v2563
  %3688 = vmatprep.subr.bf16.mxu0 %v2566
  %3689 = vmatpush1.bf16.msra.mxu0 %v2565
  %3690 = vmatprep.subr.bf16.mxu0 %v2568
  %3691 = vmatpush1.bf16.msra.mxu0 %v2567
  %3692 = vmatprep.subr.bf16.mxu0 %v2570
  %3693 = vmatpush1.bf16.msra.mxu0 %v2569
  %3694 = vmatprep.subr.bf16.mxu0 %v2572
  %3695 = vmatpush1.bf16.msra.mxu0 %v2571
  %3696 = vmatprep.subr.bf16.mxu0 %v2574
  %3697 = vmatpush1.bf16.msra.mxu0 %v2573
  %3698 = vmatprep.subr.bf16.mxu0 %v2576
  %3699 = vmatpush1.bf16.msra.mxu0 %v2575
  %3700 = vmatprep.mubr.bf16.mxu0 %v616
  %3701 = vmatmul.mubr.bf16.gmra.mrb[0].mxu0 %v615
  %v3702 = vpop.f32.mrb[0].mxu0
  %v3703 = vadd.f32 %v3662, %v3702
  %v3704 = vpop.f32.mrb[0].mxu0
  %v3705 = vadd.f32 %v3664, %v3704
  %v3706 = vpop.f32.mrb[0].mxu0
  %v3707 = vpop.f32.mrb[0].mxu0
  %3708 = vdwg.mxu0
  %3709 = vmatprep.subr.bf16.mxu0 %v2578
  %3710 = vmatpush1.bf16.msra.mxu0 %v2577
  %3711 = vmatprep.subr.bf16.mxu0 %v2580
  %3712 = vmatpush1.bf16.msra.mxu0 %v2579
  %3713 = vmatprep.subr.bf16.mxu0 %v2582
  %3714 = vmatpush1.bf16.msra.mxu0 %v2581
  %3715 = vmatprep.subr.bf16.mxu0 %v2584
  %3716 = vmatpush1.bf16.msra.mxu0 %v2583
  %3717 = vmatprep.subr.bf16.mxu0 %v2586
  %3718 = vmatpush1.bf16.msra.mxu0 %v2585
  %3719 = vmatprep.subr.bf16.mxu0 %v2588
  %3720 = vmatpush1.bf16.msra.mxu0 %v2587
  %3721 = vmatprep.subr.bf16.mxu0 %v2590
  %3722 = vmatpush1.bf16.msra.mxu0 %v2589
  %3723 = vmatprep.subr.bf16.mxu0 %v2592
  %3724 = vmatpush1.bf16.msra.mxu0 %v2591
  %3725 = vmatprep.subr.bf16.mxu0 %v2594
  %3726 = vmatpush1.bf16.msra.mxu0 %v2593
  %3727 = vmatprep.subr.bf16.mxu0 %v2596
  %3728 = vmatpush1.bf16.msra.mxu0 %v2595
  %3729 = vmatprep.subr.bf16.mxu0 %v2598
  %3730 = vmatpush1.bf16.msra.mxu0 %v2597
  %3731 = vmatprep.subr.bf16.mxu0 %v2600
  %3732 = vmatpush1.bf16.msra.mxu0 %v2599
  %3733 = vmatprep.subr.bf16.mxu0 %v2602
  %3734 = vmatpush1.bf16.msra.mxu0 %v2601
  %3735 = vmatprep.subr.bf16.mxu0 %v2604
  %3736 = vmatpush1.bf16.msra.mxu0 %v2603
  %3737 = vmatprep.subr.bf16.mxu0 %v2606
  %3738 = vmatpush1.bf16.msra.mxu0 %v2605
  %3739 = vmatprep.subr.bf16.mxu0 %v2608
  %3740 = vmatpush1.bf16.msra.mxu0 %v2607
  %3741 = vmatprep.mubr.bf16.mxu0 %v618
  %3742 = vmatmul.mubr.bf16.gmra.mrb[0].mxu0 %v617
  %v3743 = vpop.f32.mrb[0].mxu0
  %v3744 = vadd.f32 %v3703, %v3743
  %v3745 = vpop.f32.mrb[0].mxu0
  %v3746 = vadd.f32 %v3705, %v3745
  %v3747 = vpop.f32.mrb[0].mxu0
  %v3748 = vpop.f32.mrb[0].mxu0
  %3749 = vdwg.mxu0
  %3750 = vmatprep.subr.bf16.mxu0 %v2610
  %3751 = vmatpush1.bf16.msra.mxu0 %v2609
  %3752 = vmatprep.subr.bf16.mxu0 %v2612
  %3753 = vmatpush1.bf16.msra.mxu0 %v2611
  %3754 = vmatprep.subr.bf16.mxu0 %v2614
  %3755 = vmatpush1.bf16.msra.mxu0 %v2613
  %3756 = vmatprep.subr.bf16.mxu0 %v2616
  %3757 = vmatpush1.bf16.msra.mxu0 %v2615
  %3758 = vmatprep.subr.bf16.mxu0 %v2618
  %3759 = vmatpush1.bf16.msra.mxu0 %v2617
  %3760 = vmatprep.subr.bf16.mxu0 %v2620
  %3761 = vmatpush1.bf16.msra.mxu0 %v2619
  %3762 = vmatprep.subr.bf16.mxu0 %v2622
  %3763 = vmatpush1.bf16.msra.mxu0 %v2621
  %3764 = vmatprep.subr.bf16.mxu0 %v2624
  %3765 = vmatpush1.bf16.msra.mxu0 %v2623
  %3766 = vmatprep.subr.bf16.mxu0 %v2626
  %3767 = vmatpush1.bf16.msra.mxu0 %v2625
  %3768 = vmatprep.subr.bf16.mxu0 %v2628
  %3769 = vmatpush1.bf16.msra.mxu0 %v2627
  %3770 = vmatprep.subr.bf16.mxu0 %v2630
  %3771 = vmatpush1.bf16.msra.mxu0 %v2629
  %3772 = vmatprep.subr.bf16.mxu0 %v2632
  %3773 = vmatpush1.bf16.msra.mxu0 %v2631
  %3774 = vmatprep.subr.bf16.mxu0 %v2634
  %3775 = vmatpush1.bf16.msra.mxu0 %v2633
  %3776 = vmatprep.subr.bf16.mxu0 %v2636
  %3777 = vmatpush1.bf16.msra.mxu0 %v2635
  %3778 = vmatprep.subr.bf16.mxu0 %v2638
  %3779 = vmatpush1.bf16.msra.mxu0 %v2637
  %3780 = vmatprep.subr.bf16.mxu0 %v2640
  %3781 = vmatpush1.bf16.msra.mxu0 %v2639
  %3782 = vmatprep.mubr.bf16.mxu0 %v620
  %3783 = vmatmul.mubr.bf16.gmra.mrb[0].mxu0 %v619
  %v3784 = vpop.f32.mrb[0].mxu0
  %v3785 = vadd.f32 %v3744, %v3784
  %v3786 = vpop.f32.mrb[0].mxu0
  %v3787 = vadd.f32 %v3746, %v3786
  %v3788 = vpop.f32.mrb[0].mxu0
  %v3789 = vpop.f32.mrb[0].mxu0
  %3790 = vdwg.mxu0
  %3791 = vmatprep.subr.bf16.mxu0 %v2642
  %3792 = vmatpush1.bf16.msra.mxu0 %v2641
  %3793 = vmatprep.subr.bf16.mxu0 %v2644
  %3794 = vmatpush1.bf16.msra.mxu0 %v2643
  %3795 = vmatprep.subr.bf16.mxu0 %v2646
  %3796 = vmatpush1.bf16.msra.mxu0 %v2645
  %3797 = vmatprep.subr.bf16.mxu0 %v2648
  %3798 = vmatpush1.bf16.msra.mxu0 %v2647
  %3799 = vmatprep.subr.bf16.mxu0 %v2650
  %3800 = vmatpush1.bf16.msra.mxu0 %v2649
  %3801 = vmatprep.subr.bf16.mxu0 %v2652
  %3802 = vmatpush1.bf16.msra.mxu0 %v2651
  %3803 = vmatprep.subr.bf16.mxu0 %v2654
  %3804 = vmatpush1.bf16.msra.mxu0 %v2653
  %3805 = vmatprep.subr.bf16.mxu0 %v2656
  %3806 = vmatpush1.bf16.msra.mxu0 %v2655
  %3807 = vmatprep.subr.bf16.mxu0 %v2658
  %3808 = vmatpush1.bf16.msra.mxu0 %v2657
  %3809 = vmatprep.subr.bf16.mxu0 %v2660
  %3810 = vmatpush1.bf16.msra.mxu0 %v2659
  %3811 = vmatprep.subr.bf16.mxu0 %v2662
  %3812 = vmatpush1.bf16.msra.mxu0 %v2661
  %3813 = vmatprep.subr.bf16.mxu0 %v2664
  %3814 = vmatpush1.bf16.msra.mxu0 %v2663
  %3815 = vmatprep.subr.bf16.mxu0 %v2666
  %3816 = vmatpush1.bf16.msra.mxu0 %v2665
  %3817 = vmatprep.subr.bf16.mxu0 %v2668
  %3818 = vmatpush1.bf16.msra.mxu0 %v2667
  %3819 = vmatprep.subr.bf16.mxu0 %v2670
  %3820 = vmatpush1.bf16.msra.mxu0 %v2669
  %3821 = vmatprep.subr.bf16.mxu0 %v2672
  %3822 = vmatpush1.bf16.msra.mxu0 %v2671
  %3823 = vmatprep.mubr.bf16.mxu0 %v622
  %3824 = vmatmul.mubr.bf16.gmra.mrb[0].mxu0 %v621
  %v3825 = vpop.f32.mrb[0].mxu0
  %v3826 = vadd.f32 %v3785, %v3825
  %v3827 = vpop.f32.mrb[0].mxu0
  %v3828 = vadd.f32 %v3787, %v3827
  %v3829 = vpop.f32.mrb[0].mxu0
  %v3830 = vpop.f32.mrb[0].mxu0
  %3831 = vdwg.mxu0
  %3832 = vmatprep.subr.bf16.mxu0 %v2674
  %3833 = vmatpush1.bf16.msra.mxu0 %v2673
  %3834 = vmatprep.subr.bf16.mxu0 %v2676
  %3835 = vmatpush1.bf16.msra.mxu0 %v2675
  %3836 = vmatprep.subr.bf16.mxu0 %v2678
  %3837 = vmatpush1.bf16.msra.mxu0 %v2677
  %3838 = vmatprep.subr.bf16.mxu0 %v2680
  %3839 = vmatpush1.bf16.msra.mxu0 %v2679
  %3840 = vmatprep.subr.bf16.mxu0 %v2682
  %3841 = vmatpush1.bf16.msra.mxu0 %v2681
  %3842 = vmatprep.subr.bf16.mxu0 %v2684
  %3843 = vmatpush1.bf16.msra.mxu0 %v2683
  %3844 = vmatprep.subr.bf16.mxu0 %v2686
  %3845 = vmatpush1.bf16.msra.mxu0 %v2685
  %3846 = vmatprep.subr.bf16.mxu0 %v2688
  %3847 = vmatpush1.bf16.msra.mxu0 %v2687
  %3848 = vmatprep.subr.bf16.mxu0 %v2690
  %3849 = vmatpush1.bf16.msra.mxu0 %v2689
  %3850 = vmatprep.subr.bf16.mxu0 %v2692
  %3851 = vmatpush1.bf16.msra.mxu0 %v2691
  %3852 = vmatprep.subr.bf16.mxu0 %v2694
  %3853 = vmatpush1.bf16.msra.mxu0 %v2693
  %3854 = vmatprep.subr.bf16.mxu0 %v2696
  %3855 = vmatpush1.bf16.msra.mxu0 %v2695
  %3856 = vmatprep.subr.bf16.mxu0 %v2698
  %3857 = vmatpush1.bf16.msra.mxu0 %v2697
  %3858 = vmatprep.subr.bf16.mxu0 %v2700
  %3859 = vmatpush1.bf16.msra.mxu0 %v2699
  %3860 = vmatprep.subr.bf16.mxu0 %v2702
  %3861 = vmatpush1.bf16.msra.mxu0 %v2701
  %3862 = vmatprep.subr.bf16.mxu0 %v2704
  %3863 = vmatpush1.bf16.msra.mxu0 %v2703
  %3864 = vmatprep.mubr.bf16.mxu0 %v624
  %3865 = vmatmul.mubr.bf16.gmra.mrb[0].mxu0 %v623
  %v3866 = vpop.f32.mrb[0].mxu0
  %v3867 = vadd.f32 %v3826, %v3866
  %v3868 = vpop.f32.mrb[0].mxu0
  %v3869 = vadd.f32 %v3828, %v3868
  %v3870 = vpop.f32.mrb[0].mxu0
  %v3871 = vpop.f32.mrb[0].mxu0
  %3872 = vdwg.mxu0
  %v3873 = vld [vmem:[%s2] sm:$0x3]
  %v3875 = vlaneseq
  %v3876 = vshrl.u32 %v3875, 7
  %v3877 = vsub.s32 0, %v3876
  %v3878 = vrot.slane %v3873, %v3877
  %v3879 = vlaneseq
  %v3880 = vshrl.u32 %v3879, 7
  %v3881 = vsub.s32 1, %v3880
  %v3882 = vrot.slane %v3873, %v3881
  %v3885 = vmul.f32 %v3867, %v3878
  %v3886 = vmul.f32 %v3869, %v3882
  %v3887 = vld [vmem:[%s3] sm:$0x3]
  %v3889 = vlaneseq
  %v3890 = vshrl.u32 %v3889, 7
  %v3891 = vsub.s32 0, %v3890
  %v3892 = vrot.slane %v3887, %v3891
  %v3893 = vlaneseq
  %v3894 = vshrl.u32 %v3893, 7
  %v3895 = vsub.s32 1, %v3894
  %v3896 = vrot.slane %v3887, %v3895
  %v3899 = vadd.f32 %v3885, %v3892
  %v3900 = vadd.f32 %v3886, %v3896
  %v3901 = vmax.f32 %v3899, 0.0
  %v3902 = vmax.f32 %v3900, 0.0
  %v3903 = vpack.c.bf16 %v3901, %v3901
  %v3904 = vpack.c.bf16 %v3902, %v3902
  %v3907 = vunpack.c.l.b16 %v3903
  %v3908 = vunpack.c.l.b16 %v3904
  %v3909 = vpack.c.b16 %v3908, %v3907
  %3911 = vst [vmem:[%s4] sm:$0xff] %v3909
  // Predicated region
  $region18: #{discriminator_forward.13} parent=0 // pred_check
    _
  $region19: #{discriminator_forward.13} parent=0 // pred_check_branch
    %3913 = sbr.rel (0) target = $region21
  $region20: #{discriminator_forward.13} parent=0 // pred_region
    _
  $region21: #{discriminator_forward.13} parent=0 // pred_fallthru
    _
  // Predicated region
  $region22: #{discriminator_forward.13} parent=0 // pred_check
    _
  $region23: #{discriminator_forward.13} parent=0 // pred_check_branch
    %3915 = sbr.rel (0) target = $region25
  $region24: #{discriminator_forward.13} parent=0 // pred_region
    _
  $region25: #{discriminator_forward.13} parent=0 // pred_fallthru
    _

// kernel: discriminator_forward.15
$region0: #{discriminator_forward.15}
  #allocation0 [shape = 'u32[]', space=smem, size = 0x4, offset = 0x4, fixed_abs, tag = 'smem constant byte address 0x4 - core index']
  #allocation1 [shape = 'u32[144,128]{1,0:T(1,128)}', space=vmem, size = 0x12000, scoped, tag = 'internal scratch']
  %s0 = inlined_call_operand.vmem [shape: bf16[2,8,512], index: 0, kind: input, shape index: {}]
  %s1 = inlined_call_operand.vmem [shape: f32[512,128], index: 1, kind: input, shape index: {}]
  %s2 = inlined_call_operand.vmem [shape: f32[1,128], index: 2, kind: input, shape index: {}]
  %s3 = inlined_call_operand.hbm [shape: f32[2,512], index: 3, kind: output, shape index: {0}]
  %s4 = inlined_call_operand.vmem [shape: f32[2,128], index: 4, kind: output, shape index: {1}]
  %5 = xla_tuple %s3, %s4
  %s6 = sld [smem:[#allocation0]]
  $region38: #{discriminator_forward.15} parent=0
    _
  %s8 = ssub.s32 1, %s6
  %s9 = scalar_select 0, %s8, %s6
  $region1: #{discriminator_forward.15} parent=0
    #allocation2 [shape = 'u8[4096]{0}', space=vmem, size = 0x1000, scoped, tag = 'output window, operand 0, single buffered']
    #allocation3 [shape = 's32[1]{0}', space=sflag, size = 0x4, scoped, tag = 'scoped memory for discriminator_forward.15']
    %10 = vsyncpa [#allocation3], 0
    // Predicated region
    $region2: #{discriminator_forward.15} parent=1 // pred_check
      _
    $region3: #{discriminator_forward.15} parent=1 // pred_check_branch
      %12 = sbr.rel (0) target = $region5
    $region4: #{discriminator_forward.15} parent=1 // pred_region
      _
    $region5: #{discriminator_forward.15} parent=1 // pred_fallthru
      _
    // Predicated region
    $region6: #{discriminator_forward.15} parent=1 // pred_check
      _
    $region7: #{discriminator_forward.15} parent=1 // pred_check_branch
      %14 = sbr.rel (0) target = $region9
    $region8: #{discriminator_forward.15} parent=1 // pred_region
      _
    $region9: #{discriminator_forward.15} parent=1 // pred_fallthru
      _
    // Predicated region
    $region10: #{discriminator_forward.15} parent=1 // pred_check
      _
    $region11: #{discriminator_forward.15} parent=1 // pred_check_branch
      %16 = sbr.rel (0) target = $region13
    $region12: #{discriminator_forward.15} parent=1 // pred_region
      _
    $region13: #{discriminator_forward.15} parent=1 // pred_fallthru
      _
    %p17 = scmp.eq.s32.totalorder 0, 0
    // Predicated region
    $region14: #{discriminator_forward.15} parent=1 // pred_check
      %p18 = pneg %p17
    $region15: #{discriminator_forward.15} parent=1 // pred_check_branch
      %20 = sbr.rel (%p18) target = $region17
    $region16: #{discriminator_forward.15} parent=1 // pred_region
      %21 = vst [vmem:[#allocation2] sm:$0xff] 0.0
    $region17: #{discriminator_forward.15} parent=1 // pred_fallthru
      _
    %v22 = vld [vmem:[#allocation2] sm:$0xff]
    %v23 = vld [vmem:[%s0] sm:$0xff]
    %v24 = vld [vmem:[%s0 + $0x8] sm:$0xff]
    %v25 = vld [vmem:[%s0 + $0x10] sm:$0xff]
    %v26 = vld [vmem:[%s0 + $0x18] sm:$0xff]
    %v27 = vunpack.c.l.bf16 %v23
    %v28 = vunpack.c.h.bf16 %v23
    %v29 = vunpack.c.l.bf16 %v24
    %v30 = vunpack.c.h.bf16 %v24
    %v31 = vunpack.c.l.bf16 %v25
    %v32 = vunpack.c.h.bf16 %v25
    %v33 = vunpack.c.l.bf16 %v26
    %v34 = vunpack.c.h.bf16 %v26
    %v35 = vrot.slane %v27, 4
    %v36 = vadd.f32 %v27, %v35
    %v37 = vrot.slane %v36, 2
    %v38 = vadd.f32 %v36, %v37
    %v39 = vrot.slane %v38, 1
    %v40 = vadd.f32 %v38, %v39
    %v41 = vrot.slane %v28, 4
    %v42 = vadd.f32 %v28, %v41
    %v43 = vrot.slane %v42, 2
    %v44 = vadd.f32 %v42, %v43
    %v45 = vrot.slane %v44, 1
    %v46 = vadd.f32 %v44, %v45
    %v47 = vrot.slane %v29, 4
    %v48 = vadd.f32 %v29, %v47
    %v49 = vrot.slane %v48, 2
    %v50 = vadd.f32 %v48, %v49
    %v51 = vrot.slane %v50, 1
    %v52 = vadd.f32 %v50, %v51
    %v53 = vrot.slane %v30, 4
    %v54 = vadd.f32 %v30, %v53
    %v55 = vrot.slane %v54, 2
    %v56 = vadd.f32 %v54, %v55
    %v57 = vrot.slane %v56, 1
    %v58 = vadd.f32 %v56, %v57
    %v59 = vrot.slane %v31, 4
    %v60 = vadd.f32 %v31, %v59
    %v61 = vrot.slane %v60, 2
    %v62 = vadd.f32 %v60, %v61
    %v63 = vrot.slane %v62, 1
    %v64 = vadd.f32 %v62, %v63
    %v65 = vrot.slane %v32, 4
    %v66 = vadd.f32 %v32, %v65
    %v67 = vrot.slane %v66, 2
    %v68 = vadd.f32 %v66, %v67
    %v69 = vrot.slane %v68, 1
    %v70 = vadd.f32 %v68, %v69
    %v71 = vrot.slane %v33, 4
    %v72 = vadd.f32 %v33, %v71
    %v73 = vrot.slane %v72, 2
    %v74 = vadd.f32 %v72, %v73
    %v75 = vrot.slane %v74, 1
    %v76 = vadd.f32 %v74, %v75
    %v77 = vrot.slane %v34, 4
    %v78 = vadd.f32 %v34, %v77
    %v79 = vrot.slane %v78, 2
    %v80 = vadd.f32 %v78, %v79
    %v81 = vrot.slane %v80, 1
    %v82 = vadd.f32 %v80, %v81
    %v91 = vcombine.low %v40, %v46
    %v92 = vcombine.low %v52, %v58
    %v94 = vunpack.c.l.s4 1983009808
    %v95 = vunpack.c.0.s8 %v94
    %v96 = vlaneseq
    %v97 = vshrl.u32 %v96, 7
    %v98 = vsub.s32 %v95, %v97
    %v99 = vrot.slane %v91, %v98
    %v101 = vunpack.c.l.s4 1983009808
    %v102 = vunpack.c.0.s8 %v101
    %v103 = vlaneseq
    %v104 = vshrl.u32 %v103, 7
    %v105 = vsub.s32 %v102, %v104
    %v106 = vrot.slane %v92, %v105
    %v107 = vcombine.low %v99, %v106
    %v108 = vcombine.low %v64, %v70
    %v109 = vcombine.low %v76, %v82
    %v111 = vunpack.c.l.s4 1983009808
    %v112 = vunpack.c.0.s8 %v111
    %v113 = vlaneseq
    %v114 = vshrl.u32 %v113, 7
    %v115 = vsub.s32 %v112, %v114
    %v116 = vrot.slane %v108, %v115
    %v118 = vunpack.c.l.s4 1983009808
    %v119 = vunpack.c.0.s8 %v118
    %v120 = vlaneseq
    %v121 = vshrl.u32 %v120, 7
    %v122 = vsub.s32 %v119, %v121
    %v123 = vrot.slane %v109, %v122
    %v124 = vcombine.low %v116, %v123
    %vm125 = vcmask 1044484
    %v126 = vsel %vm125, %v107, %v107
    %vm127 = vcmask 1046534
    %v128 = vsel %vm127, %v107, %v126
    %v129 = vrot.slane %v124, 7
    %vm130 = vcmask 1041409
    %v131 = vsel %vm130, %v129, %v128
    %vm132 = vcmask 1043459
    %v133 = vsel %vm132, %v129, %v131
    %vm134 = vcmask 1045509
    %v135 = vsel %vm134, %v129, %v133
    %vm136 = vcmask 1047559
    %v137 = vsel %vm136, %v129, %v135
    %v139 = vadd.f32 %v22, %v137
    %140 = vst [vmem:[#allocation2] sm:$0xff] %v139
    // Predicated region
    $region18: #{discriminator_forward.15} parent=1 // pred_check
      %p141 = pneg %p17
    $region19: #{discriminator_forward.15} parent=1 // pred_check_branch
      %143 = sbr.rel (%p141) target = $region21
    $region20: #{discriminator_forward.15} parent=1 // pred_region
      %v144 = vld [vmem:[#allocation2] sm:$0xff]
      %v145 = vld [vmem:[%s1] sm:$0xff]
      %v146 = vld [vmem:[%s1 + $0x8] sm:$0xff]
      %v147 = vld [vmem:[%s1 + $0x10] sm:$0xff]
      %v148 = vld [vmem:[%s1 + $0x18] sm:$0xff]
      %v149 = vld [vmem:[%s1 + $0x20] sm:$0xff]
      %v150 = vld [vmem:[%s1 + $0x28] sm:$0xff]
      %v151 = vld [vmem:[%s1 + $0x30] sm:$0xff]
      %v152 = vld [vmem:[%s1 + $0x38] sm:$0xff]
      %v153 = vld [vmem:[%s1 + $0x40] sm:$0xff]
      %v154 = vld [vmem:[%s1 + $0x48] sm:$0xff]
      %v155 = vld [vmem:[%s1 + $0x50] sm:$0xff]
      %v156 = vld [vmem:[%s1 + $0x58] sm:$0xff]
      %v157 = vld [vmem:[%s1 + $0x60] sm:$0xff]
      %v158 = vld [vmem:[%s1 + $0x68] sm:$0xff]
      %v159 = vld [vmem:[%s1 + $0x70] sm:$0xff]
      %v160 = vld [vmem:[%s1 + $0x78] sm:$0xff]
      %v161 = vld [vmem:[%s1 + $0x80] sm:$0xff]
      %v162 = vld [vmem:[%s1 + $0x88] sm:$0xff]
      %v163 = vld [vmem:[%s1 + $0x90] sm:$0xff]
      %v164 = vld [vmem:[%s1 + $0x98] sm:$0xff]
      %v165 = vld [vmem:[%s1 + $0xa0] sm:$0xff]
      %v166 = vld [vmem:[%s1 + $0xa8] sm:$0xff]
      %v167 = vld [vmem:[%s1 + $0xb0] sm:$0xff]
      %v168 = vld [vmem:[%s1 + $0xb8] sm:$0xff]
      %v169 = vld [vmem:[%s1 + $0xc0] sm:$0xff]
      %v170 = vld [vmem:[%s1 + $0xc8] sm:$0xff]
      %v171 = vld [vmem:[%s1 + $0xd0] sm:$0xff]
      %v172 = vld [vmem:[%s1 + $0xd8] sm:$0xff]
      %v173 = vld [vmem:[%s1 + $0xe0] sm:$0xff]
      %v174 = vld [vmem:[%s1 + $0xe8] sm:$0xff]
      %v175 = vld [vmem:[%s1 + $0xf0] sm:$0xff]
      %v176 = vld [vmem:[%s1 + $0xf8] sm:$0xff]
      %v177 = vld [vmem:[%s1 + $0x100] sm:$0xff]
      %v178 = vld [vmem:[%s1 + $0x108] sm:$0xff]
      %v179 = vld [vmem:[%s1 + $0x110] sm:$0xff]
      %v180 = vld [vmem:[%s1 + $0x118] sm:$0xff]
      %v181 = vld [vmem:[%s1 + $0x120] sm:$0xff]
      %v182 = vld [vmem:[%s1 + $0x128] sm:$0xff]
      %v183 = vld [vmem:[%s1 + $0x130] sm:$0xff]
      %v184 = vld [vmem:[%s1 + $0x138] sm:$0xff]
      %v185 = vld [vmem:[%s1 + $0x140] sm:$0xff]
      %v186 = vld [vmem:[%s1 + $0x148] sm:$0xff]
      %v187 = vld [vmem:[%s1 + $0x150] sm:$0xff]
      %v188 = vld [vmem:[%s1 + $0x158] sm:$0xff]
      %v189 = vld [vmem:[%s1 + $0x160] sm:$0xff]
      %v190 = vld [vmem:[%s1 + $0x168] sm:$0xff]
      %v191 = vld [vmem:[%s1 + $0x170] sm:$0xff]
      %v192 = vld [vmem:[%s1 + $0x178] sm:$0xff]
      %v193 = vld [vmem:[%s1 + $0x180] sm:$0xff]
      %v194 = vld [vmem:[%s1 + $0x188] sm:$0xff]
      %v195 = vld [vmem:[%s1 + $0x190] sm:$0xff]
      %v196 = vld [vmem:[%s1 + $0x198] sm:$0xff]
      %v197 = vld [vmem:[%s1 + $0x1a0] sm:$0xff]
      %v198 = vld [vmem:[%s1 + $0x1a8] sm:$0xff]
      %v199 = vld [vmem:[%s1 + $0x1b0] sm:$0xff]
      %v200 = vld [vmem:[%s1 + $0x1b8] sm:$0xff]
      %v201 = vld [vmem:[%s1 + $0x1c0] sm:$0xff]
      %v202 = vld [vmem:[%s1 + $0x1c8] sm:$0xff]
      %v203 = vld [vmem:[%s1 + $0x1d0] sm:$0xff]
      %v204 = vld [vmem:[%s1 + $0x1d8] sm:$0xff]
      %v205 = vld [vmem:[%s1 + $0x1e0] sm:$0xff]
      %v206 = vld [vmem:[%s1 + $0x1e8] sm:$0xff]
      %v207 = vld [vmem:[%s1 + $0x1f0] sm:$0xff]
      %v208 = vld [vmem:[%s1 + $0x1f8] sm:$0xff]
      %v209 = vld [vmem:[%s2] sm:$0x1]
      %v211 = vlaneseq
      %v212 = vshrl.u32 %v211, 7
      %v213 = vsub.s32 0, %v212
      %v214 = vrot.slane %v209, %v213
      %v217 = vcombine.high %v144, %v144
      %v219 = vunpack.c.l.s4 1983009808
      %v220 = vunpack.c.0.s8 %v219
      %v221 = vlaneseq
      %v222 = vshrl.u32 %v221, 7
      %v223 = vsub.s32 %v220, %v222
      %v224 = vrot.slane %v144, %v223
      %v226 = vunpack.c.l.s4 1983009808
      %v227 = vunpack.c.0.s8 %v226
      %v228 = vlaneseq
      %v229 = vshrl.u32 %v228, 7
      %v230 = vsub.s32 %v227, %v229
      %v231 = vrot.slane %v217, %v230
      %v232 = vcombine.high %v224, %v224
      %v233 = vcombine.high %v231, %v231
      %238 = vmatprep.subr.mxu0 0.0
      %239 = vmatpush1.msra.mxu0 %v145
      %240 = vmatprep.subr.mxu0 0.0
      %241 = vmatpush1.msra.mxu0 %v146
      %242 = vmatprep.subr.mxu0 0.0
      %243 = vmatpush1.msra.mxu0 %v147
      %244 = vmatprep.subr.mxu0 0.0
      %245 = vmatpush1.msra.mxu0 %v148
      %246 = vmatprep.subr.mxu0 0.0
      %247 = vmatpush1.msra.mxu0 %v149
      %248 = vmatprep.subr.mxu0 0.0
      %249 = vmatpush1.msra.mxu0 %v150
      %250 = vmatprep.subr.mxu0 0.0
      %251 = vmatpush1.msra.mxu0 %v151
      %252 = vmatprep.subr.mxu0 0.0
      %253 = vmatpush1.msra.mxu0 %v152
      %254 = vmatprep.subr.mxu0 0.0
      %255 = vmatpush1.msra.mxu0 %v153
      %256 = vmatprep.subr.mxu0 0.0
      %257 = vmatpush1.msra.mxu0 %v154
      %258 = vmatprep.subr.mxu0 0.0
      %259 = vmatpush1.msra.mxu0 %v155
      %260 = vmatprep.subr.mxu0 0.0
      %261 = vmatpush1.msra.mxu0 %v156
      %262 = vmatprep.subr.mxu0 0.0
      %263 = vmatpush1.msra.mxu0 %v157
      %264 = vmatprep.subr.mxu0 0.0
      %265 = vmatpush1.msra.mxu0 %v158
      %266 = vmatprep.subr.mxu0 0.0
      %267 = vmatpush1.msra.mxu0 %v159
      %268 = vmatprep.subr.mxu0 0.0
      %269 = vmatpush1.msra.mxu0 %v160
      %270 = vmatprep.subr.mxu0 0.0
      %271 = vmatpush1.msra.mxu0 %v161
      %272 = vmatprep.subr.mxu0 0.0
      %273 = vmatpush1.msra.mxu0 %v162
      %274 = vmatprep.subr.mxu0 0.0
      %275 = vmatpush1.msra.mxu0 %v163
      %276 = vmatprep.subr.mxu0 0.0
      %277 = vmatpush1.msra.mxu0 %v164
      %278 = vmatprep.subr.mxu0 0.0
      %279 = vmatpush1.msra.mxu0 %v165
      %280 = vmatprep.subr.mxu0 0.0
      %281 = vmatpush1.msra.mxu0 %v166
      %282 = vmatprep.subr.mxu0 0.0
      %283 = vmatpush1.msra.mxu0 %v167
      %284 = vmatprep.subr.mxu0 0.0
      %285 = vmatpush1.msra.mxu0 %v168
      %286 = vmatprep.subr.mxu0 0.0
      %287 = vmatpush1.msra.mxu0 %v169
      %288 = vmatprep.subr.mxu0 0.0
      %289 = vmatpush1.msra.mxu0 %v170
      %290 = vmatprep.subr.mxu0 0.0
      %291 = vmatpush1.msra.mxu0 %v171
      %292 = vmatprep.subr.mxu0 0.0
      %293 = vmatpush1.msra.mxu0 %v172
      %294 = vmatprep.subr.mxu0 0.0
      %295 = vmatpush1.msra.mxu0 %v173
      %296 = vmatprep.subr.mxu0 0.0
      %297 = vmatpush1.msra.mxu0 %v174
      %298 = vmatprep.subr.mxu0 0.0
      %299 = vmatpush1.msra.mxu0 %v175
      %300 = vmatprep.subr.mxu0 0.0
      %301 = vmatpush1.msra.mxu0 %v176
      %302 = vmatprep.mubr.f32.mxu0 %v232
      %303 = vmatmul.mubr.f32.gmra.mrb[0].mxu0 %v224
      %v304 = vpop.f32.mrb[0].mxu0
      %v305 = vadd.f32 %v214, %v304
      %v306 = vpop.f32.mrb[0].mxu0
      %307 = vdwg.mxu0
      %308 = vmatprep.subr.mxu0 0.0
      %309 = vmatpush1.msra.mxu0 %v177
      %310 = vmatprep.subr.mxu0 0.0
      %311 = vmatpush1.msra.mxu0 %v178
      %312 = vmatprep.subr.mxu0 0.0
      %313 = vmatpush1.msra.mxu0 %v179
      %314 = vmatprep.subr.mxu0 0.0
      %315 = vmatpush1.msra.mxu0 %v180
      %316 = vmatprep.subr.mxu0 0.0
      %317 = vmatpush1.msra.mxu0 %v181
      %318 = vmatprep.subr.mxu0 0.0
      %319 = vmatpush1.msra.mxu0 %v182
      %320 = vmatprep.subr.mxu0 0.0
      %321 = vmatpush1.msra.mxu0 %v183
      %322 = vmatprep.subr.mxu0 0.0
      %323 = vmatpush1.msra.mxu0 %v184
      %324 = vmatprep.subr.mxu0 0.0
      %325 = vmatpush1.msra.mxu0 %v185
      %326 = vmatprep.subr.mxu0 0.0
      %327 = vmatpush1.msra.mxu0 %v186
      %328 = vmatprep.subr.mxu0 0.0
      %329 = vmatpush1.msra.mxu0 %v187
      %330 = vmatprep.subr.mxu0 0.0
      %331 = vmatpush1.msra.mxu0 %v188
      %332 = vmatprep.subr.mxu0 0.0
      %333 = vmatpush1.msra.mxu0 %v189
      %334 = vmatprep.subr.mxu0 0.0
      %335 = vmatpush1.msra.mxu0 %v190
      %336 = vmatprep.subr.mxu0 0.0
      %337 = vmatpush1.msra.mxu0 %v191
      %338 = vmatprep.subr.mxu0 0.0
      %339 = vmatpush1.msra.mxu0 %v192
      %340 = vmatprep.subr.mxu0 0.0
      %341 = vmatpush1.msra.mxu0 %v193
      %342 = vmatprep.subr.mxu0 0.0
      %343 = vmatpush1.msra.mxu0 %v194
      %344 = vmatprep.subr.mxu0 0.0
      %345 = vmatpush1.msra.mxu0 %v195
      %346 = vmatprep.subr.mxu0 0.0
      %347 = vmatpush1.msra.mxu0 %v196
      %348 = vmatprep.subr.mxu0 0.0
      %349 = vmatpush1.msra.mxu0 %v197
      %350 = vmatprep.subr.mxu0 0.0
      %351 = vmatpush1.msra.mxu0 %v198
      %352 = vmatprep.subr.mxu0 0.0
      %353 = vmatpush1.msra.mxu0 %v199
      %354 = vmatprep.subr.mxu0 0.0
      %355 = vmatpush1.msra.mxu0 %v200
      %356 = vmatprep.subr.mxu0 0.0
      %357 = vmatpush1.msra.mxu0 %v201
      %358 = vmatprep.subr.mxu0 0.0
      %359 = vmatpush1.msra.mxu0 %v202
      %360 = vmatprep.subr.mxu0 0.0
      %361 = vmatpush1.msra.mxu0 %v203
      %362 = vmatprep.subr.mxu0 0.0
      %363 = vmatpush1.msra.mxu0 %v204
      %364 = vmatprep.subr.mxu0 0.0
      %365 = vmatpush1.msra.mxu0 %v205
      %366 = vmatprep.subr.mxu0 0.0
      %367 = vmatpush1.msra.mxu0 %v206
      %368 = vmatprep.subr.mxu0 0.0
      %369 = vmatpush1.msra.mxu0 %v207
      %370 = vmatprep.subr.mxu0 0.0
      %371 = vmatpush1.msra.mxu0 %v208
      %372 = vmatprep.mubr.f32.mxu0 %v233
      %373 = vmatmul.mubr.f32.gmra.mrb[0].mxu0 %v231
      %v374 = vpop.f32.mrb[0].mxu0
      %v375 = vadd.f32 %v305, %v374
      %v376 = vpop.f32.mrb[0].mxu0
      %377 = vdwg.mxu0
      %378 = vst [vmem:[%s4] sm:$0x3] %v375
    $region21: #{discriminator_forward.15} parent=1 // pred_fallthru
      _
    // Predicated region
    $region22: #{discriminator_forward.15} parent=1 // pred_check
      _
    $region23: #{discriminator_forward.15} parent=1 // pred_check_branch
      %380 = sbr.rel (0) target = $region25
    $region24: #{discriminator_forward.15} parent=1 // pred_region
      %s382 = ssub.s32 128, 128
      %383 = vsyncadd [#allocation3], %s382
      %s385 = sshll.u32 [#allocation2], 4
      %s386 = int_to_ptr.vmem [resolvable:$true] %s385
      %388 = dma.vmem_to_hbm [thread:$0]  %s386, 128, %s3, [#allocation3]
    $region25: #{discriminator_forward.15} parent=1 // pred_fallthru
      _
    // Predicated region
    $region26: #{discriminator_forward.15} parent=1 // pred_check
      _
    $region27: #{discriminator_forward.15} parent=1 // pred_check_branch
      %390 = sbr.rel (0) target = $region29
    $region28: #{discriminator_forward.15} parent=1 // pred_region
      _
    $region29: #{discriminator_forward.15} parent=1 // pred_fallthru
      _
    // Predicated region
    $region30: #{discriminator_forward.15} parent=1 // pred_check
      _
    $region31: #{discriminator_forward.15} parent=1 // pred_check_branch
      %392 = sbr.rel (0) target = $region33
    $region32: #{discriminator_forward.15} parent=1 // pred_region
      %393 = dma.done [#allocation3], 128
    $region33: #{discriminator_forward.15} parent=1 // pred_fallthru
      _
    // Predicated region
    $region34: #{discriminator_forward.15} parent=1 // pred_check
      _
    $region35: #{discriminator_forward.15} parent=1 // pred_check_branch
      %395 = sbr.rel (0) target = $region37
    $region36: #{discriminator_forward.15} parent=1 // pred_region
      _
    $region37: #{discriminator_forward.15} parent=1 // pred_fallthru
      _
    %396 = vsyncpa [#allocation3], 1

// kernel: discriminator_forward.14
$region0: #{discriminator_forward.14}
  #allocation0 [shape = 'u32[]', space=smem, size = 0x4, offset = 0x4, fixed_abs, tag = 'smem constant byte address 0x4 - core index']
  #allocation1 [shape = 'u32[144,128]{1,0:T(1,128)}', space=vmem, size = 0x12000, scoped, tag = 'internal scratch']
  %s0 = inlined_call_operand.vmem [shape: bf16[8,2304], index: 0, kind: input, shape index: {}]
  %s1 = inlined_call_operand.vmem [shape: bf16[2304,512], index: 1, kind: input, shape index: {}]
  %s2 = inlined_call_operand.vmem [shape: f32[1,512], index: 2, kind: input, shape index: {}]
  %s3 = inlined_call_operand.vmem [shape: f32[1,512], index: 3, kind: input, shape index: {}]
  %s4 = inlined_call_operand.vmem [shape: bf16[8,512], index: 4, kind: output, shape index: {}]
  %s5 = sld [smem:[#allocation0]]
  $region26: #{discriminator_forward.14} parent=0
    _
  %s7 = ssub.s32 1, %s5
  %s8 = scalar_select 0, %s7, %s5
  // Predicated region
  $region2: #{discriminator_forward.14} parent=0 // pred_check
    _
  $region3: #{discriminator_forward.14} parent=0 // pred_check_branch
    %10 = sbr.rel (0) target = $region5
  $region4: #{discriminator_forward.14} parent=0 // pred_region
    _
  $region5: #{discriminator_forward.14} parent=0 // pred_fallthru
    _
  // Predicated region
  $region6: #{discriminator_forward.14} parent=0 // pred_check
    _
  $region7: #{discriminator_forward.14} parent=0 // pred_check_branch
    %12 = sbr.rel (0) target = $region9
  $region8: #{discriminator_forward.14} parent=0 // pred_region
    _
  $region9: #{discriminator_forward.14} parent=0 // pred_fallthru
    _
  // Predicated region
  $region10: #{discriminator_forward.14} parent=0 // pred_check
    _
  $region11: #{discriminator_forward.14} parent=0 // pred_check_branch
    %14 = sbr.rel (0) target = $region13
  $region12: #{discriminator_forward.14} parent=0 // pred_region
    _
  $region13: #{discriminator_forward.14} parent=0 // pred_fallthru
    _
  // Predicated region
  $region14: #{discriminator_forward.14} parent=0 // pred_check
    _
  $region15: #{discriminator_forward.14} parent=0 // pred_check_branch
    %16 = sbr.rel (0) target = $region17
  $region16: #{discriminator_forward.14} parent=0 // pred_region
    _
  $region17: #{discriminator_forward.14} parent=0 // pred_fallthru
    _
  %v17 = vld [vmem:[%s0] sm:$0xff]
  %v18 = vld [vmem:[%s0 + $0x8] sm:$0xff]
  %v19 = vld [vmem:[%s0 + $0x10] sm:$0xff]
  %v20 = vld [vmem:[%s0 + $0x18] sm:$0xff]
  %v21 = vld [vmem:[%s0 + $0x20] sm:$0xff]
  %v22 = vld [vmem:[%s0 + $0x28] sm:$0xff]
  %v23 = vld [vmem:[%s0 + $0x30] sm:$0xff]
  %v24 = vld [vmem:[%s0 + $0x38] sm:$0xff]
  %v25 = vld [vmem:[%s0 + $0x40] sm:$0xff]
  %v26 = vld [vmem:[%s1] sm:$0xff]
  %v27 = vld [vmem:[%s1 + $0x8] sm:$0xff]
  %v28 = vld [vmem:[%s1 + $0x10] sm:$0xff]
  %v29 = vld [vmem:[%s1 + $0x18] sm:$0xff]
  %v30 = vld [vmem:[%s1 + $0x20] sm:$0xff]
  %v31 = vld [vmem:[%s1 + $0x28] sm:$0xff]
  %v32 = vld [vmem:[%s1 + $0x30] sm:$0xff]
  %v33 = vld [vmem:[%s1 + $0x38] sm:$0xff]
  %v34 = vld [vmem:[%s1 + $0x40] sm:$0xff]
  %v35 = vld [vmem:[%s1 + $0x48] sm:$0xff]
  %v36 = vld [vmem:[%s1 + $0x50] sm:$0xff]
  %v37 = vld [vmem:[%s1 + $0x58] sm:$0xff]
  %v38 = vld [vmem:[%s1 + $0x60] sm:$0xff]
  %v39 = vld [vmem:[%s1 + $0x68] sm:$0xff]
  %v40 = vld [vmem:[%s1 + $0x70] sm:$0xff]
  %v41 = vld [vmem:[%s1 + $0x78] sm:$0xff]
  %v42 = vld [vmem:[%s1 + $0x80] sm:$0xff]
  %v43 = vld [vmem:[%s1 + $0x88] sm:$0xff]
  %v44 = vld [vmem:[%s1 + $0x90] sm:$0xff]
  %v45 = vld [vmem:[%s1 + $0x98] sm:$0xff]
  %v46 = vld [vmem:[%s1 + $0xa0] sm:$0xff]
  %v47 = vld [vmem:[%s1 + $0xa8] sm:$0xff]
  %v48 = vld [vmem:[%s1 + $0xb0] sm:$0xff]
  %v49 = vld [vmem:[%s1 + $0xb8] sm:$0xff]
  %v50 = vld [vmem:[%s1 + $0xc0] sm:$0xff]
  %v51 = vld [vmem:[%s1 + $0xc8] sm:$0xff]
  %v52 = vld [vmem:[%s1 + $0xd0] sm:$0xff]
  %v53 = vld [vmem:[%s1 + $0xd8] sm:$0xff]
  %v54 = vld [vmem:[%s1 + $0xe0] sm:$0xff]
  %v55 = vld [vmem:[%s1 + $0xe8] sm:$0xff]
  %v56 = vld [vmem:[%s1 + $0xf0] sm:$0xff]
  %v57 = vld [vmem:[%s1 + $0xf8] sm:$0xff]
  %v58 = vld [vmem:[%s1 + $0x100] sm:$0xff]
  %v59 = vld [vmem:[%s1 + $0x108] sm:$0xff]
  %v60 = vld [vmem:[%s1 + $0x110] sm:$0xff]
  %v61 = vld [vmem:[%s1 + $0x118] sm:$0xff]
  %v62 = vld [vmem:[%s1 + $0x120] sm:$0xff]
  %v63 = vld [vmem:[%s1 + $0x128] sm:$0xff]
  %v64 = vld [vmem:[%s1 + $0x130] sm:$0xff]
  %v65 = vld [vmem:[%s1 + $0x138] sm:$0xff]
  %v66 = vld [vmem:[%s1 + $0x140] sm:$0xff]
  %v67 = vld [vmem:[%s1 + $0x148] sm:$0xff]
  %v68 = vld [vmem:[%s1 + $0x150] sm:$0xff]
  %v69 = vld [vmem:[%s1 + $0x158] sm:$0xff]
  %v70 = vld [vmem:[%s1 + $0x160] sm:$0xff]
  %v71 = vld [vmem:[%s1 + $0x168] sm:$0xff]
  %v72 = vld [vmem:[%s1 + $0x170] sm:$0xff]
  %v73 = vld [vmem:[%s1 + $0x178] sm:$0xff]
  %v74 = vld [vmem:[%s1 + $0x180] sm:$0xff]
  %v75 = vld [vmem:[%s1 + $0x188] sm:$0xff]
  %v76 = vld [vmem:[%s1 + $0x190] sm:$0xff]
  %v77 = vld [vmem:[%s1 + $0x198] sm:$0xff]
  %v78 = vld [vmem:[%s1 + $0x1a0] sm:$0xff]
  %v79 = vld [vmem:[%s1 + $0x1a8] sm:$0xff]
  %v80 = vld [vmem:[%s1 + $0x1b0] sm:$0xff]
  %v81 = vld [vmem:[%s1 + $0x1b8] sm:$0xff]
  %v82 = vld [vmem:[%s1 + $0x1c0] sm:$0xff]
  %v83 = vld [vmem:[%s1 + $0x1c8] sm:$0xff]
  %v84 = vld [vmem:[%s1 + $0x1d0] sm:$0xff]
  %v85 = vld [vmem:[%s1 + $0x1d8] sm:$0xff]
  %v86 = vld [vmem:[%s1 + $0x1e0] sm:$0xff]
  %v87 = vld [vmem:[%s1 + $0x1e8] sm:$0xff]
  %v88 = vld [vmem:[%s1 + $0x1f0] sm:$0xff]
  %v89 = vld [vmem:[%s1 + $0x1f8] sm:$0xff]
  %v90 = vld [vmem:[%s1 + $0x200] sm:$0xff]
  %v91 = vld [vmem:[%s1 + $0x208] sm:$0xff]
  %v92 = vld [vmem:[%s1 + $0x210] sm:$0xff]
  %v93 = vld [vmem:[%s1 + $0x218] sm:$0xff]
  %v94 = vld [vmem:[%s1 + $0x220] sm:$0xff]
  %v95 = vld [vmem:[%s1 + $0x228] sm:$0xff]
  %v96 = vld [vmem:[%s1 + $0x230] sm:$0xff]
  %v97 = vld [vmem:[%s1 + $0x238] sm:$0xff]
  %v98 = vld [vmem:[%s1 + $0x240] sm:$0xff]
  %v99 = vld [vmem:[%s1 + $0x248] sm:$0xff]
  %v100 = vld [vmem:[%s1 + $0x250] sm:$0xff]
  %v101 = vld [vmem:[%s1 + $0x258] sm:$0xff]
  %v102 = vld [vmem:[%s1 + $0x260] sm:$0xff]
  %v103 = vld [vmem:[%s1 + $0x268] sm:$0xff]
  %v104 = vld [vmem:[%s1 + $0x270] sm:$0xff]
  %v105 = vld [vmem:[%s1 + $0x278] sm:$0xff]
  %v106 = vld [vmem:[%s1 + $0x280] sm:$0xff]
  %v107 = vld [vmem:[%s1 + $0x288] sm:$0xff]
  %v108 = vld [vmem:[%s1 + $0x290] sm:$0xff]
  %v109 = vld [vmem:[%s1 + $0x298] sm:$0xff]
  %v110 = vld [vmem:[%s1 + $0x2a0] sm:$0xff]
  %v111 = vld [vmem:[%s1 + $0x2a8] sm:$0xff]
  %v112 = vld [vmem:[%s1 + $0x2b0] sm:$0xff]
  %v113 = vld [vmem:[%s1 + $0x2b8] sm:$0xff]
  %v114 = vld [vmem:[%s1 + $0x2c0] sm:$0xff]
  %v115 = vld [vmem:[%s1 + $0x2c8] sm:$0xff]
  %v116 = vld [vmem:[%s1 + $0x2d0] sm:$0xff]
  %v117 = vld [vmem:[%s1 + $0x2d8] sm:$0xff]
  %v118 = vld [vmem:[%s1 + $0x2e0] sm:$0xff]
  %v119 = vld [vmem:[%s1 + $0x2e8] sm:$0xff]
  %v120 = vld [vmem:[%s1 + $0x2f0] sm:$0xff]
  %v121 = vld [vmem:[%s1 + $0x2f8] sm:$0xff]
  %v122 = vld [vmem:[%s1 + $0x300] sm:$0xff]
  %v123 = vld [vmem:[%s1 + $0x308] sm:$0xff]
  %v124 = vld [vmem:[%s1 + $0x310] sm:$0xff]
  %v125 = vld [vmem:[%s1 + $0x318] sm:$0xff]
  %v126 = vld [vmem:[%s1 + $0x320] sm:$0xff]
  %v127 = vld [vmem:[%s1 + $0x328] sm:$0xff]
  %v128 = vld [vmem:[%s1 + $0x330] sm:$0xff]
  %v129 = vld [vmem:[%s1 + $0x338] sm:$0xff]
  %v130 = vld [vmem:[%s1 + $0x340] sm:$0xff]
  %v131 = vld [vmem:[%s1 + $0x348] sm:$0xff]
  %v132 = vld [vmem:[%s1 + $0x350] sm:$0xff]
  %v133 = vld [vmem:[%s1 + $0x358] sm:$0xff]
  %v134 = vld [vmem:[%s1 + $0x360] sm:$0xff]
  %v135 = vld [vmem:[%s1 + $0x368] sm:$0xff]
  %v136 = vld [vmem:[%s1 + $0x370] sm:$0xff]
  %v137 = vld [vmem:[%s1 + $0x378] sm:$0xff]
  %v138 = vld [vmem:[%s1 + $0x380] sm:$0xff]
  %v139 = vld [vmem:[%s1 + $0x388] sm:$0xff]
  %v140 = vld [vmem:[%s1 + $0x390] sm:$0xff]
  %v141 = vld [vmem:[%s1 + $0x398] sm:$0xff]
  %v142 = vld [vmem:[%s1 + $0x3a0] sm:$0xff]
  %v143 = vld [vmem:[%s1 + $0x3a8] sm:$0xff]
  %v144 = vld [vmem:[%s1 + $0x3b0] sm:$0xff]
  %v145 = vld [vmem:[%s1 + $0x3b8] sm:$0xff]
  %v146 = vld [vmem:[%s1 + $0x3c0] sm:$0xff]
  %v147 = vld [vmem:[%s1 + $0x3c8] sm:$0xff]
  %v148 = vld [vmem:[%s1 + $0x3d0] sm:$0xff]
  %v149 = vld [vmem:[%s1 + $0x3d8] sm:$0xff]
  %v150 = vld [vmem:[%s1 + $0x3e0] sm:$0xff]
  %v151 = vld [vmem:[%s1 + $0x3e8] sm:$0xff]
  %v152 = vld [vmem:[%s1 + $0x3f0] sm:$0xff]
  %v153 = vld [vmem:[%s1 + $0x3f8] sm:$0xff]
  %v154 = vld [vmem:[%s1 + $0x400] sm:$0xff]
  %v155 = vld [vmem:[%s1 + $0x408] sm:$0xff]
  %v156 = vld [vmem:[%s1 + $0x410] sm:$0xff]
  %v157 = vld [vmem:[%s1 + $0x418] sm:$0xff]
  %v158 = vld [vmem:[%s1 + $0x420] sm:$0xff]
  %v159 = vld [vmem:[%s1 + $0x428] sm:$0xff]
  %v160 = vld [vmem:[%s1 + $0x430] sm:$0xff]
  %v161 = vld [vmem:[%s1 + $0x438] sm:$0xff]
  %v162 = vld [vmem:[%s1 + $0x440] sm:$0xff]
  %v163 = vld [vmem:[%s1 + $0x448] sm:$0xff]
  %v164 = vld [vmem:[%s1 + $0x450] sm:$0xff]
  %v165 = vld [vmem:[%s1 + $0x458] sm:$0xff]
  %v166 = vld [vmem:[%s1 + $0x460] sm:$0xff]
  %v167 = vld [vmem:[%s1 + $0x468] sm:$0xff]
  %v168 = vld [vmem:[%s1 + $0x470] sm:$0xff]
  %v169 = vld [vmem:[%s1 + $0x478] sm:$0xff]
  %v170 = vld [vmem:[%s1 + $0x480] sm:$0xff]
  %v171 = vld [vmem:[%s1 + $0x488] sm:$0xff]
  %v172 = vld [vmem:[%s1 + $0x490] sm:$0xff]
  %v173 = vld [vmem:[%s1 + $0x498] sm:$0xff]
  %v174 = vld [vmem:[%s1 + $0x4a0] sm:$0xff]
  %v175 = vld [vmem:[%s1 + $0x4a8] sm:$0xff]
  %v176 = vld [vmem:[%s1 + $0x4b0] sm:$0xff]
  %v177 = vld [vmem:[%s1 + $0x4b8] sm:$0xff]
  %v178 = vld [vmem:[%s1 + $0x4c0] sm:$0xff]
  %v179 = vld [vmem:[%s1 + $0x4c8] sm:$0xff]
  %v180 = vld [vmem:[%s1 + $0x4d0] sm:$0xff]
  %v181 = vld [vmem:[%s1 + $0x4d8] sm:$0xff]
  %v182 = vld [vmem:[%s1 + $0x4e0] sm:$0xff]
  %v183 = vld [vmem:[%s1 + $0x4e8] sm:$0xff]
  %v184 = vld [vmem:[%s1 + $0x4f0] sm:$0xff]
  %v185 = vld [vmem:[%s1 + $0x4f8] sm:$0xff]
  %v186 = vld [vmem:[%s1 + $0x500] sm:$0xff]
  %v187 = vld [vmem:[%s1 + $0x508] sm:$0xff]
  %v188 = vld [vmem:[%s1 + $0x510] sm:$0xff]
  %v189 = vld [vmem:[%s1 + $0x518] sm:$0xff]
  %v190 = vld [vmem:[%s1 + $0x520] sm:$0xff]
  %v191 = vld [vmem:[%s1 + $0x528] sm:$0xff]
  %v192 = vld [vmem:[%s1 + $0x530] sm:$0xff]
  %v193 = vld [vmem:[%s1 + $0x538] sm:$0xff]
  %v194 = vld [vmem:[%s1 + $0x540] sm:$0xff]
  %v195 = vld [vmem:[%s1 + $0x548] sm:$0xff]
  %v196 = vld [vmem:[%s1 + $0x550] sm:$0xff]
  %v197 = vld [vmem:[%s1 + $0x558] sm:$0xff]
  %v198 = vld [vmem:[%s1 + $0x560] sm:$0xff]
  %v199 = vld [vmem:[%s1 + $0x568] sm:$0xff]
  %v200 = vld [vmem:[%s1 + $0x570] sm:$0xff]
  %v201 = vld [vmem:[%s1 + $0x578] sm:$0xff]
  %v202 = vld [vmem:[%s1 + $0x580] sm:$0xff]
  %v203 = vld [vmem:[%s1 + $0x588] sm:$0xff]
  %v204 = vld [vmem:[%s1 + $0x590] sm:$0xff]
  %v205 = vld [vmem:[%s1 + $0x598] sm:$0xff]
  %v206 = vld [vmem:[%s1 + $0x5a0] sm:$0xff]
  %v207 = vld [vmem:[%s1 + $0x5a8] sm:$0xff]
  %v208 = vld [vmem:[%s1 + $0x5b0] sm:$0xff]
  %v209 = vld [vmem:[%s1 + $0x5b8] sm:$0xff]
  %v210 = vld [vmem:[%s1 + $0x5c0] sm:$0xff]
  %v211 = vld [vmem:[%s1 + $0x5c8] sm:$0xff]
  %v212 = vld [vmem:[%s1 + $0x5d0] sm:$0xff]
  %v213 = vld [vmem:[%s1 + $0x5d8] sm:$0xff]
  %v214 = vld [vmem:[%s1 + $0x5e0] sm:$0xff]
  %v215 = vld [vmem:[%s1 + $0x5e8] sm:$0xff]
  %v216 = vld [vmem:[%s1 + $0x5f0] sm:$0xff]
  %v217 = vld [vmem:[%s1 + $0x5f8] sm:$0xff]
  %v218 = vld [vmem:[%s1 + $0x600] sm:$0xff]
  %v219 = vld [vmem:[%s1 + $0x608] sm:$0xff]
  %v220 = vld [vmem:[%s1 + $0x610] sm:$0xff]
  %v221 = vld [vmem:[%s1 + $0x618] sm:$0xff]
  %v222 = vld [vmem:[%s1 + $0x620] sm:$0xff]
  %v223 = vld [vmem:[%s1 + $0x628] sm:$0xff]
  %v224 = vld [vmem:[%s1 + $0x630] sm:$0xff]
  %v225 = vld [vmem:[%s1 + $0x638] sm:$0xff]
  %v226 = vld [vmem:[%s1 + $0x640] sm:$0xff]
  %v227 = vld [vmem:[%s1 + $0x648] sm:$0xff]
  %v228 = vld [vmem:[%s1 + $0x650] sm:$0xff]
  %v229 = vld [vmem:[%s1 + $0x658] sm:$0xff]
  %v230 = vld [vmem:[%s1 + $0x660] sm:$0xff]
  %v231 = vld [vmem:[%s1 + $0x668] sm:$0xff]
  %v232 = vld [vmem:[%s1 + $0x670] sm:$0xff]
  %v233 = vld [vmem:[%s1 + $0x678] sm:$0xff]
  %v234 = vld [vmem:[%s1 + $0x680] sm:$0xff]
  %v235 = vld [vmem:[%s1 + $0x688] sm:$0xff]
  %v236 = vld [vmem:[%s1 + $0x690] sm:$0xff]
  %v237 = vld [vmem:[%s1 + $0x698] sm:$0xff]
  %v238 = vld [vmem:[%s1 + $0x6a0] sm:$0xff]
  %v239 = vld [vmem:[%s1 + $0x6a8] sm:$0xff]
  %v240 = vld [vmem:[%s1 + $0x6b0] sm:$0xff]
  %v241 = vld [vmem:[%s1 + $0x6b8] sm:$0xff]
  %v242 = vld [vmem:[%s1 + $0x6c0] sm:$0xff]
  %v243 = vld [vmem:[%s1 + $0x6c8] sm:$0xff]
  %v244 = vld [vmem:[%s1 + $0x6d0] sm:$0xff]
  %v245 = vld [vmem:[%s1 + $0x6d8] sm:$0xff]
  %v246 = vld [vmem:[%s1 + $0x6e0] sm:$0xff]
  %v247 = vld [vmem:[%s1 + $0x6e8] sm:$0xff]
  %v248 = vld [vmem:[%s1 + $0x6f0] sm:$0xff]
  %v249 = vld [vmem:[%s1 + $0x6f8] sm:$0xff]
  %v250 = vld [vmem:[%s1 + $0x700] sm:$0xff]
  %v251 = vld [vmem:[%s1 + $0x708] sm:$0xff]
  %v252 = vld [vmem:[%s1 + $0x710] sm:$0xff]
  %v253 = vld [vmem:[%s1 + $0x718] sm:$0xff]
  %v254 = vld [vmem:[%s1 + $0x720] sm:$0xff]
  %v255 = vld [vmem:[%s1 + $0x728] sm:$0xff]
  %v256 = vld [vmem:[%s1 + $0x730] sm:$0xff]
  %v257 = vld [vmem:[%s1 + $0x738] sm:$0xff]
  %v258 = vld [vmem:[%s1 + $0x740] sm:$0xff]
  %v259 = vld [vmem:[%s1 + $0x748] sm:$0xff]
  %v260 = vld [vmem:[%s1 + $0x750] sm:$0xff]
  %v261 = vld [vmem:[%s1 + $0x758] sm:$0xff]
  %v262 = vld [vmem:[%s1 + $0x760] sm:$0xff]
  %v263 = vld [vmem:[%s1 + $0x768] sm:$0xff]
  %v264 = vld [vmem:[%s1 + $0x770] sm:$0xff]
  %v265 = vld [vmem:[%s1 + $0x778] sm:$0xff]
  %v266 = vld [vmem:[%s1 + $0x780] sm:$0xff]
  %v267 = vld [vmem:[%s1 + $0x788] sm:$0xff]
  %v268 = vld [vmem:[%s1 + $0x790] sm:$0xff]
  %v269 = vld [vmem:[%s1 + $0x798] sm:$0xff]
  %v270 = vld [vmem:[%s1 + $0x7a0] sm:$0xff]
  %v271 = vld [vmem:[%s1 + $0x7a8] sm:$0xff]
  %v272 = vld [vmem:[%s1 + $0x7b0] sm:$0xff]
  %v273 = vld [vmem:[%s1 + $0x7b8] sm:$0xff]
  %v274 = vld [vmem:[%s1 + $0x7c0] sm:$0xff]
  %v275 = vld [vmem:[%s1 + $0x7c8] sm:$0xff]
  %v276 = vld [vmem:[%s1 + $0x7d0] sm:$0xff]
  %v277 = vld [vmem:[%s1 + $0x7d8] sm:$0xff]
  %v278 = vld [vmem:[%s1 + $0x7e0] sm:$0xff]
  %v279 = vld [vmem:[%s1 + $0x7e8] sm:$0xff]
  %v280 = vld [vmem:[%s1 + $0x7f0] sm:$0xff]
  %v281 = vld [vmem:[%s1 + $0x7f8] sm:$0xff]
  %v282 = vld [vmem:[%s1 + $0x800] sm:$0xff]
  %v283 = vld [vmem:[%s1 + $0x808] sm:$0xff]
  %v284 = vld [vmem:[%s1 + $0x810] sm:$0xff]
  %v285 = vld [vmem:[%s1 + $0x818] sm:$0xff]
  %v286 = vld [vmem:[%s1 + $0x820] sm:$0xff]
  %v287 = vld [vmem:[%s1 + $0x828] sm:$0xff]
  %v288 = vld [vmem:[%s1 + $0x830] sm:$0xff]
  %v289 = vld [vmem:[%s1 + $0x838] sm:$0xff]
  %v290 = vld [vmem:[%s1 + $0x840] sm:$0xff]
  %v291 = vld [vmem:[%s1 + $0x848] sm:$0xff]
  %v292 = vld [vmem:[%s1 + $0x850] sm:$0xff]
  %v293 = vld [vmem:[%s1 + $0x858] sm:$0xff]
  %v294 = vld [vmem:[%s1 + $0x860] sm:$0xff]
  %v295 = vld [vmem:[%s1 + $0x868] sm:$0xff]
  %v296 = vld [vmem:[%s1 + $0x870] sm:$0xff]
  %v297 = vld [vmem:[%s1 + $0x878] sm:$0xff]
  %v298 = vld [vmem:[%s1 + $0x880] sm:$0xff]
  %v299 = vld [vmem:[%s1 + $0x888] sm:$0xff]
  %v300 = vld [vmem:[%s1 + $0x890] sm:$0xff]
  %v301 = vld [vmem:[%s1 + $0x898] sm:$0xff]
  %v302 = vld [vmem:[%s1 + $0x8a0] sm:$0xff]
  %v303 = vld [vmem:[%s1 + $0x8a8] sm:$0xff]
  %v304 = vld [vmem:[%s1 + $0x8b0] sm:$0xff]
  %v305 = vld [vmem:[%s1 + $0x8b8] sm:$0xff]
  %v306 = vld [vmem:[%s1 + $0x8c0] sm:$0xff]
  %v307 = vld [vmem:[%s1 + $0x8c8] sm:$0xff]
  %v308 = vld [vmem:[%s1 + $0x8d0] sm:$0xff]
  %v309 = vld [vmem:[%s1 + $0x8d8] sm:$0xff]
  %v310 = vld [vmem:[%s1 + $0x8e0] sm:$0xff]
  %v311 = vld [vmem:[%s1 + $0x8e8] sm:$0xff]
  %v312 = vld [vmem:[%s1 + $0x8f0] sm:$0xff]
  %v313 = vld [vmem:[%s1 + $0x8f8] sm:$0xff]
  %v314 = vld [vmem:[%s1 + $0x900] sm:$0xff]
  %v315 = vld [vmem:[%s1 + $0x908] sm:$0xff]
  %v316 = vld [vmem:[%s1 + $0x910] sm:$0xff]
  %v317 = vld [vmem:[%s1 + $0x918] sm:$0xff]
  %v318 = vld [vmem:[%s1 + $0x920] sm:$0xff]
  %v319 = vld [vmem:[%s1 + $0x928] sm:$0xff]
  %v320 = vld [vmem:[%s1 + $0x930] sm:$0xff]
  %v321 = vld [vmem:[%s1 + $0x938] sm:$0xff]
  %v322 = vld [vmem:[%s1 + $0x940] sm:$0xff]
  %v323 = vld [vmem:[%s1 + $0x948] sm:$0xff]
  %v324 = vld [vmem:[%s1 + $0x950] sm:$0xff]
  %v325 = vld [vmem:[%s1 + $0x958] sm:$0xff]
  %v326 = vld [vmem:[%s1 + $0x960] sm:$0xff]
  %v327 = vld [vmem:[%s1 + $0x968] sm:$0xff]
  %v328 = vld [vmem:[%s1 + $0x970] sm:$0xff]
  %v329 = vld [vmem:[%s1 + $0x978] sm:$0xff]
  %v330 = vld [vmem:[%s1 + $0x980] sm:$0xff]
  %v331 = vld [vmem:[%s1 + $0x988] sm:$0xff]
  %v332 = vld [vmem:[%s1 + $0x990] sm:$0xff]
  %v333 = vld [vmem:[%s1 + $0x998] sm:$0xff]
  %v334 = vld [vmem:[%s1 + $0x9a0] sm:$0xff]
  %v335 = vld [vmem:[%s1 + $0x9a8] sm:$0xff]
  %v336 = vld [vmem:[%s1 + $0x9b0] sm:$0xff]
  %v337 = vld [vmem:[%s1 + $0x9b8] sm:$0xff]
  %v338 = vld [vmem:[%s1 + $0x9c0] sm:$0xff]
  %v339 = vld [vmem:[%s1 + $0x9c8] sm:$0xff]
  %v340 = vld [vmem:[%s1 + $0x9d0] sm:$0xff]
  %v341 = vld [vmem:[%s1 + $0x9d8] sm:$0xff]
  %v342 = vld [vmem:[%s1 + $0x9e0] sm:$0xff]
  %v343 = vld [vmem:[%s1 + $0x9e8] sm:$0xff]
  %v344 = vld [vmem:[%s1 + $0x9f0] sm:$0xff]
  %v345 = vld [vmem:[%s1 + $0x9f8] sm:$0xff]
  %v346 = vld [vmem:[%s1 + $0xa00] sm:$0xff]
  %v347 = vld [vmem:[%s1 + $0xa08] sm:$0xff]
  %v348 = vld [vmem:[%s1 + $0xa10] sm:$0xff]
  %v349 = vld [vmem:[%s1 + $0xa18] sm:$0xff]
  %v350 = vld [vmem:[%s1 + $0xa20] sm:$0xff]
  %v351 = vld [vmem:[%s1 + $0xa28] sm:$0xff]
  %v352 = vld [vmem:[%s1 + $0xa30] sm:$0xff]
  %v353 = vld [vmem:[%s1 + $0xa38] sm:$0xff]
  %v354 = vld [vmem:[%s1 + $0xa40] sm:$0xff]
  %v355 = vld [vmem:[%s1 + $0xa48] sm:$0xff]
  %v356 = vld [vmem:[%s1 + $0xa50] sm:$0xff]
  %v357 = vld [vmem:[%s1 + $0xa58] sm:$0xff]
  %v358 = vld [vmem:[%s1 + $0xa60] sm:$0xff]
  %v359 = vld [vmem:[%s1 + $0xa68] sm:$0xff]
  %v360 = vld [vmem:[%s1 + $0xa70] sm:$0xff]
  %v361 = vld [vmem:[%s1 + $0xa78] sm:$0xff]
  %v362 = vld [vmem:[%s1 + $0xa80] sm:$0xff]
  %v363 = vld [vmem:[%s1 + $0xa88] sm:$0xff]
  %v364 = vld [vmem:[%s1 + $0xa90] sm:$0xff]
  %v365 = vld [vmem:[%s1 + $0xa98] sm:$0xff]
  %v366 = vld [vmem:[%s1 + $0xaa0] sm:$0xff]
  %v367 = vld [vmem:[%s1 + $0xaa8] sm:$0xff]
  %v368 = vld [vmem:[%s1 + $0xab0] sm:$0xff]
  %v369 = vld [vmem:[%s1 + $0xab8] sm:$0xff]
  %v370 = vld [vmem:[%s1 + $0xac0] sm:$0xff]
  %v371 = vld [vmem:[%s1 + $0xac8] sm:$0xff]
  %v372 = vld [vmem:[%s1 + $0xad0] sm:$0xff]
  %v373 = vld [vmem:[%s1 + $0xad8] sm:$0xff]
  %v374 = vld [vmem:[%s1 + $0xae0] sm:$0xff]
  %v375 = vld [vmem:[%s1 + $0xae8] sm:$0xff]
  %v376 = vld [vmem:[%s1 + $0xaf0] sm:$0xff]
  %v377 = vld [vmem:[%s1 + $0xaf8] sm:$0xff]
  %v378 = vld [vmem:[%s1 + $0xb00] sm:$0xff]
  %v379 = vld [vmem:[%s1 + $0xb08] sm:$0xff]
  %v380 = vld [vmem:[%s1 + $0xb10] sm:$0xff]
  %v381 = vld [vmem:[%s1 + $0xb18] sm:$0xff]
  %v382 = vld [vmem:[%s1 + $0xb20] sm:$0xff]
  %v383 = vld [vmem:[%s1 + $0xb28] sm:$0xff]
  %v384 = vld [vmem:[%s1 + $0xb30] sm:$0xff]
  %v385 = vld [vmem:[%s1 + $0xb38] sm:$0xff]
  %v386 = vld [vmem:[%s1 + $0xb40] sm:$0xff]
  %v387 = vld [vmem:[%s1 + $0xb48] sm:$0xff]
  %v388 = vld [vmem:[%s1 + $0xb50] sm:$0xff]
  %v389 = vld [vmem:[%s1 + $0xb58] sm:$0xff]
  %v390 = vld [vmem:[%s1 + $0xb60] sm:$0xff]
  %v391 = vld [vmem:[%s1 + $0xb68] sm:$0xff]
  %v392 = vld [vmem:[%s1 + $0xb70] sm:$0xff]
  %v393 = vld [vmem:[%s1 + $0xb78] sm:$0xff]
  %v394 = vld [vmem:[%s1 + $0xb80] sm:$0xff]
  %v395 = vld [vmem:[%s1 + $0xb88] sm:$0xff]
  %v396 = vld [vmem:[%s1 + $0xb90] sm:$0xff]
  %v397 = vld [vmem:[%s1 + $0xb98] sm:$0xff]
  %v398 = vld [vmem:[%s1 + $0xba0] sm:$0xff]
  %v399 = vld [vmem:[%s1 + $0xba8] sm:$0xff]
  %v400 = vld [vmem:[%s1 + $0xbb0] sm:$0xff]
  %v401 = vld [vmem:[%s1 + $0xbb8] sm:$0xff]
  %v402 = vld [vmem:[%s1 + $0xbc0] sm:$0xff]
  %v403 = vld [vmem:[%s1 + $0xbc8] sm:$0xff]
  %v404 = vld [vmem:[%s1 + $0xbd0] sm:$0xff]
  %v405 = vld [vmem:[%s1 + $0xbd8] sm:$0xff]
  %v406 = vld [vmem:[%s1 + $0xbe0] sm:$0xff]
  %v407 = vld [vmem:[%s1 + $0xbe8] sm:$0xff]
  %v408 = vld [vmem:[%s1 + $0xbf0] sm:$0xff]
  %v409 = vld [vmem:[%s1 + $0xbf8] sm:$0xff]
  %v410 = vld [vmem:[%s1 + $0xc00] sm:$0xff]
  %v411 = vld [vmem:[%s1 + $0xc08] sm:$0xff]
  %v412 = vld [vmem:[%s1 + $0xc10] sm:$0xff]
  %v413 = vld [vmem:[%s1 + $0xc18] sm:$0xff]
  %v414 = vld [vmem:[%s1 + $0xc20] sm:$0xff]
  %v415 = vld [vmem:[%s1 + $0xc28] sm:$0xff]
  %v416 = vld [vmem:[%s1 + $0xc30] sm:$0xff]
  %v417 = vld [vmem:[%s1 + $0xc38] sm:$0xff]
  %v418 = vld [vmem:[%s1 + $0xc40] sm:$0xff]
  %v419 = vld [vmem:[%s1 + $0xc48] sm:$0xff]
  %v420 = vld [vmem:[%s1 + $0xc50] sm:$0xff]
  %v421 = vld [vmem:[%s1 + $0xc58] sm:$0xff]
  %v422 = vld [vmem:[%s1 + $0xc60] sm:$0xff]
  %v423 = vld [vmem:[%s1 + $0xc68] sm:$0xff]
  %v424 = vld [vmem:[%s1 + $0xc70] sm:$0xff]
  %v425 = vld [vmem:[%s1 + $0xc78] sm:$0xff]
  %v426 = vld [vmem:[%s1 + $0xc80] sm:$0xff]
  %v427 = vld [vmem:[%s1 + $0xc88] sm:$0xff]
  %v428 = vld [vmem:[%s1 + $0xc90] sm:$0xff]
  %v429 = vld [vmem:[%s1 + $0xc98] sm:$0xff]
  %v430 = vld [vmem:[%s1 + $0xca0] sm:$0xff]
  %v431 = vld [vmem:[%s1 + $0xca8] sm:$0xff]
  %v432 = vld [vmem:[%s1 + $0xcb0] sm:$0xff]
  %v433 = vld [vmem:[%s1 + $0xcb8] sm:$0xff]
  %v434 = vld [vmem:[%s1 + $0xcc0] sm:$0xff]
  %v435 = vld [vmem:[%s1 + $0xcc8] sm:$0xff]
  %v436 = vld [vmem:[%s1 + $0xcd0] sm:$0xff]
  %v437 = vld [vmem:[%s1 + $0xcd8] sm:$0xff]
  %v438 = vld [vmem:[%s1 + $0xce0] sm:$0xff]
  %v439 = vld [vmem:[%s1 + $0xce8] sm:$0xff]
  %v440 = vld [vmem:[%s1 + $0xcf0] sm:$0xff]
  %v441 = vld [vmem:[%s1 + $0xcf8] sm:$0xff]
  %v442 = vld [vmem:[%s1 + $0xd00] sm:$0xff]
  %v443 = vld [vmem:[%s1 + $0xd08] sm:$0xff]
  %v444 = vld [vmem:[%s1 + $0xd10] sm:$0xff]
  %v445 = vld [vmem:[%s1 + $0xd18] sm:$0xff]
  %v446 = vld [vmem:[%s1 + $0xd20] sm:$0xff]
  %v447 = vld [vmem:[%s1 + $0xd28] sm:$0xff]
  %v448 = vld [vmem:[%s1 + $0xd30] sm:$0xff]
  %v449 = vld [vmem:[%s1 + $0xd38] sm:$0xff]
  %v450 = vld [vmem:[%s1 + $0xd40] sm:$0xff]
  %v451 = vld [vmem:[%s1 + $0xd48] sm:$0xff]
  %v452 = vld [vmem:[%s1 + $0xd50] sm:$0xff]
  %v453 = vld [vmem:[%s1 + $0xd58] sm:$0xff]
  %v454 = vld [vmem:[%s1 + $0xd60] sm:$0xff]
  %v455 = vld [vmem:[%s1 + $0xd68] sm:$0xff]
  %v456 = vld [vmem:[%s1 + $0xd70] sm:$0xff]
  %v457 = vld [vmem:[%s1 + $0xd78] sm:$0xff]
  %v458 = vld [vmem:[%s1 + $0xd80] sm:$0xff]
  %v459 = vld [vmem:[%s1 + $0xd88] sm:$0xff]
  %v460 = vld [vmem:[%s1 + $0xd90] sm:$0xff]
  %v461 = vld [vmem:[%s1 + $0xd98] sm:$0xff]
  %v462 = vld [vmem:[%s1 + $0xda0] sm:$0xff]
  %v463 = vld [vmem:[%s1 + $0xda8] sm:$0xff]
  %v464 = vld [vmem:[%s1 + $0xdb0] sm:$0xff]
  %v465 = vld [vmem:[%s1 + $0xdb8] sm:$0xff]
  %v466 = vld [vmem:[%s1 + $0xdc0] sm:$0xff]
  %v467 = vld [vmem:[%s1 + $0xdc8] sm:$0xff]
  %v468 = vld [vmem:[%s1 + $0xdd0] sm:$0xff]
  %v469 = vld [vmem:[%s1 + $0xdd8] sm:$0xff]
  %v470 = vld [vmem:[%s1 + $0xde0] sm:$0xff]
  %v471 = vld [vmem:[%s1 + $0xde8] sm:$0xff]
  %v472 = vld [vmem:[%s1 + $0xdf0] sm:$0xff]
  %v473 = vld [vmem:[%s1 + $0xdf8] sm:$0xff]
  %v474 = vld [vmem:[%s1 + $0xe00] sm:$0xff]
  %v475 = vld [vmem:[%s1 + $0xe08] sm:$0xff]
  %v476 = vld [vmem:[%s1 + $0xe10] sm:$0xff]
  %v477 = vld [vmem:[%s1 + $0xe18] sm:$0xff]
  %v478 = vld [vmem:[%s1 + $0xe20] sm:$0xff]
  %v479 = vld [vmem:[%s1 + $0xe28] sm:$0xff]
  %v480 = vld [vmem:[%s1 + $0xe30] sm:$0xff]
  %v481 = vld [vmem:[%s1 + $0xe38] sm:$0xff]
  %v482 = vld [vmem:[%s1 + $0xe40] sm:$0xff]
  %v483 = vld [vmem:[%s1 + $0xe48] sm:$0xff]
  %v484 = vld [vmem:[%s1 + $0xe50] sm:$0xff]
  %v485 = vld [vmem:[%s1 + $0xe58] sm:$0xff]
  %v486 = vld [vmem:[%s1 + $0xe60] sm:$0xff]
  %v487 = vld [vmem:[%s1 + $0xe68] sm:$0xff]
  %v488 = vld [vmem:[%s1 + $0xe70] sm:$0xff]
  %v489 = vld [vmem:[%s1 + $0xe78] sm:$0xff]
  %v490 = vld [vmem:[%s1 + $0xe80] sm:$0xff]
  %v491 = vld [vmem:[%s1 + $0xe88] sm:$0xff]
  %v492 = vld [vmem:[%s1 + $0xe90] sm:$0xff]
  %v493 = vld [vmem:[%s1 + $0xe98] sm:$0xff]
  %v494 = vld [vmem:[%s1 + $0xea0] sm:$0xff]
  %v495 = vld [vmem:[%s1 + $0xea8] sm:$0xff]
  %v496 = vld [vmem:[%s1 + $0xeb0] sm:$0xff]
  %v497 = vld [vmem:[%s1 + $0xeb8] sm:$0xff]
  %v498 = vld [vmem:[%s1 + $0xec0] sm:$0xff]
  %v499 = vld [vmem:[%s1 + $0xec8] sm:$0xff]
  %v500 = vld [vmem:[%s1 + $0xed0] sm:$0xff]
  %v501 = vld [vmem:[%s1 + $0xed8] sm:$0xff]
  %v502 = vld [vmem:[%s1 + $0xee0] sm:$0xff]
  %v503 = vld [vmem:[%s1 + $0xee8] sm:$0xff]
  %v504 = vld [vmem:[%s1 + $0xef0] sm:$0xff]
  %v505 = vld [vmem:[%s1 + $0xef8] sm:$0xff]
  %v506 = vld [vmem:[%s1 + $0xf00] sm:$0xff]
  %v507 = vld [vmem:[%s1 + $0xf08] sm:$0xff]
  %v508 = vld [vmem:[%s1 + $0xf10] sm:$0xff]
  %v509 = vld [vmem:[%s1 + $0xf18] sm:$0xff]
  %v510 = vld [vmem:[%s1 + $0xf20] sm:$0xff]
  %v511 = vld [vmem:[%s1 + $0xf28] sm:$0xff]
  %v512 = vld [vmem:[%s1 + $0xf30] sm:$0xff]
  %v513 = vld [vmem:[%s1 + $0xf38] sm:$0xff]
  %v514 = vld [vmem:[%s1 + $0xf40] sm:$0xff]
  %v515 = vld [vmem:[%s1 + $0xf48] sm:$0xff]
  %v516 = vld [vmem:[%s1 + $0xf50] sm:$0xff]
  %v517 = vld [vmem:[%s1 + $0xf58] sm:$0xff]
  %v518 = vld [vmem:[%s1 + $0xf60] sm:$0xff]
  %v519 = vld [vmem:[%s1 + $0xf68] sm:$0xff]
  %v520 = vld [vmem:[%s1 + $0xf70] sm:$0xff]
  %v521 = vld [vmem:[%s1 + $0xf78] sm:$0xff]
  %v522 = vld [vmem:[%s1 + $0xf80] sm:$0xff]
  %v523 = vld [vmem:[%s1 + $0xf88] sm:$0xff]
  %v524 = vld [vmem:[%s1 + $0xf90] sm:$0xff]
  %v525 = vld [vmem:[%s1 + $0xf98] sm:$0xff]
  %v526 = vld [vmem:[%s1 + $0xfa0] sm:$0xff]
  %v527 = vld [vmem:[%s1 + $0xfa8] sm:$0xff]
  %v528 = vld [vmem:[%s1 + $0xfb0] sm:$0xff]
  %v529 = vld [vmem:[%s1 + $0xfb8] sm:$0xff]
  %v530 = vld [vmem:[%s1 + $0xfc0] sm:$0xff]
  %v531 = vld [vmem:[%s1 + $0xfc8] sm:$0xff]
  %v532 = vld [vmem:[%s1 + $0xfd0] sm:$0xff]
  %v533 = vld [vmem:[%s1 + $0xfd8] sm:$0xff]
  %v534 = vld [vmem:[%s1 + $0xfe0] sm:$0xff]
  %v535 = vld [vmem:[%s1 + $0xfe8] sm:$0xff]
  %v536 = vld [vmem:[%s1 + $0xff0] sm:$0xff]
  %v537 = vld [vmem:[%s1 + $0xff8] sm:$0xff]
  %v538 = vld [vmem:[%s1 + $0x1000] sm:$0xff]
  %v539 = vld [vmem:[%s1 + $0x1008] sm:$0xff]
  %v540 = vld [vmem:[%s1 + $0x1010] sm:$0xff]
  %v541 = vld [vmem:[%s1 + $0x1018] sm:$0xff]
  %v542 = vld [vmem:[%s1 + $0x1020] sm:$0xff]
  %v543 = vld [vmem:[%s1 + $0x1028] sm:$0xff]
  %v544 = vld [vmem:[%s1 + $0x1030] sm:$0xff]
  %v545 = vld [vmem:[%s1 + $0x1038] sm:$0xff]
  %v546 = vld [vmem:[%s1 + $0x1040] sm:$0xff]
  %v547 = vld [vmem:[%s1 + $0x1048] sm:$0xff]
  %v548 = vld [vmem:[%s1 + $0x1050] sm:$0xff]
  %v549 = vld [vmem:[%s1 + $0x1058] sm:$0xff]
  %v550 = vld [vmem:[%s1 + $0x1060] sm:$0xff]
  %v551 = vld [vmem:[%s1 + $0x1068] sm:$0xff]
  %v552 = vld [vmem:[%s1 + $0x1070] sm:$0xff]
  %v553 = vld [vmem:[%s1 + $0x1078] sm:$0xff]
  %v554 = vld [vmem:[%s1 + $0x1080] sm:$0xff]
  %v555 = vld [vmem:[%s1 + $0x1088] sm:$0xff]
  %v556 = vld [vmem:[%s1 + $0x1090] sm:$0xff]
  %v557 = vld [vmem:[%s1 + $0x1098] sm:$0xff]
  %v558 = vld [vmem:[%s1 + $0x10a0] sm:$0xff]
  %v559 = vld [vmem:[%s1 + $0x10a8] sm:$0xff]
  %v560 = vld [vmem:[%s1 + $0x10b0] sm:$0xff]
  %v561 = vld [vmem:[%s1 + $0x10b8] sm:$0xff]
  %v562 = vld [vmem:[%s1 + $0x10c0] sm:$0xff]
  %v563 = vld [vmem:[%s1 + $0x10c8] sm:$0xff]
  %v564 = vld [vmem:[%s1 + $0x10d0] sm:$0xff]
  %v565 = vld [vmem:[%s1 + $0x10d8] sm:$0xff]
  %v566 = vld [vmem:[%s1 + $0x10e0] sm:$0xff]
  %v567 = vld [vmem:[%s1 + $0x10e8] sm:$0xff]
  %v568 = vld [vmem:[%s1 + $0x10f0] sm:$0xff]
  %v569 = vld [vmem:[%s1 + $0x10f8] sm:$0xff]
  %v570 = vld [vmem:[%s1 + $0x1100] sm:$0xff]
  %v571 = vld [vmem:[%s1 + $0x1108] sm:$0xff]
  %v572 = vld [vmem:[%s1 + $0x1110] sm:$0xff]
  %v573 = vld [vmem:[%s1 + $0x1118] sm:$0xff]
  %v574 = vld [vmem:[%s1 + $0x1120] sm:$0xff]
  %v575 = vld [vmem:[%s1 + $0x1128] sm:$0xff]
  %v576 = vld [vmem:[%s1 + $0x1130] sm:$0xff]
  %v577 = vld [vmem:[%s1 + $0x1138] sm:$0xff]
  %v578 = vld [vmem:[%s1 + $0x1140] sm:$0xff]
  %v579 = vld [vmem:[%s1 + $0x1148] sm:$0xff]
  %v580 = vld [vmem:[%s1 + $0x1150] sm:$0xff]
  %v581 = vld [vmem:[%s1 + $0x1158] sm:$0xff]
  %v582 = vld [vmem:[%s1 + $0x1160] sm:$0xff]
  %v583 = vld [vmem:[%s1 + $0x1168] sm:$0xff]
  %v584 = vld [vmem:[%s1 + $0x1170] sm:$0xff]
  %v585 = vld [vmem:[%s1 + $0x1178] sm:$0xff]
  %v586 = vld [vmem:[%s1 + $0x1180] sm:$0xff]
  %v587 = vld [vmem:[%s1 + $0x1188] sm:$0xff]
  %v588 = vld [vmem:[%s1 + $0x1190] sm:$0xff]
  %v589 = vld [vmem:[%s1 + $0x1198] sm:$0xff]
  %v590 = vld [vmem:[%s1 + $0x11a0] sm:$0xff]
  %v591 = vld [vmem:[%s1 + $0x11a8] sm:$0xff]
  %v592 = vld [vmem:[%s1 + $0x11b0] sm:$0xff]
  %v593 = vld [vmem:[%s1 + $0x11b8] sm:$0xff]
  %v594 = vld [vmem:[%s1 + $0x11c0] sm:$0xff]
  %v595 = vld [vmem:[%s1 + $0x11c8] sm:$0xff]
  %v596 = vld [vmem:[%s1 + $0x11d0] sm:$0xff]
  %v597 = vld [vmem:[%s1 + $0x11d8] sm:$0xff]
  %v598 = vld [vmem:[%s1 + $0x11e0] sm:$0xff]
  %v599 = vld [vmem:[%s1 + $0x11e8] sm:$0xff]
  %v600 = vld [vmem:[%s1 + $0x11f0] sm:$0xff]
  %v601 = vld [vmem:[%s1 + $0x11f8] sm:$0xff]
  %v611 = vunpack.c.l.b16 %v17
  %v612 = vunpack.c.h.b16 %v17
  %v613 = vunpack.c.l.b16 %v18
  %v614 = vunpack.c.h.b16 %v18
  %v615 = vunpack.c.l.b16 %v19
  %v616 = vunpack.c.h.b16 %v19
  %v617 = vunpack.c.l.b16 %v20
  %v618 = vunpack.c.h.b16 %v20
  %v619 = vunpack.c.l.b16 %v21
  %v620 = vunpack.c.h.b16 %v21
  %v621 = vunpack.c.l.b16 %v22
  %v622 = vunpack.c.h.b16 %v22
  %v623 = vunpack.c.l.b16 %v23
  %v624 = vunpack.c.h.b16 %v23
  %v625 = vunpack.c.l.b16 %v24
  %v626 = vunpack.c.h.b16 %v24
  %v627 = vunpack.c.l.b16 %v25
  %v628 = vunpack.c.h.b16 %v25
  %v629 = vpack.c.b16 %v611, %v611
  %v630 = vpack.c.b16 %v612, %v612
  %v631 = vpack.c.b16 %v613, %v613
  %v632 = vpack.c.b16 %v614, %v614
  %v633 = vpack.c.b16 %v615, %v615
  %v634 = vpack.c.b16 %v616, %v616
  %v635 = vpack.c.b16 %v617, %v617
  %v636 = vpack.c.b16 %v618, %v618
  %v637 = vpack.c.b16 %v619, %v619
  %v638 = vpack.c.b16 %v620, %v620
  %v639 = vpack.c.b16 %v621, %v621
  %v640 = vpack.c.b16 %v622, %v622
  %v641 = vpack.c.b16 %v623, %v623
  %v642 = vpack.c.b16 %v624, %v624
  %v643 = vpack.c.b16 %v625, %v625
  %v644 = vpack.c.b16 %v626, %v626
  %v645 = vpack.c.b16 %v627, %v627
  %v646 = vpack.c.b16 %v628, %v628
  %v1241 = vunpack.c.l.b16 %v26
  %v1242 = vunpack.c.h.b16 %v26
  %v1243 = vunpack.c.l.b16 %v27
  %v1244 = vunpack.c.h.b16 %v27
  %v1245 = vunpack.c.l.b16 %v28
  %v1246 = vunpack.c.h.b16 %v28
  %v1247 = vunpack.c.l.b16 %v29
  %v1248 = vunpack.c.h.b16 %v29
  %v1249 = vunpack.c.l.b16 %v30
  %v1250 = vunpack.c.h.b16 %v30
  %v1251 = vunpack.c.l.b16 %v31
  %v1252 = vunpack.c.h.b16 %v31
  %v1253 = vunpack.c.l.b16 %v32
  %v1254 = vunpack.c.h.b16 %v32
  %v1255 = vunpack.c.l.b16 %v33
  %v1256 = vunpack.c.h.b16 %v33
  %v1257 = vunpack.c.l.b16 %v34
  %v1258 = vunpack.c.h.b16 %v34
  %v1259 = vunpack.c.l.b16 %v35
  %v1260 = vunpack.c.h.b16 %v35
  %v1261 = vunpack.c.l.b16 %v36
  %v1262 = vunpack.c.h.b16 %v36
  %v1263 = vunpack.c.l.b16 %v37
  %v1264 = vunpack.c.h.b16 %v37
  %v1265 = vunpack.c.l.b16 %v38
  %v1266 = vunpack.c.h.b16 %v38
  %v1267 = vunpack.c.l.b16 %v39
  %v1268 = vunpack.c.h.b16 %v39
  %v1269 = vunpack.c.l.b16 %v40
  %v1270 = vunpack.c.h.b16 %v40
  %v1271 = vunpack.c.l.b16 %v41
  %v1272 = vunpack.c.h.b16 %v41
  %v1273 = vunpack.c.l.b16 %v42
  %v1274 = vunpack.c.h.b16 %v42
  %v1275 = vunpack.c.l.b16 %v43
  %v1276 = vunpack.c.h.b16 %v43
  %v1277 = vunpack.c.l.b16 %v44
  %v1278 = vunpack.c.h.b16 %v44
  %v1279 = vunpack.c.l.b16 %v45
  %v1280 = vunpack.c.h.b16 %v45
  %v1281 = vunpack.c.l.b16 %v46
  %v1282 = vunpack.c.h.b16 %v46
  %v1283 = vunpack.c.l.b16 %v47
  %v1284 = vunpack.c.h.b16 %v47
  %v1285 = vunpack.c.l.b16 %v48
  %v1286 = vunpack.c.h.b16 %v48
  %v1287 = vunpack.c.l.b16 %v49
  %v1288 = vunpack.c.h.b16 %v49
  %v1289 = vunpack.c.l.b16 %v50
  %v1290 = vunpack.c.h.b16 %v50
  %v1291 = vunpack.c.l.b16 %v51
  %v1292 = vunpack.c.h.b16 %v51
  %v1293 = vunpack.c.l.b16 %v52
  %v1294 = vunpack.c.h.b16 %v52
  %v1295 = vunpack.c.l.b16 %v53
  %v1296 = vunpack.c.h.b16 %v53
  %v1297 = vunpack.c.l.b16 %v54
  %v1298 = vunpack.c.h.b16 %v54
  %v1299 = vunpack.c.l.b16 %v55
  %v1300 = vunpack.c.h.b16 %v55
  %v1301 = vunpack.c.l.b16 %v56
  %v1302 = vunpack.c.h.b16 %v56
  %v1303 = vunpack.c.l.b16 %v57
  %v1304 = vunpack.c.h.b16 %v57
  %v1305 = vunpack.c.l.b16 %v58
  %v1306 = vunpack.c.h.b16 %v58
  %v1307 = vunpack.c.l.b16 %v59
  %v1308 = vunpack.c.h.b16 %v59
  %v1309 = vunpack.c.l.b16 %v60
  %v1310 = vunpack.c.h.b16 %v60
  %v1311 = vunpack.c.l.b16 %v61
  %v1312 = vunpack.c.h.b16 %v61
  %v1313 = vunpack.c.l.b16 %v62
  %v1314 = vunpack.c.h.b16 %v62
  %v1315 = vunpack.c.l.b16 %v63
  %v1316 = vunpack.c.h.b16 %v63
  %v1317 = vunpack.c.l.b16 %v64
  %v1318 = vunpack.c.h.b16 %v64
  %v1319 = vunpack.c.l.b16 %v65
  %v1320 = vunpack.c.h.b16 %v65
  %v1321 = vunpack.c.l.b16 %v66
  %v1322 = vunpack.c.h.b16 %v66
  %v1323 = vunpack.c.l.b16 %v67
  %v1324 = vunpack.c.h.b16 %v67
  %v1325 = vunpack.c.l.b16 %v68
  %v1326 = vunpack.c.h.b16 %v68
  %v1327 = vunpack.c.l.b16 %v69
  %v1328 = vunpack.c.h.b16 %v69
  %v1329 = vunpack.c.l.b16 %v70
  %v1330 = vunpack.c.h.b16 %v70
  %v1331 = vunpack.c.l.b16 %v71
  %v1332 = vunpack.c.h.b16 %v71
  %v1333 = vunpack.c.l.b16 %v72
  %v1334 = vunpack.c.h.b16 %v72
  %v1335 = vunpack.c.l.b16 %v73
  %v1336 = vunpack.c.h.b16 %v73
  %v1337 = vunpack.c.l.b16 %v74
  %v1338 = vunpack.c.h.b16 %v74
  %v1339 = vunpack.c.l.b16 %v75
  %v1340 = vunpack.c.h.b16 %v75
  %v1341 = vunpack.c.l.b16 %v76
  %v1342 = vunpack.c.h.b16 %v76
  %v1343 = vunpack.c.l.b16 %v77
  %v1344 = vunpack.c.h.b16 %v77
  %v1345 = vunpack.c.l.b16 %v78
  %v1346 = vunpack.c.h.b16 %v78
  %v1347 = vunpack.c.l.b16 %v79
  %v1348 = vunpack.c.h.b16 %v79
  %v1349 = vunpack.c.l.b16 %v80
  %v1350 = vunpack.c.h.b16 %v80
  %v1351 = vunpack.c.l.b16 %v81
  %v1352 = vunpack.c.h.b16 %v81
  %v1353 = vunpack.c.l.b16 %v82
  %v1354 = vunpack.c.h.b16 %v82
  %v1355 = vunpack.c.l.b16 %v83
  %v1356 = vunpack.c.h.b16 %v83
  %v1357 = vunpack.c.l.b16 %v84
  %v1358 = vunpack.c.h.b16 %v84
  %v1359 = vunpack.c.l.b16 %v85
  %v1360 = vunpack.c.h.b16 %v85
  %v1361 = vunpack.c.l.b16 %v86
  %v1362 = vunpack.c.h.b16 %v86
  %v1363 = vunpack.c.l.b16 %v87
  %v1364 = vunpack.c.h.b16 %v87
  %v1365 = vunpack.c.l.b16 %v88
  %v1366 = vunpack.c.h.b16 %v88
  %v1367 = vunpack.c.l.b16 %v89
  %v1368 = vunpack.c.h.b16 %v89
  %v1369 = vunpack.c.l.b16 %v90
  %v1370 = vunpack.c.h.b16 %v90
  %v1371 = vunpack.c.l.b16 %v91
  %v1372 = vunpack.c.h.b16 %v91
  %v1373 = vunpack.c.l.b16 %v92
  %v1374 = vunpack.c.h.b16 %v92
  %v1375 = vunpack.c.l.b16 %v93
  %v1376 = vunpack.c.h.b16 %v93
  %v1377 = vunpack.c.l.b16 %v94
  %v1378 = vunpack.c.h.b16 %v94
  %v1379 = vunpack.c.l.b16 %v95
  %v1380 = vunpack.c.h.b16 %v95
  %v1381 = vunpack.c.l.b16 %v96
  %v1382 = vunpack.c.h.b16 %v96
  %v1383 = vunpack.c.l.b16 %v97
  %v1384 = vunpack.c.h.b16 %v97
  %v1385 = vunpack.c.l.b16 %v98
  %v1386 = vunpack.c.h.b16 %v98
  %v1387 = vunpack.c.l.b16 %v99
  %v1388 = vunpack.c.h.b16 %v99
  %v1389 = vunpack.c.l.b16 %v100
  %v1390 = vunpack.c.h.b16 %v100
  %v1391 = vunpack.c.l.b16 %v101
  %v1392 = vunpack.c.h.b16 %v101
  %v1393 = vunpack.c.l.b16 %v102
  %v1394 = vunpack.c.h.b16 %v102
  %v1395 = vunpack.c.l.b16 %v103
  %v1396 = vunpack.c.h.b16 %v103
  %v1397 = vunpack.c.l.b16 %v104
  %v1398 = vunpack.c.h.b16 %v104
  %v1399 = vunpack.c.l.b16 %v105
  %v1400 = vunpack.c.h.b16 %v105
  %v1401 = vunpack.c.l.b16 %v106
  %v1402 = vunpack.c.h.b16 %v106
  %v1403 = vunpack.c.l.b16 %v107
  %v1404 = vunpack.c.h.b16 %v107
  %v1405 = vunpack.c.l.b16 %v108
  %v1406 = vunpack.c.h.b16 %v108
  %v1407 = vunpack.c.l.b16 %v109
  %v1408 = vunpack.c.h.b16 %v109
  %v1409 = vunpack.c.l.b16 %v110
  %v1410 = vunpack.c.h.b16 %v110
  %v1411 = vunpack.c.l.b16 %v111
  %v1412 = vunpack.c.h.b16 %v111
  %v1413 = vunpack.c.l.b16 %v112
  %v1414 = vunpack.c.h.b16 %v112
  %v1415 = vunpack.c.l.b16 %v113
  %v1416 = vunpack.c.h.b16 %v113
  %v1417 = vunpack.c.l.b16 %v114
  %v1418 = vunpack.c.h.b16 %v114
  %v1419 = vunpack.c.l.b16 %v115
  %v1420 = vunpack.c.h.b16 %v115
  %v1421 = vunpack.c.l.b16 %v116
  %v1422 = vunpack.c.h.b16 %v116
  %v1423 = vunpack.c.l.b16 %v117
  %v1424 = vunpack.c.h.b16 %v117
  %v1425 = vunpack.c.l.b16 %v118
  %v1426 = vunpack.c.h.b16 %v118
  %v1427 = vunpack.c.l.b16 %v119
  %v1428 = vunpack.c.h.b16 %v119
  %v1429 = vunpack.c.l.b16 %v120
  %v1430 = vunpack.c.h.b16 %v120
  %v1431 = vunpack.c.l.b16 %v121
  %v1432 = vunpack.c.h.b16 %v121
  %v1433 = vunpack.c.l.b16 %v122
  %v1434 = vunpack.c.h.b16 %v122
  %v1435 = vunpack.c.l.b16 %v123
  %v1436 = vunpack.c.h.b16 %v123
  %v1437 = vunpack.c.l.b16 %v124
  %v1438 = vunpack.c.h.b16 %v124
  %v1439 = vunpack.c.l.b16 %v125
  %v1440 = vunpack.c.h.b16 %v125
  %v1441 = vunpack.c.l.b16 %v126
  %v1442 = vunpack.c.h.b16 %v126
  %v1443 = vunpack.c.l.b16 %v127
  %v1444 = vunpack.c.h.b16 %v127
  %v1445 = vunpack.c.l.b16 %v128
  %v1446 = vunpack.c.h.b16 %v128
  %v1447 = vunpack.c.l.b16 %v129
  %v1448 = vunpack.c.h.b16 %v129
  %v1449 = vunpack.c.l.b16 %v130
  %v1450 = vunpack.c.h.b16 %v130
  %v1451 = vunpack.c.l.b16 %v131
  %v1452 = vunpack.c.h.b16 %v131
  %v1453 = vunpack.c.l.b16 %v132
  %v1454 = vunpack.c.h.b16 %v132
  %v1455 = vunpack.c.l.b16 %v133
  %v1456 = vunpack.c.h.b16 %v133
  %v1457 = vunpack.c.l.b16 %v134
  %v1458 = vunpack.c.h.b16 %v134
  %v1459 = vunpack.c.l.b16 %v135
  %v1460 = vunpack.c.h.b16 %v135
  %v1461 = vunpack.c.l.b16 %v136
  %v1462 = vunpack.c.h.b16 %v136
  %v1463 = vunpack.c.l.b16 %v137
  %v1464 = vunpack.c.h.b16 %v137
  %v1465 = vunpack.c.l.b16 %v138
  %v1466 = vunpack.c.h.b16 %v138
  %v1467 = vunpack.c.l.b16 %v139
  %v1468 = vunpack.c.h.b16 %v139
  %v1469 = vunpack.c.l.b16 %v140
  %v1470 = vunpack.c.h.b16 %v140
  %v1471 = vunpack.c.l.b16 %v141
  %v1472 = vunpack.c.h.b16 %v141
  %v1473 = vunpack.c.l.b16 %v142
  %v1474 = vunpack.c.h.b16 %v142
  %v1475 = vunpack.c.l.b16 %v143
  %v1476 = vunpack.c.h.b16 %v143
  %v1477 = vunpack.c.l.b16 %v144
  %v1478 = vunpack.c.h.b16 %v144
  %v1479 = vunpack.c.l.b16 %v145
  %v1480 = vunpack.c.h.b16 %v145
  %v1481 = vunpack.c.l.b16 %v146
  %v1482 = vunpack.c.h.b16 %v146
  %v1483 = vunpack.c.l.b16 %v147
  %v1484 = vunpack.c.h.b16 %v147
  %v1485 = vunpack.c.l.b16 %v148
  %v1486 = vunpack.c.h.b16 %v148
  %v1487 = vunpack.c.l.b16 %v149
  %v1488 = vunpack.c.h.b16 %v149
  %v1489 = vunpack.c.l.b16 %v150
  %v1490 = vunpack.c.h.b16 %v150
  %v1491 = vunpack.c.l.b16 %v151
  %v1492 = vunpack.c.h.b16 %v151
  %v1493 = vunpack.c.l.b16 %v152
  %v1494 = vunpack.c.h.b16 %v152
  %v1495 = vunpack.c.l.b16 %v153
  %v1496 = vunpack.c.h.b16 %v153
  %v1497 = vunpack.c.l.b16 %v154
  %v1498 = vunpack.c.h.b16 %v154
  %v1499 = vunpack.c.l.b16 %v155
  %v1500 = vunpack.c.h.b16 %v155
  %v1501 = vunpack.c.l.b16 %v156
  %v1502 = vunpack.c.h.b16 %v156
  %v1503 = vunpack.c.l.b16 %v157
  %v1504 = vunpack.c.h.b16 %v157
  %v1505 = vunpack.c.l.b16 %v158
  %v1506 = vunpack.c.h.b16 %v158
  %v1507 = vunpack.c.l.b16 %v159
  %v1508 = vunpack.c.h.b16 %v159
  %v1509 = vunpack.c.l.b16 %v160
  %v1510 = vunpack.c.h.b16 %v160
  %v1511 = vunpack.c.l.b16 %v161
  %v1512 = vunpack.c.h.b16 %v161
  %v1513 = vunpack.c.l.b16 %v162
  %v1514 = vunpack.c.h.b16 %v162
  %v1515 = vunpack.c.l.b16 %v163
  %v1516 = vunpack.c.h.b16 %v163
  %v1517 = vunpack.c.l.b16 %v164
  %v1518 = vunpack.c.h.b16 %v164
  %v1519 = vunpack.c.l.b16 %v165
  %v1520 = vunpack.c.h.b16 %v165
  %v1521 = vunpack.c.l.b16 %v166
  %v1522 = vunpack.c.h.b16 %v166
  %v1523 = vunpack.c.l.b16 %v167
  %v1524 = vunpack.c.h.b16 %v167
  %v1525 = vunpack.c.l.b16 %v168
  %v1526 = vunpack.c.h.b16 %v168
  %v1527 = vunpack.c.l.b16 %v169
  %v1528 = vunpack.c.h.b16 %v169
  %v1529 = vunpack.c.l.b16 %v170
  %v1530 = vunpack.c.h.b16 %v170
  %v1531 = vunpack.c.l.b16 %v171
  %v1532 = vunpack.c.h.b16 %v171
  %v1533 = vunpack.c.l.b16 %v172
  %v1534 = vunpack.c.h.b16 %v172
  %v1535 = vunpack.c.l.b16 %v173
  %v1536 = vunpack.c.h.b16 %v173
  %v1537 = vunpack.c.l.b16 %v174
  %v1538 = vunpack.c.h.b16 %v174
  %v1539 = vunpack.c.l.b16 %v175
  %v1540 = vunpack.c.h.b16 %v175
  %v1541 = vunpack.c.l.b16 %v176
  %v1542 = vunpack.c.h.b16 %v176
  %v1543 = vunpack.c.l.b16 %v177
  %v1544 = vunpack.c.h.b16 %v177
  %v1545 = vunpack.c.l.b16 %v178
  %v1546 = vunpack.c.h.b16 %v178
  %v1547 = vunpack.c.l.b16 %v179
  %v1548 = vunpack.c.h.b16 %v179
  %v1549 = vunpack.c.l.b16 %v180
  %v1550 = vunpack.c.h.b16 %v180
  %v1551 = vunpack.c.l.b16 %v181
  %v1552 = vunpack.c.h.b16 %v181
  %v1553 = vunpack.c.l.b16 %v182
  %v1554 = vunpack.c.h.b16 %v182
  %v1555 = vunpack.c.l.b16 %v183
  %v1556 = vunpack.c.h.b16 %v183
  %v1557 = vunpack.c.l.b16 %v184
  %v1558 = vunpack.c.h.b16 %v184
  %v1559 = vunpack.c.l.b16 %v185
  %v1560 = vunpack.c.h.b16 %v185
  %v1561 = vunpack.c.l.b16 %v186
  %v1562 = vunpack.c.h.b16 %v186
  %v1563 = vunpack.c.l.b16 %v187
  %v1564 = vunpack.c.h.b16 %v187
  %v1565 = vunpack.c.l.b16 %v188
  %v1566 = vunpack.c.h.b16 %v188
  %v1567 = vunpack.c.l.b16 %v189
  %v1568 = vunpack.c.h.b16 %v189
  %v1569 = vunpack.c.l.b16 %v190
  %v1570 = vunpack.c.h.b16 %v190
  %v1571 = vunpack.c.l.b16 %v191
  %v1572 = vunpack.c.h.b16 %v191
  %v1573 = vunpack.c.l.b16 %v192
  %v1574 = vunpack.c.h.b16 %v192
  %v1575 = vunpack.c.l.b16 %v193
  %v1576 = vunpack.c.h.b16 %v193
  %v1577 = vunpack.c.l.b16 %v194
  %v1578 = vunpack.c.h.b16 %v194
  %v1579 = vunpack.c.l.b16 %v195
  %v1580 = vunpack.c.h.b16 %v195
  %v1581 = vunpack.c.l.b16 %v196
  %v1582 = vunpack.c.h.b16 %v196
  %v1583 = vunpack.c.l.b16 %v197
  %v1584 = vunpack.c.h.b16 %v197
  %v1585 = vunpack.c.l.b16 %v198
  %v1586 = vunpack.c.h.b16 %v198
  %v1587 = vunpack.c.l.b16 %v199
  %v1588 = vunpack.c.h.b16 %v199
  %v1589 = vunpack.c.l.b16 %v200
  %v1590 = vunpack.c.h.b16 %v200
  %v1591 = vunpack.c.l.b16 %v201
  %v1592 = vunpack.c.h.b16 %v201
  %v1593 = vunpack.c.l.b16 %v202
  %v1594 = vunpack.c.h.b16 %v202
  %v1595 = vunpack.c.l.b16 %v203
  %v1596 = vunpack.c.h.b16 %v203
  %v1597 = vunpack.c.l.b16 %v204
  %v1598 = vunpack.c.h.b16 %v204
  %v1599 = vunpack.c.l.b16 %v205
  %v1600 = vunpack.c.h.b16 %v205
  %v1601 = vunpack.c.l.b16 %v206
  %v1602 = vunpack.c.h.b16 %v206
  %v1603 = vunpack.c.l.b16 %v207
  %v1604 = vunpack.c.h.b16 %v207
  %v1605 = vunpack.c.l.b16 %v208
  %v1606 = vunpack.c.h.b16 %v208
  %v1607 = vunpack.c.l.b16 %v209
  %v1608 = vunpack.c.h.b16 %v209
  %v1609 = vunpack.c.l.b16 %v210
  %v1610 = vunpack.c.h.b16 %v210
  %v1611 = vunpack.c.l.b16 %v211
  %v1612 = vunpack.c.h.b16 %v211
  %v1613 = vunpack.c.l.b16 %v212
  %v1614 = vunpack.c.h.b16 %v212
  %v1615 = vunpack.c.l.b16 %v213
  %v1616 = vunpack.c.h.b16 %v213
  %v1617 = vunpack.c.l.b16 %v214
  %v1618 = vunpack.c.h.b16 %v214
  %v1619 = vunpack.c.l.b16 %v215
  %v1620 = vunpack.c.h.b16 %v215
  %v1621 = vunpack.c.l.b16 %v216
  %v1622 = vunpack.c.h.b16 %v216
  %v1623 = vunpack.c.l.b16 %v217
  %v1624 = vunpack.c.h.b16 %v217
  %v1625 = vunpack.c.l.b16 %v218
  %v1626 = vunpack.c.h.b16 %v218
  %v1627 = vunpack.c.l.b16 %v219
  %v1628 = vunpack.c.h.b16 %v219
  %v1629 = vunpack.c.l.b16 %v220
  %v1630 = vunpack.c.h.b16 %v220
  %v1631 = vunpack.c.l.b16 %v221
  %v1632 = vunpack.c.h.b16 %v221
  %v1633 = vunpack.c.l.b16 %v222
  %v1634 = vunpack.c.h.b16 %v222
  %v1635 = vunpack.c.l.b16 %v223
  %v1636 = vunpack.c.h.b16 %v223
  %v1637 = vunpack.c.l.b16 %v224
  %v1638 = vunpack.c.h.b16 %v224
  %v1639 = vunpack.c.l.b16 %v225
  %v1640 = vunpack.c.h.b16 %v225
  %v1641 = vunpack.c.l.b16 %v226
  %v1642 = vunpack.c.h.b16 %v226
  %v1643 = vunpack.c.l.b16 %v227
  %v1644 = vunpack.c.h.b16 %v227
  %v1645 = vunpack.c.l.b16 %v228
  %v1646 = vunpack.c.h.b16 %v228
  %v1647 = vunpack.c.l.b16 %v229
  %v1648 = vunpack.c.h.b16 %v229
  %v1649 = vunpack.c.l.b16 %v230
  %v1650 = vunpack.c.h.b16 %v230
  %v1651 = vunpack.c.l.b16 %v231
  %v1652 = vunpack.c.h.b16 %v231
  %v1653 = vunpack.c.l.b16 %v232
  %v1654 = vunpack.c.h.b16 %v232
  %v1655 = vunpack.c.l.b16 %v233
  %v1656 = vunpack.c.h.b16 %v233
  %v1657 = vunpack.c.l.b16 %v234
  %v1658 = vunpack.c.h.b16 %v234
  %v1659 = vunpack.c.l.b16 %v235
  %v1660 = vunpack.c.h.b16 %v235
  %v1661 = vunpack.c.l.b16 %v236
  %v1662 = vunpack.c.h.b16 %v236
  %v1663 = vunpack.c.l.b16 %v237
  %v1664 = vunpack.c.h.b16 %v237
  %v1665 = vunpack.c.l.b16 %v238
  %v1666 = vunpack.c.h.b16 %v238
  %v1667 = vunpack.c.l.b16 %v239
  %v1668 = vunpack.c.h.b16 %v239
  %v1669 = vunpack.c.l.b16 %v240
  %v1670 = vunpack.c.h.b16 %v240
  %v1671 = vunpack.c.l.b16 %v241
  %v1672 = vunpack.c.h.b16 %v241
  %v1673 = vunpack.c.l.b16 %v242
  %v1674 = vunpack.c.h.b16 %v242
  %v1675 = vunpack.c.l.b16 %v243
  %v1676 = vunpack.c.h.b16 %v243
  %v1677 = vunpack.c.l.b16 %v244
  %v1678 = vunpack.c.h.b16 %v244
  %v1679 = vunpack.c.l.b16 %v245
  %v1680 = vunpack.c.h.b16 %v245
  %v1681 = vunpack.c.l.b16 %v246
  %v1682 = vunpack.c.h.b16 %v246
  %v1683 = vunpack.c.l.b16 %v247
  %v1684 = vunpack.c.h.b16 %v247
  %v1685 = vunpack.c.l.b16 %v248
  %v1686 = vunpack.c.h.b16 %v248
  %v1687 = vunpack.c.l.b16 %v249
  %v1688 = vunpack.c.h.b16 %v249
  %v1689 = vunpack.c.l.b16 %v250
  %v1690 = vunpack.c.h.b16 %v250
  %v1691 = vunpack.c.l.b16 %v251
  %v1692 = vunpack.c.h.b16 %v251
  %v1693 = vunpack.c.l.b16 %v252
  %v1694 = vunpack.c.h.b16 %v252
  %v1695 = vunpack.c.l.b16 %v253
  %v1696 = vunpack.c.h.b16 %v253
  %v1697 = vunpack.c.l.b16 %v254
  %v1698 = vunpack.c.h.b16 %v254
  %v1699 = vunpack.c.l.b16 %v255
  %v1700 = vunpack.c.h.b16 %v255
  %v1701 = vunpack.c.l.b16 %v256
  %v1702 = vunpack.c.h.b16 %v256
  %v1703 = vunpack.c.l.b16 %v257
  %v1704 = vunpack.c.h.b16 %v257
  %v1705 = vunpack.c.l.b16 %v258
  %v1706 = vunpack.c.h.b16 %v258
  %v1707 = vunpack.c.l.b16 %v259
  %v1708 = vunpack.c.h.b16 %v259
  %v1709 = vunpack.c.l.b16 %v260
  %v1710 = vunpack.c.h.b16 %v260
  %v1711 = vunpack.c.l.b16 %v261
  %v1712 = vunpack.c.h.b16 %v261
  %v1713 = vunpack.c.l.b16 %v262
  %v1714 = vunpack.c.h.b16 %v262
  %v1715 = vunpack.c.l.b16 %v263
  %v1716 = vunpack.c.h.b16 %v263
  %v1717 = vunpack.c.l.b16 %v264
  %v1718 = vunpack.c.h.b16 %v264
  %v1719 = vunpack.c.l.b16 %v265
  %v1720 = vunpack.c.h.b16 %v265
  %v1721 = vunpack.c.l.b16 %v266
  %v1722 = vunpack.c.h.b16 %v266
  %v1723 = vunpack.c.l.b16 %v267
  %v1724 = vunpack.c.h.b16 %v267
  %v1725 = vunpack.c.l.b16 %v268
  %v1726 = vunpack.c.h.b16 %v268
  %v1727 = vunpack.c.l.b16 %v269
  %v1728 = vunpack.c.h.b16 %v269
  %v1729 = vunpack.c.l.b16 %v270
  %v1730 = vunpack.c.h.b16 %v270
  %v1731 = vunpack.c.l.b16 %v271
  %v1732 = vunpack.c.h.b16 %v271
  %v1733 = vunpack.c.l.b16 %v272
  %v1734 = vunpack.c.h.b16 %v272
  %v1735 = vunpack.c.l.b16 %v273
  %v1736 = vunpack.c.h.b16 %v273
  %v1737 = vunpack.c.l.b16 %v274
  %v1738 = vunpack.c.h.b16 %v274
  %v1739 = vunpack.c.l.b16 %v275
  %v1740 = vunpack.c.h.b16 %v275
  %v1741 = vunpack.c.l.b16 %v276
  %v1742 = vunpack.c.h.b16 %v276
  %v1743 = vunpack.c.l.b16 %v277
  %v1744 = vunpack.c.h.b16 %v277
  %v1745 = vunpack.c.l.b16 %v278
  %v1746 = vunpack.c.h.b16 %v278
  %v1747 = vunpack.c.l.b16 %v279
  %v1748 = vunpack.c.h.b16 %v279
  %v1749 = vunpack.c.l.b16 %v280
  %v1750 = vunpack.c.h.b16 %v280
  %v1751 = vunpack.c.l.b16 %v281
  %v1752 = vunpack.c.h.b16 %v281
  %v1753 = vunpack.c.l.b16 %v282
  %v1754 = vunpack.c.h.b16 %v282
  %v1755 = vunpack.c.l.b16 %v283
  %v1756 = vunpack.c.h.b16 %v283
  %v1757 = vunpack.c.l.b16 %v284
  %v1758 = vunpack.c.h.b16 %v284
  %v1759 = vunpack.c.l.b16 %v285
  %v1760 = vunpack.c.h.b16 %v285
  %v1761 = vunpack.c.l.b16 %v286
  %v1762 = vunpack.c.h.b16 %v286
  %v1763 = vunpack.c.l.b16 %v287
  %v1764 = vunpack.c.h.b16 %v287
  %v1765 = vunpack.c.l.b16 %v288
  %v1766 = vunpack.c.h.b16 %v288
  %v1767 = vunpack.c.l.b16 %v289
  %v1768 = vunpack.c.h.b16 %v289
  %v1769 = vunpack.c.l.b16 %v290
  %v1770 = vunpack.c.h.b16 %v290
  %v1771 = vunpack.c.l.b16 %v291
  %v1772 = vunpack.c.h.b16 %v291
  %v1773 = vunpack.c.l.b16 %v292
  %v1774 = vunpack.c.h.b16 %v292
  %v1775 = vunpack.c.l.b16 %v293
  %v1776 = vunpack.c.h.b16 %v293
  %v1777 = vunpack.c.l.b16 %v294
  %v1778 = vunpack.c.h.b16 %v294
  %v1779 = vunpack.c.l.b16 %v295
  %v1780 = vunpack.c.h.b16 %v295
  %v1781 = vunpack.c.l.b16 %v296
  %v1782 = vunpack.c.h.b16 %v296
  %v1783 = vunpack.c.l.b16 %v297
  %v1784 = vunpack.c.h.b16 %v297
  %v1785 = vunpack.c.l.b16 %v298
  %v1786 = vunpack.c.h.b16 %v298
  %v1787 = vunpack.c.l.b16 %v299
  %v1788 = vunpack.c.h.b16 %v299
  %v1789 = vunpack.c.l.b16 %v300
  %v1790 = vunpack.c.h.b16 %v300
  %v1791 = vunpack.c.l.b16 %v301
  %v1792 = vunpack.c.h.b16 %v301
  %v1793 = vunpack.c.l.b16 %v302
  %v1794 = vunpack.c.h.b16 %v302
  %v1795 = vunpack.c.l.b16 %v303
  %v1796 = vunpack.c.h.b16 %v303
  %v1797 = vunpack.c.l.b16 %v304
  %v1798 = vunpack.c.h.b16 %v304
  %v1799 = vunpack.c.l.b16 %v305
  %v1800 = vunpack.c.h.b16 %v305
  %v1801 = vunpack.c.l.b16 %v306
  %v1802 = vunpack.c.h.b16 %v306
  %v1803 = vunpack.c.l.b16 %v307
  %v1804 = vunpack.c.h.b16 %v307
  %v1805 = vunpack.c.l.b16 %v308
  %v1806 = vunpack.c.h.b16 %v308
  %v1807 = vunpack.c.l.b16 %v309
  %v1808 = vunpack.c.h.b16 %v309
  %v1809 = vunpack.c.l.b16 %v310
  %v1810 = vunpack.c.h.b16 %v310
  %v1811 = vunpack.c.l.b16 %v311
  %v1812 = vunpack.c.h.b16 %v311
  %v1813 = vunpack.c.l.b16 %v312
  %v1814 = vunpack.c.h.b16 %v312
  %v1815 = vunpack.c.l.b16 %v313
  %v1816 = vunpack.c.h.b16 %v313
  %v1817 = vunpack.c.l.b16 %v314
  %v1818 = vunpack.c.h.b16 %v314
  %v1819 = vunpack.c.l.b16 %v315
  %v1820 = vunpack.c.h.b16 %v315
  %v1821 = vunpack.c.l.b16 %v316
  %v1822 = vunpack.c.h.b16 %v316
  %v1823 = vunpack.c.l.b16 %v317
  %v1824 = vunpack.c.h.b16 %v317
  %v1825 = vunpack.c.l.b16 %v318
  %v1826 = vunpack.c.h.b16 %v318
  %v1827 = vunpack.c.l.b16 %v319
  %v1828 = vunpack.c.h.b16 %v319
  %v1829 = vunpack.c.l.b16 %v320
  %v1830 = vunpack.c.h.b16 %v320
  %v1831 = vunpack.c.l.b16 %v321
  %v1832 = vunpack.c.h.b16 %v321
  %v1833 = vunpack.c.l.b16 %v322
  %v1834 = vunpack.c.h.b16 %v322
  %v1835 = vunpack.c.l.b16 %v323
  %v1836 = vunpack.c.h.b16 %v323
  %v1837 = vunpack.c.l.b16 %v324
  %v1838 = vunpack.c.h.b16 %v324
  %v1839 = vunpack.c.l.b16 %v325
  %v1840 = vunpack.c.h.b16 %v325
  %v1841 = vunpack.c.l.b16 %v326
  %v1842 = vunpack.c.h.b16 %v326
  %v1843 = vunpack.c.l.b16 %v327
  %v1844 = vunpack.c.h.b16 %v327
  %v1845 = vunpack.c.l.b16 %v328
  %v1846 = vunpack.c.h.b16 %v328
  %v1847 = vunpack.c.l.b16 %v329
  %v1848 = vunpack.c.h.b16 %v329
  %v1849 = vunpack.c.l.b16 %v330
  %v1850 = vunpack.c.h.b16 %v330
  %v1851 = vunpack.c.l.b16 %v331
  %v1852 = vunpack.c.h.b16 %v331
  %v1853 = vunpack.c.l.b16 %v332
  %v1854 = vunpack.c.h.b16 %v332
  %v1855 = vunpack.c.l.b16 %v333
  %v1856 = vunpack.c.h.b16 %v333
  %v1857 = vunpack.c.l.b16 %v334
  %v1858 = vunpack.c.h.b16 %v334
  %v1859 = vunpack.c.l.b16 %v335
  %v1860 = vunpack.c.h.b16 %v335
  %v1861 = vunpack.c.l.b16 %v336
  %v1862 = vunpack.c.h.b16 %v336
  %v1863 = vunpack.c.l.b16 %v337
  %v1864 = vunpack.c.h.b16 %v337
  %v1865 = vunpack.c.l.b16 %v338
  %v1866 = vunpack.c.h.b16 %v338
  %v1867 = vunpack.c.l.b16 %v339
  %v1868 = vunpack.c.h.b16 %v339
  %v1869 = vunpack.c.l.b16 %v340
  %v1870 = vunpack.c.h.b16 %v340
  %v1871 = vunpack.c.l.b16 %v341
  %v1872 = vunpack.c.h.b16 %v341
  %v1873 = vunpack.c.l.b16 %v342
  %v1874 = vunpack.c.h.b16 %v342
  %v1875 = vunpack.c.l.b16 %v343
  %v1876 = vunpack.c.h.b16 %v343
  %v1877 = vunpack.c.l.b16 %v344
  %v1878 = vunpack.c.h.b16 %v344
  %v1879 = vunpack.c.l.b16 %v345
  %v1880 = vunpack.c.h.b16 %v345
  %v1881 = vunpack.c.l.b16 %v346
  %v1882 = vunpack.c.h.b16 %v346
  %v1883 = vunpack.c.l.b16 %v347
  %v1884 = vunpack.c.h.b16 %v347
  %v1885 = vunpack.c.l.b16 %v348
  %v1886 = vunpack.c.h.b16 %v348
  %v1887 = vunpack.c.l.b16 %v349
  %v1888 = vunpack.c.h.b16 %v349
  %v1889 = vunpack.c.l.b16 %v350
  %v1890 = vunpack.c.h.b16 %v350
  %v1891 = vunpack.c.l.b16 %v351
  %v1892 = vunpack.c.h.b16 %v351
  %v1893 = vunpack.c.l.b16 %v352
  %v1894 = vunpack.c.h.b16 %v352
  %v1895 = vunpack.c.l.b16 %v353
  %v1896 = vunpack.c.h.b16 %v353
  %v1897 = vunpack.c.l.b16 %v354
  %v1898 = vunpack.c.h.b16 %v354
  %v1899 = vunpack.c.l.b16 %v355
  %v1900 = vunpack.c.h.b16 %v355
  %v1901 = vunpack.c.l.b16 %v356
  %v1902 = vunpack.c.h.b16 %v356
  %v1903 = vunpack.c.l.b16 %v357
  %v1904 = vunpack.c.h.b16 %v357
  %v1905 = vunpack.c.l.b16 %v358
  %v1906 = vunpack.c.h.b16 %v358
  %v1907 = vunpack.c.l.b16 %v359
  %v1908 = vunpack.c.h.b16 %v359
  %v1909 = vunpack.c.l.b16 %v360
  %v1910 = vunpack.c.h.b16 %v360
  %v1911 = vunpack.c.l.b16 %v361
  %v1912 = vunpack.c.h.b16 %v361
  %v1913 = vunpack.c.l.b16 %v362
  %v1914 = vunpack.c.h.b16 %v362
  %v1915 = vunpack.c.l.b16 %v363
  %v1916 = vunpack.c.h.b16 %v363
  %v1917 = vunpack.c.l.b16 %v364
  %v1918 = vunpack.c.h.b16 %v364
  %v1919 = vunpack.c.l.b16 %v365
  %v1920 = vunpack.c.h.b16 %v365
  %v1921 = vunpack.c.l.b16 %v366
  %v1922 = vunpack.c.h.b16 %v366
  %v1923 = vunpack.c.l.b16 %v367
  %v1924 = vunpack.c.h.b16 %v367
  %v1925 = vunpack.c.l.b16 %v368
  %v1926 = vunpack.c.h.b16 %v368
  %v1927 = vunpack.c.l.b16 %v369
  %v1928 = vunpack.c.h.b16 %v369
  %v1929 = vunpack.c.l.b16 %v370
  %v1930 = vunpack.c.h.b16 %v370
  %v1931 = vunpack.c.l.b16 %v371
  %v1932 = vunpack.c.h.b16 %v371
  %v1933 = vunpack.c.l.b16 %v372
  %v1934 = vunpack.c.h.b16 %v372
  %v1935 = vunpack.c.l.b16 %v373
  %v1936 = vunpack.c.h.b16 %v373
  %v1937 = vunpack.c.l.b16 %v374
  %v1938 = vunpack.c.h.b16 %v374
  %v1939 = vunpack.c.l.b16 %v375
  %v1940 = vunpack.c.h.b16 %v375
  %v1941 = vunpack.c.l.b16 %v376
  %v1942 = vunpack.c.h.b16 %v376
  %v1943 = vunpack.c.l.b16 %v377
  %v1944 = vunpack.c.h.b16 %v377
  %v1945 = vunpack.c.l.b16 %v378
  %v1946 = vunpack.c.h.b16 %v378
  %v1947 = vunpack.c.l.b16 %v379
  %v1948 = vunpack.c.h.b16 %v379
  %v1949 = vunpack.c.l.b16 %v380
  %v1950 = vunpack.c.h.b16 %v380
  %v1951 = vunpack.c.l.b16 %v381
  %v1952 = vunpack.c.h.b16 %v381
  %v1953 = vunpack.c.l.b16 %v382
  %v1954 = vunpack.c.h.b16 %v382
  %v1955 = vunpack.c.l.b16 %v383
  %v1956 = vunpack.c.h.b16 %v383
  %v1957 = vunpack.c.l.b16 %v384
  %v1958 = vunpack.c.h.b16 %v384
  %v1959 = vunpack.c.l.b16 %v385
  %v1960 = vunpack.c.h.b16 %v385
  %v1961 = vunpack.c.l.b16 %v386
  %v1962 = vunpack.c.h.b16 %v386
  %v1963 = vunpack.c.l.b16 %v387
  %v1964 = vunpack.c.h.b16 %v387
  %v1965 = vunpack.c.l.b16 %v388
  %v1966 = vunpack.c.h.b16 %v388
  %v1967 = vunpack.c.l.b16 %v389
  %v1968 = vunpack.c.h.b16 %v389
  %v1969 = vunpack.c.l.b16 %v390
  %v1970 = vunpack.c.h.b16 %v390
  %v1971 = vunpack.c.l.b16 %v391
  %v1972 = vunpack.c.h.b16 %v391
  %v1973 = vunpack.c.l.b16 %v392
  %v1974 = vunpack.c.h.b16 %v392
  %v1975 = vunpack.c.l.b16 %v393
  %v1976 = vunpack.c.h.b16 %v393
  %v1977 = vunpack.c.l.b16 %v394
  %v1978 = vunpack.c.h.b16 %v394
  %v1979 = vunpack.c.l.b16 %v395
  %v1980 = vunpack.c.h.b16 %v395
  %v1981 = vunpack.c.l.b16 %v396
  %v1982 = vunpack.c.h.b16 %v396
  %v1983 = vunpack.c.l.b16 %v397
  %v1984 = vunpack.c.h.b16 %v397
  %v1985 = vunpack.c.l.b16 %v398
  %v1986 = vunpack.c.h.b16 %v398
  %v1987 = vunpack.c.l.b16 %v399
  %v1988 = vunpack.c.h.b16 %v399
  %v1989 = vunpack.c.l.b16 %v400
  %v1990 = vunpack.c.h.b16 %v400
  %v1991 = vunpack.c.l.b16 %v401
  %v1992 = vunpack.c.h.b16 %v401
  %v1993 = vunpack.c.l.b16 %v402
  %v1994 = vunpack.c.h.b16 %v402
  %v1995 = vunpack.c.l.b16 %v403
  %v1996 = vunpack.c.h.b16 %v403
  %v1997 = vunpack.c.l.b16 %v404
  %v1998 = vunpack.c.h.b16 %v404
  %v1999 = vunpack.c.l.b16 %v405
  %v2000 = vunpack.c.h.b16 %v405
  %v2001 = vunpack.c.l.b16 %v406
  %v2002 = vunpack.c.h.b16 %v406
  %v2003 = vunpack.c.l.b16 %v407
  %v2004 = vunpack.c.h.b16 %v407
  %v2005 = vunpack.c.l.b16 %v408
  %v2006 = vunpack.c.h.b16 %v408
  %v2007 = vunpack.c.l.b16 %v409
  %v2008 = vunpack.c.h.b16 %v409
  %v2009 = vunpack.c.l.b16 %v410
  %v2010 = vunpack.c.h.b16 %v410
  %v2011 = vunpack.c.l.b16 %v411
  %v2012 = vunpack.c.h.b16 %v411
  %v2013 = vunpack.c.l.b16 %v412
  %v2014 = vunpack.c.h.b16 %v412
  %v2015 = vunpack.c.l.b16 %v413
  %v2016 = vunpack.c.h.b16 %v413
  %v2017 = vunpack.c.l.b16 %v414
  %v2018 = vunpack.c.h.b16 %v414
  %v2019 = vunpack.c.l.b16 %v415
  %v2020 = vunpack.c.h.b16 %v415
  %v2021 = vunpack.c.l.b16 %v416
  %v2022 = vunpack.c.h.b16 %v416
  %v2023 = vunpack.c.l.b16 %v417
  %v2024 = vunpack.c.h.b16 %v417
  %v2025 = vunpack.c.l.b16 %v418
  %v2026 = vunpack.c.h.b16 %v418
  %v2027 = vunpack.c.l.b16 %v419
  %v2028 = vunpack.c.h.b16 %v419
  %v2029 = vunpack.c.l.b16 %v420
  %v2030 = vunpack.c.h.b16 %v420
  %v2031 = vunpack.c.l.b16 %v421
  %v2032 = vunpack.c.h.b16 %v421
  %v2033 = vunpack.c.l.b16 %v422
  %v2034 = vunpack.c.h.b16 %v422
  %v2035 = vunpack.c.l.b16 %v423
  %v2036 = vunpack.c.h.b16 %v423
  %v2037 = vunpack.c.l.b16 %v424
  %v2038 = vunpack.c.h.b16 %v424
  %v2039 = vunpack.c.l.b16 %v425
  %v2040 = vunpack.c.h.b16 %v425
  %v2041 = vunpack.c.l.b16 %v426
  %v2042 = vunpack.c.h.b16 %v426
  %v2043 = vunpack.c.l.b16 %v427
  %v2044 = vunpack.c.h.b16 %v427
  %v2045 = vunpack.c.l.b16 %v428
  %v2046 = vunpack.c.h.b16 %v428
  %v2047 = vunpack.c.l.b16 %v429
  %v2048 = vunpack.c.h.b16 %v429
  %v2049 = vunpack.c.l.b16 %v430
  %v2050 = vunpack.c.h.b16 %v430
  %v2051 = vunpack.c.l.b16 %v431
  %v2052 = vunpack.c.h.b16 %v431
  %v2053 = vunpack.c.l.b16 %v432
  %v2054 = vunpack.c.h.b16 %v432
  %v2055 = vunpack.c.l.b16 %v433
  %v2056 = vunpack.c.h.b16 %v433
  %v2057 = vunpack.c.l.b16 %v434
  %v2058 = vunpack.c.h.b16 %v434
  %v2059 = vunpack.c.l.b16 %v435
  %v2060 = vunpack.c.h.b16 %v435
  %v2061 = vunpack.c.l.b16 %v436
  %v2062 = vunpack.c.h.b16 %v436
  %v2063 = vunpack.c.l.b16 %v437
  %v2064 = vunpack.c.h.b16 %v437
  %v2065 = vunpack.c.l.b16 %v438
  %v2066 = vunpack.c.h.b16 %v438
  %v2067 = vunpack.c.l.b16 %v439
  %v2068 = vunpack.c.h.b16 %v439
  %v2069 = vunpack.c.l.b16 %v440
  %v2070 = vunpack.c.h.b16 %v440
  %v2071 = vunpack.c.l.b16 %v441
  %v2072 = vunpack.c.h.b16 %v441
  %v2073 = vunpack.c.l.b16 %v442
  %v2074 = vunpack.c.h.b16 %v442
  %v2075 = vunpack.c.l.b16 %v443
  %v2076 = vunpack.c.h.b16 %v443
  %v2077 = vunpack.c.l.b16 %v444
  %v2078 = vunpack.c.h.b16 %v444
  %v2079 = vunpack.c.l.b16 %v445
  %v2080 = vunpack.c.h.b16 %v445
  %v2081 = vunpack.c.l.b16 %v446
  %v2082 = vunpack.c.h.b16 %v446
  %v2083 = vunpack.c.l.b16 %v447
  %v2084 = vunpack.c.h.b16 %v447
  %v2085 = vunpack.c.l.b16 %v448
  %v2086 = vunpack.c.h.b16 %v448
  %v2087 = vunpack.c.l.b16 %v449
  %v2088 = vunpack.c.h.b16 %v449
  %v2089 = vunpack.c.l.b16 %v450
  %v2090 = vunpack.c.h.b16 %v450
  %v2091 = vunpack.c.l.b16 %v451
  %v2092 = vunpack.c.h.b16 %v451
  %v2093 = vunpack.c.l.b16 %v452
  %v2094 = vunpack.c.h.b16 %v452
  %v2095 = vunpack.c.l.b16 %v453
  %v2096 = vunpack.c.h.b16 %v453
  %v2097 = vunpack.c.l.b16 %v454
  %v2098 = vunpack.c.h.b16 %v454
  %v2099 = vunpack.c.l.b16 %v455
  %v2100 = vunpack.c.h.b16 %v455
  %v2101 = vunpack.c.l.b16 %v456
  %v2102 = vunpack.c.h.b16 %v456
  %v2103 = vunpack.c.l.b16 %v457
  %v2104 = vunpack.c.h.b16 %v457
  %v2105 = vunpack.c.l.b16 %v458
  %v2106 = vunpack.c.h.b16 %v458
  %v2107 = vunpack.c.l.b16 %v459
  %v2108 = vunpack.c.h.b16 %v459
  %v2109 = vunpack.c.l.b16 %v460
  %v2110 = vunpack.c.h.b16 %v460
  %v2111 = vunpack.c.l.b16 %v461
  %v2112 = vunpack.c.h.b16 %v461
  %v2113 = vunpack.c.l.b16 %v462
  %v2114 = vunpack.c.h.b16 %v462
  %v2115 = vunpack.c.l.b16 %v463
  %v2116 = vunpack.c.h.b16 %v463
  %v2117 = vunpack.c.l.b16 %v464
  %v2118 = vunpack.c.h.b16 %v464
  %v2119 = vunpack.c.l.b16 %v465
  %v2120 = vunpack.c.h.b16 %v465
  %v2121 = vunpack.c.l.b16 %v466
  %v2122 = vunpack.c.h.b16 %v466
  %v2123 = vunpack.c.l.b16 %v467
  %v2124 = vunpack.c.h.b16 %v467
  %v2125 = vunpack.c.l.b16 %v468
  %v2126 = vunpack.c.h.b16 %v468
  %v2127 = vunpack.c.l.b16 %v469
  %v2128 = vunpack.c.h.b16 %v469
  %v2129 = vunpack.c.l.b16 %v470
  %v2130 = vunpack.c.h.b16 %v470
  %v2131 = vunpack.c.l.b16 %v471
  %v2132 = vunpack.c.h.b16 %v471
  %v2133 = vunpack.c.l.b16 %v472
  %v2134 = vunpack.c.h.b16 %v472
  %v2135 = vunpack.c.l.b16 %v473
  %v2136 = vunpack.c.h.b16 %v473
  %v2137 = vunpack.c.l.b16 %v474
  %v2138 = vunpack.c.h.b16 %v474
  %v2139 = vunpack.c.l.b16 %v475
  %v2140 = vunpack.c.h.b16 %v475
  %v2141 = vunpack.c.l.b16 %v476
  %v2142 = vunpack.c.h.b16 %v476
  %v2143 = vunpack.c.l.b16 %v477
  %v2144 = vunpack.c.h.b16 %v477
  %v2145 = vunpack.c.l.b16 %v478
  %v2146 = vunpack.c.h.b16 %v478
  %v2147 = vunpack.c.l.b16 %v479
  %v2148 = vunpack.c.h.b16 %v479
  %v2149 = vunpack.c.l.b16 %v480
  %v2150 = vunpack.c.h.b16 %v480
  %v2151 = vunpack.c.l.b16 %v481
  %v2152 = vunpack.c.h.b16 %v481
  %v2153 = vunpack.c.l.b16 %v482
  %v2154 = vunpack.c.h.b16 %v482
  %v2155 = vunpack.c.l.b16 %v483
  %v2156 = vunpack.c.h.b16 %v483
  %v2157 = vunpack.c.l.b16 %v484
  %v2158 = vunpack.c.h.b16 %v484
  %v2159 = vunpack.c.l.b16 %v485
  %v2160 = vunpack.c.h.b16 %v485
  %v2161 = vunpack.c.l.b16 %v486
  %v2162 = vunpack.c.h.b16 %v486
  %v2163 = vunpack.c.l.b16 %v487
  %v2164 = vunpack.c.h.b16 %v487
  %v2165 = vunpack.c.l.b16 %v488
  %v2166 = vunpack.c.h.b16 %v488
  %v2167 = vunpack.c.l.b16 %v489
  %v2168 = vunpack.c.h.b16 %v489
  %v2169 = vunpack.c.l.b16 %v490
  %v2170 = vunpack.c.h.b16 %v490
  %v2171 = vunpack.c.l.b16 %v491
  %v2172 = vunpack.c.h.b16 %v491
  %v2173 = vunpack.c.l.b16 %v492
  %v2174 = vunpack.c.h.b16 %v492
  %v2175 = vunpack.c.l.b16 %v493
  %v2176 = vunpack.c.h.b16 %v493
  %v2177 = vunpack.c.l.b16 %v494
  %v2178 = vunpack.c.h.b16 %v494
  %v2179 = vunpack.c.l.b16 %v495
  %v2180 = vunpack.c.h.b16 %v495
  %v2181 = vunpack.c.l.b16 %v496
  %v2182 = vunpack.c.h.b16 %v496
  %v2183 = vunpack.c.l.b16 %v497
  %v2184 = vunpack.c.h.b16 %v497
  %v2185 = vunpack.c.l.b16 %v498
  %v2186 = vunpack.c.h.b16 %v498
  %v2187 = vunpack.c.l.b16 %v499
  %v2188 = vunpack.c.h.b16 %v499
  %v2189 = vunpack.c.l.b16 %v500
  %v2190 = vunpack.c.h.b16 %v500
  %v2191 = vunpack.c.l.b16 %v501
  %v2192 = vunpack.c.h.b16 %v501
  %v2193 = vunpack.c.l.b16 %v502
  %v2194 = vunpack.c.h.b16 %v502
  %v2195 = vunpack.c.l.b16 %v503
  %v2196 = vunpack.c.h.b16 %v503
  %v2197 = vunpack.c.l.b16 %v504
  %v2198 = vunpack.c.h.b16 %v504
  %v2199 = vunpack.c.l.b16 %v505
  %v2200 = vunpack.c.h.b16 %v505
  %v2201 = vunpack.c.l.b16 %v506
  %v2202 = vunpack.c.h.b16 %v506
  %v2203 = vunpack.c.l.b16 %v507
  %v2204 = vunpack.c.h.b16 %v507
  %v2205 = vunpack.c.l.b16 %v508
  %v2206 = vunpack.c.h.b16 %v508
  %v2207 = vunpack.c.l.b16 %v509
  %v2208 = vunpack.c.h.b16 %v509
  %v2209 = vunpack.c.l.b16 %v510
  %v2210 = vunpack.c.h.b16 %v510
  %v2211 = vunpack.c.l.b16 %v511
  %v2212 = vunpack.c.h.b16 %v511
  %v2213 = vunpack.c.l.b16 %v512
  %v2214 = vunpack.c.h.b16 %v512
  %v2215 = vunpack.c.l.b16 %v513
  %v2216 = vunpack.c.h.b16 %v513
  %v2217 = vunpack.c.l.b16 %v514
  %v2218 = vunpack.c.h.b16 %v514
  %v2219 = vunpack.c.l.b16 %v515
  %v2220 = vunpack.c.h.b16 %v515
  %v2221 = vunpack.c.l.b16 %v516
  %v2222 = vunpack.c.h.b16 %v516
  %v2223 = vunpack.c.l.b16 %v517
  %v2224 = vunpack.c.h.b16 %v517
  %v2225 = vunpack.c.l.b16 %v518
  %v2226 = vunpack.c.h.b16 %v518
  %v2227 = vunpack.c.l.b16 %v519
  %v2228 = vunpack.c.h.b16 %v519
  %v2229 = vunpack.c.l.b16 %v520
  %v2230 = vunpack.c.h.b16 %v520
  %v2231 = vunpack.c.l.b16 %v521
  %v2232 = vunpack.c.h.b16 %v521
  %v2233 = vunpack.c.l.b16 %v522
  %v2234 = vunpack.c.h.b16 %v522
  %v2235 = vunpack.c.l.b16 %v523
  %v2236 = vunpack.c.h.b16 %v523
  %v2237 = vunpack.c.l.b16 %v524
  %v2238 = vunpack.c.h.b16 %v524
  %v2239 = vunpack.c.l.b16 %v525
  %v2240 = vunpack.c.h.b16 %v525
  %v2241 = vunpack.c.l.b16 %v526
  %v2242 = vunpack.c.h.b16 %v526
  %v2243 = vunpack.c.l.b16 %v527
  %v2244 = vunpack.c.h.b16 %v527
  %v2245 = vunpack.c.l.b16 %v528
  %v2246 = vunpack.c.h.b16 %v528
  %v2247 = vunpack.c.l.b16 %v529
  %v2248 = vunpack.c.h.b16 %v529
  %v2249 = vunpack.c.l.b16 %v530
  %v2250 = vunpack.c.h.b16 %v530
  %v2251 = vunpack.c.l.b16 %v531
  %v2252 = vunpack.c.h.b16 %v531
  %v2253 = vunpack.c.l.b16 %v532
  %v2254 = vunpack.c.h.b16 %v532
  %v2255 = vunpack.c.l.b16 %v533
  %v2256 = vunpack.c.h.b16 %v533
  %v2257 = vunpack.c.l.b16 %v534
  %v2258 = vunpack.c.h.b16 %v534
  %v2259 = vunpack.c.l.b16 %v535
  %v2260 = vunpack.c.h.b16 %v535
  %v2261 = vunpack.c.l.b16 %v536
  %v2262 = vunpack.c.h.b16 %v536
  %v2263 = vunpack.c.l.b16 %v537
  %v2264 = vunpack.c.h.b16 %v537
  %v2265 = vunpack.c.l.b16 %v538
  %v2266 = vunpack.c.h.b16 %v538
  %v2267 = vunpack.c.l.b16 %v539
  %v2268 = vunpack.c.h.b16 %v539
  %v2269 = vunpack.c.l.b16 %v540
  %v2270 = vunpack.c.h.b16 %v540
  %v2271 = vunpack.c.l.b16 %v541
  %v2272 = vunpack.c.h.b16 %v541
  %v2273 = vunpack.c.l.b16 %v542
  %v2274 = vunpack.c.h.b16 %v542
  %v2275 = vunpack.c.l.b16 %v543
  %v2276 = vunpack.c.h.b16 %v543
  %v2277 = vunpack.c.l.b16 %v544
  %v2278 = vunpack.c.h.b16 %v544
  %v2279 = vunpack.c.l.b16 %v545
  %v2280 = vunpack.c.h.b16 %v545
  %v2281 = vunpack.c.l.b16 %v546
  %v2282 = vunpack.c.h.b16 %v546
  %v2283 = vunpack.c.l.b16 %v547
  %v2284 = vunpack.c.h.b16 %v547
  %v2285 = vunpack.c.l.b16 %v548
  %v2286 = vunpack.c.h.b16 %v548
  %v2287 = vunpack.c.l.b16 %v549
  %v2288 = vunpack.c.h.b16 %v549
  %v2289 = vunpack.c.l.b16 %v550
  %v2290 = vunpack.c.h.b16 %v550
  %v2291 = vunpack.c.l.b16 %v551
  %v2292 = vunpack.c.h.b16 %v551
  %v2293 = vunpack.c.l.b16 %v552
  %v2294 = vunpack.c.h.b16 %v552
  %v2295 = vunpack.c.l.b16 %v553
  %v2296 = vunpack.c.h.b16 %v553
  %v2297 = vunpack.c.l.b16 %v554
  %v2298 = vunpack.c.h.b16 %v554
  %v2299 = vunpack.c.l.b16 %v555
  %v2300 = vunpack.c.h.b16 %v555
  %v2301 = vunpack.c.l.b16 %v556
  %v2302 = vunpack.c.h.b16 %v556
  %v2303 = vunpack.c.l.b16 %v557
  %v2304 = vunpack.c.h.b16 %v557
  %v2305 = vunpack.c.l.b16 %v558
  %v2306 = vunpack.c.h.b16 %v558
  %v2307 = vunpack.c.l.b16 %v559
  %v2308 = vunpack.c.h.b16 %v559
  %v2309 = vunpack.c.l.b16 %v560
  %v2310 = vunpack.c.h.b16 %v560
  %v2311 = vunpack.c.l.b16 %v561
  %v2312 = vunpack.c.h.b16 %v561
  %v2313 = vunpack.c.l.b16 %v562
  %v2314 = vunpack.c.h.b16 %v562
  %v2315 = vunpack.c.l.b16 %v563
  %v2316 = vunpack.c.h.b16 %v563
  %v2317 = vunpack.c.l.b16 %v564
  %v2318 = vunpack.c.h.b16 %v564
  %v2319 = vunpack.c.l.b16 %v565
  %v2320 = vunpack.c.h.b16 %v565
  %v2321 = vunpack.c.l.b16 %v566
  %v2322 = vunpack.c.h.b16 %v566
  %v2323 = vunpack.c.l.b16 %v567
  %v2324 = vunpack.c.h.b16 %v567
  %v2325 = vunpack.c.l.b16 %v568
  %v2326 = vunpack.c.h.b16 %v568
  %v2327 = vunpack.c.l.b16 %v569
  %v2328 = vunpack.c.h.b16 %v569
  %v2329 = vunpack.c.l.b16 %v570
  %v2330 = vunpack.c.h.b16 %v570
  %v2331 = vunpack.c.l.b16 %v571
  %v2332 = vunpack.c.h.b16 %v571
  %v2333 = vunpack.c.l.b16 %v572
  %v2334 = vunpack.c.h.b16 %v572
  %v2335 = vunpack.c.l.b16 %v573
  %v2336 = vunpack.c.h.b16 %v573
  %v2337 = vunpack.c.l.b16 %v574
  %v2338 = vunpack.c.h.b16 %v574
  %v2339 = vunpack.c.l.b16 %v575
  %v2340 = vunpack.c.h.b16 %v575
  %v2341 = vunpack.c.l.b16 %v576
  %v2342 = vunpack.c.h.b16 %v576
  %v2343 = vunpack.c.l.b16 %v577
  %v2344 = vunpack.c.h.b16 %v577
  %v2345 = vunpack.c.l.b16 %v578
  %v2346 = vunpack.c.h.b16 %v578
  %v2347 = vunpack.c.l.b16 %v579
  %v2348 = vunpack.c.h.b16 %v579
  %v2349 = vunpack.c.l.b16 %v580
  %v2350 = vunpack.c.h.b16 %v580
  %v2351 = vunpack.c.l.b16 %v581
  %v2352 = vunpack.c.h.b16 %v581
  %v2353 = vunpack.c.l.b16 %v582
  %v2354 = vunpack.c.h.b16 %v582
  %v2355 = vunpack.c.l.b16 %v583
  %v2356 = vunpack.c.h.b16 %v583
  %v2357 = vunpack.c.l.b16 %v584
  %v2358 = vunpack.c.h.b16 %v584
  %v2359 = vunpack.c.l.b16 %v585
  %v2360 = vunpack.c.h.b16 %v585
  %v2361 = vunpack.c.l.b16 %v586
  %v2362 = vunpack.c.h.b16 %v586
  %v2363 = vunpack.c.l.b16 %v587
  %v2364 = vunpack.c.h.b16 %v587
  %v2365 = vunpack.c.l.b16 %v588
  %v2366 = vunpack.c.h.b16 %v588
  %v2367 = vunpack.c.l.b16 %v589
  %v2368 = vunpack.c.h.b16 %v589
  %v2369 = vunpack.c.l.b16 %v590
  %v2370 = vunpack.c.h.b16 %v590
  %v2371 = vunpack.c.l.b16 %v591
  %v2372 = vunpack.c.h.b16 %v591
  %v2373 = vunpack.c.l.b16 %v592
  %v2374 = vunpack.c.h.b16 %v592
  %v2375 = vunpack.c.l.b16 %v593
  %v2376 = vunpack.c.h.b16 %v593
  %v2377 = vunpack.c.l.b16 %v594
  %v2378 = vunpack.c.h.b16 %v594
  %v2379 = vunpack.c.l.b16 %v595
  %v2380 = vunpack.c.h.b16 %v595
  %v2381 = vunpack.c.l.b16 %v596
  %v2382 = vunpack.c.h.b16 %v596
  %v2383 = vunpack.c.l.b16 %v597
  %v2384 = vunpack.c.h.b16 %v597
  %v2385 = vunpack.c.l.b16 %v598
  %v2386 = vunpack.c.h.b16 %v598
  %v2387 = vunpack.c.l.b16 %v599
  %v2388 = vunpack.c.h.b16 %v599
  %v2389 = vunpack.c.l.b16 %v600
  %v2390 = vunpack.c.h.b16 %v600
  %v2391 = vunpack.c.l.b16 %v601
  %v2392 = vunpack.c.h.b16 %v601
  %v2393 = vpack.c.b16 %v1245, %v1241
  %v2394 = vpack.c.b16 %v1246, %v1242
  %v2395 = vpack.c.b16 %v1247, %v1243
  %v2396 = vpack.c.b16 %v1248, %v1244
  %v2397 = vpack.c.b16 %v1253, %v1249
  %v2398 = vpack.c.b16 %v1254, %v1250
  %v2399 = vpack.c.b16 %v1255, %v1251
  %v2400 = vpack.c.b16 %v1256, %v1252
  %v2401 = vpack.c.b16 %v1261, %v1257
  %v2402 = vpack.c.b16 %v1262, %v1258
  %v2403 = vpack.c.b16 %v1263, %v1259
  %v2404 = vpack.c.b16 %v1264, %v1260
  %v2405 = vpack.c.b16 %v1269, %v1265
  %v2406 = vpack.c.b16 %v1270, %v1266
  %v2407 = vpack.c.b16 %v1271, %v1267
  %v2408 = vpack.c.b16 %v1272, %v1268
  %v2409 = vpack.c.b16 %v1277, %v1273
  %v2410 = vpack.c.b16 %v1278, %v1274
  %v2411 = vpack.c.b16 %v1279, %v1275
  %v2412 = vpack.c.b16 %v1280, %v1276
  %v2413 = vpack.c.b16 %v1285, %v1281
  %v2414 = vpack.c.b16 %v1286, %v1282
  %v2415 = vpack.c.b16 %v1287, %v1283
  %v2416 = vpack.c.b16 %v1288, %v1284
  %v2417 = vpack.c.b16 %v1293, %v1289
  %v2418 = vpack.c.b16 %v1294, %v1290
  %v2419 = vpack.c.b16 %v1295, %v1291
  %v2420 = vpack.c.b16 %v1296, %v1292
  %v2421 = vpack.c.b16 %v1301, %v1297
  %v2422 = vpack.c.b16 %v1302, %v1298
  %v2423 = vpack.c.b16 %v1303, %v1299
  %v2424 = vpack.c.b16 %v1304, %v1300
  %v2425 = vpack.c.b16 %v1309, %v1305
  %v2426 = vpack.c.b16 %v1310, %v1306
  %v2427 = vpack.c.b16 %v1311, %v1307
  %v2428 = vpack.c.b16 %v1312, %v1308
  %v2429 = vpack.c.b16 %v1317, %v1313
  %v2430 = vpack.c.b16 %v1318, %v1314
  %v2431 = vpack.c.b16 %v1319, %v1315
  %v2432 = vpack.c.b16 %v1320, %v1316
  %v2433 = vpack.c.b16 %v1325, %v1321
  %v2434 = vpack.c.b16 %v1326, %v1322
  %v2435 = vpack.c.b16 %v1327, %v1323
  %v2436 = vpack.c.b16 %v1328, %v1324
  %v2437 = vpack.c.b16 %v1333, %v1329
  %v2438 = vpack.c.b16 %v1334, %v1330
  %v2439 = vpack.c.b16 %v1335, %v1331
  %v2440 = vpack.c.b16 %v1336, %v1332
  %v2441 = vpack.c.b16 %v1341, %v1337
  %v2442 = vpack.c.b16 %v1342, %v1338
  %v2443 = vpack.c.b16 %v1343, %v1339
  %v2444 = vpack.c.b16 %v1344, %v1340
  %v2445 = vpack.c.b16 %v1349, %v1345
  %v2446 = vpack.c.b16 %v1350, %v1346
  %v2447 = vpack.c.b16 %v1351, %v1347
  %v2448 = vpack.c.b16 %v1352, %v1348
  %v2449 = vpack.c.b16 %v1357, %v1353
  %v2450 = vpack.c.b16 %v1358, %v1354
  %v2451 = vpack.c.b16 %v1359, %v1355
  %v2452 = vpack.c.b16 %v1360, %v1356
  %v2453 = vpack.c.b16 %v1365, %v1361
  %v2454 = vpack.c.b16 %v1366, %v1362
  %v2455 = vpack.c.b16 %v1367, %v1363
  %v2456 = vpack.c.b16 %v1368, %v1364
  %v2457 = vpack.c.b16 %v1373, %v1369
  %v2458 = vpack.c.b16 %v1374, %v1370
  %v2459 = vpack.c.b16 %v1375, %v1371
  %v2460 = vpack.c.b16 %v1376, %v1372
  %v2461 = vpack.c.b16 %v1381, %v1377
  %v2462 = vpack.c.b16 %v1382, %v1378
  %v2463 = vpack.c.b16 %v1383, %v1379
  %v2464 = vpack.c.b16 %v1384, %v1380
  %v2465 = vpack.c.b16 %v1389, %v1385
  %v2466 = vpack.c.b16 %v1390, %v1386
  %v2467 = vpack.c.b16 %v1391, %v1387
  %v2468 = vpack.c.b16 %v1392, %v1388
  %v2469 = vpack.c.b16 %v1397, %v1393
  %v2470 = vpack.c.b16 %v1398, %v1394
  %v2471 = vpack.c.b16 %v1399, %v1395
  %v2472 = vpack.c.b16 %v1400, %v1396
  %v2473 = vpack.c.b16 %v1405, %v1401
  %v2474 = vpack.c.b16 %v1406, %v1402
  %v2475 = vpack.c.b16 %v1407, %v1403
  %v2476 = vpack.c.b16 %v1408, %v1404
  %v2477 = vpack.c.b16 %v1413, %v1409
  %v2478 = vpack.c.b16 %v1414, %v1410
  %v2479 = vpack.c.b16 %v1415, %v1411
  %v2480 = vpack.c.b16 %v1416, %v1412
  %v2481 = vpack.c.b16 %v1421, %v1417
  %v2482 = vpack.c.b16 %v1422, %v1418
  %v2483 = vpack.c.b16 %v1423, %v1419
  %v2484 = vpack.c.b16 %v1424, %v1420
  %v2485 = vpack.c.b16 %v1429, %v1425
  %v2486 = vpack.c.b16 %v1430, %v1426
  %v2487 = vpack.c.b16 %v1431, %v1427
  %v2488 = vpack.c.b16 %v1432, %v1428
  %v2489 = vpack.c.b16 %v1437, %v1433
  %v2490 = vpack.c.b16 %v1438, %v1434
  %v2491 = vpack.c.b16 %v1439, %v1435
  %v2492 = vpack.c.b16 %v1440, %v1436
  %v2493 = vpack.c.b16 %v1445, %v1441
  %v2494 = vpack.c.b16 %v1446, %v1442
  %v2495 = vpack.c.b16 %v1447, %v1443
  %v2496 = vpack.c.b16 %v1448, %v1444
  %v2497 = vpack.c.b16 %v1453, %v1449
  %v2498 = vpack.c.b16 %v1454, %v1450
  %v2499 = vpack.c.b16 %v1455, %v1451
  %v2500 = vpack.c.b16 %v1456, %v1452
  %v2501 = vpack.c.b16 %v1461, %v1457
  %v2502 = vpack.c.b16 %v1462, %v1458
  %v2503 = vpack.c.b16 %v1463, %v1459
  %v2504 = vpack.c.b16 %v1464, %v1460
  %v2505 = vpack.c.b16 %v1469, %v1465
  %v2506 = vpack.c.b16 %v1470, %v1466
  %v2507 = vpack.c.b16 %v1471, %v1467
  %v2508 = vpack.c.b16 %v1472, %v1468
  %v2509 = vpack.c.b16 %v1477, %v1473
  %v2510 = vpack.c.b16 %v1478, %v1474
  %v2511 = vpack.c.b16 %v1479, %v1475
  %v2512 = vpack.c.b16 %v1480, %v1476
  %v2513 = vpack.c.b16 %v1485, %v1481
  %v2514 = vpack.c.b16 %v1486, %v1482
  %v2515 = vpack.c.b16 %v1487, %v1483
  %v2516 = vpack.c.b16 %v1488, %v1484
  %v2517 = vpack.c.b16 %v1493, %v1489
  %v2518 = vpack.c.b16 %v1494, %v1490
  %v2519 = vpack.c.b16 %v1495, %v1491
  %v2520 = vpack.c.b16 %v1496, %v1492
  %v2521 = vpack.c.b16 %v1501, %v1497
  %v2522 = vpack.c.b16 %v1502, %v1498
  %v2523 = vpack.c.b16 %v1503, %v1499
  %v2524 = vpack.c.b16 %v1504, %v1500
  %v2525 = vpack.c.b16 %v1509, %v1505
  %v2526 = vpack.c.b16 %v1510, %v1506
  %v2527 = vpack.c.b16 %v1511, %v1507
  %v2528 = vpack.c.b16 %v1512, %v1508
  %v2529 = vpack.c.b16 %v1517, %v1513
  %v2530 = vpack.c.b16 %v1518, %v1514
  %v2531 = vpack.c.b16 %v1519, %v1515
  %v2532 = vpack.c.b16 %v1520, %v1516
  %v2533 = vpack.c.b16 %v1525, %v1521
  %v2534 = vpack.c.b16 %v1526, %v1522
  %v2535 = vpack.c.b16 %v1527, %v1523
  %v2536 = vpack.c.b16 %v1528, %v1524
  %v2537 = vpack.c.b16 %v1533, %v1529
  %v2538 = vpack.c.b16 %v1534, %v1530
  %v2539 = vpack.c.b16 %v1535, %v1531
  %v2540 = vpack.c.b16 %v1536, %v1532
  %v2541 = vpack.c.b16 %v1541, %v1537
  %v2542 = vpack.c.b16 %v1542, %v1538
  %v2543 = vpack.c.b16 %v1543, %v1539
  %v2544 = vpack.c.b16 %v1544, %v1540
  %v2545 = vpack.c.b16 %v1549, %v1545
  %v2546 = vpack.c.b16 %v1550, %v1546
  %v2547 = vpack.c.b16 %v1551, %v1547
  %v2548 = vpack.c.b16 %v1552, %v1548
  %v2549 = vpack.c.b16 %v1557, %v1553
  %v2550 = vpack.c.b16 %v1558, %v1554
  %v2551 = vpack.c.b16 %v1559, %v1555
  %v2552 = vpack.c.b16 %v1560, %v1556
  %v2553 = vpack.c.b16 %v1565, %v1561
  %v2554 = vpack.c.b16 %v1566, %v1562
  %v2555 = vpack.c.b16 %v1567, %v1563
  %v2556 = vpack.c.b16 %v1568, %v1564
  %v2557 = vpack.c.b16 %v1573, %v1569
  %v2558 = vpack.c.b16 %v1574, %v1570
  %v2559 = vpack.c.b16 %v1575, %v1571
  %v2560 = vpack.c.b16 %v1576, %v1572
  %v2561 = vpack.c.b16 %v1581, %v1577
  %v2562 = vpack.c.b16 %v1582, %v1578
  %v2563 = vpack.c.b16 %v1583, %v1579
  %v2564 = vpack.c.b16 %v1584, %v1580
  %v2565 = vpack.c.b16 %v1589, %v1585
  %v2566 = vpack.c.b16 %v1590, %v1586
  %v2567 = vpack.c.b16 %v1591, %v1587
  %v2568 = vpack.c.b16 %v1592, %v1588
  %v2569 = vpack.c.b16 %v1597, %v1593
  %v2570 = vpack.c.b16 %v1598, %v1594
  %v2571 = vpack.c.b16 %v1599, %v1595
  %v2572 = vpack.c.b16 %v1600, %v1596
  %v2573 = vpack.c.b16 %v1605, %v1601
  %v2574 = vpack.c.b16 %v1606, %v1602
  %v2575 = vpack.c.b16 %v1607, %v1603
  %v2576 = vpack.c.b16 %v1608, %v1604
  %v2577 = vpack.c.b16 %v1613, %v1609
  %v2578 = vpack.c.b16 %v1614, %v1610
  %v2579 = vpack.c.b16 %v1615, %v1611
  %v2580 = vpack.c.b16 %v1616, %v1612
  %v2581 = vpack.c.b16 %v1621, %v1617
  %v2582 = vpack.c.b16 %v1622, %v1618
  %v2583 = vpack.c.b16 %v1623, %v1619
  %v2584 = vpack.c.b16 %v1624, %v1620
  %v2585 = vpack.c.b16 %v1629, %v1625
  %v2586 = vpack.c.b16 %v1630, %v1626
  %v2587 = vpack.c.b16 %v1631, %v1627
  %v2588 = vpack.c.b16 %v1632, %v1628
  %v2589 = vpack.c.b16 %v1637, %v1633
  %v2590 = vpack.c.b16 %v1638, %v1634
  %v2591 = vpack.c.b16 %v1639, %v1635
  %v2592 = vpack.c.b16 %v1640, %v1636
  %v2593 = vpack.c.b16 %v1645, %v1641
  %v2594 = vpack.c.b16 %v1646, %v1642
  %v2595 = vpack.c.b16 %v1647, %v1643
  %v2596 = vpack.c.b16 %v1648, %v1644
  %v2597 = vpack.c.b16 %v1653, %v1649
  %v2598 = vpack.c.b16 %v1654, %v1650
  %v2599 = vpack.c.b16 %v1655, %v1651
  %v2600 = vpack.c.b16 %v1656, %v1652
  %v2601 = vpack.c.b16 %v1661, %v1657
  %v2602 = vpack.c.b16 %v1662, %v1658
  %v2603 = vpack.c.b16 %v1663, %v1659
  %v2604 = vpack.c.b16 %v1664, %v1660
  %v2605 = vpack.c.b16 %v1669, %v1665
  %v2606 = vpack.c.b16 %v1670, %v1666
  %v2607 = vpack.c.b16 %v1671, %v1667
  %v2608 = vpack.c.b16 %v1672, %v1668
  %v2609 = vpack.c.b16 %v1677, %v1673
  %v2610 = vpack.c.b16 %v1678, %v1674
  %v2611 = vpack.c.b16 %v1679, %v1675
  %v2612 = vpack.c.b16 %v1680, %v1676
  %v2613 = vpack.c.b16 %v1685, %v1681
  %v2614 = vpack.c.b16 %v1686, %v1682
  %v2615 = vpack.c.b16 %v1687, %v1683
  %v2616 = vpack.c.b16 %v1688, %v1684
  %v2617 = vpack.c.b16 %v1693, %v1689
  %v2618 = vpack.c.b16 %v1694, %v1690
  %v2619 = vpack.c.b16 %v1695, %v1691
  %v2620 = vpack.c.b16 %v1696, %v1692
  %v2621 = vpack.c.b16 %v1701, %v1697
  %v2622 = vpack.c.b16 %v1702, %v1698
  %v2623 = vpack.c.b16 %v1703, %v1699
  %v2624 = vpack.c.b16 %v1704, %v1700
  %v2625 = vpack.c.b16 %v1709, %v1705
  %v2626 = vpack.c.b16 %v1710, %v1706
  %v2627 = vpack.c.b16 %v1711, %v1707
  %v2628 = vpack.c.b16 %v1712, %v1708
  %v2629 = vpack.c.b16 %v1717, %v1713
  %v2630 = vpack.c.b16 %v1718, %v1714
  %v2631 = vpack.c.b16 %v1719, %v1715
  %v2632 = vpack.c.b16 %v1720, %v1716
  %v2633 = vpack.c.b16 %v1725, %v1721
  %v2634 = vpack.c.b16 %v1726, %v1722
  %v2635 = vpack.c.b16 %v1727, %v1723
  %v2636 = vpack.c.b16 %v1728, %v1724
  %v2637 = vpack.c.b16 %v1733, %v1729
  %v2638 = vpack.c.b16 %v1734, %v1730
  %v2639 = vpack.c.b16 %v1735, %v1731
  %v2640 = vpack.c.b16 %v1736, %v1732
  %v2641 = vpack.c.b16 %v1741, %v1737
  %v2642 = vpack.c.b16 %v1742, %v1738
  %v2643 = vpack.c.b16 %v1743, %v1739
  %v2644 = vpack.c.b16 %v1744, %v1740
  %v2645 = vpack.c.b16 %v1749, %v1745
  %v2646 = vpack.c.b16 %v1750, %v1746
  %v2647 = vpack.c.b16 %v1751, %v1747
  %v2648 = vpack.c.b16 %v1752, %v1748
  %v2649 = vpack.c.b16 %v1757, %v1753
  %v2650 = vpack.c.b16 %v1758, %v1754
  %v2651 = vpack.c.b16 %v1759, %v1755
  %v2652 = vpack.c.b16 %v1760, %v1756
  %v2653 = vpack.c.b16 %v1765, %v1761
  %v2654 = vpack.c.b16 %v1766, %v1762
  %v2655 = vpack.c.b16 %v1767, %v1763
  %v2656 = vpack.c.b16 %v1768, %v1764
  %v2657 = vpack.c.b16 %v1773, %v1769
  %v2658 = vpack.c.b16 %v1774, %v1770
  %v2659 = vpack.c.b16 %v1775, %v1771
  %v2660 = vpack.c.b16 %v1776, %v1772
  %v2661 = vpack.c.b16 %v1781, %v1777
  %v2662 = vpack.c.b16 %v1782, %v1778
  %v2663 = vpack.c.b16 %v1783, %v1779
  %v2664 = vpack.c.b16 %v1784, %v1780
  %v2665 = vpack.c.b16 %v1789, %v1785
  %v2666 = vpack.c.b16 %v1790, %v1786
  %v2667 = vpack.c.b16 %v1791, %v1787
  %v2668 = vpack.c.b16 %v1792, %v1788
  %v2669 = vpack.c.b16 %v1797, %v1793
  %v2670 = vpack.c.b16 %v1798, %v1794
  %v2671 = vpack.c.b16 %v1799, %v1795
  %v2672 = vpack.c.b16 %v1800, %v1796
  %v2673 = vpack.c.b16 %v1805, %v1801
  %v2674 = vpack.c.b16 %v1806, %v1802
  %v2675 = vpack.c.b16 %v1807, %v1803
  %v2676 = vpack.c.b16 %v1808, %v1804
  %v2677 = vpack.c.b16 %v1813, %v1809
  %v2678 = vpack.c.b16 %v1814, %v1810
  %v2679 = vpack.c.b16 %v1815, %v1811
  %v2680 = vpack.c.b16 %v1816, %v1812
  %v2681 = vpack.c.b16 %v1821, %v1817
  %v2682 = vpack.c.b16 %v1822, %v1818
  %v2683 = vpack.c.b16 %v1823, %v1819
  %v2684 = vpack.c.b16 %v1824, %v1820
  %v2685 = vpack.c.b16 %v1829, %v1825
  %v2686 = vpack.c.b16 %v1830, %v1826
  %v2687 = vpack.c.b16 %v1831, %v1827
  %v2688 = vpack.c.b16 %v1832, %v1828
  %v2689 = vpack.c.b16 %v1837, %v1833
  %v2690 = vpack.c.b16 %v1838, %v1834
  %v2691 = vpack.c.b16 %v1839, %v1835
  %v2692 = vpack.c.b16 %v1840, %v1836
  %v2693 = vpack.c.b16 %v1845, %v1841
  %v2694 = vpack.c.b16 %v1846, %v1842
  %v2695 = vpack.c.b16 %v1847, %v1843
  %v2696 = vpack.c.b16 %v1848, %v1844
  %v2697 = vpack.c.b16 %v1853, %v1849
  %v2698 = vpack.c.b16 %v1854, %v1850
  %v2699 = vpack.c.b16 %v1855, %v1851
  %v2700 = vpack.c.b16 %v1856, %v1852
  %v2701 = vpack.c.b16 %v1861, %v1857
  %v2702 = vpack.c.b16 %v1862, %v1858
  %v2703 = vpack.c.b16 %v1863, %v1859
  %v2704 = vpack.c.b16 %v1864, %v1860
  %v2705 = vpack.c.b16 %v1869, %v1865
  %v2706 = vpack.c.b16 %v1870, %v1866
  %v2707 = vpack.c.b16 %v1871, %v1867
  %v2708 = vpack.c.b16 %v1872, %v1868
  %v2709 = vpack.c.b16 %v1877, %v1873
  %v2710 = vpack.c.b16 %v1878, %v1874
  %v2711 = vpack.c.b16 %v1879, %v1875
  %v2712 = vpack.c.b16 %v1880, %v1876
  %v2713 = vpack.c.b16 %v1885, %v1881
  %v2714 = vpack.c.b16 %v1886, %v1882
  %v2715 = vpack.c.b16 %v1887, %v1883
  %v2716 = vpack.c.b16 %v1888, %v1884
  %v2717 = vpack.c.b16 %v1893, %v1889
  %v2718 = vpack.c.b16 %v1894, %v1890
  %v2719 = vpack.c.b16 %v1895, %v1891
  %v2720 = vpack.c.b16 %v1896, %v1892
  %v2721 = vpack.c.b16 %v1901, %v1897
  %v2722 = vpack.c.b16 %v1902, %v1898
  %v2723 = vpack.c.b16 %v1903, %v1899
  %v2724 = vpack.c.b16 %v1904, %v1900
  %v2725 = vpack.c.b16 %v1909, %v1905
  %v2726 = vpack.c.b16 %v1910, %v1906
  %v2727 = vpack.c.b16 %v1911, %v1907
  %v2728 = vpack.c.b16 %v1912, %v1908
  %v2729 = vpack.c.b16 %v1917, %v1913
  %v2730 = vpack.c.b16 %v1918, %v1914
  %v2731 = vpack.c.b16 %v1919, %v1915
  %v2732 = vpack.c.b16 %v1920, %v1916
  %v2733 = vpack.c.b16 %v1925, %v1921
  %v2734 = vpack.c.b16 %v1926, %v1922
  %v2735 = vpack.c.b16 %v1927, %v1923
  %v2736 = vpack.c.b16 %v1928, %v1924
  %v2737 = vpack.c.b16 %v1933, %v1929
  %v2738 = vpack.c.b16 %v1934, %v1930
  %v2739 = vpack.c.b16 %v1935, %v1931
  %v2740 = vpack.c.b16 %v1936, %v1932
  %v2741 = vpack.c.b16 %v1941, %v1937
  %v2742 = vpack.c.b16 %v1942, %v1938
  %v2743 = vpack.c.b16 %v1943, %v1939
  %v2744 = vpack.c.b16 %v1944, %v1940
  %v2745 = vpack.c.b16 %v1949, %v1945
  %v2746 = vpack.c.b16 %v1950, %v1946
  %v2747 = vpack.c.b16 %v1951, %v1947
  %v2748 = vpack.c.b16 %v1952, %v1948
  %v2749 = vpack.c.b16 %v1957, %v1953
  %v2750 = vpack.c.b16 %v1958, %v1954
  %v2751 = vpack.c.b16 %v1959, %v1955
  %v2752 = vpack.c.b16 %v1960, %v1956
  %v2753 = vpack.c.b16 %v1965, %v1961
  %v2754 = vpack.c.b16 %v1966, %v1962
  %v2755 = vpack.c.b16 %v1967, %v1963
  %v2756 = vpack.c.b16 %v1968, %v1964
  %v2757 = vpack.c.b16 %v1973, %v1969
  %v2758 = vpack.c.b16 %v1974, %v1970
  %v2759 = vpack.c.b16 %v1975, %v1971
  %v2760 = vpack.c.b16 %v1976, %v1972
  %v2761 = vpack.c.b16 %v1981, %v1977
  %v2762 = vpack.c.b16 %v1982, %v1978
  %v2763 = vpack.c.b16 %v1983, %v1979
  %v2764 = vpack.c.b16 %v1984, %v1980
  %v2765 = vpack.c.b16 %v1989, %v1985
  %v2766 = vpack.c.b16 %v1990, %v1986
  %v2767 = vpack.c.b16 %v1991, %v1987
  %v2768 = vpack.c.b16 %v1992, %v1988
  %v2769 = vpack.c.b16 %v1997, %v1993
  %v2770 = vpack.c.b16 %v1998, %v1994
  %v2771 = vpack.c.b16 %v1999, %v1995
  %v2772 = vpack.c.b16 %v2000, %v1996
  %v2773 = vpack.c.b16 %v2005, %v2001
  %v2774 = vpack.c.b16 %v2006, %v2002
  %v2775 = vpack.c.b16 %v2007, %v2003
  %v2776 = vpack.c.b16 %v2008, %v2004
  %v2777 = vpack.c.b16 %v2013, %v2009
  %v2778 = vpack.c.b16 %v2014, %v2010
  %v2779 = vpack.c.b16 %v2015, %v2011
  %v2780 = vpack.c.b16 %v2016, %v2012
  %v2781 = vpack.c.b16 %v2021, %v2017
  %v2782 = vpack.c.b16 %v2022, %v2018
  %v2783 = vpack.c.b16 %v2023, %v2019
  %v2784 = vpack.c.b16 %v2024, %v2020
  %v2785 = vpack.c.b16 %v2029, %v2025
  %v2786 = vpack.c.b16 %v2030, %v2026
  %v2787 = vpack.c.b16 %v2031, %v2027
  %v2788 = vpack.c.b16 %v2032, %v2028
  %v2789 = vpack.c.b16 %v2037, %v2033
  %v2790 = vpack.c.b16 %v2038, %v2034
  %v2791 = vpack.c.b16 %v2039, %v2035
  %v2792 = vpack.c.b16 %v2040, %v2036
  %v2793 = vpack.c.b16 %v2045, %v2041
  %v2794 = vpack.c.b16 %v2046, %v2042
  %v2795 = vpack.c.b16 %v2047, %v2043
  %v2796 = vpack.c.b16 %v2048, %v2044
  %v2797 = vpack.c.b16 %v2053, %v2049
  %v2798 = vpack.c.b16 %v2054, %v2050
  %v2799 = vpack.c.b16 %v2055, %v2051
  %v2800 = vpack.c.b16 %v2056, %v2052
  %v2801 = vpack.c.b16 %v2061, %v2057
  %v2802 = vpack.c.b16 %v2062, %v2058
  %v2803 = vpack.c.b16 %v2063, %v2059
  %v2804 = vpack.c.b16 %v2064, %v2060
  %v2805 = vpack.c.b16 %v2069, %v2065
  %v2806 = vpack.c.b16 %v2070, %v2066
  %v2807 = vpack.c.b16 %v2071, %v2067
  %v2808 = vpack.c.b16 %v2072, %v2068
  %v2809 = vpack.c.b16 %v2077, %v2073
  %v2810 = vpack.c.b16 %v2078, %v2074
  %v2811 = vpack.c.b16 %v2079, %v2075
  %v2812 = vpack.c.b16 %v2080, %v2076
  %v2813 = vpack.c.b16 %v2085, %v2081
  %v2814 = vpack.c.b16 %v2086, %v2082
  %v2815 = vpack.c.b16 %v2087, %v2083
  %v2816 = vpack.c.b16 %v2088, %v2084
  %v2817 = vpack.c.b16 %v2093, %v2089
  %v2818 = vpack.c.b16 %v2094, %v2090
  %v2819 = vpack.c.b16 %v2095, %v2091
  %v2820 = vpack.c.b16 %v2096, %v2092
  %v2821 = vpack.c.b16 %v2101, %v2097
  %v2822 = vpack.c.b16 %v2102, %v2098
  %v2823 = vpack.c.b16 %v2103, %v2099
  %v2824 = vpack.c.b16 %v2104, %v2100
  %v2825 = vpack.c.b16 %v2109, %v2105
  %v2826 = vpack.c.b16 %v2110, %v2106
  %v2827 = vpack.c.b16 %v2111, %v2107
  %v2828 = vpack.c.b16 %v2112, %v2108
  %v2829 = vpack.c.b16 %v2117, %v2113
  %v2830 = vpack.c.b16 %v2118, %v2114
  %v2831 = vpack.c.b16 %v2119, %v2115
  %v2832 = vpack.c.b16 %v2120, %v2116
  %v2833 = vpack.c.b16 %v2125, %v2121
  %v2834 = vpack.c.b16 %v2126, %v2122
  %v2835 = vpack.c.b16 %v2127, %v2123
  %v2836 = vpack.c.b16 %v2128, %v2124
  %v2837 = vpack.c.b16 %v2133, %v2129
  %v2838 = vpack.c.b16 %v2134, %v2130
  %v2839 = vpack.c.b16 %v2135, %v2131
  %v2840 = vpack.c.b16 %v2136, %v2132
  %v2841 = vpack.c.b16 %v2141, %v2137
  %v2842 = vpack.c.b16 %v2142, %v2138
  %v2843 = vpack.c.b16 %v2143, %v2139
  %v2844 = vpack.c.b16 %v2144, %v2140
  %v2845 = vpack.c.b16 %v2149, %v2145
  %v2846 = vpack.c.b16 %v2150, %v2146
  %v2847 = vpack.c.b16 %v2151, %v2147
  %v2848 = vpack.c.b16 %v2152, %v2148
  %v2849 = vpack.c.b16 %v2157, %v2153
  %v2850 = vpack.c.b16 %v2158, %v2154
  %v2851 = vpack.c.b16 %v2159, %v2155
  %v2852 = vpack.c.b16 %v2160, %v2156
  %v2853 = vpack.c.b16 %v2165, %v2161
  %v2854 = vpack.c.b16 %v2166, %v2162
  %v2855 = vpack.c.b16 %v2167, %v2163
  %v2856 = vpack.c.b16 %v2168, %v2164
  %v2857 = vpack.c.b16 %v2173, %v2169
  %v2858 = vpack.c.b16 %v2174, %v2170
  %v2859 = vpack.c.b16 %v2175, %v2171
  %v2860 = vpack.c.b16 %v2176, %v2172
  %v2861 = vpack.c.b16 %v2181, %v2177
  %v2862 = vpack.c.b16 %v2182, %v2178
  %v2863 = vpack.c.b16 %v2183, %v2179
  %v2864 = vpack.c.b16 %v2184, %v2180
  %v2865 = vpack.c.b16 %v2189, %v2185
  %v2866 = vpack.c.b16 %v2190, %v2186
  %v2867 = vpack.c.b16 %v2191, %v2187
  %v2868 = vpack.c.b16 %v2192, %v2188
  %v2869 = vpack.c.b16 %v2197, %v2193
  %v2870 = vpack.c.b16 %v2198, %v2194
  %v2871 = vpack.c.b16 %v2199, %v2195
  %v2872 = vpack.c.b16 %v2200, %v2196
  %v2873 = vpack.c.b16 %v2205, %v2201
  %v2874 = vpack.c.b16 %v2206, %v2202
  %v2875 = vpack.c.b16 %v2207, %v2203
  %v2876 = vpack.c.b16 %v2208, %v2204
  %v2877 = vpack.c.b16 %v2213, %v2209
  %v2878 = vpack.c.b16 %v2214, %v2210
  %v2879 = vpack.c.b16 %v2215, %v2211
  %v2880 = vpack.c.b16 %v2216, %v2212
  %v2881 = vpack.c.b16 %v2221, %v2217
  %v2882 = vpack.c.b16 %v2222, %v2218
  %v2883 = vpack.c.b16 %v2223, %v2219
  %v2884 = vpack.c.b16 %v2224, %v2220
  %v2885 = vpack.c.b16 %v2229, %v2225
  %v2886 = vpack.c.b16 %v2230, %v2226
  %v2887 = vpack.c.b16 %v2231, %v2227
  %v2888 = vpack.c.b16 %v2232, %v2228
  %v2889 = vpack.c.b16 %v2237, %v2233
  %v2890 = vpack.c.b16 %v2238, %v2234
  %v2891 = vpack.c.b16 %v2239, %v2235
  %v2892 = vpack.c.b16 %v2240, %v2236
  %v2893 = vpack.c.b16 %v2245, %v2241
  %v2894 = vpack.c.b16 %v2246, %v2242
  %v2895 = vpack.c.b16 %v2247, %v2243
  %v2896 = vpack.c.b16 %v2248, %v2244
  %v2897 = vpack.c.b16 %v2253, %v2249
  %v2898 = vpack.c.b16 %v2254, %v2250
  %v2899 = vpack.c.b16 %v2255, %v2251
  %v2900 = vpack.c.b16 %v2256, %v2252
  %v2901 = vpack.c.b16 %v2261, %v2257
  %v2902 = vpack.c.b16 %v2262, %v2258
  %v2903 = vpack.c.b16 %v2263, %v2259
  %v2904 = vpack.c.b16 %v2264, %v2260
  %v2905 = vpack.c.b16 %v2269, %v2265
  %v2906 = vpack.c.b16 %v2270, %v2266
  %v2907 = vpack.c.b16 %v2271, %v2267
  %v2908 = vpack.c.b16 %v2272, %v2268
  %v2909 = vpack.c.b16 %v2277, %v2273
  %v2910 = vpack.c.b16 %v2278, %v2274
  %v2911 = vpack.c.b16 %v2279, %v2275
  %v2912 = vpack.c.b16 %v2280, %v2276
  %v2913 = vpack.c.b16 %v2285, %v2281
  %v2914 = vpack.c.b16 %v2286, %v2282
  %v2915 = vpack.c.b16 %v2287, %v2283
  %v2916 = vpack.c.b16 %v2288, %v2284
  %v2917 = vpack.c.b16 %v2293, %v2289
  %v2918 = vpack.c.b16 %v2294, %v2290
  %v2919 = vpack.c.b16 %v2295, %v2291
  %v2920 = vpack.c.b16 %v2296, %v2292
  %v2921 = vpack.c.b16 %v2301, %v2297
  %v2922 = vpack.c.b16 %v2302, %v2298
  %v2923 = vpack.c.b16 %v2303, %v2299
  %v2924 = vpack.c.b16 %v2304, %v2300
  %v2925 = vpack.c.b16 %v2309, %v2305
  %v2926 = vpack.c.b16 %v2310, %v2306
  %v2927 = vpack.c.b16 %v2311, %v2307
  %v2928 = vpack.c.b16 %v2312, %v2308
  %v2929 = vpack.c.b16 %v2317, %v2313
  %v2930 = vpack.c.b16 %v2318, %v2314
  %v2931 = vpack.c.b16 %v2319, %v2315
  %v2932 = vpack.c.b16 %v2320, %v2316
  %v2933 = vpack.c.b16 %v2325, %v2321
  %v2934 = vpack.c.b16 %v2326, %v2322
  %v2935 = vpack.c.b16 %v2327, %v2323
  %v2936 = vpack.c.b16 %v2328, %v2324
  %v2937 = vpack.c.b16 %v2333, %v2329
  %v2938 = vpack.c.b16 %v2334, %v2330
  %v2939 = vpack.c.b16 %v2335, %v2331
  %v2940 = vpack.c.b16 %v2336, %v2332
  %v2941 = vpack.c.b16 %v2341, %v2337
  %v2942 = vpack.c.b16 %v2342, %v2338
  %v2943 = vpack.c.b16 %v2343, %v2339
  %v2944 = vpack.c.b16 %v2344, %v2340
  %v2945 = vpack.c.b16 %v2349, %v2345
  %v2946 = vpack.c.b16 %v2350, %v2346
  %v2947 = vpack.c.b16 %v2351, %v2347
  %v2948 = vpack.c.b16 %v2352, %v2348
  %v2949 = vpack.c.b16 %v2357, %v2353
  %v2950 = vpack.c.b16 %v2358, %v2354
  %v2951 = vpack.c.b16 %v2359, %v2355
  %v2952 = vpack.c.b16 %v2360, %v2356
  %v2953 = vpack.c.b16 %v2365, %v2361
  %v2954 = vpack.c.b16 %v2366, %v2362
  %v2955 = vpack.c.b16 %v2367, %v2363
  %v2956 = vpack.c.b16 %v2368, %v2364
  %v2957 = vpack.c.b16 %v2373, %v2369
  %v2958 = vpack.c.b16 %v2374, %v2370
  %v2959 = vpack.c.b16 %v2375, %v2371
  %v2960 = vpack.c.b16 %v2376, %v2372
  %v2961 = vpack.c.b16 %v2381, %v2377
  %v2962 = vpack.c.b16 %v2382, %v2378
  %v2963 = vpack.c.b16 %v2383, %v2379
  %v2964 = vpack.c.b16 %v2384, %v2380
  %v2965 = vpack.c.b16 %v2389, %v2385
  %v2966 = vpack.c.b16 %v2390, %v2386
  %v2967 = vpack.c.b16 %v2391, %v2387
  %v2968 = vpack.c.b16 %v2392, %v2388
  %3545 = vmatprep.subr.bf16.mxu0 %v2394
  %3546 = vmatpush1.bf16.msra.mxu0 %v2393
  %3547 = vmatprep.subr.bf16.mxu0 %v2398
  %3548 = vmatpush1.bf16.msra.mxu0 %v2397
  %3549 = vmatprep.subr.bf16.mxu0 %v2402
  %3550 = vmatpush1.bf16.msra.mxu0 %v2401
  %3551 = vmatprep.subr.bf16.mxu0 %v2406
  %3552 = vmatpush1.bf16.msra.mxu0 %v2405
  %3553 = vmatprep.subr.bf16.mxu0 %v2410
  %3554 = vmatpush1.bf16.msra.mxu0 %v2409
  %3555 = vmatprep.subr.bf16.mxu0 %v2414
  %3556 = vmatpush1.bf16.msra.mxu0 %v2413
  %3557 = vmatprep.subr.bf16.mxu0 %v2418
  %3558 = vmatpush1.bf16.msra.mxu0 %v2417
  %3559 = vmatprep.subr.bf16.mxu0 %v2422
  %3560 = vmatpush1.bf16.msra.mxu0 %v2421
  %3561 = vmatprep.subr.bf16.mxu0 %v2426
  %3562 = vmatpush1.bf16.msra.mxu0 %v2425
  %3563 = vmatprep.subr.bf16.mxu0 %v2430
  %3564 = vmatpush1.bf16.msra.mxu0 %v2429
  %3565 = vmatprep.subr.bf16.mxu0 %v2434
  %3566 = vmatpush1.bf16.msra.mxu0 %v2433
  %3567 = vmatprep.subr.bf16.mxu0 %v2438
  %3568 = vmatpush1.bf16.msra.mxu0 %v2437
  %3569 = vmatprep.subr.bf16.mxu0 %v2442
  %3570 = vmatpush1.bf16.msra.mxu0 %v2441
  %3571 = vmatprep.subr.bf16.mxu0 %v2446
  %3572 = vmatpush1.bf16.msra.mxu0 %v2445
  %3573 = vmatprep.subr.bf16.mxu0 %v2450
  %3574 = vmatpush1.bf16.msra.mxu0 %v2449
  %3575 = vmatprep.subr.bf16.mxu0 %v2454
  %3576 = vmatpush1.bf16.msra.mxu0 %v2453
  %3577 = vmatprep.mubr.bf16.mxu0 %v630
  %3578 = vmatmul.mubr.bf16.gmra.mrb[0].mxu0 %v629
  %v3579 = vpop.f32.mrb[0].mxu0
  %v3580 = vadd.f32 0.0, %v3579
  %v3581 = vpop.f32.mrb[0].mxu0
  %v3582 = vadd.f32 0.0, %v3581
  %v3583 = vpop.f32.mrb[0].mxu0
  %v3584 = vpop.f32.mrb[0].mxu0
  %3585 = vdwg.mxu0
  %3586 = vmatprep.subr.bf16.mxu0 %v2458
  %3587 = vmatpush1.bf16.msra.mxu0 %v2457
  %3588 = vmatprep.subr.bf16.mxu0 %v2462
  %3589 = vmatpush1.bf16.msra.mxu0 %v2461
  %3590 = vmatprep.subr.bf16.mxu0 %v2466
  %3591 = vmatpush1.bf16.msra.mxu0 %v2465
  %3592 = vmatprep.subr.bf16.mxu0 %v2470
  %3593 = vmatpush1.bf16.msra.mxu0 %v2469
  %3594 = vmatprep.subr.bf16.mxu0 %v2474
  %3595 = vmatpush1.bf16.msra.mxu0 %v2473
  %3596 = vmatprep.subr.bf16.mxu0 %v2478
  %3597 = vmatpush1.bf16.msra.mxu0 %v2477
  %3598 = vmatprep.subr.bf16.mxu0 %v2482
  %3599 = vmatpush1.bf16.msra.mxu0 %v2481
  %3600 = vmatprep.subr.bf16.mxu0 %v2486
  %3601 = vmatpush1.bf16.msra.mxu0 %v2485
  %3602 = vmatprep.subr.bf16.mxu0 %v2490
  %3603 = vmatpush1.bf16.msra.mxu0 %v2489
  %3604 = vmatprep.subr.bf16.mxu0 %v2494
  %3605 = vmatpush1.bf16.msra.mxu0 %v2493
  %3606 = vmatprep.subr.bf16.mxu0 %v2498
  %3607 = vmatpush1.bf16.msra.mxu0 %v2497
  %3608 = vmatprep.subr.bf16.mxu0 %v2502
  %3609 = vmatpush1.bf16.msra.mxu0 %v2501
  %3610 = vmatprep.subr.bf16.mxu0 %v2506
  %3611 = vmatpush1.bf16.msra.mxu0 %v2505
  %3612 = vmatprep.subr.bf16.mxu0 %v2510
  %3613 = vmatpush1.bf16.msra.mxu0 %v2509
  %3614 = vmatprep.subr.bf16.mxu0 %v2514
  %3615 = vmatpush1.bf16.msra.mxu0 %v2513
  %3616 = vmatprep.subr.bf16.mxu0 %v2518
  %3617 = vmatpush1.bf16.msra.mxu0 %v2517
  %3618 = vmatprep.mubr.bf16.mxu0 %v632
  %3619 = vmatmul.mubr.bf16.gmra.mrb[0].mxu0 %v631
  %v3620 = vpop.f32.mrb[0].mxu0
  %v3621 = vadd.f32 %v3580, %v3620
  %v3622 = vpop.f32.mrb[0].mxu0
  %v3623 = vadd.f32 %v3582, %v3622
  %v3624 = vpop.f32.mrb[0].mxu0
  %v3625 = vpop.f32.mrb[0].mxu0
  %3626 = vdwg.mxu0
  %3627 = vmatprep.subr.bf16.mxu0 %v2522
  %3628 = vmatpush1.bf16.msra.mxu0 %v2521
  %3629 = vmatprep.subr.bf16.mxu0 %v2526
  %3630 = vmatpush1.bf16.msra.mxu0 %v2525
  %3631 = vmatprep.subr.bf16.mxu0 %v2530
  %3632 = vmatpush1.bf16.msra.mxu0 %v2529
  %3633 = vmatprep.subr.bf16.mxu0 %v2534
  %3634 = vmatpush1.bf16.msra.mxu0 %v2533
  %3635 = vmatprep.subr.bf16.mxu0 %v2538
  %3636 = vmatpush1.bf16.msra.mxu0 %v2537
  %3637 = vmatprep.subr.bf16.mxu0 %v2542
  %3638 = vmatpush1.bf16.msra.mxu0 %v2541
  %3639 = vmatprep.subr.bf16.mxu0 %v2546
  %3640 = vmatpush1.bf16.msra.mxu0 %v2545
  %3641 = vmatprep.subr.bf16.mxu0 %v2550
  %3642 = vmatpush1.bf16.msra.mxu0 %v2549
  %3643 = vmatprep.subr.bf16.mxu0 %v2554
  %3644 = vmatpush1.bf16.msra.mxu0 %v2553
  %3645 = vmatprep.subr.bf16.mxu0 %v2558
  %3646 = vmatpush1.bf16.msra.mxu0 %v2557
  %3647 = vmatprep.subr.bf16.mxu0 %v2562
  %3648 = vmatpush1.bf16.msra.mxu0 %v2561
  %3649 = vmatprep.subr.bf16.mxu0 %v2566
  %3650 = vmatpush1.bf16.msra.mxu0 %v2565
  %3651 = vmatprep.subr.bf16.mxu0 %v2570
  %3652 = vmatpush1.bf16.msra.mxu0 %v2569
  %3653 = vmatprep.subr.bf16.mxu0 %v2574
  %3654 = vmatpush1.bf16.msra.mxu0 %v2573
  %3655 = vmatprep.subr.bf16.mxu0 %v2578
  %3656 = vmatpush1.bf16.msra.mxu0 %v2577
  %3657 = vmatprep.subr.bf16.mxu0 %v2582
  %3658 = vmatpush1.bf16.msra.mxu0 %v2581
  %3659 = vmatprep.mubr.bf16.mxu0 %v634
  %3660 = vmatmul.mubr.bf16.gmra.mrb[0].mxu0 %v633
  %v3661 = vpop.f32.mrb[0].mxu0
  %v3662 = vadd.f32 %v3621, %v3661
  %v3663 = vpop.f32.mrb[0].mxu0
  %v3664 = vadd.f32 %v3623, %v3663
  %v3665 = vpop.f32.mrb[0].mxu0
  %v3666 = vpop.f32.mrb[0].mxu0
  %3667 = vdwg.mxu0
  %3668 = vmatprep.subr.bf16.mxu0 %v2586
  %3669 = vmatpush1.bf16.msra.mxu0 %v2585
  %3670 = vmatprep.subr.bf16.mxu0 %v2590
  %3671 = vmatpush1.bf16.msra.mxu0 %v2589
  %3672 = vmatprep.subr.bf16.mxu0 %v2594
  %3673 = vmatpush1.bf16.msra.mxu0 %v2593
  %3674 = vmatprep.subr.bf16.mxu0 %v2598
  %3675 = vmatpush1.bf16.msra.mxu0 %v2597
  %3676 = vmatprep.subr.bf16.mxu0 %v2602
  %3677 = vmatpush1.bf16.msra.mxu0 %v2601
  %3678 = vmatprep.subr.bf16.mxu0 %v2606
  %3679 = vmatpush1.bf16.msra.mxu0 %v2605
  %3680 = vmatprep.subr.bf16.mxu0 %v2610
  %3681 = vmatpush1.bf16.msra.mxu0 %v2609
  %3682 = vmatprep.subr.bf16.mxu0 %v2614
  %3683 = vmatpush1.bf16.msra.mxu0 %v2613
  %3684 = vmatprep.subr.bf16.mxu0 %v2618
  %3685 = vmatpush1.bf16.msra.mxu0 %v2617
  %3686 = vmatprep.subr.bf16.mxu0 %v2622
  %3687 = vmatpush1.bf16.msra.mxu0 %v2621
  %3688 = vmatprep.subr.bf16.mxu0 %v2626
  %3689 = vmatpush1.bf16.msra.mxu0 %v2625
  %3690 = vmatprep.subr.bf16.mxu0 %v2630
  %3691 = vmatpush1.bf16.msra.mxu0 %v2629
  %3692 = vmatprep.subr.bf16.mxu0 %v2634
  %3693 = vmatpush1.bf16.msra.mxu0 %v2633
  %3694 = vmatprep.subr.bf16.mxu0 %v2638
  %3695 = vmatpush1.bf16.msra.mxu0 %v2637
  %3696 = vmatprep.subr.bf16.mxu0 %v2642
  %3697 = vmatpush1.bf16.msra.mxu0 %v2641
  %3698 = vmatprep.subr.bf16.mxu0 %v2646
  %3699 = vmatpush1.bf16.msra.mxu0 %v2645
  %3700 = vmatprep.mubr.bf16.mxu0 %v636
  %3701 = vmatmul.mubr.bf16.gmra.mrb[0].mxu0 %v635
  %v3702 = vpop.f32.mrb[0].mxu0
  %v3703 = vadd.f32 %v3662, %v3702
  %v3704 = vpop.f32.mrb[0].mxu0
  %v3705 = vadd.f32 %v3664, %v3704
  %v3706 = vpop.f32.mrb[0].mxu0
  %v3707 = vpop.f32.mrb[0].mxu0
  %3708 = vdwg.mxu0
  %3709 = vmatprep.subr.bf16.mxu0 %v2650
  %3710 = vmatpush1.bf16.msra.mxu0 %v2649
  %3711 = vmatprep.subr.bf16.mxu0 %v2654
  %3712 = vmatpush1.bf16.msra.mxu0 %v2653
  %3713 = vmatprep.subr.bf16.mxu0 %v2658
  %3714 = vmatpush1.bf16.msra.mxu0 %v2657
  %3715 = vmatprep.subr.bf16.mxu0 %v2662
  %3716 = vmatpush1.bf16.msra.mxu0 %v2661
  %3717 = vmatprep.subr.bf16.mxu0 %v2666
  %3718 = vmatpush1.bf16.msra.mxu0 %v2665
  %3719 = vmatprep.subr.bf16.mxu0 %v2670
  %3720 = vmatpush1.bf16.msra.mxu0 %v2669
  %3721 = vmatprep.subr.bf16.mxu0 %v2674
  %3722 = vmatpush1.bf16.msra.mxu0 %v2673
  %3723 = vmatprep.subr.bf16.mxu0 %v2678
  %3724 = vmatpush1.bf16.msra.mxu0 %v2677
  %3725 = vmatprep.subr.bf16.mxu0 %v2682
  %3726 = vmatpush1.bf16.msra.mxu0 %v2681
  %3727 = vmatprep.subr.bf16.mxu0 %v2686
  %3728 = vmatpush1.bf16.msra.mxu0 %v2685
  %3729 = vmatprep.subr.bf16.mxu0 %v2690
  %3730 = vmatpush1.bf16.msra.mxu0 %v2689
  %3731 = vmatprep.subr.bf16.mxu0 %v2694
  %3732 = vmatpush1.bf16.msra.mxu0 %v2693
  %3733 = vmatprep.subr.bf16.mxu0 %v2698
  %3734 = vmatpush1.bf16.msra.mxu0 %v2697
  %3735 = vmatprep.subr.bf16.mxu0 %v2702
  %3736 = vmatpush1.bf16.msra.mxu0 %v2701
  %3737 = vmatprep.subr.bf16.mxu0 %v2706
  %3738 = vmatpush1.bf16.msra.mxu0 %v2705
  %3739 = vmatprep.subr.bf16.mxu0 %v2710
  %3740 = vmatpush1.bf16.msra.mxu0 %v2709
  %3741 = vmatprep.mubr.bf16.mxu0 %v638
  %3742 = vmatmul.mubr.bf16.gmra.mrb[0].mxu0 %v637
  %v3743 = vpop.f32.mrb[0].mxu0
  %v3744 = vadd.f32 %v3703, %v3743
  %v3745 = vpop.f32.mrb[0].mxu0
  %v3746 = vadd.f32 %v3705, %v3745
  %v3747 = vpop.f32.mrb[0].mxu0
  %v3748 = vpop.f32.mrb[0].mxu0
  %3749 = vdwg.mxu0
  %3750 = vmatprep.subr.bf16.mxu0 %v2714
  %3751 = vmatpush1.bf16.msra.mxu0 %v2713
  %3752 = vmatprep.subr.bf16.mxu0 %v2718
  %3753 = vmatpush1.bf16.msra.mxu0 %v2717
  %3754 = vmatprep.subr.bf16.mxu0 %v2722
  %3755 = vmatpush1.bf16.msra.mxu0 %v2721
  %3756 = vmatprep.subr.bf16.mxu0 %v2726
  %3757 = vmatpush1.bf16.msra.mxu0 %v2725
  %3758 = vmatprep.subr.bf16.mxu0 %v2730
  %3759 = vmatpush1.bf16.msra.mxu0 %v2729
  %3760 = vmatprep.subr.bf16.mxu0 %v2734
  %3761 = vmatpush1.bf16.msra.mxu0 %v2733
  %3762 = vmatprep.subr.bf16.mxu0 %v2738
  %3763 = vmatpush1.bf16.msra.mxu0 %v2737
  %3764 = vmatprep.subr.bf16.mxu0 %v2742
  %3765 = vmatpush1.bf16.msra.mxu0 %v2741
  %3766 = vmatprep.subr.bf16.mxu0 %v2746
  %3767 = vmatpush1.bf16.msra.mxu0 %v2745
  %3768 = vmatprep.subr.bf16.mxu0 %v2750
  %3769 = vmatpush1.bf16.msra.mxu0 %v2749
  %3770 = vmatprep.subr.bf16.mxu0 %v2754
  %3771 = vmatpush1.bf16.msra.mxu0 %v2753
  %3772 = vmatprep.subr.bf16.mxu0 %v2758
  %3773 = vmatpush1.bf16.msra.mxu0 %v2757
  %3774 = vmatprep.subr.bf16.mxu0 %v2762
  %3775 = vmatpush1.bf16.msra.mxu0 %v2761
  %3776 = vmatprep.subr.bf16.mxu0 %v2766
  %3777 = vmatpush1.bf16.msra.mxu0 %v2765
  %3778 = vmatprep.subr.bf16.mxu0 %v2770
  %3779 = vmatpush1.bf16.msra.mxu0 %v2769
  %3780 = vmatprep.subr.bf16.mxu0 %v2774
  %3781 = vmatpush1.bf16.msra.mxu0 %v2773
  %3782 = vmatprep.mubr.bf16.mxu0 %v640
  %3783 = vmatmul.mubr.bf16.gmra.mrb[0].mxu0 %v639
  %v3784 = vpop.f32.mrb[0].mxu0
  %v3785 = vadd.f32 %v3744, %v3784
  %v3786 = vpop.f32.mrb[0].mxu0
  %v3787 = vadd.f32 %v3746, %v3786
  %v3788 = vpop.f32.mrb[0].mxu0
  %v3789 = vpop.f32.mrb[0].mxu0
  %3790 = vdwg.mxu0
  %3791 = vmatprep.subr.bf16.mxu0 %v2778
  %3792 = vmatpush1.bf16.msra.mxu0 %v2777
  %3793 = vmatprep.subr.bf16.mxu0 %v2782
  %3794 = vmatpush1.bf16.msra.mxu0 %v2781
  %3795 = vmatprep.subr.bf16.mxu0 %v2786
  %3796 = vmatpush1.bf16.msra.mxu0 %v2785
  %3797 = vmatprep.subr.bf16.mxu0 %v2790
  %3798 = vmatpush1.bf16.msra.mxu0 %v2789
  %3799 = vmatprep.subr.bf16.mxu0 %v2794
  %3800 = vmatpush1.bf16.msra.mxu0 %v2793
  %3801 = vmatprep.subr.bf16.mxu0 %v2798
  %3802 = vmatpush1.bf16.msra.mxu0 %v2797
  %3803 = vmatprep.subr.bf16.mxu0 %v2802
  %3804 = vmatpush1.bf16.msra.mxu0 %v2801
  %3805 = vmatprep.subr.bf16.mxu0 %v2806
  %3806 = vmatpush1.bf16.msra.mxu0 %v2805
  %3807 = vmatprep.subr.bf16.mxu0 %v2810
  %3808 = vmatpush1.bf16.msra.mxu0 %v2809
  %3809 = vmatprep.subr.bf16.mxu0 %v2814
  %3810 = vmatpush1.bf16.msra.mxu0 %v2813
  %3811 = vmatprep.subr.bf16.mxu0 %v2818
  %3812 = vmatpush1.bf16.msra.mxu0 %v2817
  %3813 = vmatprep.subr.bf16.mxu0 %v2822
  %3814 = vmatpush1.bf16.msra.mxu0 %v2821
  %3815 = vmatprep.subr.bf16.mxu0 %v2826
  %3816 = vmatpush1.bf16.msra.mxu0 %v2825
  %3817 = vmatprep.subr.bf16.mxu0 %v2830
  %3818 = vmatpush1.bf16.msra.mxu0 %v2829
  %3819 = vmatprep.subr.bf16.mxu0 %v2834
  %3820 = vmatpush1.bf16.msra.mxu0 %v2833
  %3821 = vmatprep.subr.bf16.mxu0 %v2838
  %3822 = vmatpush1.bf16.msra.mxu0 %v2837
  %3823 = vmatprep.mubr.bf16.mxu0 %v642
  %3824 = vmatmul.mubr.bf16.gmra.mrb[0].mxu0 %v641
  %v3825 = vpop.f32.mrb[0].mxu0
  %v3826 = vadd.f32 %v3785, %v3825
  %v3827 = vpop.f32.mrb[0].mxu0
  %v3828 = vadd.f32 %v3787, %v3827
  %v3829 = vpop.f32.mrb[0].mxu0
  %v3830 = vpop.f32.mrb[0].mxu0
  %3831 = vdwg.mxu0
  %3832 = vmatprep.subr.bf16.mxu0 %v2842
  %3833 = vmatpush1.bf16.msra.mxu0 %v2841
  %3834 = vmatprep.subr.bf16.mxu0 %v2846
  %3835 = vmatpush1.bf16.msra.mxu0 %v2845
  %3836 = vmatprep.subr.bf16.mxu0 %v2850
  %3837 = vmatpush1.bf16.msra.mxu0 %v2849
  %3838 = vmatprep.subr.bf16.mxu0 %v2854
  %3839 = vmatpush1.bf16.msra.mxu0 %v2853
  %3840 = vmatprep.subr.bf16.mxu0 %v2858
  %3841 = vmatpush1.bf16.msra.mxu0 %v2857
  %3842 = vmatprep.subr.bf16.mxu0 %v2862
  %3843 = vmatpush1.bf16.msra.mxu0 %v2861
  %3844 = vmatprep.subr.bf16.mxu0 %v2866
  %3845 = vmatpush1.bf16.msra.mxu0 %v2865
  %3846 = vmatprep.subr.bf16.mxu0 %v2870
  %3847 = vmatpush1.bf16.msra.mxu0 %v2869
  %3848 = vmatprep.subr.bf16.mxu0 %v2874
  %3849 = vmatpush1.bf16.msra.mxu0 %v2873
  %3850 = vmatprep.subr.bf16.mxu0 %v2878
  %3851 = vmatpush1.bf16.msra.mxu0 %v2877
  %3852 = vmatprep.subr.bf16.mxu0 %v2882
  %3853 = vmatpush1.bf16.msra.mxu0 %v2881
  %3854 = vmatprep.subr.bf16.mxu0 %v2886
  %3855 = vmatpush1.bf16.msra.mxu0 %v2885
  %3856 = vmatprep.subr.bf16.mxu0 %v2890
  %3857 = vmatpush1.bf16.msra.mxu0 %v2889
  %3858 = vmatprep.subr.bf16.mxu0 %v2894
  %3859 = vmatpush1.bf16.msra.mxu0 %v2893
  %3860 = vmatprep.subr.bf16.mxu0 %v2898
  %3861 = vmatpush1.bf16.msra.mxu0 %v2897
  %3862 = vmatprep.subr.bf16.mxu0 %v2902
  %3863 = vmatpush1.bf16.msra.mxu0 %v2901
  %3864 = vmatprep.mubr.bf16.mxu0 %v644
  %3865 = vmatmul.mubr.bf16.gmra.mrb[0].mxu0 %v643
  %v3866 = vpop.f32.mrb[0].mxu0
  %v3867 = vadd.f32 %v3826, %v3866
  %v3868 = vpop.f32.mrb[0].mxu0
  %v3869 = vadd.f32 %v3828, %v3868
  %v3870 = vpop.f32.mrb[0].mxu0
  %v3871 = vpop.f32.mrb[0].mxu0
  %3872 = vdwg.mxu0
  %3873 = vmatprep.subr.bf16.mxu0 %v2906
  %3874 = vmatpush1.bf16.msra.mxu0 %v2905
  %3875 = vmatprep.subr.bf16.mxu0 %v2910
  %3876 = vmatpush1.bf16.msra.mxu0 %v2909
  %3877 = vmatprep.subr.bf16.mxu0 %v2914
  %3878 = vmatpush1.bf16.msra.mxu0 %v2913
  %3879 = vmatprep.subr.bf16.mxu0 %v2918
  %3880 = vmatpush1.bf16.msra.mxu0 %v2917
  %3881 = vmatprep.subr.bf16.mxu0 %v2922
  %3882 = vmatpush1.bf16.msra.mxu0 %v2921
  %3883 = vmatprep.subr.bf16.mxu0 %v2926
  %3884 = vmatpush1.bf16.msra.mxu0 %v2925
  %3885 = vmatprep.subr.bf16.mxu0 %v2930
  %3886 = vmatpush1.bf16.msra.mxu0 %v2929
  %3887 = vmatprep.subr.bf16.mxu0 %v2934
  %3888 = vmatpush1.bf16.msra.mxu0 %v2933
  %3889 = vmatprep.subr.bf16.mxu0 %v2938
  %3890 = vmatpush1.bf16.msra.mxu0 %v2937
  %3891 = vmatprep.subr.bf16.mxu0 %v2942
  %3892 = vmatpush1.bf16.msra.mxu0 %v2941
  %3893 = vmatprep.subr.bf16.mxu0 %v2946
  %3894 = vmatpush1.bf16.msra.mxu0 %v2945
  %3895 = vmatprep.subr.bf16.mxu0 %v2950
  %3896 = vmatpush1.bf16.msra.mxu0 %v2949
  %3897 = vmatprep.subr.bf16.mxu0 %v2954
  %3898 = vmatpush1.bf16.msra.mxu0 %v2953
  %3899 = vmatprep.subr.bf16.mxu0 %v2958
  %3900 = vmatpush1.bf16.msra.mxu0 %v2957
  %3901 = vmatprep.subr.bf16.mxu0 %v2962
  %3902 = vmatpush1.bf16.msra.mxu0 %v2961
  %3903 = vmatprep.subr.bf16.mxu0 %v2966
  %3904 = vmatpush1.bf16.msra.mxu0 %v2965
  %3905 = vmatprep.mubr.bf16.mxu0 %v646
  %3906 = vmatmul.mubr.bf16.gmra.mrb[0].mxu0 %v645
  %v3907 = vpop.f32.mrb[0].mxu0
  %v3908 = vadd.f32 %v3867, %v3907
  %v3909 = vpop.f32.mrb[0].mxu0
  %v3910 = vadd.f32 %v3869, %v3909
  %v3911 = vpop.f32.mrb[0].mxu0
  %v3912 = vpop.f32.mrb[0].mxu0
  %3913 = vdwg.mxu0
  %3914 = vmatprep.subr.bf16.mxu0 %v2396
  %3915 = vmatpush1.bf16.msra.mxu0 %v2395
  %3916 = vmatprep.subr.bf16.mxu0 %v2400
  %3917 = vmatpush1.bf16.msra.mxu0 %v2399
  %3918 = vmatprep.subr.bf16.mxu0 %v2404
  %3919 = vmatpush1.bf16.msra.mxu0 %v2403
  %3920 = vmatprep.subr.bf16.mxu0 %v2408
  %3921 = vmatpush1.bf16.msra.mxu0 %v2407
  %3922 = vmatprep.subr.bf16.mxu0 %v2412
  %3923 = vmatpush1.bf16.msra.mxu0 %v2411
  %3924 = vmatprep.subr.bf16.mxu0 %v2416
  %3925 = vmatpush1.bf16.msra.mxu0 %v2415
  %3926 = vmatprep.subr.bf16.mxu0 %v2420
  %3927 = vmatpush1.bf16.msra.mxu0 %v2419
  %3928 = vmatprep.subr.bf16.mxu0 %v2424
  %3929 = vmatpush1.bf16.msra.mxu0 %v2423
  %3930 = vmatprep.subr.bf16.mxu0 %v2428
  %3931 = vmatpush1.bf16.msra.mxu0 %v2427
  %3932 = vmatprep.subr.bf16.mxu0 %v2432
  %3933 = vmatpush1.bf16.msra.mxu0 %v2431
  %3934 = vmatprep.subr.bf16.mxu0 %v2436
  %3935 = vmatpush1.bf16.msra.mxu0 %v2435
  %3936 = vmatprep.subr.bf16.mxu0 %v2440
  %3937 = vmatpush1.bf16.msra.mxu0 %v2439
  %3938 = vmatprep.subr.bf16.mxu0 %v2444
  %3939 = vmatpush1.bf16.msra.mxu0 %v2443
  %3940 = vmatprep.subr.bf16.mxu0 %v2448
  %3941 = vmatpush1.bf16.msra.mxu0 %v2447
  %3942 = vmatprep.subr.bf16.mxu0 %v2452
  %3943 = vmatpush1.bf16.msra.mxu0 %v2451
  %3944 = vmatprep.subr.bf16.mxu0 %v2456
  %3945 = vmatpush1.bf16.msra.mxu0 %v2455
  %3946 = vmatprep.mubr.bf16.mxu0 %v630
  %3947 = vmatmul.mubr.bf16.gmra.mrb[0].mxu0 %v629
  %v3948 = vpop.f32.mrb[0].mxu0
  %v3949 = vadd.f32 0.0, %v3948
  %v3950 = vpop.f32.mrb[0].mxu0
  %v3951 = vadd.f32 0.0, %v3950
  %v3952 = vpop.f32.mrb[0].mxu0
  %v3953 = vpop.f32.mrb[0].mxu0
  %3954 = vdwg.mxu0
  %3955 = vmatprep.subr.bf16.mxu0 %v2460
  %3956 = vmatpush1.bf16.msra.mxu0 %v2459
  %3957 = vmatprep.subr.bf16.mxu0 %v2464
  %3958 = vmatpush1.bf16.msra.mxu0 %v2463
  %3959 = vmatprep.subr.bf16.mxu0 %v2468
  %3960 = vmatpush1.bf16.msra.mxu0 %v2467
  %3961 = vmatprep.subr.bf16.mxu0 %v2472
  %3962 = vmatpush1.bf16.msra.mxu0 %v2471
  %3963 = vmatprep.subr.bf16.mxu0 %v2476
  %3964 = vmatpush1.bf16.msra.mxu0 %v2475
  %3965 = vmatprep.subr.bf16.mxu0 %v2480
  %3966 = vmatpush1.bf16.msra.mxu0 %v2479
  %3967 = vmatprep.subr.bf16.mxu0 %v2484
  %3968 = vmatpush1.bf16.msra.mxu0 %v2483
  %3969 = vmatprep.subr.bf16.mxu0 %v2488
  %3970 = vmatpush1.bf16.msra.mxu0 %v2487
  %3971 = vmatprep.subr.bf16.mxu0 %v2492
  %3972 = vmatpush1.bf16.msra.mxu0 %v2491
  %3973 = vmatprep.subr.bf16.mxu0 %v2496
  %3974 = vmatpush1.bf16.msra.mxu0 %v2495
  %3975 = vmatprep.subr.bf16.mxu0 %v2500
  %3976 = vmatpush1.bf16.msra.mxu0 %v2499
  %3977 = vmatprep.subr.bf16.mxu0 %v2504
  %3978 = vmatpush1.bf16.msra.mxu0 %v2503
  %3979 = vmatprep.subr.bf16.mxu0 %v2508
  %3980 = vmatpush1.bf16.msra.mxu0 %v2507
  %3981 = vmatprep.subr.bf16.mxu0 %v2512
  %3982 = vmatpush1.bf16.msra.mxu0 %v2511
  %3983 = vmatprep.subr.bf16.mxu0 %v2516
  %3984 = vmatpush1.bf16.msra.mxu0 %v2515
  %3985 = vmatprep.subr.bf16.mxu0 %v2520
  %3986 = vmatpush1.bf16.msra.mxu0 %v2519
  %3987 = vmatprep.mubr.bf16.mxu0 %v632
  %3988 = vmatmul.mubr.bf16.gmra.mrb[0].mxu0 %v631
  %v3989 = vpop.f32.mrb[0].mxu0
  %v3990 = vadd.f32 %v3949, %v3989
  %v3991 = vpop.f32.mrb[0].mxu0
  %v3992 = vadd.f32 %v3951, %v3991
  %v3993 = vpop.f32.mrb[0].mxu0
  %v3994 = vpop.f32.mrb[0].mxu0
  %3995 = vdwg.mxu0
  %3996 = vmatprep.subr.bf16.mxu0 %v2524
  %3997 = vmatpush1.bf16.msra.mxu0 %v2523
  %3998 = vmatprep.subr.bf16.mxu0 %v2528
  %3999 = vmatpush1.bf16.msra.mxu0 %v2527
  %4000 = vmatprep.subr.bf16.mxu0 %v2532
  %4001 = vmatpush1.bf16.msra.mxu0 %v2531
  %4002 = vmatprep.subr.bf16.mxu0 %v2536
  %4003 = vmatpush1.bf16.msra.mxu0 %v2535
  %4004 = vmatprep.subr.bf16.mxu0 %v2540
  %4005 = vmatpush1.bf16.msra.mxu0 %v2539
  %4006 = vmatprep.subr.bf16.mxu0 %v2544
  %4007 = vmatpush1.bf16.msra.mxu0 %v2543
  %4008 = vmatprep.subr.bf16.mxu0 %v2548
  %4009 = vmatpush1.bf16.msra.mxu0 %v2547
  %4010 = vmatprep.subr.bf16.mxu0 %v2552
  %4011 = vmatpush1.bf16.msra.mxu0 %v2551
  %4012 = vmatprep.subr.bf16.mxu0 %v2556
  %4013 = vmatpush1.bf16.msra.mxu0 %v2555
  %4014 = vmatprep.subr.bf16.mxu0 %v2560
  %4015 = vmatpush1.bf16.msra.mxu0 %v2559
  %4016 = vmatprep.subr.bf16.mxu0 %v2564
  %4017 = vmatpush1.bf16.msra.mxu0 %v2563
  %4018 = vmatprep.subr.bf16.mxu0 %v2568
  %4019 = vmatpush1.bf16.msra.mxu0 %v2567
  %4020 = vmatprep.subr.bf16.mxu0 %v2572
  %4021 = vmatpush1.bf16.msra.mxu0 %v2571
  %4022 = vmatprep.subr.bf16.mxu0 %v2576
  %4023 = vmatpush1.bf16.msra.mxu0 %v2575
  %4024 = vmatprep.subr.bf16.mxu0 %v2580
  %4025 = vmatpush1.bf16.msra.mxu0 %v2579
  %4026 = vmatprep.subr.bf16.mxu0 %v2584
  %4027 = vmatpush1.bf16.msra.mxu0 %v2583
  %4028 = vmatprep.mubr.bf16.mxu0 %v634
  %4029 = vmatmul.mubr.bf16.gmra.mrb[0].mxu0 %v633
  %v4030 = vpop.f32.mrb[0].mxu0
  %v4031 = vadd.f32 %v3990, %v4030
  %v4032 = vpop.f32.mrb[0].mxu0
  %v4033 = vadd.f32 %v3992, %v4032
  %v4034 = vpop.f32.mrb[0].mxu0
  %v4035 = vpop.f32.mrb[0].mxu0
  %4036 = vdwg.mxu0
  %4037 = vmatprep.subr.bf16.mxu0 %v2588
  %4038 = vmatpush1.bf16.msra.mxu0 %v2587
  %4039 = vmatprep.subr.bf16.mxu0 %v2592
  %4040 = vmatpush1.bf16.msra.mxu0 %v2591
  %4041 = vmatprep.subr.bf16.mxu0 %v2596
  %4042 = vmatpush1.bf16.msra.mxu0 %v2595
  %4043 = vmatprep.subr.bf16.mxu0 %v2600
  %4044 = vmatpush1.bf16.msra.mxu0 %v2599
  %4045 = vmatprep.subr.bf16.mxu0 %v2604
  %4046 = vmatpush1.bf16.msra.mxu0 %v2603
  %4047 = vmatprep.subr.bf16.mxu0 %v2608
  %4048 = vmatpush1.bf16.msra.mxu0 %v2607
  %4049 = vmatprep.subr.bf16.mxu0 %v2612
  %4050 = vmatpush1.bf16.msra.mxu0 %v2611
  %4051 = vmatprep.subr.bf16.mxu0 %v2616
  %4052 = vmatpush1.bf16.msra.mxu0 %v2615
  %4053 = vmatprep.subr.bf16.mxu0 %v2620
  %4054 = vmatpush1.bf16.msra.mxu0 %v2619
  %4055 = vmatprep.subr.bf16.mxu0 %v2624
  %4056 = vmatpush1.bf16.msra.mxu0 %v2623
  %4057 = vmatprep.subr.bf16.mxu0 %v2628
  %4058 = vmatpush1.bf16.msra.mxu0 %v2627
  %4059 = vmatprep.subr.bf16.mxu0 %v2632
  %4060 = vmatpush1.bf16.msra.mxu0 %v2631
  %4061 = vmatprep.subr.bf16.mxu0 %v2636
  %4062 = vmatpush1.bf16.msra.mxu0 %v2635
  %4063 = vmatprep.subr.bf16.mxu0 %v2640
  %4064 = vmatpush1.bf16.msra.mxu0 %v2639
  %4065 = vmatprep.subr.bf16.mxu0 %v2644
  %4066 = vmatpush1.bf16.msra.mxu0 %v2643
  %4067 = vmatprep.subr.bf16.mxu0 %v2648
  %4068 = vmatpush1.bf16.msra.mxu0 %v2647
  %4069 = vmatprep.mubr.bf16.mxu0 %v636
  %4070 = vmatmul.mubr.bf16.gmra.mrb[0].mxu0 %v635
  %v4071 = vpop.f32.mrb[0].mxu0
  %v4072 = vadd.f32 %v4031, %v4071
  %v4073 = vpop.f32.mrb[0].mxu0
  %v4074 = vadd.f32 %v4033, %v4073
  %v4075 = vpop.f32.mrb[0].mxu0
  %v4076 = vpop.f32.mrb[0].mxu0
  %4077 = vdwg.mxu0
  %4078 = vmatprep.subr.bf16.mxu0 %v2652
  %4079 = vmatpush1.bf16.msra.mxu0 %v2651
  %4080 = vmatprep.subr.bf16.mxu0 %v2656
  %4081 = vmatpush1.bf16.msra.mxu0 %v2655
  %4082 = vmatprep.subr.bf16.mxu0 %v2660
  %4083 = vmatpush1.bf16.msra.mxu0 %v2659
  %4084 = vmatprep.subr.bf16.mxu0 %v2664
  %4085 = vmatpush1.bf16.msra.mxu0 %v2663
  %4086 = vmatprep.subr.bf16.mxu0 %v2668
  %4087 = vmatpush1.bf16.msra.mxu0 %v2667
  %4088 = vmatprep.subr.bf16.mxu0 %v2672
  %4089 = vmatpush1.bf16.msra.mxu0 %v2671
  %4090 = vmatprep.subr.bf16.mxu0 %v2676
  %4091 = vmatpush1.bf16.msra.mxu0 %v2675
  %4092 = vmatprep.subr.bf16.mxu0 %v2680
  %4093 = vmatpush1.bf16.msra.mxu0 %v2679
  %4094 = vmatprep.subr.bf16.mxu0 %v2684
  %4095 = vmatpush1.bf16.msra.mxu0 %v2683
  %4096 = vmatprep.subr.bf16.mxu0 %v2688
  %4097 = vmatpush1.bf16.msra.mxu0 %v2687
  %4098 = vmatprep.subr.bf16.mxu0 %v2692
  %4099 = vmatpush1.bf16.msra.mxu0 %v2691
  %4100 = vmatprep.subr.bf16.mxu0 %v2696
  %4101 = vmatpush1.bf16.msra.mxu0 %v2695
  %4102 = vmatprep.subr.bf16.mxu0 %v2700
  %4103 = vmatpush1.bf16.msra.mxu0 %v2699
  %4104 = vmatprep.subr.bf16.mxu0 %v2704
  %4105 = vmatpush1.bf16.msra.mxu0 %v2703
  %4106 = vmatprep.subr.bf16.mxu0 %v2708
  %4107 = vmatpush1.bf16.msra.mxu0 %v2707
  %4108 = vmatprep.subr.bf16.mxu0 %v2712
  %4109 = vmatpush1.bf16.msra.mxu0 %v2711
  %4110 = vmatprep.mubr.bf16.mxu0 %v638
  %4111 = vmatmul.mubr.bf16.gmra.mrb[0].mxu0 %v637
  %v4112 = vpop.f32.mrb[0].mxu0
  %v4113 = vadd.f32 %v4072, %v4112
  %v4114 = vpop.f32.mrb[0].mxu0
  %v4115 = vadd.f32 %v4074, %v4114
  %v4116 = vpop.f32.mrb[0].mxu0
  %v4117 = vpop.f32.mrb[0].mxu0
  %4118 = vdwg.mxu0
  %4119 = vmatprep.subr.bf16.mxu0 %v2716
  %4120 = vmatpush1.bf16.msra.mxu0 %v2715
  %4121 = vmatprep.subr.bf16.mxu0 %v2720
  %4122 = vmatpush1.bf16.msra.mxu0 %v2719
  %4123 = vmatprep.subr.bf16.mxu0 %v2724
  %4124 = vmatpush1.bf16.msra.mxu0 %v2723
  %4125 = vmatprep.subr.bf16.mxu0 %v2728
  %4126 = vmatpush1.bf16.msra.mxu0 %v2727
  %4127 = vmatprep.subr.bf16.mxu0 %v2732
  %4128 = vmatpush1.bf16.msra.mxu0 %v2731
  %4129 = vmatprep.subr.bf16.mxu0 %v2736
  %4130 = vmatpush1.bf16.msra.mxu0 %v2735
  %4131 = vmatprep.subr.bf16.mxu0 %v2740
  %4132 = vmatpush1.bf16.msra.mxu0 %v2739
  %4133 = vmatprep.subr.bf16.mxu0 %v2744
  %4134 = vmatpush1.bf16.msra.mxu0 %v2743
  %4135 = vmatprep.subr.bf16.mxu0 %v2748
  %4136 = vmatpush1.bf16.msra.mxu0 %v2747
  %4137 = vmatprep.subr.bf16.mxu0 %v2752
  %4138 = vmatpush1.bf16.msra.mxu0 %v2751
  %4139 = vmatprep.subr.bf16.mxu0 %v2756
  %4140 = vmatpush1.bf16.msra.mxu0 %v2755
  %4141 = vmatprep.subr.bf16.mxu0 %v2760
  %4142 = vmatpush1.bf16.msra.mxu0 %v2759
  %4143 = vmatprep.subr.bf16.mxu0 %v2764
  %4144 = vmatpush1.bf16.msra.mxu0 %v2763
  %4145 = vmatprep.subr.bf16.mxu0 %v2768
  %4146 = vmatpush1.bf16.msra.mxu0 %v2767
  %4147 = vmatprep.subr.bf16.mxu0 %v2772
  %4148 = vmatpush1.bf16.msra.mxu0 %v2771
  %4149 = vmatprep.subr.bf16.mxu0 %v2776
  %4150 = vmatpush1.bf16.msra.mxu0 %v2775
  %4151 = vmatprep.mubr.bf16.mxu0 %v640
  %4152 = vmatmul.mubr.bf16.gmra.mrb[0].mxu0 %v639
  %v4153 = vpop.f32.mrb[0].mxu0
  %v4154 = vadd.f32 %v4113, %v4153
  %v4155 = vpop.f32.mrb[0].mxu0
  %v4156 = vadd.f32 %v4115, %v4155
  %v4157 = vpop.f32.mrb[0].mxu0
  %v4158 = vpop.f32.mrb[0].mxu0
  %4159 = vdwg.mxu0
  %4160 = vmatprep.subr.bf16.mxu0 %v2780
  %4161 = vmatpush1.bf16.msra.mxu0 %v2779
  %4162 = vmatprep.subr.bf16.mxu0 %v2784
  %4163 = vmatpush1.bf16.msra.mxu0 %v2783
  %4164 = vmatprep.subr.bf16.mxu0 %v2788
  %4165 = vmatpush1.bf16.msra.mxu0 %v2787
  %4166 = vmatprep.subr.bf16.mxu0 %v2792
  %4167 = vmatpush1.bf16.msra.mxu0 %v2791
  %4168 = vmatprep.subr.bf16.mxu0 %v2796
  %4169 = vmatpush1.bf16.msra.mxu0 %v2795
  %4170 = vmatprep.subr.bf16.mxu0 %v2800
  %4171 = vmatpush1.bf16.msra.mxu0 %v2799
  %4172 = vmatprep.subr.bf16.mxu0 %v2804
  %4173 = vmatpush1.bf16.msra.mxu0 %v2803
  %4174 = vmatprep.subr.bf16.mxu0 %v2808
  %4175 = vmatpush1.bf16.msra.mxu0 %v2807
  %4176 = vmatprep.subr.bf16.mxu0 %v2812
  %4177 = vmatpush1.bf16.msra.mxu0 %v2811
  %4178 = vmatprep.subr.bf16.mxu0 %v2816
  %4179 = vmatpush1.bf16.msra.mxu0 %v2815
  %4180 = vmatprep.subr.bf16.mxu0 %v2820
  %4181 = vmatpush1.bf16.msra.mxu0 %v2819
  %4182 = vmatprep.subr.bf16.mxu0 %v2824
  %4183 = vmatpush1.bf16.msra.mxu0 %v2823
  %4184 = vmatprep.subr.bf16.mxu0 %v2828
  %4185 = vmatpush1.bf16.msra.mxu0 %v2827
  %4186 = vmatprep.subr.bf16.mxu0 %v2832
  %4187 = vmatpush1.bf16.msra.mxu0 %v2831
  %4188 = vmatprep.subr.bf16.mxu0 %v2836
  %4189 = vmatpush1.bf16.msra.mxu0 %v2835
  %4190 = vmatprep.subr.bf16.mxu0 %v2840
  %4191 = vmatpush1.bf16.msra.mxu0 %v2839
  %4192 = vmatprep.mubr.bf16.mxu0 %v642
  %4193 = vmatmul.mubr.bf16.gmra.mrb[0].mxu0 %v641
  %v4194 = vpop.f32.mrb[0].mxu0
  %v4195 = vadd.f32 %v4154, %v4194
  %v4196 = vpop.f32.mrb[0].mxu0
  %v4197 = vadd.f32 %v4156, %v4196
  %v4198 = vpop.f32.mrb[0].mxu0
  %v4199 = vpop.f32.mrb[0].mxu0
  %4200 = vdwg.mxu0
  %4201 = vmatprep.subr.bf16.mxu0 %v2844
  %4202 = vmatpush1.bf16.msra.mxu0 %v2843
  %4203 = vmatprep.subr.bf16.mxu0 %v2848
  %4204 = vmatpush1.bf16.msra.mxu0 %v2847
  %4205 = vmatprep.subr.bf16.mxu0 %v2852
  %4206 = vmatpush1.bf16.msra.mxu0 %v2851
  %4207 = vmatprep.subr.bf16.mxu0 %v2856
  %4208 = vmatpush1.bf16.msra.mxu0 %v2855
  %4209 = vmatprep.subr.bf16.mxu0 %v2860
  %4210 = vmatpush1.bf16.msra.mxu0 %v2859
  %4211 = vmatprep.subr.bf16.mxu0 %v2864
  %4212 = vmatpush1.bf16.msra.mxu0 %v2863
  %4213 = vmatprep.subr.bf16.mxu0 %v2868
  %4214 = vmatpush1.bf16.msra.mxu0 %v2867
  %4215 = vmatprep.subr.bf16.mxu0 %v2872
  %4216 = vmatpush1.bf16.msra.mxu0 %v2871
  %4217 = vmatprep.subr.bf16.mxu0 %v2876
  %4218 = vmatpush1.bf16.msra.mxu0 %v2875
  %4219 = vmatprep.subr.bf16.mxu0 %v2880
  %4220 = vmatpush1.bf16.msra.mxu0 %v2879
  %4221 = vmatprep.subr.bf16.mxu0 %v2884
  %4222 = vmatpush1.bf16.msra.mxu0 %v2883
  %4223 = vmatprep.subr.bf16.mxu0 %v2888
  %4224 = vmatpush1.bf16.msra.mxu0 %v2887
  %4225 = vmatprep.subr.bf16.mxu0 %v2892
  %4226 = vmatpush1.bf16.msra.mxu0 %v2891
  %4227 = vmatprep.subr.bf16.mxu0 %v2896
  %4228 = vmatpush1.bf16.msra.mxu0 %v2895
  %4229 = vmatprep.subr.bf16.mxu0 %v2900
  %4230 = vmatpush1.bf16.msra.mxu0 %v2899
  %4231 = vmatprep.subr.bf16.mxu0 %v2904
  %4232 = vmatpush1.bf16.msra.mxu0 %v2903
  %4233 = vmatprep.mubr.bf16.mxu0 %v644
  %4234 = vmatmul.mubr.bf16.gmra.mrb[0].mxu0 %v643
  %v4235 = vpop.f32.mrb[0].mxu0
  %v4236 = vadd.f32 %v4195, %v4235
  %v4237 = vpop.f32.mrb[0].mxu0
  %v4238 = vadd.f32 %v4197, %v4237
  %v4239 = vpop.f32.mrb[0].mxu0
  %v4240 = vpop.f32.mrb[0].mxu0
  %4241 = vdwg.mxu0
  %4242 = vmatprep.subr.bf16.mxu0 %v2908
  %4243 = vmatpush1.bf16.msra.mxu0 %v2907
  %4244 = vmatprep.subr.bf16.mxu0 %v2912
  %4245 = vmatpush1.bf16.msra.mxu0 %v2911
  %4246 = vmatprep.subr.bf16.mxu0 %v2916
  %4247 = vmatpush1.bf16.msra.mxu0 %v2915
  %4248 = vmatprep.subr.bf16.mxu0 %v2920
  %4249 = vmatpush1.bf16.msra.mxu0 %v2919
  %4250 = vmatprep.subr.bf16.mxu0 %v2924
  %4251 = vmatpush1.bf16.msra.mxu0 %v2923
  %4252 = vmatprep.subr.bf16.mxu0 %v2928
  %4253 = vmatpush1.bf16.msra.mxu0 %v2927
  %4254 = vmatprep.subr.bf16.mxu0 %v2932
  %4255 = vmatpush1.bf16.msra.mxu0 %v2931
  %4256 = vmatprep.subr.bf16.mxu0 %v2936
  %4257 = vmatpush1.bf16.msra.mxu0 %v2935
  %4258 = vmatprep.subr.bf16.mxu0 %v2940
  %4259 = vmatpush1.bf16.msra.mxu0 %v2939
  %4260 = vmatprep.subr.bf16.mxu0 %v2944
  %4261 = vmatpush1.bf16.msra.mxu0 %v2943
  %4262 = vmatprep.subr.bf16.mxu0 %v2948
  %4263 = vmatpush1.bf16.msra.mxu0 %v2947
  %4264 = vmatprep.subr.bf16.mxu0 %v2952
  %4265 = vmatpush1.bf16.msra.mxu0 %v2951
  %4266 = vmatprep.subr.bf16.mxu0 %v2956
  %4267 = vmatpush1.bf16.msra.mxu0 %v2955
  %4268 = vmatprep.subr.bf16.mxu0 %v2960
  %4269 = vmatpush1.bf16.msra.mxu0 %v2959
  %4270 = vmatprep.subr.bf16.mxu0 %v2964
  %4271 = vmatpush1.bf16.msra.mxu0 %v2963
  %4272 = vmatprep.subr.bf16.mxu0 %v2968
  %4273 = vmatpush1.bf16.msra.mxu0 %v2967
  %4274 = vmatprep.mubr.bf16.mxu0 %v646
  %4275 = vmatmul.mubr.bf16.gmra.mrb[0].mxu0 %v645
  %v4276 = vpop.f32.mrb[0].mxu0
  %v4277 = vadd.f32 %v4236, %v4276
  %v4278 = vpop.f32.mrb[0].mxu0
  %v4279 = vadd.f32 %v4238, %v4278
  %v4280 = vpop.f32.mrb[0].mxu0
  %v4281 = vpop.f32.mrb[0].mxu0
  %4282 = vdwg.mxu0
  %v4283 = vld [vmem:[%s2] sm:$0xf]
  %v4285 = vlaneseq
  %v4286 = vshrl.u32 %v4285, 7
  %v4287 = vsub.s32 0, %v4286
  %v4288 = vrot.slane %v4283, %v4287
  %v4289 = vlaneseq
  %v4290 = vshrl.u32 %v4289, 7
  %v4291 = vsub.s32 1, %v4290
  %v4292 = vrot.slane %v4283, %v4291
  %v4293 = vlaneseq
  %v4294 = vshrl.u32 %v4293, 7
  %v4295 = vsub.s32 2, %v4294
  %v4296 = vrot.slane %v4283, %v4295
  %v4297 = vlaneseq
  %v4298 = vshrl.u32 %v4297, 7
  %v4299 = vsub.s32 3, %v4298
  %v4300 = vrot.slane %v4283, %v4299
  %v4305 = vmul.f32 %v3908, %v4288
  %v4306 = vmul.f32 %v3910, %v4292
  %v4307 = vmul.f32 %v4277, %v4296
  %v4308 = vmul.f32 %v4279, %v4300
  %v4309 = vld [vmem:[%s3] sm:$0xf]
  %v4311 = vlaneseq
  %v4312 = vshrl.u32 %v4311, 7
  %v4313 = vsub.s32 0, %v4312
  %v4314 = vrot.slane %v4309, %v4313
  %v4315 = vlaneseq
  %v4316 = vshrl.u32 %v4315, 7
  %v4317 = vsub.s32 1, %v4316
  %v4318 = vrot.slane %v4309, %v4317
  %v4319 = vlaneseq
  %v4320 = vshrl.u32 %v4319, 7
  %v4321 = vsub.s32 2, %v4320
  %v4322 = vrot.slane %v4309, %v4321
  %v4323 = vlaneseq
  %v4324 = vshrl.u32 %v4323, 7
  %v4325 = vsub.s32 3, %v4324
  %v4326 = vrot.slane %v4309, %v4325
  %v4331 = vadd.f32 %v4305, %v4314
  %v4332 = vadd.f32 %v4306, %v4318
  %v4333 = vadd.f32 %v4307, %v4322
  %v4334 = vadd.f32 %v4308, %v4326
  %v4335 = vmax.f32 %v4331, 0.0
  %v4336 = vmax.f32 %v4332, 0.0
  %v4337 = vmax.f32 %v4333, 0.0
  %v4338 = vmax.f32 %v4334, 0.0
  %v4339 = vpack.c.bf16 %v4335, %v4335
  %v4340 = vpack.c.bf16 %v4336, %v4336
  %v4341 = vpack.c.bf16 %v4337, %v4337
  %v4342 = vpack.c.bf16 %v4338, %v4338
  %v4347 = vunpack.c.l.b16 %v4339
  %v4348 = vunpack.c.l.b16 %v4340
  %v4349 = vunpack.c.l.b16 %v4341
  %v4350 = vunpack.c.l.b16 %v4342
  %v4351 = vpack.c.b16 %v4348, %v4347
  %v4352 = vpack.c.b16 %v4350, %v4349
  %4355 = vst [vmem:[%s4] sm:$0xff] %v4351
  %4356 = vst [vmem:[%s4 + $0x8] sm:$0xff] %v4352
  // Predicated region
  $region18: #{discriminator_forward.14} parent=0 // pred_check
    _
  $region19: #{discriminator_forward.14} parent=0 // pred_check_branch
    %4358 = sbr.rel (0) target = $region21
  $region20: #{discriminator_forward.14} parent=0 // pred_region
    _
  $region21: #{discriminator_forward.14} parent=0 // pred_fallthru
    _
  // Predicated region
  $region22: #{discriminator_forward.14} parent=0 // pred_check
    _
  $region23: #{discriminator_forward.14} parent=0 // pred_check_branch
    %4360 = sbr.rel (0) target = $region25
  $region24: #{discriminator_forward.14} parent=0 // pred_region
    _
  $region25: #{discriminator_forward.14} parent=0 // pred_fallthru
    _

</llo_original>
